<compile_context>
chip_gen: v5e
topology: v5e:2x2
jax: 0.10.0
libtpu: 0.0.40
codegen_flags: <defaults>
</compile_context>

<pallas_src>
import functools

import jax
import jax.numpy as jnp
from jax.experimental import pallas as pl
from jax.experimental.pallas import tpu as pltpu

_BN_EPS = 1e-5
_CPAD = 128      # output channels padded to one full lane tile (lane-dense stores)


# ---------------------------------------------------------------------------
# Fused kernel: conv1(matmul) + bn1 + relu + conv2(wide-K matmul via in-VMEM
# im2col) + bn2 + residual + relu.  BT images per grid step.
# ---------------------------------------------------------------------------
def _fused_block_kernel(p1_ref, w1_ref, b1_ref, w2_ref, b2_ref, res_ref,
                        o_ref, pad_ref, col_ref, *, bt, ho, wo):
    m = ho * wo
    c = _CPAD
    rows = bt * m

    # ---- conv1: ONE (bt*m, 9*Cin) x (9*Cin, 128) bf16 matmul + bn1 + relu ---
    x1 = p1_ref[...].reshape(rows, p1_ref.shape[-1])
    acc1 = jnp.dot(x1, w1_ref[...], preferred_element_type=jnp.float32)
    out1 = jnp.maximum(acc1 + b1_ref[...], 0.0).astype(jnp.bfloat16)
    out1 = out1.reshape(bt, ho, wo, c)          # padded channels are exactly 0

    # ---- stage out1 into a spatially zero-padded bf16 halo scratch ----------
    # Only the 1-wide border strips are zeroed each step (interior is fully
    # overwritten).  A program_id==0-gated init would be wrong: under
    # ("parallel",) semantics each TensorCore owns its own scratch.
    zrow = jnp.zeros((1, wo + 2, c), jnp.bfloat16)
    zcol = jnp.zeros((ho, 1, c), jnp.bfloat16)
    for b in range(bt):
        pad_ref[b, 0:1, :, :] = zrow
        pad_ref[b, ho + 1:ho + 2, :, :] = zrow
        pad_ref[b, 1:1 + ho, 0:1, :] = zcol
        pad_ref[b, 1:1 + ho, wo + 1:wo + 2, :] = zcol
        pad_ref[b, 1:1 + ho, 1:1 + wo, :] = out1[b]

    # ---- build conv2 im2col ONCE (each tap lands on a lane-aligned 128-wide
    #      block), already bf16 so no per-tap casts ----------------------------
    for b in range(bt):
        for kh in range(3):
            for kw in range(3):
                kt = kh * 3 + kw
                col_ref[b, :, kt * c:(kt + 1) * c] = (
                    pad_ref[b, kh:kh + ho, kw:kw + wo, :].reshape(m, c))

    # ---- conv2 as ONE wide-K matmul (K = 9*128 = 1152 fills the 256-deep
    #      MXU) + bn2 bias + residual + relu -----------------------------------
    acc2 = jnp.dot(col_ref[...].reshape(rows, 9 * c), w2_ref[...],
                   preferred_element_type=jnp.float32)
    res = res_ref[...].reshape(rows, c).astype(jnp.float32)
    out2 = jnp.maximum(acc2 + b2_ref[...] + res, 0.0)
    o_ref[...] = out2.reshape(bt, m, c).astype(o_ref.dtype)


# ---------------------------------------------------------------------------
# Wrapper glue: im2col for conv1 (bf16), BN folding, option-A shortcut.
# ---------------------------------------------------------------------------
def _im2col_3x3(x_nhwc, stride):
    n, h, w, cin = x_nhwc.shape
    xp = jnp.pad(x_nhwc, ((0, 0), (1, 1), (1, 1), (0, 0)))
    ho = (h + 2 - 3) // stride + 1
    wo = (w + 2 - 3) // stride + 1
    cols = []
    for kh in range(3):
        for kw in range(3):
            cols.append(xp[:, kh:kh + stride * (ho - 1) + 1:stride,
                              kw:kw + stride * (wo - 1) + 1:stride, :])
    patches = jnp.concatenate(cols, axis=-1)               # (N, Ho, Wo, 9*Cin)
    return patches.reshape(n, ho * wo, 9 * cin), ho, wo


def _fold_bn(gamma, beta, mean, var):
    scale = gamma / jnp.sqrt(var + _BN_EPS)
    return scale, beta - mean * scale


def _pick_bt(n, m, target_rows=512):
    """Largest batch tile with bt*m <= target_rows, keeping >=2 grid steps."""
    divs = [d for d in range(1, n + 1) if n % d == 0]
    good = [d for d in divs if d * m <= target_rows and n // d >= 2]
    if good:
        return max(good)
    ok = [d for d in divs if d * m <= target_rows]
    return max(ok) if ok else 1


@functools.partial(jax.jit, static_argnames=("in_planes", "planes", "stride"))
def maddness_basic_block(x_nchw, params, *, in_planes, planes, stride):
    assert planes <= _CPAD, "channel padding scheme assumes planes <= 128"
    n = x_nchw.shape[0]
    x_nhwc = jnp.transpose(x_nchw, (0, 2, 3, 1))

    # conv1 im2col (wrapper side, bf16 so the HBM intermediate is half size).
    p1, ho, wo = _im2col_3x3(x_nhwc.astype(jnp.bfloat16), stride)
    m = ho * wo
    k1 = 9 * in_planes

    # Fold BN scale into the conv weights; keep only bias vectors.
    s1, b1 = _fold_bn(params["bn1_gamma"], params["bn1_beta"],
                      params["bn1_mean"], params["bn1_var"])
    s2, b2 = _fold_bn(params["bn2_gamma"], params["bn2_beta"],
                      params["bn2_mean"], params["bn2_var"])

    w1m = jnp.transpose(params["conv1_w"], (2, 3, 1, 0)).reshape(k1, planes)
    w1m = jnp.pad(w1m * s1[None, :],
                  ((0, 0), (0, _CPAD - planes))).astype(jnp.bfloat16)
    b1p = jnp.pad(b1, (0, _CPAD - planes)).reshape(1, _CPAD).astype(jnp.float32)

    w2m = jnp.transpose(params["conv2_w"], (2, 3, 1, 0)).reshape(9, planes, planes)
    w2m = jnp.pad(w2m * s2[None, None, :],
                  ((0, 0), (0, _CPAD - planes), (0, _CPAD - planes)))
    w2m = w2m.reshape(9 * _CPAD, _CPAD).astype(jnp.bfloat16)   # wide-K weight
    b2p = jnp.pad(b2, (0, _CPAD - planes)).reshape(1, _CPAD).astype(jnp.float32)

    # Shortcut (option A when shapes change), NHWC, channel-padded, bf16.
    if stride != 1 or in_planes != planes:
        sc = x_nhwc[:, ::2, ::2, :]                           # (N, Ho, Wo, Cin)
        lo = planes // 4
        res = jnp.pad(sc, ((0, 0), (0, 0), (0, 0), (lo, _CPAD - in_planes - lo)))
    else:
        res = jnp.pad(x_nhwc, ((0, 0), (0, 0), (0, 0), (0, _CPAD - planes)))
    res = res.reshape(n, m, _CPAD).astype(jnp.bfloat16)

    bt = _pick_bt(n, m)
    out = pl.pallas_call(
        functools.partial(_fused_block_kernel, bt=bt, ho=ho, wo=wo),
        out_shape=jax.ShapeDtypeStruct((n, m, _CPAD), jnp.bfloat16),
        grid=(n // bt,),
        in_specs=[
            pl.BlockSpec((bt, m, k1), lambda i: (i, 0, 0)),          # conv1 patches
            pl.BlockSpec((k1, _CPAD), lambda i: (0, 0)),             # conv1 weight (bn1-scaled)
            pl.BlockSpec((1, _CPAD), lambda i: (0, 0)),              # bn1 bias
            pl.BlockSpec((9 * _CPAD, _CPAD), lambda i: (0, 0)),      # conv2 wide-K weight
            pl.BlockSpec((1, _CPAD), lambda i: (0, 0)),              # bn2 bias
            pl.BlockSpec((bt, m, _CPAD), lambda i: (i, 0, 0)),       # residual (bf16)
        ],
        out_specs=pl.BlockSpec((bt, m, _CPAD), lambda i: (i, 0, 0)),
        scratch_shapes=[
            pltpu.VMEM((bt, ho + 2, wo + 2, _CPAD), jnp.bfloat16),   # halo scratch
            pltpu.VMEM((bt, m, 9 * _CPAD), jnp.bfloat16),            # conv2 im2col
        ],
        compiler_params=pltpu.CompilerParams(dimension_semantics=("parallel",)),
    )(p1, w1m, b1p, w2m, b2p, res)

    out = out[:, :, :planes].astype(jnp.float32).reshape(n, ho, wo, planes)
    return jnp.transpose(out, (0, 3, 1, 2))


# ---------------------------------------------------------------------------
# Pure-JAX reference (correctness check)
# ---------------------------------------------------------------------------
def _shortcut_option_a(x_nchw, planes):
    xs = x_nchw[:, :, ::2, ::2]
    p = planes // 4
    return jnp.pad(xs, ((0, 0), (p, p), (0, 0), (0, 0)))


def _reference(x_nchw, params, in_planes, planes, stride):
    def conv(x, w, s):
        return jax.lax.conv_general_dilated(
            x, w, window_strides=(s, s), padding=((1, 1), (1, 1)),
            dimension_numbers=("NCHW", "OIHW", "NCHW"))

    def bn(x, g, b, m, v):
        return (x - m[None, :, None, None]) / jnp.sqrt(v[None, :, None, None] + _BN_EPS) \
            * g[None, :, None, None] + b[None, :, None, None]

    out = jax.nn.relu(bn(conv(x_nchw, params["conv1_w"], stride),
                         params["bn1_gamma"], params["bn1_beta"],
                         params["bn1_mean"], params["bn1_var"]))
    out = bn(conv(out, params["conv2_w"], 1),
             params["bn2_gamma"], params["bn2_beta"],
             params["bn2_mean"], params["bn2_var"])
    if stride != 1 or in_planes != planes:
        out = out + _shortcut_option_a(x_nchw, planes)
    else:
        out = out + x_nchw
    return jax.nn.relu(out)


def _init_params(key, in_planes, planes):
    ks = jax.random.split(key, 10)
    return {
        "conv1_w": 0.1 * jax.random.normal(ks[0], (planes, in_planes, 3, 3), jnp.float32),
        "conv2_w": 0.1 * jax.random.normal(ks[1], (planes, planes, 3, 3), jnp.float32),
        "bn1_gamma": 1.0 + 0.1 * jax.random.normal(ks[2], (planes,), jnp.float32),
        "bn1_beta": 0.1 * jax.random.normal(ks[3], (planes,), jnp.float32),
        "bn1_mean": 0.1 * jax.random.normal(ks[4], (planes,), jnp.float32),
        "bn1_var": 0.5 + jnp.abs(jax.random.normal(ks[5], (planes,), jnp.float32)),
        "bn2_gamma": 1.0 + 0.1 * jax.random.normal(ks[6], (planes,), jnp.float32),
        "bn2_beta": 0.1 * jax.random.normal(ks[7], (planes,), jnp.float32),
        "bn2_mean": 0.1 * jax.random.normal(ks[8], (planes,), jnp.float32),
        "bn2_var": 0.5 + jnp.abs(jax.random.normal(ks[9], (planes,), jnp.float32)),
    }


if __name__ == "__main__":
    key = jax.random.PRNGKey(0)

    # --- config 1: option-A downsampling block (stride 2, channel doubling) --
    in_planes, planes, stride = 16, 32, 2
    N, H, W = 8, 16, 16                      # N=8 so batch tiling (BT=4) kicks in
    kx, kp, key = jax.random.split(key, 3)
    x = jax.random.normal(kx, (N, in_planes, H, W), jnp.float32)   # NCHW like PyTorch
    params = _init_params(kp, in_planes, planes)

    out = jax.block_until_ready(
        maddness_basic_block(x, params, in_planes=in_planes, planes=planes, stride=stride))
    ref = jax.block_until_ready(_reference(x, params, in_planes, planes, stride))
    assert out.shape == (N, planes, H // stride, W // stride), out.shape
    err1 = float(jnp.max(jnp.abs(out - ref)))
    assert jnp.allclose(out, ref, atol=5e-2, rtol=5e-2), err1

    # --- config 2: identity-shortcut block (stride 1) ------------------------
    in_planes2, planes2, stride2 = 32, 32, 1
    kx2, kp2 = jax.random.split(key)
    x2 = jax.random.normal(kx2, (4, in_planes2, 8, 8), jnp.float32)
    params2 = _init_params(kp2, in_planes2, planes2)

    out2 = jax.block_until_ready(
        maddness_basic_block(x2, params2, in_planes=in_planes2, planes=planes2, stride=stride2))
    ref2 = jax.block_until_ready(_reference(x2, params2, in_planes2, planes2, stride2))
    assert out2.shape == (4, planes2, 8, 8), out2.shape
    err2 = float(jnp.max(jnp.abs(out2 - ref2)))
    assert jnp.allclose(out2, ref2, atol=5e-2, rtol=5e-2), err2

    print("KERNEL_OK")
</pallas_src>

<mosaic_0001>
module attributes {stable_mosaic.version = 11 : i64} {
  func.func @_fused_block_kernel(%arg0: i32, %arg1: memref<4x64x144xbf16, #tpu.memory_space<vmem>>, %arg2: memref<144x128xbf16, #tpu.memory_space<vmem>>, %arg3: memref<1x128xf32, #tpu.memory_space<vmem>>, %arg4: memref<1152x128xbf16, #tpu.memory_space<vmem>>, %arg5: memref<1x128xf32, #tpu.memory_space<vmem>>, %arg6: memref<4x64x128xbf16, #tpu.memory_space<vmem>>, %arg7: memref<4x64x128xbf16, #tpu.memory_space<vmem>>, %arg8: memref<4x10x10x128xbf16, #tpu.memory_space<vmem>>, %arg9: memref<4x64x1152xbf16, #tpu.memory_space<vmem>>) attributes {dimension_semantics = [#tpu.dimension_semantics<parallel>], iteration_bounds = array<i64: 2>, scalar_prefetch = 0 : i64, scratch_operands = 2 : i64, tpu.core_type = #tpu.core_type<tc>, window_params = [{transform_indices = @transform_0, window_bounds = array<i64: 4, 64, 144>}, {pipeline_mode = #tpu.pipeline_mode<synchronous>, transform_indices = @transform_1, window_bounds = array<i64: 144, 128>}, {pipeline_mode = #tpu.pipeline_mode<synchronous>, transform_indices = @transform_2, window_bounds = array<i64: 1, 128>}, {pipeline_mode = #tpu.pipeline_mode<synchronous>, transform_indices = @transform_3, window_bounds = array<i64: 1152, 128>}, {pipeline_mode = #tpu.pipeline_mode<synchronous>, transform_indices = @transform_4, window_bounds = array<i64: 1, 128>}, {transform_indices = @transform_5, window_bounds = array<i64: 4, 64, 128>}, {transform_indices = @transform_6, window_bounds = array<i64: 4, 64, 128>}]} {
    %c0 = arith.constant 0 : index
    %c0_0 = arith.constant 0 : index
    %c0_1 = arith.constant 0 : index
    %0 = vector.load %arg1[%c0, %c0_0, %c0_1] : memref<4x64x144xbf16, #tpu.memory_space<vmem>>, vector<4x64x144xbf16>
    %1 = vector.shape_cast %0 : vector<4x64x144xbf16> to vector<256x144xbf16>
    %c0_2 = arith.constant 0 : index
    %c0_3 = arith.constant 0 : index
    %2 = vector.load %arg2[%c0_2, %c0_3] : memref<144x128xbf16, #tpu.memory_space<vmem>>, vector<144x128xbf16>
    %cst = arith.constant dense<0.000000e+00> : vector<256x128xf32>
    %3 = tpu.matmul %1, %2, %cst {dimension_numbers = #tpu.dot_dimension_numbers<[1], [0], [0], [1], [0, 0, 1, 1], [], []>} : vector<256x144xbf16>, vector<144x128xbf16>, vector<256x128xf32> -> vector<256x128xf32>
    %c0_4 = arith.constant 0 : index
    %c0_5 = arith.constant 0 : index
    %4 = vector.load %arg3[%c0_4, %c0_5] : memref<1x128xf32, #tpu.memory_space<vmem>>, vector<1x128xf32>
    %5 = vector.broadcast %4 : vector<1x128xf32> to vector<256x128xf32>
    %6 = arith.addf %3, %5 : vector<256x128xf32>
    %cst_6 = arith.constant 0.000000e+00 : f32
    %7 = vector.broadcast %cst_6 : f32 to vector<256x128xf32>
    %8 = arith.maximumf %6, %7 : vector<256x128xf32>
    %9 = arith.truncf %8 : vector<256x128xf32> to vector<256x128xbf16>
    %10 = vector.shape_cast %9 : vector<256x128xbf16> to vector<4x8x8x128xbf16>
    %cst_7 = arith.constant 0.000000e+00 : bf16
    %11 = vector.broadcast %cst_7 : bf16 to vector<1x10x128xbf16>
    %cst_8 = arith.constant 0.000000e+00 : bf16
    %12 = vector.broadcast %cst_8 : bf16 to vector<8x1x128xbf16>
    %c0_9 = arith.constant 0 : index
    %c0_10 = arith.constant 0 : index
    %c0_11 = arith.constant 0 : index
    %c0_12 = arith.constant 0 : index
    %13 = vector.load %arg8[%c0_9, %c0_10, %c0_11, %c0_12] : memref<4x10x10x128xbf16, #tpu.memory_space<vmem>>, vector<1x1x10x128xbf16>
    %14 = vector.shape_cast %13 : vector<1x1x10x128xbf16> to vector<1x10x128xbf16>
    %15 = vector.shape_cast %11 : vector<1x10x128xbf16> to vector<1x1x10x128xbf16>
    tpu.vector_store %arg8[%c0_9, %c0_10, %c0_11, %c0_12], %15 {strides = array<i32>} : memref<4x10x10x128xbf16, #tpu.memory_space<vmem>>, vector<1x1x10x128xbf16>,
    %c0_13 = arith.constant 0 : index
    %c9 = arith.constant 9 : index
    %c0_14 = arith.constant 0 : index
    %c0_15 = arith.constant 0 : index
    %16 = vector.load %arg8[%c0_13, %c9, %c0_14, %c0_15] : memref<4x10x10x128xbf16, #tpu.memory_space<vmem>>, vector<1x1x10x128xbf16>
    %17 = vector.shape_cast %16 : vector<1x1x10x128xbf16> to vector<1x10x128xbf16>
    %18 = vector.shape_cast %11 : vector<1x10x128xbf16> to vector<1x1x10x128xbf16>
    tpu.vector_store %arg8[%c0_13, %c9, %c0_14, %c0_15], %18 {strides = array<i32>} : memref<4x10x10x128xbf16, #tpu.memory_space<vmem>>, vector<1x1x10x128xbf16>,
    %c0_16 = arith.constant 0 : index
    %c1 = arith.constant 1 : index
    %c0_17 = arith.constant 0 : index
    %c0_18 = arith.constant 0 : index
    %19 = vector.load %arg8[%c0_16, %c1, %c0_17, %c0_18] : memref<4x10x10x128xbf16, #tpu.memory_space<vmem>>, vector<1x8x1x128xbf16>
    %20 = vector.shape_cast %19 : vector<1x8x1x128xbf16> to vector<8x1x128xbf16>
    %21 = vector.shape_cast %12 : vector<8x1x128xbf16> to vector<1x8x1x128xbf16>
    tpu.vector_store %arg8[%c0_16, %c1, %c0_17, %c0_18], %21 {strides = array<i32>} : memref<4x10x10x128xbf16, #tpu.memory_space<vmem>>, vector<1x8x1x128xbf16>,
    %c0_19 = arith.constant 0 : index
    %c1_20 = arith.constant 1 : index
    %c9_21 = arith.constant 9 : index
    %c0_22 = arith.constant 0 : index
    %22 = vector.load %arg8[%c0_19, %c1_20, %c9_21, %c0_22] : memref<4x10x10x128xbf16, #tpu.memory_space<vmem>>, vector<1x8x1x128xbf16>
    %23 = vector.shape_cast %22 : vector<1x8x1x128xbf16> to vector<8x1x128xbf16>
    %24 = vector.shape_cast %12 : vector<8x1x128xbf16> to vector<1x8x1x128xbf16>
    tpu.vector_store %arg8[%c0_19, %c1_20, %c9_21, %c0_22], %24 {strides = array<i32>} : memref<4x10x10x128xbf16, #tpu.memory_space<vmem>>, vector<1x8x1x128xbf16>,
    %25 = vector.extract_strided_slice %10 {offsets = [0, 0, 0, 0], sizes = [1, 8, 8, 128], strides = [1, 1, 1, 1]} : vector<4x8x8x128xbf16> to vector<1x8x8x128xbf16>
    %26 = vector.shape_cast %25 : vector<1x8x8x128xbf16> to vector<8x8x128xbf16>
    %c0_23 = arith.constant 0 : index
    %c1_24 = arith.constant 1 : index
    %c1_25 = arith.constant 1 : index
    %c0_26 = arith.constant 0 : index
    %27 = vector.load %arg8[%c0_23, %c1_24, %c1_25, %c0_26] : memref<4x10x10x128xbf16, #tpu.memory_space<vmem>>, vector<1x8x8x128xbf16>
    %28 = vector.shape_cast %27 : vector<1x8x8x128xbf16> to vector<8x8x128xbf16>
    %29 = vector.shape_cast %26 : vector<8x8x128xbf16> to vector<1x8x8x128xbf16>
    tpu.vector_store %arg8[%c0_23, %c1_24, %c1_25, %c0_26], %29 {strides = array<i32>} : memref<4x10x10x128xbf16, #tpu.memory_space<vmem>>, vector<1x8x8x128xbf16>,
    %c1_27 = arith.constant 1 : index
    %c0_28 = arith.constant 0 : index
    %c0_29 = arith.constant 0 : index
    %c0_30 = arith.constant 0 : index
    %30 = vector.load %arg8[%c1_27, %c0_28, %c0_29, %c0_30] : memref<4x10x10x128xbf16, #tpu.memory_space<vmem>>, vector<1x1x10x128xbf16>
    %31 = vector.shape_cast %30 : vector<1x1x10x128xbf16> to vector<1x10x128xbf16>
    %32 = vector.shape_cast %11 : vector<1x10x128xbf16> to vector<1x1x10x128xbf16>
    tpu.vector_store %arg8[%c1_27, %c0_28, %c0_29, %c0_30], %32 {strides = array<i32>} : memref<4x10x10x128xbf16, #tpu.memory_space<vmem>>, vector<1x1x10x128xbf16>,
    %c1_31 = arith.constant 1 : index
    %c9_32 = arith.constant 9 : index
    %c0_33 = arith.constant 0 : index
    %c0_34 = arith.constant 0 : index
    %33 = vector.load %arg8[%c1_31, %c9_32, %c0_33, %c0_34] : memref<4x10x10x128xbf16, #tpu.memory_space<vmem>>, vector<1x1x10x128xbf16>
    %34 = vector.shape_cast %33 : vector<1x1x10x128xbf16> to vector<1x10x128xbf16>
    %35 = vector.shape_cast %11 : vector<1x10x128xbf16> to vector<1x1x10x128xbf16>
    tpu.vector_store %arg8[%c1_31, %c9_32, %c0_33, %c0_34], %35 {strides = array<i32>} : memref<4x10x10x128xbf16, #tpu.memory_space<vmem>>, vector<1x1x10x128xbf16>,
    %c1_35 = arith.constant 1 : index
    %c1_36 = arith.constant 1 : index
    %c0_37 = arith.constant 0 : index
    %c0_38 = arith.constant 0 : index
    %36 = vector.load %arg8[%c1_35, %c1_36, %c0_37, %c0_38] : memref<4x10x10x128xbf16, #tpu.memory_space<vmem>>, vector<1x8x1x128xbf16>
    %37 = vector.shape_cast %36 : vector<1x8x1x128xbf16> to vector<8x1x128xbf16>
    %38 = vector.shape_cast %12 : vector<8x1x128xbf16> to vector<1x8x1x128xbf16>
    tpu.vector_store %arg8[%c1_35, %c1_36, %c0_37, %c0_38], %38 {strides = array<i32>} : memref<4x10x10x128xbf16, #tpu.memory_space<vmem>>, vector<1x8x1x128xbf16>,
    %c1_39 = arith.constant 1 : index
    %c1_40 = arith.constant 1 : index
    %c9_41 = arith.constant 9 : index
    %c0_42 = arith.constant 0 : index
    %39 = vector.load %arg8[%c1_39, %c1_40, %c9_41, %c0_42] : memref<4x10x10x128xbf16, #tpu.memory_space<vmem>>, vector<1x8x1x128xbf16>
    %40 = vector.shape_cast %39 : vector<1x8x1x128xbf16> to vector<8x1x128xbf16>
    %41 = vector.shape_cast %12 : vector<8x1x128xbf16> to vector<1x8x1x128xbf16>
    tpu.vector_store %arg8[%c1_39, %c1_40, %c9_41, %c0_42], %41 {strides = array<i32>} : memref<4x10x10x128xbf16, #tpu.memory_space<vmem>>, vector<1x8x1x128xbf16>,
    %42 = vector.extract_strided_slice %10 {offsets = [1, 0, 0, 0], sizes = [1, 8, 8, 128], strides = [1, 1, 1, 1]} : vector<4x8x8x128xbf16> to vector<1x8x8x128xbf16>
    %43 = vector.shape_cast %42 : vector<1x8x8x128xbf16> to vector<8x8x128xbf16>
    %c1_43 = arith.constant 1 : index
    %c1_44 = arith.constant 1 : index
    %c1_45 = arith.constant 1 : index
    %c0_46 = arith.constant 0 : index
    %44 = vector.load %arg8[%c1_43, %c1_44, %c1_45, %c0_46] : memref<4x10x10x128xbf16, #tpu.memory_space<vmem>>, vector<1x8x8x128xbf16>
    %45 = vector.shape_cast %44 : vector<1x8x8x128xbf16> to vector<8x8x128xbf16>
    %46 = vector.shape_cast %43 : vector<8x8x128xbf16> to vector<1x8x8x128xbf16>
    tpu.vector_store %arg8[%c1_43, %c1_44, %c1_45, %c0_46], %46 {strides = array<i32>} : memref<4x10x10x128xbf16, #tpu.memory_space<vmem>>, vector<1x8x8x128xbf16>,
    %c2 = arith.constant 2 : index
    %c0_47 = arith.constant 0 : index
    %c0_48 = arith.constant 0 : index
    %c0_49 = arith.constant 0 : index
    %47 = vector.load %arg8[%c2, %c0_47, %c0_48, %c0_49] : memref<4x10x10x128xbf16, #tpu.memory_space<vmem>>, vector<1x1x10x128xbf16>
    %48 = vector.shape_cast %47 : vector<1x1x10x128xbf16> to vector<1x10x128xbf16>
    %49 = vector.shape_cast %11 : vector<1x10x128xbf16> to vector<1x1x10x128xbf16>
    tpu.vector_store %arg8[%c2, %c0_47, %c0_48, %c0_49], %49 {strides = array<i32>} : memref<4x10x10x128xbf16, #tpu.memory_space<vmem>>, vector<1x1x10x128xbf16>,
    %c2_50 = arith.constant 2 : index
    %c9_51 = arith.constant 9 : index
    %c0_52 = arith.constant 0 : index
    %c0_53 = arith.constant 0 : index
    %50 = vector.load %arg8[%c2_50, %c9_51, %c0_52, %c0_53] : memref<4x10x10x128xbf16, #tpu.memory_space<vmem>>, vector<1x1x10x128xbf16>
    %51 = vector.shape_cast %50 : vector<1x1x10x128xbf16> to vector<1x10x128xbf16>
    %52 = vector.shape_cast %11 : vector<1x10x128xbf16> to vector<1x1x10x128xbf16>
    tpu.vector_store %arg8[%c2_50, %c9_51, %c0_52, %c0_53], %52 {strides = array<i32>} : memref<4x10x10x128xbf16, #tpu.memory_space<vmem>>, vector<1x1x10x128xbf16>,
    %c2_54 = arith.constant 2 : index
    %c1_55 = arith.constant 1 : index
    %c0_56 = arith.constant 0 : index
    %c0_57 = arith.constant 0 : index
    %53 = vector.load %arg8[%c2_54, %c1_55, %c0_56, %c0_57] : memref<4x10x10x128xbf16, #tpu.memory_space<vmem>>, vector<1x8x1x128xbf16>
    %54 = vector.shape_cast %53 : vector<1x8x1x128xbf16> to vector<8x1x128xbf16>
    %55 = vector.shape_cast %12 : vector<8x1x128xbf16> to vector<1x8x1x128xbf16>
    tpu.vector_store %arg8[%c2_54, %c1_55, %c0_56, %c0_57], %55 {strides = array<i32>} : memref<4x10x10x128xbf16, #tpu.memory_space<vmem>>, vector<1x8x1x128xbf16>,
    %c2_58 = arith.constant 2 : index
    %c1_59 = arith.constant 1 : index
    %c9_60 = arith.constant 9 : index
    %c0_61 = arith.constant 0 : index
    %56 = vector.load %arg8[%c2_58, %c1_59, %c9_60, %c0_61] : memref<4x10x10x128xbf16, #tpu.memory_space<vmem>>, vector<1x8x1x128xbf16>
    %57 = vector.shape_cast %56 : vector<1x8x1x128xbf16> to vector<8x1x128xbf16>
    %58 = vector.shape_cast %12 : vector<8x1x128xbf16> to vector<1x8x1x128xbf16>
    tpu.vector_store %arg8[%c2_58, %c1_59, %c9_60, %c0_61], %58 {strides = array<i32>} : memref<4x10x10x128xbf16, #tpu.memory_space<vmem>>, vector<1x8x1x128xbf16>,
    %59 = vector.extract_strided_slice %10 {offsets = [2, 0, 0, 0], sizes = [1, 8, 8, 128], strides = [1, 1, 1, 1]} : vector<4x8x8x128xbf16> to vector<1x8x8x128xbf16>
    %60 = vector.shape_cast %59 : vector<1x8x8x128xbf16> to vector<8x8x128xbf16>
    %c2_62 = arith.constant 2 : index
    %c1_63 = arith.constant 1 : index
    %c1_64 = arith.constant 1 : index
    %c0_65 = arith.constant 0 : index
    %61 = vector.load %arg8[%c2_62, %c1_63, %c1_64, %c0_65] : memref<4x10x10x128xbf16, #tpu.memory_space<vmem>>, vector<1x8x8x128xbf16>
    %62 = vector.shape_cast %61 : vector<1x8x8x128xbf16> to vector<8x8x128xbf16>
    %63 = vector.shape_cast %60 : vector<8x8x128xbf16> to vector<1x8x8x128xbf16>
    tpu.vector_store %arg8[%c2_62, %c1_63, %c1_64, %c0_65], %63 {strides = array<i32>} : memref<4x10x10x128xbf16, #tpu.memory_space<vmem>>, vector<1x8x8x128xbf16>,
    %c3 = arith.constant 3 : index
    %c0_66 = arith.constant 0 : index
    %c0_67 = arith.constant 0 : index
    %c0_68 = arith.constant 0 : index
    %64 = vector.load %arg8[%c3, %c0_66, %c0_67, %c0_68] : memref<4x10x10x128xbf16, #tpu.memory_space<vmem>>, vector<1x1x10x128xbf16>
    %65 = vector.shape_cast %64 : vector<1x1x10x128xbf16> to vector<1x10x128xbf16>
    %66 = vector.shape_cast %11 : vector<1x10x128xbf16> to vector<1x1x10x128xbf16>
    tpu.vector_store %arg8[%c3, %c0_66, %c0_67, %c0_68], %66 {strides = array<i32>} : memref<4x10x10x128xbf16, #tpu.memory_space<vmem>>, vector<1x1x10x128xbf16>,
    %c3_69 = arith.constant 3 : index
    %c9_70 = arith.constant 9 : index
    %c0_71 = arith.constant 0 : index
    %c0_72 = arith.constant 0 : index
    %67 = vector.load %arg8[%c3_69, %c9_70, %c0_71, %c0_72] : memref<4x10x10x128xbf16, #tpu.memory_space<vmem>>, vector<1x1x10x128xbf16>
    %68 = vector.shape_cast %67 : vector<1x1x10x128xbf16> to vector<1x10x128xbf16>
    %69 = vector.shape_cast %11 : vector<1x10x128xbf16> to vector<1x1x10x128xbf16>
    tpu.vector_store %arg8[%c3_69, %c9_70, %c0_71, %c0_72], %69 {strides = array<i32>} : memref<4x10x10x128xbf16, #tpu.memory_space<vmem>>, vector<1x1x10x128xbf16>,
    %c3_73 = arith.constant 3 : index
    %c1_74 = arith.constant 1 : index
    %c0_75 = arith.constant 0 : index
    %c0_76 = arith.constant 0 : index
    %70 = vector.load %arg8[%c3_73, %c1_74, %c0_75, %c0_76] : memref<4x10x10x128xbf16, #tpu.memory_space<vmem>>, vector<1x8x1x128xbf16>
    %71 = vector.shape_cast %70 : vector<1x8x1x128xbf16> to vector<8x1x128xbf16>
    %72 = vector.shape_cast %12 : vector<8x1x128xbf16> to vector<1x8x1x128xbf16>
    tpu.vector_store %arg8[%c3_73, %c1_74, %c0_75, %c0_76], %72 {strides = array<i32>} : memref<4x10x10x128xbf16, #tpu.memory_space<vmem>>, vector<1x8x1x128xbf16>,
    %c3_77 = arith.constant 3 : index
    %c1_78 = arith.constant 1 : index
    %c9_79 = arith.constant 9 : index
    %c0_80 = arith.constant 0 : index
    %73 = vector.load %arg8[%c3_77, %c1_78, %c9_79, %c0_80] : memref<4x10x10x128xbf16, #tpu.memory_space<vmem>>, vector<1x8x1x128xbf16>
    %74 = vector.shape_cast %73 : vector<1x8x1x128xbf16> to vector<8x1x128xbf16>
    %75 = vector.shape_cast %12 : vector<8x1x128xbf16> to vector<1x8x1x128xbf16>
    tpu.vector_store %arg8[%c3_77, %c1_78, %c9_79, %c0_80], %75 {strides = array<i32>} : memref<4x10x10x128xbf16, #tpu.memory_space<vmem>>, vector<1x8x1x128xbf16>,
    %76 = vector.extract_strided_slice %10 {offsets = [3, 0, 0, 0], sizes = [1, 8, 8, 128], strides = [1, 1, 1, 1]} : vector<4x8x8x128xbf16> to vector<1x8x8x128xbf16>
    %77 = vector.shape_cast %76 : vector<1x8x8x128xbf16> to vector<8x8x128xbf16>
    %c3_81 = arith.constant 3 : index
    %c1_82 = arith.constant 1 : index
    %c1_83 = arith.constant 1 : index
    %c0_84 = arith.constant 0 : index
    %78 = vector.load %arg8[%c3_81, %c1_82, %c1_83, %c0_84] : memref<4x10x10x128xbf16, #tpu.memory_space<vmem>>, vector<1x8x8x128xbf16>
    %79 = vector.shape_cast %78 : vector<1x8x8x128xbf16> to vector<8x8x128xbf16>
    %80 = vector.shape_cast %77 : vector<8x8x128xbf16> to vector<1x8x8x128xbf16>
    tpu.vector_store %arg8[%c3_81, %c1_82, %c1_83, %c0_84], %80 {strides = array<i32>} : memref<4x10x10x128xbf16, #tpu.memory_space<vmem>>, vector<1x8x8x128xbf16>,
    %c0_85 = arith.constant 0 : index
    %c0_86 = arith.constant 0 : index
    %c0_87 = arith.constant 0 : index
    %c0_88 = arith.constant 0 : index
    %81 = vector.load %arg8[%c0_85, %c0_86, %c0_87, %c0_88] : memref<4x10x10x128xbf16, #tpu.memory_space<vmem>>, vector<1x8x8x128xbf16>
    %82 = vector.shape_cast %81 : vector<1x8x8x128xbf16> to vector<8x8x128xbf16>
    %83 = vector.shape_cast %82 : vector<8x8x128xbf16> to vector<64x128xbf16>
    %c0_89 = arith.constant 0 : index
    %c0_90 = arith.constant 0 : index
    %c0_91 = arith.constant 0 : index
    %84 = vector.load %arg9[%c0_89, %c0_90, %c0_91] : memref<4x64x1152xbf16, #tpu.memory_space<vmem>>, vector<1x64x128xbf16>
    %85 = vector.shape_cast %84 : vector<1x64x128xbf16> to vector<64x128xbf16>
    %86 = vector.shape_cast %83 : vector<64x128xbf16> to vector<1x64x128xbf16>
    tpu.vector_store %arg9[%c0_89, %c0_90, %c0_91], %86 {strides = array<i32>} : memref<4x64x1152xbf16, #tpu.memory_space<vmem>>, vector<1x64x128xbf16>,
    %c0_92 = arith.constant 0 : index
    %c0_93 = arith.constant 0 : index
    %c1_94 = arith.constant 1 : index
    %c0_95 = arith.constant 0 : index
    %87 = vector.load %arg8[%c0_92, %c0_93, %c1_94, %c0_95] : memref<4x10x10x128xbf16, #tpu.memory_space<vmem>>, vector<1x8x8x128xbf16>
    %88 = vector.shape_cast %87 : vector<1x8x8x128xbf16> to vector<8x8x128xbf16>
    %89 = vector.shape_cast %88 : vector<8x8x128xbf16> to vector<64x128xbf16>
    %c0_96 = arith.constant 0 : index
    %c0_97 = arith.constant 0 : index
    %c128 = arith.constant 128 : index
    %90 = vector.load %arg9[%c0_96, %c0_97, %c128] : memref<4x64x1152xbf16, #tpu.memory_space<vmem>>, vector<1x64x128xbf16>
    %91 = vector.shape_cast %90 : vector<1x64x128xbf16> to vector<64x128xbf16>
    %92 = vector.shape_cast %89 : vector<64x128xbf16> to vector<1x64x128xbf16>
    tpu.vector_store %arg9[%c0_96, %c0_97, %c128], %92 {strides = array<i32>} : memref<4x64x1152xbf16, #tpu.memory_space<vmem>>, vector<1x64x128xbf16>,
    %c0_98 = arith.constant 0 : index
    %c0_99 = arith.constant 0 : index
    %c2_100 = arith.constant 2 : index
    %c0_101 = arith.constant 0 : index
    %93 = vector.load %arg8[%c0_98, %c0_99, %c2_100, %c0_101] : memref<4x10x10x128xbf16, #tpu.memory_space<vmem>>, vector<1x8x8x128xbf16>
    %94 = vector.shape_cast %93 : vector<1x8x8x128xbf16> to vector<8x8x128xbf16>
    %95 = vector.shape_cast %94 : vector<8x8x128xbf16> to vector<64x128xbf16>
    %c0_102 = arith.constant 0 : index
    %c0_103 = arith.constant 0 : index
    %c256 = arith.constant 256 : index
    %96 = vector.load %arg9[%c0_102, %c0_103, %c256] : memref<4x64x1152xbf16, #tpu.memory_space<vmem>>, vector<1x64x128xbf16>
    %97 = vector.shape_cast %96 : vector<1x64x128xbf16> to vector<64x128xbf16>
    %98 = vector.shape_cast %95 : vector<64x128xbf16> to vector<1x64x128xbf16>
    tpu.vector_store %arg9[%c0_102, %c0_103, %c256], %98 {strides = array<i32>} : memref<4x64x1152xbf16, #tpu.memory_space<vmem>>, vector<1x64x128xbf16>,
    %c0_104 = arith.constant 0 : index
    %c1_105 = arith.constant 1 : index
    %c0_106 = arith.constant 0 : index
    %c0_107 = arith.constant 0 : index
    %99 = vector.load %arg8[%c0_104, %c1_105, %c0_106, %c0_107] : memref<4x10x10x128xbf16, #tpu.memory_space<vmem>>, vector<1x8x8x128xbf16>
    %100 = vector.shape_cast %99 : vector<1x8x8x128xbf16> to vector<8x8x128xbf16>
    %101 = vector.shape_cast %100 : vector<8x8x128xbf16> to vector<64x128xbf16>
    %c0_108 = arith.constant 0 : index
    %c0_109 = arith.constant 0 : index
    %c384 = arith.constant 384 : index
    %102 = vector.load %arg9[%c0_108, %c0_109, %c384] : memref<4x64x1152xbf16, #tpu.memory_space<vmem>>, vector<1x64x128xbf16>
    %103 = vector.shape_cast %102 : vector<1x64x128xbf16> to vector<64x128xbf16>
    %104 = vector.shape_cast %101 : vector<64x128xbf16> to vector<1x64x128xbf16>
    tpu.vector_store %arg9[%c0_108, %c0_109, %c384], %104 {strides = array<i32>} : memref<4x64x1152xbf16, #tpu.memory_space<vmem>>, vector<1x64x128xbf16>,
    %c0_110 = arith.constant 0 : index
    %c1_111 = arith.constant 1 : index
    %c1_112 = arith.constant 1 : index
    %c0_113 = arith.constant 0 : index
    %105 = vector.load %arg8[%c0_110, %c1_111, %c1_112, %c0_113] : memref<4x10x10x128xbf16, #tpu.memory_space<vmem>>, vector<1x8x8x128xbf16>
    %106 = vector.shape_cast %105 : vector<1x8x8x128xbf16> to vector<8x8x128xbf16>
    %107 = vector.shape_cast %106 : vector<8x8x128xbf16> to vector<64x128xbf16>
    %c0_114 = arith.constant 0 : index
    %c0_115 = arith.constant 0 : index
    %c512 = arith.constant 512 : index
    %108 = vector.load %arg9[%c0_114, %c0_115, %c512] : memref<4x64x1152xbf16, #tpu.memory_space<vmem>>, vector<1x64x128xbf16>
    %109 = vector.shape_cast %108 : vector<1x64x128xbf16> to vector<64x128xbf16>
    %110 = vector.shape_cast %107 : vector<64x128xbf16> to vector<1x64x128xbf16>
    tpu.vector_store %arg9[%c0_114, %c0_115, %c512], %110 {strides = array<i32>} : memref<4x64x1152xbf16, #tpu.memory_space<vmem>>, vector<1x64x128xbf16>,
    %c0_116 = arith.constant 0 : index
    %c1_117 = arith.constant 1 : index
    %c2_118 = arith.constant 2 : index
    %c0_119 = arith.constant 0 : index
    %111 = vector.load %arg8[%c0_116, %c1_117, %c2_118, %c0_119] : memref<4x10x10x128xbf16, #tpu.memory_space<vmem>>, vector<1x8x8x128xbf16>
    %112 = vector.shape_cast %111 : vector<1x8x8x128xbf16> to vector<8x8x128xbf16>
    %113 = vector.shape_cast %112 : vector<8x8x128xbf16> to vector<64x128xbf16>
    %c0_120 = arith.constant 0 : index
    %c0_121 = arith.constant 0 : index
    %c640 = arith.constant 640 : index
    %114 = vector.load %arg9[%c0_120, %c0_121, %c640] : memref<4x64x1152xbf16, #tpu.memory_space<vmem>>, vector<1x64x128xbf16>
    %115 = vector.shape_cast %114 : vector<1x64x128xbf16> to vector<64x128xbf16>
    %116 = vector.shape_cast %113 : vector<64x128xbf16> to vector<1x64x128xbf16>
    tpu.vector_store %arg9[%c0_120, %c0_121, %c640], %116 {strides = array<i32>} : memref<4x64x1152xbf16, #tpu.memory_space<vmem>>, vector<1x64x128xbf16>,
    %c0_122 = arith.constant 0 : index
    %c2_123 = arith.constant 2 : index
    %c0_124 = arith.constant 0 : index
    %c0_125 = arith.constant 0 : index
    %117 = vector.load %arg8[%c0_122, %c2_123, %c0_124, %c0_125] : memref<4x10x10x128xbf16, #tpu.memory_space<vmem>>, vector<1x8x8x128xbf16>
    %118 = vector.shape_cast %117 : vector<1x8x8x128xbf16> to vector<8x8x128xbf16>
    %119 = vector.shape_cast %118 : vector<8x8x128xbf16> to vector<64x128xbf16>
    %c0_126 = arith.constant 0 : index
    %c0_127 = arith.constant 0 : index
    %c768 = arith.constant 768 : index
    %120 = vector.load %arg9[%c0_126, %c0_127, %c768] : memref<4x64x1152xbf16, #tpu.memory_space<vmem>>, vector<1x64x128xbf16>
    %121 = vector.shape_cast %120 : vector<1x64x128xbf16> to vector<64x128xbf16>
    %122 = vector.shape_cast %119 : vector<64x128xbf16> to vector<1x64x128xbf16>
    tpu.vector_store %arg9[%c0_126, %c0_127, %c768], %122 {strides = array<i32>} : memref<4x64x1152xbf16, #tpu.memory_space<vmem>>, vector<1x64x128xbf16>,
    %c0_128 = arith.constant 0 : index
    %c2_129 = arith.constant 2 : index
    %c1_130 = arith.constant 1 : index
    %c0_131 = arith.constant 0 : index
    %123 = vector.load %arg8[%c0_128, %c2_129, %c1_130, %c0_131] : memref<4x10x10x128xbf16, #tpu.memory_space<vmem>>, vector<1x8x8x128xbf16>
    %124 = vector.shape_cast %123 : vector<1x8x8x128xbf16> to vector<8x8x128xbf16>
    %125 = vector.shape_cast %124 : vector<8x8x128xbf16> to vector<64x128xbf16>
    %c0_132 = arith.constant 0 : index
    %c0_133 = arith.constant 0 : index
    %c896 = arith.constant 896 : index
    %126 = vector.load %arg9[%c0_132, %c0_133, %c896] : memref<4x64x1152xbf16, #tpu.memory_space<vmem>>, vector<1x64x128xbf16>
    %127 = vector.shape_cast %126 : vector<1x64x128xbf16> to vector<64x128xbf16>
    %128 = vector.shape_cast %125 : vector<64x128xbf16> to vector<1x64x128xbf16>
    tpu.vector_store %arg9[%c0_132, %c0_133, %c896], %128 {strides = array<i32>} : memref<4x64x1152xbf16, #tpu.memory_space<vmem>>, vector<1x64x128xbf16>,
    %c0_134 = arith.constant 0 : index
    %c2_135 = arith.constant 2 : index
    %c2_136 = arith.constant 2 : index
    %c0_137 = arith.constant 0 : index
    %129 = vector.load %arg8[%c0_134, %c2_135, %c2_136, %c0_137] : memref<4x10x10x128xbf16, #tpu.memory_space<vmem>>, vector<1x8x8x128xbf16>
    %130 = vector.shape_cast %129 : vector<1x8x8x128xbf16> to vector<8x8x128xbf16>
    %131 = vector.shape_cast %130 : vector<8x8x128xbf16> to vector<64x128xbf16>
    %c0_138 = arith.constant 0 : index
    %c0_139 = arith.constant 0 : index
    %c1024 = arith.constant 1024 : index
    %132 = vector.load %arg9[%c0_138, %c0_139, %c1024] : memref<4x64x1152xbf16, #tpu.memory_space<vmem>>, vector<1x64x128xbf16>
    %133 = vector.shape_cast %132 : vector<1x64x128xbf16> to vector<64x128xbf16>
    %134 = vector.shape_cast %131 : vector<64x128xbf16> to vector<1x64x128xbf16>
    tpu.vector_store %arg9[%c0_138, %c0_139, %c1024], %134 {strides = array<i32>} : memref<4x64x1152xbf16, #tpu.memory_space<vmem>>, vector<1x64x128xbf16>,
    %c1_140 = arith.constant 1 : index
    %c0_141 = arith.constant 0 : index
    %c0_142 = arith.constant 0 : index
    %c0_143 = arith.constant 0 : index
    %135 = vector.load %arg8[%c1_140, %c0_141, %c0_142, %c0_143] : memref<4x10x10x128xbf16, #tpu.memory_space<vmem>>, vector<1x8x8x128xbf16>
    %136 = vector.shape_cast %135 : vector<1x8x8x128xbf16> to vector<8x8x128xbf16>
    %137 = vector.shape_cast %136 : vector<8x8x128xbf16> to vector<64x128xbf16>
    %c1_144 = arith.constant 1 : index
    %c0_145 = arith.constant 0 : index
    %c0_146 = arith.constant 0 : index
    %138 = vector.load %arg9[%c1_144, %c0_145, %c0_146] : memref<4x64x1152xbf16, #tpu.memory_space<vmem>>, vector<1x64x128xbf16>
    %139 = vector.shape_cast %138 : vector<1x64x128xbf16> to vector<64x128xbf16>
    %140 = vector.shape_cast %137 : vector<64x128xbf16> to vector<1x64x128xbf16>
    tpu.vector_store %arg9[%c1_144, %c0_145, %c0_146], %140 {strides = array<i32>} : memref<4x64x1152xbf16, #tpu.memory_space<vmem>>, vector<1x64x128xbf16>,
    %c1_147 = arith.constant 1 : index
    %c0_148 = arith.constant 0 : index
    %c1_149 = arith.constant 1 : index
    %c0_150 = arith.constant 0 : index
    %141 = vector.load %arg8[%c1_147, %c0_148, %c1_149, %c0_150] : memref<4x10x10x128xbf16, #tpu.memory_space<vmem>>, vector<1x8x8x128xbf16>
    %142 = vector.shape_cast %141 : vector<1x8x8x128xbf16> to vector<8x8x128xbf16>
    %143 = vector.shape_cast %142 : vector<8x8x128xbf16> to vector<64x128xbf16>
    %c1_151 = arith.constant 1 : index
    %c0_152 = arith.constant 0 : index
    %c128_153 = arith.constant 128 : index
    %144 = vector.load %arg9[%c1_151, %c0_152, %c128_153] : memref<4x64x1152xbf16, #tpu.memory_space<vmem>>, vector<1x64x128xbf16>
    %145 = vector.shape_cast %144 : vector<1x64x128xbf16> to vector<64x128xbf16>
    %146 = vector.shape_cast %143 : vector<64x128xbf16> to vector<1x64x128xbf16>
    tpu.vector_store %arg9[%c1_151, %c0_152, %c128_153], %146 {strides = array<i32>} : memref<4x64x1152xbf16, #tpu.memory_space<vmem>>, vector<1x64x128xbf16>,
    %c1_154 = arith.constant 1 : index
    %c0_155 = arith.constant 0 : index
    %c2_156 = arith.constant 2 : index
    %c0_157 = arith.constant 0 : index
    %147 = vector.load %arg8[%c1_154, %c0_155, %c2_156, %c0_157] : memref<4x10x10x128xbf16, #tpu.memory_space<vmem>>, vector<1x8x8x128xbf16>
    %148 = vector.shape_cast %147 : vector<1x8x8x128xbf16> to vector<8x8x128xbf16>
    %149 = vector.shape_cast %148 : vector<8x8x128xbf16> to vector<64x128xbf16>
    %c1_158 = arith.constant 1 : index
    %c0_159 = arith.constant 0 : index
    %c256_160 = arith.constant 256 : index
    %150 = vector.load %arg9[%c1_158, %c0_159, %c256_160] : memref<4x64x1152xbf16, #tpu.memory_space<vmem>>, vector<1x64x128xbf16>
    %151 = vector.shape_cast %150 : vector<1x64x128xbf16> to vector<64x128xbf16>
    %152 = vector.shape_cast %149 : vector<64x128xbf16> to vector<1x64x128xbf16>
    tpu.vector_store %arg9[%c1_158, %c0_159, %c256_160], %152 {strides = array<i32>} : memref<4x64x1152xbf16, #tpu.memory_space<vmem>>, vector<1x64x128xbf16>,
    %c1_161 = arith.constant 1 : index
    %c1_162 = arith.constant 1 : index
    %c0_163 = arith.constant 0 : index
    %c0_164 = arith.constant 0 : index
    %153 = vector.load %arg8[%c1_161, %c1_162, %c0_163, %c0_164] : memref<4x10x10x128xbf16, #tpu.memory_space<vmem>>, vector<1x8x8x128xbf16>
    %154 = vector.shape_cast %153 : vector<1x8x8x128xbf16> to vector<8x8x128xbf16>
    %155 = vector.shape_cast %154 : vector<8x8x128xbf16> to vector<64x128xbf16>
    %c1_165 = arith.constant 1 : index
    %c0_166 = arith.constant 0 : index
    %c384_167 = arith.constant 384 : index
    %156 = vector.load %arg9[%c1_165, %c0_166, %c384_167] : memref<4x64x1152xbf16, #tpu.memory_space<vmem>>, vector<1x64x128xbf16>
    %157 = vector.shape_cast %156 : vector<1x64x128xbf16> to vector<64x128xbf16>
    %158 = vector.shape_cast %155 : vector<64x128xbf16> to vector<1x64x128xbf16>
    tpu.vector_store %arg9[%c1_165, %c0_166, %c384_167], %158 {strides = array<i32>} : memref<4x64x1152xbf16, #tpu.memory_space<vmem>>, vector<1x64x128xbf16>,
    %c1_168 = arith.constant 1 : index
    %c1_169 = arith.constant 1 : index
    %c1_170 = arith.constant 1 : index
    %c0_171 = arith.constant 0 : index
    %159 = vector.load %arg8[%c1_168, %c1_169, %c1_170, %c0_171] : memref<4x10x10x128xbf16, #tpu.memory_space<vmem>>, vector<1x8x8x128xbf16>
    %160 = vector.shape_cast %159 : vector<1x8x8x128xbf16> to vector<8x8x128xbf16>
    %161 = vector.shape_cast %160 : vector<8x8x128xbf16> to vector<64x128xbf16>
    %c1_172 = arith.constant 1 : index
    %c0_173 = arith.constant 0 : index
    %c512_174 = arith.constant 512 : index
    %162 = vector.load %arg9[%c1_172, %c0_173, %c512_174] : memref<4x64x1152xbf16, #tpu.memory_space<vmem>>, vector<1x64x128xbf16>
    %163 = vector.shape_cast %162 : vector<1x64x128xbf16> to vector<64x128xbf16>
    %164 = vector.shape_cast %161 : vector<64x128xbf16> to vector<1x64x128xbf16>
    tpu.vector_store %arg9[%c1_172, %c0_173, %c512_174], %164 {strides = array<i32>} : memref<4x64x1152xbf16, #tpu.memory_space<vmem>>, vector<1x64x128xbf16>,
    %c1_175 = arith.constant 1 : index
    %c1_176 = arith.constant 1 : index
    %c2_177 = arith.constant 2 : index
    %c0_178 = arith.constant 0 : index
    %165 = vector.load %arg8[%c1_175, %c1_176, %c2_177, %c0_178] : memref<4x10x10x128xbf16, #tpu.memory_space<vmem>>, vector<1x8x8x128xbf16>
    %166 = vector.shape_cast %165 : vector<1x8x8x128xbf16> to vector<8x8x128xbf16>
    %167 = vector.shape_cast %166 : vector<8x8x128xbf16> to vector<64x128xbf16>
    %c1_179 = arith.constant 1 : index
    %c0_180 = arith.constant 0 : index
    %c640_181 = arith.constant 640 : index
    %168 = vector.load %arg9[%c1_179, %c0_180, %c640_181] : memref<4x64x1152xbf16, #tpu.memory_space<vmem>>, vector<1x64x128xbf16>
    %169 = vector.shape_cast %168 : vector<1x64x128xbf16> to vector<64x128xbf16>
    %170 = vector.shape_cast %167 : vector<64x128xbf16> to vector<1x64x128xbf16>
    tpu.vector_store %arg9[%c1_179, %c0_180, %c640_181], %170 {strides = array<i32>} : memref<4x64x1152xbf16, #tpu.memory_space<vmem>>, vector<1x64x128xbf16>,
    %c1_182 = arith.constant 1 : index
    %c2_183 = arith.constant 2 : index
    %c0_184 = arith.constant 0 : index
    %c0_185 = arith.constant 0 : index
    %171 = vector.load %arg8[%c1_182, %c2_183, %c0_184, %c0_185] : memref<4x10x10x128xbf16, #tpu.memory_space<vmem>>, vector<1x8x8x128xbf16>
    %172 = vector.shape_cast %171 : vector<1x8x8x128xbf16> to vector<8x8x128xbf16>
    %173 = vector.shape_cast %172 : vector<8x8x128xbf16> to vector<64x128xbf16>
    %c1_186 = arith.constant 1 : index
    %c0_187 = arith.constant 0 : index
    %c768_188 = arith.constant 768 : index
    %174 = vector.load %arg9[%c1_186, %c0_187, %c768_188] : memref<4x64x1152xbf16, #tpu.memory_space<vmem>>, vector<1x64x128xbf16>
    %175 = vector.shape_cast %174 : vector<1x64x128xbf16> to vector<64x128xbf16>
    %176 = vector.shape_cast %173 : vector<64x128xbf16> to vector<1x64x128xbf16>
    tpu.vector_store %arg9[%c1_186, %c0_187, %c768_188], %176 {strides = array<i32>} : memref<4x64x1152xbf16, #tpu.memory_space<vmem>>, vector<1x64x128xbf16>,
    %c1_189 = arith.constant 1 : index
    %c2_190 = arith.constant 2 : index
    %c1_191 = arith.constant 1 : index
    %c0_192 = arith.constant 0 : index
    %177 = vector.load %arg8[%c1_189, %c2_190, %c1_191, %c0_192] : memref<4x10x10x128xbf16, #tpu.memory_space<vmem>>, vector<1x8x8x128xbf16>
    %178 = vector.shape_cast %177 : vector<1x8x8x128xbf16> to vector<8x8x128xbf16>
    %179 = vector.shape_cast %178 : vector<8x8x128xbf16> to vector<64x128xbf16>
    %c1_193 = arith.constant 1 : index
    %c0_194 = arith.constant 0 : index
    %c896_195 = arith.constant 896 : index
    %180 = vector.load %arg9[%c1_193, %c0_194, %c896_195] : memref<4x64x1152xbf16, #tpu.memory_space<vmem>>, vector<1x64x128xbf16>
    %181 = vector.shape_cast %180 : vector<1x64x128xbf16> to vector<64x128xbf16>
    %182 = vector.shape_cast %179 : vector<64x128xbf16> to vector<1x64x128xbf16>
    tpu.vector_store %arg9[%c1_193, %c0_194, %c896_195], %182 {strides = array<i32>} : memref<4x64x1152xbf16, #tpu.memory_space<vmem>>, vector<1x64x128xbf16>,
    %c1_196 = arith.constant 1 : index
    %c2_197 = arith.constant 2 : index
    %c2_198 = arith.constant 2 : index
    %c0_199 = arith.constant 0 : index
    %183 = vector.load %arg8[%c1_196, %c2_197, %c2_198, %c0_199] : memref<4x10x10x128xbf16, #tpu.memory_space<vmem>>, vector<1x8x8x128xbf16>
    %184 = vector.shape_cast %183 : vector<1x8x8x128xbf16> to vector<8x8x128xbf16>
    %185 = vector.shape_cast %184 : vector<8x8x128xbf16> to vector<64x128xbf16>
    %c1_200 = arith.constant 1 : index
    %c0_201 = arith.constant 0 : index
    %c1024_202 = arith.constant 1024 : index
    %186 = vector.load %arg9[%c1_200, %c0_201, %c1024_202] : memref<4x64x1152xbf16, #tpu.memory_space<vmem>>, vector<1x64x128xbf16>
    %187 = vector.shape_cast %186 : vector<1x64x128xbf16> to vector<64x128xbf16>
    %188 = vector.shape_cast %185 : vector<64x128xbf16> to vector<1x64x128xbf16>
    tpu.vector_store %arg9[%c1_200, %c0_201, %c1024_202], %188 {strides = array<i32>} : memref<4x64x1152xbf16, #tpu.memory_space<vmem>>, vector<1x64x128xbf16>,
    %c2_203 = arith.constant 2 : index
    %c0_204 = arith.constant 0 : index
    %c0_205 = arith.constant 0 : index
    %c0_206 = arith.constant 0 : index
    %189 = vector.load %arg8[%c2_203, %c0_204, %c0_205, %c0_206] : memref<4x10x10x128xbf16, #tpu.memory_space<vmem>>, vector<1x8x8x128xbf16>
    %190 = vector.shape_cast %189 : vector<1x8x8x128xbf16> to vector<8x8x128xbf16>
    %191 = vector.shape_cast %190 : vector<8x8x128xbf16> to vector<64x128xbf16>
    %c2_207 = arith.constant 2 : index
    %c0_208 = arith.constant 0 : index
    %c0_209 = arith.constant 0 : index
    %192 = vector.load %arg9[%c2_207, %c0_208, %c0_209] : memref<4x64x1152xbf16, #tpu.memory_space<vmem>>, vector<1x64x128xbf16>
    %193 = vector.shape_cast %192 : vector<1x64x128xbf16> to vector<64x128xbf16>
    %194 = vector.shape_cast %191 : vector<64x128xbf16> to vector<1x64x128xbf16>
    tpu.vector_store %arg9[%c2_207, %c0_208, %c0_209], %194 {strides = array<i32>} : memref<4x64x1152xbf16, #tpu.memory_space<vmem>>, vector<1x64x128xbf16>,
    %c2_210 = arith.constant 2 : index
    %c0_211 = arith.constant 0 : index
    %c1_212 = arith.constant 1 : index
    %c0_213 = arith.constant 0 : index
    %195 = vector.load %arg8[%c2_210, %c0_211, %c1_212, %c0_213] : memref<4x10x10x128xbf16, #tpu.memory_space<vmem>>, vector<1x8x8x128xbf16>
    %196 = vector.shape_cast %195 : vector<1x8x8x128xbf16> to vector<8x8x128xbf16>
    %197 = vector.shape_cast %196 : vector<8x8x128xbf16> to vector<64x128xbf16>
    %c2_214 = arith.constant 2 : index
    %c0_215 = arith.constant 0 : index
    %c128_216 = arith.constant 128 : index
    %198 = vector.load %arg9[%c2_214, %c0_215, %c128_216] : memref<4x64x1152xbf16, #tpu.memory_space<vmem>>, vector<1x64x128xbf16>
    %199 = vector.shape_cast %198 : vector<1x64x128xbf16> to vector<64x128xbf16>
    %200 = vector.shape_cast %197 : vector<64x128xbf16> to vector<1x64x128xbf16>
    tpu.vector_store %arg9[%c2_214, %c0_215, %c128_216], %200 {strides = array<i32>} : memref<4x64x1152xbf16, #tpu.memory_space<vmem>>, vector<1x64x128xbf16>,
    %c2_217 = arith.constant 2 : index
    %c0_218 = arith.constant 0 : index
    %c2_219 = arith.constant 2 : index
    %c0_220 = arith.constant 0 : index
    %201 = vector.load %arg8[%c2_217, %c0_218, %c2_219, %c0_220] : memref<4x10x10x128xbf16, #tpu.memory_space<vmem>>, vector<1x8x8x128xbf16>
    %202 = vector.shape_cast %201 : vector<1x8x8x128xbf16> to vector<8x8x128xbf16>
    %203 = vector.shape_cast %202 : vector<8x8x128xbf16> to vector<64x128xbf16>
    %c2_221 = arith.constant 2 : index
    %c0_222 = arith.constant 0 : index
    %c256_223 = arith.constant 256 : index
    %204 = vector.load %arg9[%c2_221, %c0_222, %c256_223] : memref<4x64x1152xbf16, #tpu.memory_space<vmem>>, vector<1x64x128xbf16>
    %205 = vector.shape_cast %204 : vector<1x64x128xbf16> to vector<64x128xbf16>
    %206 = vector.shape_cast %203 : vector<64x128xbf16> to vector<1x64x128xbf16>
    tpu.vector_store %arg9[%c2_221, %c0_222, %c256_223], %206 {strides = array<i32>} : memref<4x64x1152xbf16, #tpu.memory_space<vmem>>, vector<1x64x128xbf16>,
    %c2_224 = arith.constant 2 : index
    %c1_225 = arith.constant 1 : index
    %c0_226 = arith.constant 0 : index
    %c0_227 = arith.constant 0 : index
    %207 = vector.load %arg8[%c2_224, %c1_225, %c0_226, %c0_227] : memref<4x10x10x128xbf16, #tpu.memory_space<vmem>>, vector<1x8x8x128xbf16>
    %208 = vector.shape_cast %207 : vector<1x8x8x128xbf16> to vector<8x8x128xbf16>
    %209 = vector.shape_cast %208 : vector<8x8x128xbf16> to vector<64x128xbf16>
    %c2_228 = arith.constant 2 : index
    %c0_229 = arith.constant 0 : index
    %c384_230 = arith.constant 384 : index
    %210 = vector.load %arg9[%c2_228, %c0_229, %c384_230] : memref<4x64x1152xbf16, #tpu.memory_space<vmem>>, vector<1x64x128xbf16>
    %211 = vector.shape_cast %210 : vector<1x64x128xbf16> to vector<64x128xbf16>
    %212 = vector.shape_cast %209 : vector<64x128xbf16> to vector<1x64x128xbf16>
    tpu.vector_store %arg9[%c2_228, %c0_229, %c384_230], %212 {strides = array<i32>} : memref<4x64x1152xbf16, #tpu.memory_space<vmem>>, vector<1x64x128xbf16>,
    %c2_231 = arith.constant 2 : index
    %c1_232 = arith.constant 1 : index
    %c1_233 = arith.constant 1 : index
    %c0_234 = arith.constant 0 : index
    %213 = vector.load %arg8[%c2_231, %c1_232, %c1_233, %c0_234] : memref<4x10x10x128xbf16, #tpu.memory_space<vmem>>, vector<1x8x8x128xbf16>
    %214 = vector.shape_cast %213 : vector<1x8x8x128xbf16> to vector<8x8x128xbf16>
    %215 = vector.shape_cast %214 : vector<8x8x128xbf16> to vector<64x128xbf16>
    %c2_235 = arith.constant 2 : index
    %c0_236 = arith.constant 0 : index
    %c512_237 = arith.constant 512 : index
    %216 = vector.load %arg9[%c2_235, %c0_236, %c512_237] : memref<4x64x1152xbf16, #tpu.memory_space<vmem>>, vector<1x64x128xbf16>
    %217 = vector.shape_cast %216 : vector<1x64x128xbf16> to vector<64x128xbf16>
    %218 = vector.shape_cast %215 : vector<64x128xbf16> to vector<1x64x128xbf16>
    tpu.vector_store %arg9[%c2_235, %c0_236, %c512_237], %218 {strides = array<i32>} : memref<4x64x1152xbf16, #tpu.memory_space<vmem>>, vector<1x64x128xbf16>,
    %c2_238 = arith.constant 2 : index
    %c1_239 = arith.constant 1 : index
    %c2_240 = arith.constant 2 : index
    %c0_241 = arith.constant 0 : index
    %219 = vector.load %arg8[%c2_238, %c1_239, %c2_240, %c0_241] : memref<4x10x10x128xbf16, #tpu.memory_space<vmem>>, vector<1x8x8x128xbf16>
    %220 = vector.shape_cast %219 : vector<1x8x8x128xbf16> to vector<8x8x128xbf16>
    %221 = vector.shape_cast %220 : vector<8x8x128xbf16> to vector<64x128xbf16>
    %c2_242 = arith.constant 2 : index
    %c0_243 = arith.constant 0 : index
    %c640_244 = arith.constant 640 : index
    %222 = vector.load %arg9[%c2_242, %c0_243, %c640_244] : memref<4x64x1152xbf16, #tpu.memory_space<vmem>>, vector<1x64x128xbf16>
    %223 = vector.shape_cast %222 : vector<1x64x128xbf16> to vector<64x128xbf16>
    %224 = vector.shape_cast %221 : vector<64x128xbf16> to vector<1x64x128xbf16>
    tpu.vector_store %arg9[%c2_242, %c0_243, %c640_244], %224 {strides = array<i32>} : memref<4x64x1152xbf16, #tpu.memory_space<vmem>>, vector<1x64x128xbf16>,
    %c2_245 = arith.constant 2 : index
    %c2_246 = arith.constant 2 : index
    %c0_247 = arith.constant 0 : index
    %c0_248 = arith.constant 0 : index
    %225 = vector.load %arg8[%c2_245, %c2_246, %c0_247, %c0_248] : memref<4x10x10x128xbf16, #tpu.memory_space<vmem>>, vector<1x8x8x128xbf16>
    %226 = vector.shape_cast %225 : vector<1x8x8x128xbf16> to vector<8x8x128xbf16>
    %227 = vector.shape_cast %226 : vector<8x8x128xbf16> to vector<64x128xbf16>
    %c2_249 = arith.constant 2 : index
    %c0_250 = arith.constant 0 : index
    %c768_251 = arith.constant 768 : index
    %228 = vector.load %arg9[%c2_249, %c0_250, %c768_251] : memref<4x64x1152xbf16, #tpu.memory_space<vmem>>, vector<1x64x128xbf16>
    %229 = vector.shape_cast %228 : vector<1x64x128xbf16> to vector<64x128xbf16>
    %230 = vector.shape_cast %227 : vector<64x128xbf16> to vector<1x64x128xbf16>
    tpu.vector_store %arg9[%c2_249, %c0_250, %c768_251], %230 {strides = array<i32>} : memref<4x64x1152xbf16, #tpu.memory_space<vmem>>, vector<1x64x128xbf16>,
    %c2_252 = arith.constant 2 : index
    %c2_253 = arith.constant 2 : index
    %c1_254 = arith.constant 1 : index
    %c0_255 = arith.constant 0 : index
    %231 = vector.load %arg8[%c2_252, %c2_253, %c1_254, %c0_255] : memref<4x10x10x128xbf16, #tpu.memory_space<vmem>>, vector<1x8x8x128xbf16>
    %232 = vector.shape_cast %231 : vector<1x8x8x128xbf16> to vector<8x8x128xbf16>
    %233 = vector.shape_cast %232 : vector<8x8x128xbf16> to vector<64x128xbf16>
    %c2_256 = arith.constant 2 : index
    %c0_257 = arith.constant 0 : index
    %c896_258 = arith.constant 896 : index
    %234 = vector.load %arg9[%c2_256, %c0_257, %c896_258] : memref<4x64x1152xbf16, #tpu.memory_space<vmem>>, vector<1x64x128xbf16>
    %235 = vector.shape_cast %234 : vector<1x64x128xbf16> to vector<64x128xbf16>
    %236 = vector.shape_cast %233 : vector<64x128xbf16> to vector<1x64x128xbf16>
    tpu.vector_store %arg9[%c2_256, %c0_257, %c896_258], %236 {strides = array<i32>} : memref<4x64x1152xbf16, #tpu.memory_space<vmem>>, vector<1x64x128xbf16>,
    %c2_259 = arith.constant 2 : index
    %c2_260 = arith.constant 2 : index
    %c2_261 = arith.constant 2 : index
    %c0_262 = arith.constant 0 : index
    %237 = vector.load %arg8[%c2_259, %c2_260, %c2_261, %c0_262] : memref<4x10x10x128xbf16, #tpu.memory_space<vmem>>, vector<1x8x8x128xbf16>
    %238 = vector.shape_cast %237 : vector<1x8x8x128xbf16> to vector<8x8x128xbf16>
    %239 = vector.shape_cast %238 : vector<8x8x128xbf16> to vector<64x128xbf16>
    %c2_263 = arith.constant 2 : index
    %c0_264 = arith.constant 0 : index
    %c1024_265 = arith.constant 1024 : index
    %240 = vector.load %arg9[%c2_263, %c0_264, %c1024_265] : memref<4x64x1152xbf16, #tpu.memory_space<vmem>>, vector<1x64x128xbf16>
    %241 = vector.shape_cast %240 : vector<1x64x128xbf16> to vector<64x128xbf16>
    %242 = vector.shape_cast %239 : vector<64x128xbf16> to vector<1x64x128xbf16>
    tpu.vector_store %arg9[%c2_263, %c0_264, %c1024_265], %242 {strides = array<i32>} : memref<4x64x1152xbf16, #tpu.memory_space<vmem>>, vector<1x64x128xbf16>,
    %c3_266 = arith.constant 3 : index
    %c0_267 = arith.constant 0 : index
    %c0_268 = arith.constant 0 : index
    %c0_269 = arith.constant 0 : index
    %243 = vector.load %arg8[%c3_266, %c0_267, %c0_268, %c0_269] : memref<4x10x10x128xbf16, #tpu.memory_space<vmem>>, vector<1x8x8x128xbf16>
    %244 = vector.shape_cast %243 : vector<1x8x8x128xbf16> to vector<8x8x128xbf16>
    %245 = vector.shape_cast %244 : vector<8x8x128xbf16> to vector<64x128xbf16>
    %c3_270 = arith.constant 3 : index
    %c0_271 = arith.constant 0 : index
    %c0_272 = arith.constant 0 : index
    %246 = vector.load %arg9[%c3_270, %c0_271, %c0_272] : memref<4x64x1152xbf16, #tpu.memory_space<vmem>>, vector<1x64x128xbf16>
    %247 = vector.shape_cast %246 : vector<1x64x128xbf16> to vector<64x128xbf16>
    %248 = vector.shape_cast %245 : vector<64x128xbf16> to vector<1x64x128xbf16>
    tpu.vector_store %arg9[%c3_270, %c0_271, %c0_272], %248 {strides = array<i32>} : memref<4x64x1152xbf16, #tpu.memory_space<vmem>>, vector<1x64x128xbf16>,
    %c3_273 = arith.constant 3 : index
    %c0_274 = arith.constant 0 : index
    %c1_275 = arith.constant 1 : index
    %c0_276 = arith.constant 0 : index
    %249 = vector.load %arg8[%c3_273, %c0_274, %c1_275, %c0_276] : memref<4x10x10x128xbf16, #tpu.memory_space<vmem>>, vector<1x8x8x128xbf16>
    %250 = vector.shape_cast %249 : vector<1x8x8x128xbf16> to vector<8x8x128xbf16>
    %251 = vector.shape_cast %250 : vector<8x8x128xbf16> to vector<64x128xbf16>
    %c3_277 = arith.constant 3 : index
    %c0_278 = arith.constant 0 : index
    %c128_279 = arith.constant 128 : index
    %252 = vector.load %arg9[%c3_277, %c0_278, %c128_279] : memref<4x64x1152xbf16, #tpu.memory_space<vmem>>, vector<1x64x128xbf16>
    %253 = vector.shape_cast %252 : vector<1x64x128xbf16> to vector<64x128xbf16>
    %254 = vector.shape_cast %251 : vector<64x128xbf16> to vector<1x64x128xbf16>
    tpu.vector_store %arg9[%c3_277, %c0_278, %c128_279], %254 {strides = array<i32>} : memref<4x64x1152xbf16, #tpu.memory_space<vmem>>, vector<1x64x128xbf16>,
    %c3_280 = arith.constant 3 : index
    %c0_281 = arith.constant 0 : index
    %c2_282 = arith.constant 2 : index
    %c0_283 = arith.constant 0 : index
    %255 = vector.load %arg8[%c3_280, %c0_281, %c2_282, %c0_283] : memref<4x10x10x128xbf16, #tpu.memory_space<vmem>>, vector<1x8x8x128xbf16>
    %256 = vector.shape_cast %255 : vector<1x8x8x128xbf16> to vector<8x8x128xbf16>
    %257 = vector.shape_cast %256 : vector<8x8x128xbf16> to vector<64x128xbf16>
    %c3_284 = arith.constant 3 : index
    %c0_285 = arith.constant 0 : index
    %c256_286 = arith.constant 256 : index
    %258 = vector.load %arg9[%c3_284, %c0_285, %c256_286] : memref<4x64x1152xbf16, #tpu.memory_space<vmem>>, vector<1x64x128xbf16>
    %259 = vector.shape_cast %258 : vector<1x64x128xbf16> to vector<64x128xbf16>
    %260 = vector.shape_cast %257 : vector<64x128xbf16> to vector<1x64x128xbf16>
    tpu.vector_store %arg9[%c3_284, %c0_285, %c256_286], %260 {strides = array<i32>} : memref<4x64x1152xbf16, #tpu.memory_space<vmem>>, vector<1x64x128xbf16>,
    %c3_287 = arith.constant 3 : index
    %c1_288 = arith.constant 1 : index
    %c0_289 = arith.constant 0 : index
    %c0_290 = arith.constant 0 : index
    %261 = vector.load %arg8[%c3_287, %c1_288, %c0_289, %c0_290] : memref<4x10x10x128xbf16, #tpu.memory_space<vmem>>, vector<1x8x8x128xbf16>
    %262 = vector.shape_cast %261 : vector<1x8x8x128xbf16> to vector<8x8x128xbf16>
    %263 = vector.shape_cast %262 : vector<8x8x128xbf16> to vector<64x128xbf16>
    %c3_291 = arith.constant 3 : index
    %c0_292 = arith.constant 0 : index
    %c384_293 = arith.constant 384 : index
    %264 = vector.load %arg9[%c3_291, %c0_292, %c384_293] : memref<4x64x1152xbf16, #tpu.memory_space<vmem>>, vector<1x64x128xbf16>
    %265 = vector.shape_cast %264 : vector<1x64x128xbf16> to vector<64x128xbf16>
    %266 = vector.shape_cast %263 : vector<64x128xbf16> to vector<1x64x128xbf16>
    tpu.vector_store %arg9[%c3_291, %c0_292, %c384_293], %266 {strides = array<i32>} : memref<4x64x1152xbf16, #tpu.memory_space<vmem>>, vector<1x64x128xbf16>,
    %c3_294 = arith.constant 3 : index
    %c1_295 = arith.constant 1 : index
    %c1_296 = arith.constant 1 : index
    %c0_297 = arith.constant 0 : index
    %267 = vector.load %arg8[%c3_294, %c1_295, %c1_296, %c0_297] : memref<4x10x10x128xbf16, #tpu.memory_space<vmem>>, vector<1x8x8x128xbf16>
    %268 = vector.shape_cast %267 : vector<1x8x8x128xbf16> to vector<8x8x128xbf16>
    %269 = vector.shape_cast %268 : vector<8x8x128xbf16> to vector<64x128xbf16>
    %c3_298 = arith.constant 3 : index
    %c0_299 = arith.constant 0 : index
    %c512_300 = arith.constant 512 : index
    %270 = vector.load %arg9[%c3_298, %c0_299, %c512_300] : memref<4x64x1152xbf16, #tpu.memory_space<vmem>>, vector<1x64x128xbf16>
    %271 = vector.shape_cast %270 : vector<1x64x128xbf16> to vector<64x128xbf16>
    %272 = vector.shape_cast %269 : vector<64x128xbf16> to vector<1x64x128xbf16>
    tpu.vector_store %arg9[%c3_298, %c0_299, %c512_300], %272 {strides = array<i32>} : memref<4x64x1152xbf16, #tpu.memory_space<vmem>>, vector<1x64x128xbf16>,
    %c3_301 = arith.constant 3 : index
    %c1_302 = arith.constant 1 : index
    %c2_303 = arith.constant 2 : index
    %c0_304 = arith.constant 0 : index
    %273 = vector.load %arg8[%c3_301, %c1_302, %c2_303, %c0_304] : memref<4x10x10x128xbf16, #tpu.memory_space<vmem>>, vector<1x8x8x128xbf16>
    %274 = vector.shape_cast %273 : vector<1x8x8x128xbf16> to vector<8x8x128xbf16>
    %275 = vector.shape_cast %274 : vector<8x8x128xbf16> to vector<64x128xbf16>
    %c3_305 = arith.constant 3 : index
    %c0_306 = arith.constant 0 : index
    %c640_307 = arith.constant 640 : index
    %276 = vector.load %arg9[%c3_305, %c0_306, %c640_307] : memref<4x64x1152xbf16, #tpu.memory_space<vmem>>, vector<1x64x128xbf16>
    %277 = vector.shape_cast %276 : vector<1x64x128xbf16> to vector<64x128xbf16>
    %278 = vector.shape_cast %275 : vector<64x128xbf16> to vector<1x64x128xbf16>
    tpu.vector_store %arg9[%c3_305, %c0_306, %c640_307], %278 {strides = array<i32>} : memref<4x64x1152xbf16, #tpu.memory_space<vmem>>, vector<1x64x128xbf16>,
    %c3_308 = arith.constant 3 : index
    %c2_309 = arith.constant 2 : index
    %c0_310 = arith.constant 0 : index
    %c0_311 = arith.constant 0 : index
    %279 = vector.load %arg8[%c3_308, %c2_309, %c0_310, %c0_311] : memref<4x10x10x128xbf16, #tpu.memory_space<vmem>>, vector<1x8x8x128xbf16>
    %280 = vector.shape_cast %279 : vector<1x8x8x128xbf16> to vector<8x8x128xbf16>
    %281 = vector.shape_cast %280 : vector<8x8x128xbf16> to vector<64x128xbf16>
    %c3_312 = arith.constant 3 : index
    %c0_313 = arith.constant 0 : index
    %c768_314 = arith.constant 768 : index
    %282 = vector.load %arg9[%c3_312, %c0_313, %c768_314] : memref<4x64x1152xbf16, #tpu.memory_space<vmem>>, vector<1x64x128xbf16>
    %283 = vector.shape_cast %282 : vector<1x64x128xbf16> to vector<64x128xbf16>
    %284 = vector.shape_cast %281 : vector<64x128xbf16> to vector<1x64x128xbf16>
    tpu.vector_store %arg9[%c3_312, %c0_313, %c768_314], %284 {strides = array<i32>} : memref<4x64x1152xbf16, #tpu.memory_space<vmem>>, vector<1x64x128xbf16>,
    %c3_315 = arith.constant 3 : index
    %c2_316 = arith.constant 2 : index
    %c1_317 = arith.constant 1 : index
    %c0_318 = arith.constant 0 : index
    %285 = vector.load %arg8[%c3_315, %c2_316, %c1_317, %c0_318] : memref<4x10x10x128xbf16, #tpu.memory_space<vmem>>, vector<1x8x8x128xbf16>
    %286 = vector.shape_cast %285 : vector<1x8x8x128xbf16> to vector<8x8x128xbf16>
    %287 = vector.shape_cast %286 : vector<8x8x128xbf16> to vector<64x128xbf16>
    %c3_319 = arith.constant 3 : index
    %c0_320 = arith.constant 0 : index
    %c896_321 = arith.constant 896 : index
    %288 = vector.load %arg9[%c3_319, %c0_320, %c896_321] : memref<4x64x1152xbf16, #tpu.memory_space<vmem>>, vector<1x64x128xbf16>
    %289 = vector.shape_cast %288 : vector<1x64x128xbf16> to vector<64x128xbf16>
    %290 = vector.shape_cast %287 : vector<64x128xbf16> to vector<1x64x128xbf16>
    tpu.vector_store %arg9[%c3_319, %c0_320, %c896_321], %290 {strides = array<i32>} : memref<4x64x1152xbf16, #tpu.memory_space<vmem>>, vector<1x64x128xbf16>,
    %c3_322 = arith.constant 3 : index
    %c2_323 = arith.constant 2 : index
    %c2_324 = arith.constant 2 : index
    %c0_325 = arith.constant 0 : index
    %291 = vector.load %arg8[%c3_322, %c2_323, %c2_324, %c0_325] : memref<4x10x10x128xbf16, #tpu.memory_space<vmem>>, vector<1x8x8x128xbf16>
    %292 = vector.shape_cast %291 : vector<1x8x8x128xbf16> to vector<8x8x128xbf16>
    %293 = vector.shape_cast %292 : vector<8x8x128xbf16> to vector<64x128xbf16>
    %c3_326 = arith.constant 3 : index
    %c0_327 = arith.constant 0 : index
    %c1024_328 = arith.constant 1024 : index
    %294 = vector.load %arg9[%c3_326, %c0_327, %c1024_328] : memref<4x64x1152xbf16, #tpu.memory_space<vmem>>, vector<1x64x128xbf16>
    %295 = vector.shape_cast %294 : vector<1x64x128xbf16> to vector<64x128xbf16>
    %296 = vector.shape_cast %293 : vector<64x128xbf16> to vector<1x64x128xbf16>
    tpu.vector_store %arg9[%c3_326, %c0_327, %c1024_328], %296 {strides = array<i32>} : memref<4x64x1152xbf16, #tpu.memory_space<vmem>>, vector<1x64x128xbf16>,
    %c0_329 = arith.constant 0 : index
    %c0_330 = arith.constant 0 : index
    %c0_331 = arith.constant 0 : index
    %297 = vector.load %arg9[%c0_329, %c0_330, %c0_331] : memref<4x64x1152xbf16, #tpu.memory_space<vmem>>, vector<4x64x1152xbf16>
    %298 = vector.shape_cast %297 : vector<4x64x1152xbf16> to vector<256x1152xbf16>
    %c0_332 = arith.constant 0 : index
    %c0_333 = arith.constant 0 : index
    %299 = vector.load %arg4[%c0_332, %c0_333] : memref<1152x128xbf16, #tpu.memory_space<vmem>>, vector<1152x128xbf16>
    %cst_334 = arith.constant dense<0.000000e+00> : vector<256x128xf32>
    %300 = tpu.matmul %298, %299, %cst_334 {dimension_numbers = #tpu.dot_dimension_numbers<[1], [0], [0], [1], [0, 0, 1, 1], [], []>} : vector<256x1152xbf16>, vector<1152x128xbf16>, vector<256x128xf32> -> vector<256x128xf32>
    %c0_335 = arith.constant 0 : index
    %c0_336 = arith.constant 0 : index
    %c0_337 = arith.constant 0 : index
    %301 = vector.load %arg6[%c0_335, %c0_336, %c0_337] : memref<4x64x128xbf16, #tpu.memory_space<vmem>>, vector<4x64x128xbf16>
    %302 = vector.shape_cast %301 : vector<4x64x128xbf16> to vector<256x128xbf16>
    %303 = arith.extf %302 : vector<256x128xbf16> to vector<256x128xf32>
    %c0_338 = arith.constant 0 : index
    %c0_339 = arith.constant 0 : index
    %304 = vector.load %arg5[%c0_338, %c0_339] : memref<1x128xf32, #tpu.memory_space<vmem>>, vector<1x128xf32>
    %305 = vector.broadcast %304 : vector<1x128xf32> to vector<256x128xf32>
    %306 = arith.addf %300, %305 : vector<256x128xf32>
    %307 = arith.addf %306, %303 : vector<256x128xf32>
    %cst_340 = arith.constant 0.000000e+00 : f32
    %308 = vector.broadcast %cst_340 : f32 to vector<256x128xf32>
    %309 = arith.maximumf %307, %308 : vector<256x128xf32>
    %310 = vector.shape_cast %309 : vector<256x128xf32> to vector<4x64x128xf32>
    %311 = arith.truncf %310 : vector<4x64x128xf32> to vector<4x64x128xbf16>
    %c0_341 = arith.constant 0 : index
    %c0_342 = arith.constant 0 : index
    %c0_343 = arith.constant 0 : index
    %312 = vector.load %arg7[%c0_341, %c0_342, %c0_343] : memref<4x64x128xbf16, #tpu.memory_space<vmem>>, vector<4x64x128xbf16>
    tpu.vector_store %arg7[%c0_341, %c0_342, %c0_343], %311 {strides = array<i32>} : memref<4x64x128xbf16, #tpu.memory_space<vmem>>, vector<4x64x128xbf16>,
    return
  }
  func.func @transform_0(%arg0: i32) -> (i32, i32, i32) {
    %c0_i32 = arith.constant 0 : i32
    %c0_i32_0 = arith.constant 0 : i32
    %c0_i32_1 = arith.constant 0 : i32
    return %arg0, %c0_i32, %c0_i32_0 : i32, i32, i32
  }
  func.func @transform_1(%arg0: i32) -> (i32, i32) {
    %c0_i32 = arith.constant 0 : i32
    %c0_i32_0 = arith.constant 0 : i32
    %c0_i32_1 = arith.constant 0 : i32
    return %c0_i32, %c0_i32_0 : i32, i32
  }
  func.func @transform_2(%arg0: i32) -> (i32, i32) {
    %c0_i32 = arith.constant 0 : i32
    %c0_i32_0 = arith.constant 0 : i32
    %c0_i32_1 = arith.constant 0 : i32
    return %c0_i32, %c0_i32_0 : i32, i32
  }
  func.func @transform_3(%arg0: i32) -> (i32, i32) {
    %c0_i32 = arith.constant 0 : i32
    %c0_i32_0 = arith.constant 0 : i32
    %c0_i32_1 = arith.constant 0 : i32
    return %c0_i32, %c0_i32_0 : i32, i32
  }
  func.func @transform_4(%arg0: i32) -> (i32, i32) {
    %c0_i32 = arith.constant 0 : i32
    %c0_i32_0 = arith.constant 0 : i32
    %c0_i32_1 = arith.constant 0 : i32
    return %c0_i32, %c0_i32_0 : i32, i32
  }
  func.func @transform_5(%arg0: i32) -> (i32, i32, i32) {
    %c0_i32 = arith.constant 0 : i32
    %c0_i32_0 = arith.constant 0 : i32
    %c0_i32_1 = arith.constant 0 : i32
    return %arg0, %c0_i32, %c0_i32_0 : i32, i32, i32
  }
  func.func @transform_6(%arg0: i32) -> (i32, i32, i32) {
    %c0_i32 = arith.constant 0 : i32
    %c0_i32_0 = arith.constant 0 : i32
    %c0_i32_1 = arith.constant 0 : i32
    return %arg0, %c0_i32, %c0_i32_0 : i32, i32, i32
  }
}

</mosaic_0001>

<llo_original>
// kernel: maddness_basic_block.1
$region0: #{maddness_basic_block.1}
  #allocation0 [shape = 'u32[]', space=smem, size = 0x4, offset = 0x4, fixed_abs, tag = 'smem constant byte address 0x4 - core index']
  #allocation1 [shape = 'u32[72,128]{1,0:T(1,128)}', space=vmem, size = 0x9000, scoped, tag = 'internal scratch']
  #allocation2 [shape = 'bf16[4,10,10,128]{3,2,1,0:T(8,128)(2,1)}', space=vmem, size = 0x28000, scoped, tag = 'scratch operand']
  #allocation3 [shape = 'bf16[4,64,1152]{2,1,0:T(8,128)(2,1)}', space=vmem, size = 0x90000, scoped, tag = 'scratch operand']
  %s0 = inlined_call_operand.vmem [shape: bf16[8,64,144], index: 0, kind: input, shape index: {}]
  %s1 = inlined_call_operand.vmem [shape: bf16[144,128], index: 1, kind: input, shape index: {}]
  %s2 = inlined_call_operand.vmem [shape: f32[1,128], index: 2, kind: input, shape index: {}]
  %s3 = inlined_call_operand.vmem [shape: bf16[1152,128], index: 3, kind: input, shape index: {}]
  %s4 = inlined_call_operand.vmem [shape: f32[1,128], index: 4, kind: input, shape index: {}]
  %s5 = inlined_call_operand.vmem [shape: bf16[8,64,128], index: 5, kind: input, shape index: {}]
  %s6 = inlined_call_operand.vmem [shape: bf16[8,64,128], index: 6, kind: output, shape index: {}]
  %s7 = sld [smem:[#allocation0]]
  $region57: #{maddness_basic_block.1} parent=0
    _
  %s9 = ssub.s32 1, %s7
  %s10 = scalar_select 0, %s9, %s7
  loop: start=0, step=1, limit=4
  $region2: #{maddness_basic_block.1} parent=0 // loop_pre_header
    _
  $region3: #{maddness_basic_block.1} parent=0 // loop_header
    %s12 = sphi 0, %s16
    %p13 = scmp.ge.s32.totalorder %s12, 4
    %s22 = sphi 0, %s24
    %s25 = sphi 0, %s22
    %s26 = sphi 0, %s25
    %s42 = sphi 0, %s26
    %s46 = sphi 0, %s46
    %s48 = sphi 0, %s46
    %s49 = sphi 0, %s48
    %s63 = sphi 0, %s49
    %s67 = sphi 0, %s67
    %s69 = sphi 0, %s67
    %s70 = sphi 0, %s69
    %s84 = sphi 0, %s70
    %s88 = sphi 0, %s88
    %s90 = sphi 0, %s88
    %s91 = sphi 0, %s90
    %s105 = sphi 0, %s91
    %s109 = sphi 0, %s109
    %s111 = sphi 0, %s109
    %s112 = sphi 0, %s111
    %s126 = sphi 0, %s112
    %s132 = sphi 0, %s134
    %s135 = sphi 0, %s132
    %s136 = sphi 0, %s135
    %s152 = sphi 0, %s136
    %s158 = sphi 0, %s160
    %s161 = sphi 0, %s158
    %s162 = sphi 0, %s161
    %s178 = sphi 0, %s162
  $region4: #{maddness_basic_block.1} parent=0 // loop_header_branch
    %15 = sbr.rel (%p13) target = $region8
  $region5: #{maddness_basic_block.1} parent=0 // loop_body
    %s17 = ssub.s32 %s12, 1
    %s18 = ssub.s32 %s12, 2
    %s19 = sadd.s32 %s12, 1
    %s20 = ssub.s32 %s12, %s19
    %p21 = scmp.eq.s32.totalorder %s20, 0
    %s23 = sadd.s32 %s22, 1
    %s24 = scalar_select %p21, %s22, %s23
    %p27 = pneg %p21
    %p28 = scmp.eq.s32.totalorder %s12, 1
    %p29 = por %p27, %p28
    %p30 = scmp.ne.s32.totalorder %s22, %s25
    %p31 = scmp.eq.s32.totalorder %s12, 0
    %p32 = por %p30, %p31
    %p33 = scmp.ne.s32.totalorder %s22, %s25
    %p34 = scmp.eq.s32.totalorder %s17, 1
    %p35 = por %p33, %p34
    %p36 = scmp.ne.s32.totalorder %s25, %s26
    %p37 = scmp.eq.s32.totalorder %s17, 0
    %p38 = por %p36, %p37
    %p39 = scmp.ne.s32.totalorder %s25, %s26
    %p40 = scmp.eq.s32.totalorder %s18, 1
    %p41 = por %p39, %p40
    %p43 = scmp.ne.s32.totalorder %s26, %s42
    %p44 = scmp.eq.s32.totalorder %s18, 0
    %p45 = por %p43, %p44
    %s47 = sadd.s32 %s46, 1
    %p50 = scmp.eq.s32.totalorder %s12, 1
    %p51 = scmp.ne.s32.totalorder %s46, %s48
    %p52 = scmp.eq.s32.totalorder %s12, 0
    %p53 = por %p51, %p52
    %p54 = scmp.ne.s32.totalorder %s46, %s48
    %p55 = scmp.eq.s32.totalorder %s17, 1
    %p56 = por %p54, %p55
    %p57 = scmp.ne.s32.totalorder %s48, %s49
    %p58 = scmp.eq.s32.totalorder %s17, 0
    %p59 = por %p57, %p58
    %p60 = scmp.ne.s32.totalorder %s48, %s49
    %p61 = scmp.eq.s32.totalorder %s18, 1
    %p62 = por %p60, %p61
    %p64 = scmp.ne.s32.totalorder %s49, %s63
    %p65 = scmp.eq.s32.totalorder %s18, 0
    %p66 = por %p64, %p65
    %s68 = sadd.s32 %s67, 1
    %p71 = scmp.eq.s32.totalorder %s12, 1
    %p72 = scmp.ne.s32.totalorder %s67, %s69
    %p73 = scmp.eq.s32.totalorder %s12, 0
    %p74 = por %p72, %p73
    %p75 = scmp.ne.s32.totalorder %s67, %s69
    %p76 = scmp.eq.s32.totalorder %s17, 1
    %p77 = por %p75, %p76
    %p78 = scmp.ne.s32.totalorder %s69, %s70
    %p79 = scmp.eq.s32.totalorder %s17, 0
    %p80 = por %p78, %p79
    %p81 = scmp.ne.s32.totalorder %s69, %s70
    %p82 = scmp.eq.s32.totalorder %s18, 1
    %p83 = por %p81, %p82
    %p85 = scmp.ne.s32.totalorder %s70, %s84
    %p86 = scmp.eq.s32.totalorder %s18, 0
    %p87 = por %p85, %p86
    %s89 = sadd.s32 %s88, 1
    %p92 = scmp.eq.s32.totalorder %s12, 1
    %p93 = scmp.ne.s32.totalorder %s88, %s90
    %p94 = scmp.eq.s32.totalorder %s12, 0
    %p95 = por %p93, %p94
    %p96 = scmp.ne.s32.totalorder %s88, %s90
    %p97 = scmp.eq.s32.totalorder %s17, 1
    %p98 = por %p96, %p97
    %p99 = scmp.ne.s32.totalorder %s90, %s91
    %p100 = scmp.eq.s32.totalorder %s17, 0
    %p101 = por %p99, %p100
    %p102 = scmp.ne.s32.totalorder %s90, %s91
    %p103 = scmp.eq.s32.totalorder %s18, 1
    %p104 = por %p102, %p103
    %p106 = scmp.ne.s32.totalorder %s91, %s105
    %p107 = scmp.eq.s32.totalorder %s18, 0
    %p108 = por %p106, %p107
    %s110 = sadd.s32 %s109, 1
    %p113 = scmp.eq.s32.totalorder %s12, 1
    %p114 = scmp.ne.s32.totalorder %s109, %s111
    %p115 = scmp.eq.s32.totalorder %s12, 0
    %p116 = por %p114, %p115
    %p117 = scmp.ne.s32.totalorder %s109, %s111
    %p118 = scmp.eq.s32.totalorder %s17, 1
    %p119 = por %p117, %p118
    %p120 = scmp.ne.s32.totalorder %s111, %s112
    %p121 = scmp.eq.s32.totalorder %s17, 0
    %p122 = por %p120, %p121
    %p123 = scmp.ne.s32.totalorder %s111, %s112
    %p124 = scmp.eq.s32.totalorder %s18, 1
    %p125 = por %p123, %p124
    %p127 = scmp.ne.s32.totalorder %s112, %s126
    %p128 = scmp.eq.s32.totalorder %s18, 0
    %p129 = por %p127, %p128
    %s130 = ssub.s32 %s12, %s19
    %p131 = scmp.eq.s32.totalorder %s130, 0
    %s133 = sadd.s32 %s132, 1
    %s134 = scalar_select %p131, %s132, %s133
    %p137 = pneg %p131
    %p138 = scmp.eq.s32.totalorder %s12, 1
    %p139 = por %p137, %p138
    %p140 = scmp.ne.s32.totalorder %s132, %s135
    %p141 = scmp.eq.s32.totalorder %s12, 0
    %p142 = por %p140, %p141
    %p143 = scmp.ne.s32.totalorder %s132, %s135
    %p144 = scmp.eq.s32.totalorder %s17, 1
    %p145 = por %p143, %p144
    %p146 = scmp.ne.s32.totalorder %s135, %s136
    %p147 = scmp.eq.s32.totalorder %s17, 0
    %p148 = por %p146, %p147
    %p149 = scmp.ne.s32.totalorder %s135, %s136
    %p150 = scmp.eq.s32.totalorder %s18, 1
    %p151 = por %p149, %p150
    %p153 = scmp.ne.s32.totalorder %s136, %s152
    %p154 = scmp.eq.s32.totalorder %s18, 0
    %p155 = por %p153, %p154
    %s156 = ssub.s32 %s12, %s19
    %p157 = scmp.eq.s32.totalorder %s156, 0
    %s159 = sadd.s32 %s158, 1
    %s160 = scalar_select %p157, %s158, %s159
    %p163 = pneg %p157
    %p164 = scmp.eq.s32.totalorder %s12, 1
    %p165 = por %p163, %p164
    %p166 = scmp.ne.s32.totalorder %s158, %s161
    %p167 = scmp.eq.s32.totalorder %s12, 0
    %p168 = por %p166, %p167
    %p169 = scmp.ne.s32.totalorder %s158, %s161
    %p170 = scmp.eq.s32.totalorder %s17, 1
    %p171 = por %p169, %p170
    %p172 = scmp.ne.s32.totalorder %s161, %s162
    %p173 = scmp.eq.s32.totalorder %s17, 0
    %p174 = por %p172, %p173
    %p175 = scmp.ne.s32.totalorder %s161, %s162
    %p176 = scmp.eq.s32.totalorder %s18, 1
    %p177 = por %p175, %p176
    %p179 = scmp.ne.s32.totalorder %s162, %s178
    %p180 = scmp.eq.s32.totalorder %s18, 0
    %p181 = por %p179, %p180
    %p182 = scmp.le.s32.totalorder 1, %s12
    %p183 = scmp.lt.s32.totalorder %s12, 3
    %p184 = pnand %p182, %p183
    %p185 = pneg %p184
    // Predicated region
    $region9: #{maddness_basic_block.1} parent=5 // pred_check
      _
    $region10: #{maddness_basic_block.1} parent=5 // pred_check_branch
      %187 = sbr.rel (%p184) target = $region12
    $region11: #{maddness_basic_block.1} parent=5 // pred_region
      %s188 = ssub.s32 %s12, 1
      // Predicated region
      $region13: #{maddness_basic_block.1} parent=11 // pred_check
        %p189 = pneg %p59
      $region14: #{maddness_basic_block.1} parent=11 // pred_check_branch
        %191 = sbr.rel (%p189) target = $region16
      $region15: #{maddness_basic_block.1} parent=11 // pred_region
        _
      $region16: #{maddness_basic_block.1} parent=11 // pred_fallthru
        _
      // Predicated region
      $region17: #{maddness_basic_block.1} parent=11 // pred_check
        %p192 = pneg %p80
      $region18: #{maddness_basic_block.1} parent=11 // pred_check_branch
        %194 = sbr.rel (%p192) target = $region20
      $region19: #{maddness_basic_block.1} parent=11 // pred_region
        _
      $region20: #{maddness_basic_block.1} parent=11 // pred_fallthru
        _
      // Predicated region
      $region21: #{maddness_basic_block.1} parent=11 // pred_check
        %p195 = pneg %p101
      $region22: #{maddness_basic_block.1} parent=11 // pred_check_branch
        %197 = sbr.rel (%p195) target = $region24
      $region23: #{maddness_basic_block.1} parent=11 // pred_region
        _
      $region24: #{maddness_basic_block.1} parent=11 // pred_fallthru
        _
      // Predicated region
      $region25: #{maddness_basic_block.1} parent=11 // pred_check
        %p198 = pneg %p122
      $region26: #{maddness_basic_block.1} parent=11 // pred_check_branch
        %200 = sbr.rel (%p198) target = $region28
      $region27: #{maddness_basic_block.1} parent=11 // pred_region
        _
      $region28: #{maddness_basic_block.1} parent=11 // pred_fallthru
        _
    $region12: #{maddness_basic_block.1} parent=5 // pred_fallthru
      _
    %p201 = scmp.lt.s32.totalorder %s12, 2
    // Predicated region
    $region29: #{maddness_basic_block.1} parent=5 // pred_check
      %p202 = pneg %p201
    $region30: #{maddness_basic_block.1} parent=5 // pred_check_branch
      %204 = sbr.rel (%p202) target = $region32
    $region31: #{maddness_basic_block.1} parent=5 // pred_region
      // Predicated region
      $region33: #{maddness_basic_block.1} parent=31 // pred_check
        %p205 = pneg %p32
      $region34: #{maddness_basic_block.1} parent=31 // pred_check_branch
        %207 = sbr.rel (%p205) target = $region36
      $region35: #{maddness_basic_block.1} parent=31 // pred_region
        %s208 = smul.u32 4, %s12
        %p209 = scmp.lt.s32.totalorder %s208, 7
        %s210 = scalar_select %p209, %s208, 7
        %s211 = smul.addr %s210, 16
        %s212 = smul.addr %s211, 4
        %s213 = scalar_lea.vmem %s0, %s212
        %s214 = smul.u32 4, %s12
      $region36: #{maddness_basic_block.1} parent=31 // pred_fallthru
        _
      // Predicated region
      $region37: #{maddness_basic_block.1} parent=31 // pred_check
        %p215 = pneg %p142
      $region38: #{maddness_basic_block.1} parent=31 // pred_check_branch
        %217 = sbr.rel (%p215) target = $region40
      $region39: #{maddness_basic_block.1} parent=31 // pred_region
        %s218 = smul.u32 4, %s12
        %p219 = scmp.lt.s32.totalorder %s218, 7
        %s220 = scalar_select %p219, %s218, 7
        %s221 = smul.addr %s220, 8
        %s222 = smul.addr %s221, 4
        %s223 = scalar_lea.vmem %s5, %s222
        %s224 = smul.u32 4, %s12
      $region40: #{maddness_basic_block.1} parent=31 // pred_fallthru
        _
    $region32: #{maddness_basic_block.1} parent=5 // pred_fallthru
      _
    %p225 = scmp.le.s32.totalorder 1, %s12
    %p226 = scmp.lt.s32.totalorder %s12, 3
    %p227 = pnand %p225, %p226
    %p228 = pneg %p227
    // Predicated region
    $region41: #{maddness_basic_block.1} parent=5 // pred_check
      _
    $region42: #{maddness_basic_block.1} parent=5 // pred_check_branch
      %230 = sbr.rel (%p227) target = $region44
    $region43: #{maddness_basic_block.1} parent=5 // pred_region
      %s231 = ssub.s32 %s12, 1
      %s232 = smul.u32 4, %s17
      %p233 = scmp.lt.s32.totalorder %s232, 7
      %s234 = scalar_select %p233, %s232, 7
      %s235 = smul.addr %s234, 16
      %s236 = smul.addr %s235, 4
      %s237 = scalar_lea.vmem %s0, %s236
      %p238 = pneg %p38
      %p239 = pneg %p35
      %p240 = pneg %p59
      %p241 = pneg %p56
      %p242 = pneg %p80
      %p243 = pneg %p77
      %p244 = pneg %p101
      %p245 = pneg %p98
      %p246 = pneg %p122
      %p247 = pneg %p119
      %s248 = smul.u32 4, %s17
      %p249 = scmp.lt.s32.totalorder %s248, 7
      %s250 = scalar_select %p249, %s248, 7
      %s251 = smul.addr %s250, 8
      %s252 = smul.addr %s251, 4
      %s253 = scalar_lea.vmem %s5, %s252
      %p254 = pneg %p148
      %p255 = pneg %p145
      %p256 = pneg %p174
      %p257 = pneg %p171
      %s258 = smul.u32 4, %s17
      %p259 = scmp.lt.s32.totalorder %s258, 7
      %s260 = scalar_select %p259, %s258, 7
      %s261 = smul.addr %s260, 8
      %s262 = smul.addr %s261, 4
      %s263 = scalar_lea.vmem %s6, %s262
      %s264 = smul.u32 4, %s17
      %p265 = scmp.lt.s32.totalorder %s264, 7
      %s266 = scalar_select %p265, %s264, 7
      %s267 = smul.addr %s266, 16
      %s268 = smul.addr %s267, 4
      %s269 = scalar_lea.vmem %s0, %s268
      %s270 = smul.u32 4, %s17
      %s271 = smul.u32 4, %s17
      %p272 = scmp.lt.s32.totalorder %s271, 7
      %s273 = scalar_select %p272, %s271, 7
      %s274 = smul.addr %s273, 8
      %s275 = smul.addr %s274, 4
      %s276 = scalar_lea.vmem %s5, %s275
      %s277 = smul.u32 4, %s17
      %s278 = smul.u32 4, %s17
      %p279 = scmp.lt.s32.totalorder %s278, 7
      %s280 = scalar_select %p279, %s278, 7
      %s281 = smul.addr %s280, 8
      %s282 = smul.addr %s281, 4
      %s283 = scalar_lea.vmem %s6, %s282
      %s284 = smul.u32 4, %s17
      %v286 = vld [vmem:[%s269] sm:$0xff]
      %v287 = vld [vmem:[%s269 + $0x8] sm:$0xff]
      %v288 = vld [vmem:[%s269 + $0x10] sm:$0xff]
      %v289 = vld [vmem:[%s269 + $0x18] sm:$0xff]
      %v290 = vld [vmem:[%s269 + $0x20] sm:$0xff]
      %v291 = vld [vmem:[%s269 + $0x28] sm:$0xff]
      %v292 = vld [vmem:[%s269 + $0x30] sm:$0xff]
      %v293 = vld [vmem:[%s269 + $0x38] sm:$0xff]
      %v294 = vld [vmem:[%s269 + $0x40] sm:$0xff]
      %v295 = vld [vmem:[%s269 + $0x48] sm:$0xff]
      %v296 = vld [vmem:[%s269 + $0x50] sm:$0xff]
      %v297 = vld [vmem:[%s269 + $0x58] sm:$0xff]
      %v298 = vld [vmem:[%s269 + $0x60] sm:$0xff]
      %v299 = vld [vmem:[%s269 + $0x68] sm:$0xff]
      %v300 = vld [vmem:[%s269 + $0x70] sm:$0xff]
      %v301 = vld [vmem:[%s269 + $0x78] sm:$0xff]
      %v302 = vld [vmem:[%s269 + $0x80] sm:$0xff]
      %v303 = vld [vmem:[%s269 + $0x88] sm:$0xff]
      %v304 = vld [vmem:[%s269 + $0x90] sm:$0xff]
      %v305 = vld [vmem:[%s269 + $0x98] sm:$0xff]
      %v306 = vld [vmem:[%s269 + $0xa0] sm:$0xff]
      %v307 = vld [vmem:[%s269 + $0xa8] sm:$0xff]
      %v308 = vld [vmem:[%s269 + $0xb0] sm:$0xff]
      %v309 = vld [vmem:[%s269 + $0xb8] sm:$0xff]
      %v310 = vld [vmem:[%s269 + $0xc0] sm:$0xff]
      %v311 = vld [vmem:[%s269 + $0xc8] sm:$0xff]
      %v312 = vld [vmem:[%s269 + $0xd0] sm:$0xff]
      %v313 = vld [vmem:[%s269 + $0xd8] sm:$0xff]
      %v314 = vld [vmem:[%s269 + $0xe0] sm:$0xff]
      %v315 = vld [vmem:[%s269 + $0xe8] sm:$0xff]
      %v316 = vld [vmem:[%s269 + $0xf0] sm:$0xff]
      %v317 = vld [vmem:[%s269 + $0xf8] sm:$0xff]
      %v318 = vld [vmem:[%s1] sm:$0xf]
      %v319 = vld [vmem:[%s1 + $0x4] sm:$0xf]
      %v320 = vld [vmem:[%s1 + $0x8] sm:$0xf]
      %v321 = vld [vmem:[%s1 + $0xc] sm:$0xf]
      %v322 = vld [vmem:[%s1 + $0x10] sm:$0xf]
      %v323 = vld [vmem:[%s1 + $0x14] sm:$0xf]
      %v324 = vld [vmem:[%s1 + $0x18] sm:$0xf]
      %v325 = vld [vmem:[%s1 + $0x1c] sm:$0xf]
      %v326 = vld [vmem:[%s1 + $0x20] sm:$0xf]
      %v327 = vld [vmem:[%s1 + $0x24] sm:$0xf]
      %v328 = vld [vmem:[%s1 + $0x28] sm:$0xf]
      %v329 = vld [vmem:[%s1 + $0x2c] sm:$0xf]
      %v330 = vld [vmem:[%s1 + $0x30] sm:$0xf]
      %v331 = vld [vmem:[%s1 + $0x34] sm:$0xf]
      %v332 = vld [vmem:[%s1 + $0x38] sm:$0xf]
      %v333 = vld [vmem:[%s1 + $0x3c] sm:$0xf]
      %v334 = vld [vmem:[%s1 + $0x40] sm:$0xf]
      %v335 = vld [vmem:[%s1 + $0x44] sm:$0xf]
      %v336 = vld [vmem:[%s2] sm:$0x1]
      %v338 = vperm.slane %v336, 0
      %v372 = vunpack.c.l.b16 %v286
      %v373 = vunpack.c.h.b16 %v286
      %v374 = vunpack.c.l.b16 %v287
      %v375 = vunpack.c.h.b16 %v287
      %v376 = vunpack.c.l.b16 %v288
      %v377 = vunpack.c.h.b16 %v288
      %v378 = vunpack.c.l.b16 %v289
      %v379 = vunpack.c.h.b16 %v289
      %v380 = vunpack.c.l.b16 %v290
      %v381 = vunpack.c.h.b16 %v290
      %v382 = vunpack.c.l.b16 %v291
      %v383 = vunpack.c.h.b16 %v291
      %v384 = vunpack.c.l.b16 %v292
      %v385 = vunpack.c.h.b16 %v292
      %v386 = vunpack.c.l.b16 %v293
      %v387 = vunpack.c.h.b16 %v293
      %v388 = vunpack.c.l.b16 %v294
      %v389 = vunpack.c.h.b16 %v294
      %v390 = vunpack.c.l.b16 %v295
      %v391 = vunpack.c.h.b16 %v295
      %v392 = vunpack.c.l.b16 %v296
      %v393 = vunpack.c.h.b16 %v296
      %v394 = vunpack.c.l.b16 %v297
      %v395 = vunpack.c.h.b16 %v297
      %v396 = vunpack.c.l.b16 %v298
      %v397 = vunpack.c.h.b16 %v298
      %v398 = vunpack.c.l.b16 %v299
      %v399 = vunpack.c.h.b16 %v299
      %v400 = vunpack.c.l.b16 %v300
      %v401 = vunpack.c.h.b16 %v300
      %v402 = vunpack.c.l.b16 %v301
      %v403 = vunpack.c.h.b16 %v301
      %v404 = vunpack.c.l.b16 %v302
      %v405 = vunpack.c.h.b16 %v302
      %v406 = vunpack.c.l.b16 %v303
      %v407 = vunpack.c.h.b16 %v303
      %v408 = vunpack.c.l.b16 %v304
      %v409 = vunpack.c.h.b16 %v304
      %v410 = vunpack.c.l.b16 %v305
      %v411 = vunpack.c.h.b16 %v305
      %v412 = vunpack.c.l.b16 %v306
      %v413 = vunpack.c.h.b16 %v306
      %v414 = vunpack.c.l.b16 %v307
      %v415 = vunpack.c.h.b16 %v307
      %v416 = vunpack.c.l.b16 %v308
      %v417 = vunpack.c.h.b16 %v308
      %v418 = vunpack.c.l.b16 %v309
      %v419 = vunpack.c.h.b16 %v309
      %v420 = vunpack.c.l.b16 %v310
      %v421 = vunpack.c.h.b16 %v310
      %v422 = vunpack.c.l.b16 %v311
      %v423 = vunpack.c.h.b16 %v311
      %v424 = vunpack.c.l.b16 %v312
      %v425 = vunpack.c.h.b16 %v312
      %v426 = vunpack.c.l.b16 %v313
      %v427 = vunpack.c.h.b16 %v313
      %v428 = vunpack.c.l.b16 %v314
      %v429 = vunpack.c.h.b16 %v314
      %v430 = vunpack.c.l.b16 %v315
      %v431 = vunpack.c.h.b16 %v315
      %v432 = vunpack.c.l.b16 %v316
      %v433 = vunpack.c.h.b16 %v316
      %v434 = vunpack.c.l.b16 %v317
      %v435 = vunpack.c.h.b16 %v317
      %v436 = vpack.c.b16 %v374, %v372
      %v437 = vpack.c.b16 %v375, %v373
      %v438 = vpack.c.b16 %v378, %v376
      %v439 = vpack.c.b16 %v379, %v377
      %v440 = vpack.c.b16 %v382, %v380
      %v441 = vpack.c.b16 %v383, %v381
      %v442 = vpack.c.b16 %v386, %v384
      %v443 = vpack.c.b16 %v387, %v385
      %v444 = vpack.c.b16 %v390, %v388
      %v445 = vpack.c.b16 %v391, %v389
      %v446 = vpack.c.b16 %v394, %v392
      %v447 = vpack.c.b16 %v395, %v393
      %v448 = vpack.c.b16 %v398, %v396
      %v449 = vpack.c.b16 %v399, %v397
      %v450 = vpack.c.b16 %v402, %v400
      %v451 = vpack.c.b16 %v403, %v401
      %v452 = vpack.c.b16 %v406, %v404
      %v453 = vpack.c.b16 %v407, %v405
      %v454 = vpack.c.b16 %v410, %v408
      %v455 = vpack.c.b16 %v411, %v409
      %v456 = vpack.c.b16 %v414, %v412
      %v457 = vpack.c.b16 %v415, %v413
      %v458 = vpack.c.b16 %v418, %v416
      %v459 = vpack.c.b16 %v419, %v417
      %v460 = vpack.c.b16 %v422, %v420
      %v461 = vpack.c.b16 %v423, %v421
      %v462 = vpack.c.b16 %v426, %v424
      %v463 = vpack.c.b16 %v427, %v425
      %v464 = vpack.c.b16 %v430, %v428
      %v465 = vpack.c.b16 %v431, %v429
      %v466 = vpack.c.b16 %v434, %v432
      %v467 = vpack.c.b16 %v435, %v433
      %v502 = vunpack.c.l.b16 %v318
      %v503 = vunpack.c.l.b16 %v319
      %v504 = vunpack.c.l.b16 %v320
      %v505 = vunpack.c.l.b16 %v321
      %v506 = vunpack.c.l.b16 %v322
      %v507 = vunpack.c.l.b16 %v323
      %v508 = vunpack.c.l.b16 %v324
      %v509 = vunpack.c.l.b16 %v325
      %v510 = vunpack.c.l.b16 %v326
      %v511 = vunpack.c.l.b16 %v327
      %v512 = vunpack.c.l.b16 %v328
      %v513 = vunpack.c.l.b16 %v329
      %v514 = vunpack.c.l.b16 %v330
      %v515 = vunpack.c.l.b16 %v331
      %v516 = vunpack.c.l.b16 %v332
      %v517 = vunpack.c.l.b16 %v333
      %v518 = vunpack.c.l.b16 %v334
      %v519 = vunpack.c.l.b16 %v335
      %v520 = vpack.c.b16 %v503, %v502
      %v521 = vpack.c.b16 %v505, %v504
      %v522 = vpack.c.b16 %v507, %v506
      %v523 = vpack.c.b16 %v509, %v508
      %v524 = vpack.c.b16 %v511, %v510
      %v525 = vpack.c.b16 %v513, %v512
      %v526 = vpack.c.b16 %v515, %v514
      %v527 = vpack.c.b16 %v517, %v516
      %v528 = vpack.c.b16 %v519, %v518
      %vm538 = vcmask 130048
      %v540 = vsel %vm538, %v437, 0
      %v543 = vsel %vm538, %v439, 0
      %v546 = vsel %vm538, %v441, 0
      %v549 = vsel %vm538, %v443, 0
      %v552 = vsel %vm538, %v445, 0
      %v555 = vsel %vm538, %v447, 0
      %v558 = vsel %vm538, %v449, 0
      %v561 = vsel %vm538, %v451, 0
      %v564 = vsel %vm538, %v453, 0
      %v567 = vsel %vm538, %v455, 0
      %v570 = vsel %vm538, %v457, 0
      %v573 = vsel %vm538, %v459, 0
      %v576 = vsel %vm538, %v461, 0
      %v579 = vsel %vm538, %v463, 0
      %v582 = vsel %vm538, %v465, 0
      %v585 = vsel %vm538, %v467, 0
      %587 = vmatpush.bf16.msra.mxu0 %v527
      %588 = vmatpush.bf16.msra.mxu0 %v526
      %589 = vmatpush.bf16.msra.mxu0 %v525
      %590 = vmatpush.bf16.msra.mxu0 %v524
      %591 = vmatpush.bf16.msra.mxu0 %v523
      %592 = vmatpush.bf16.msra.mxu0 %v522
      %593 = vmatpush.bf16.msra.mxu0 %v521
      %594 = vmatpush.bf16.msra.mxu0 %v520
      %595 = vmatmul.bf16.gmra.mxu0 %v436
      %v596 = vpop.f32.mrf.mxu0
      %v597 = vadd.f32 %v338, %v596
      %v598 = vpop.f32.mrf.mxu0
      %v599 = vadd.f32 %v338, %v598
      %600 = vmatmul.bf16.gmra.mxu0 %v438
      %v601 = vpop.f32.mrf.mxu0
      %v602 = vadd.f32 %v338, %v601
      %v603 = vpop.f32.mrf.mxu0
      %v604 = vadd.f32 %v338, %v603
      %605 = vmatmul.bf16.gmra.mxu0 %v440
      %v606 = vpop.f32.mrf.mxu0
      %v607 = vadd.f32 %v338, %v606
      %v608 = vpop.f32.mrf.mxu0
      %v609 = vadd.f32 %v338, %v608
      %610 = vmatmul.bf16.gmra.mxu0 %v442
      %v611 = vpop.f32.mrf.mxu0
      %v612 = vadd.f32 %v338, %v611
      %v613 = vpop.f32.mrf.mxu0
      %v614 = vadd.f32 %v338, %v613
      %615 = vmatmul.bf16.gmra.mxu0 %v444
      %v616 = vpop.f32.mrf.mxu0
      %v617 = vadd.f32 %v338, %v616
      %v618 = vpop.f32.mrf.mxu0
      %v619 = vadd.f32 %v338, %v618
      %620 = vmatmul.bf16.gmra.mxu0 %v446
      %v621 = vpop.f32.mrf.mxu0
      %v622 = vadd.f32 %v338, %v621
      %v623 = vpop.f32.mrf.mxu0
      %v624 = vadd.f32 %v338, %v623
      %625 = vmatmul.bf16.gmra.mxu0 %v448
      %v626 = vpop.f32.mrf.mxu0
      %v627 = vadd.f32 %v338, %v626
      %v628 = vpop.f32.mrf.mxu0
      %v629 = vadd.f32 %v338, %v628
      %630 = vmatmul.bf16.gmra.mxu0 %v450
      %v631 = vpop.f32.mrf.mxu0
      %v632 = vadd.f32 %v338, %v631
      %v633 = vpop.f32.mrf.mxu0
      %v634 = vadd.f32 %v338, %v633
      %635 = vmatmul.bf16.gmra.mxu0 %v452
      %v636 = vpop.f32.mrf.mxu0
      %v637 = vadd.f32 %v338, %v636
      %v638 = vpop.f32.mrf.mxu0
      %v639 = vadd.f32 %v338, %v638
      %640 = vmatmul.bf16.gmra.mxu0 %v454
      %v641 = vpop.f32.mrf.mxu0
      %v642 = vadd.f32 %v338, %v641
      %v643 = vpop.f32.mrf.mxu0
      %v644 = vadd.f32 %v338, %v643
      %645 = vmatmul.bf16.gmra.mxu0 %v456
      %v646 = vpop.f32.mrf.mxu0
      %v647 = vadd.f32 %v338, %v646
      %v648 = vpop.f32.mrf.mxu0
      %v649 = vadd.f32 %v338, %v648
      %650 = vmatmul.bf16.gmra.mxu0 %v458
      %v651 = vpop.f32.mrf.mxu0
      %v652 = vadd.f32 %v338, %v651
      %v653 = vpop.f32.mrf.mxu0
      %v654 = vadd.f32 %v338, %v653
      %655 = vmatmul.bf16.gmra.mxu0 %v460
      %v656 = vpop.f32.mrf.mxu0
      %v657 = vadd.f32 %v338, %v656
      %v658 = vpop.f32.mrf.mxu0
      %v659 = vadd.f32 %v338, %v658
      %660 = vmatmul.bf16.gmra.mxu0 %v462
      %v661 = vpop.f32.mrf.mxu0
      %v662 = vadd.f32 %v338, %v661
      %v663 = vpop.f32.mrf.mxu0
      %v664 = vadd.f32 %v338, %v663
      %665 = vmatmul.bf16.gmra.mxu0 %v464
      %v666 = vpop.f32.mrf.mxu0
      %v667 = vadd.f32 %v338, %v666
      %v668 = vpop.f32.mrf.mxu0
      %v669 = vadd.f32 %v338, %v668
      %670 = vmatmul.bf16.gmra.mxu0 %v466
      %v671 = vpop.f32.mrf.mxu0
      %v672 = vadd.f32 %v338, %v671
      %v673 = vpop.f32.mrf.mxu0
      %v674 = vadd.f32 %v338, %v673
      %675 = vdwg.mxu0
      %676 = vmatpush.bf16.msra.mxu0 0
      %677 = vmatpush.bf16.msra.mxu0 0
      %678 = vmatpush.bf16.msra.mxu0 0
      %679 = vmatpush.bf16.msra.mxu0 0
      %680 = vmatpush.bf16.msra.mxu0 0
      %681 = vmatpush.bf16.msra.mxu0 0
      %682 = vmatpush.bf16.msra.mxu0 0
      %683 = vmatpush.bf16.msra.mxu0 %v528
      %684 = vmatmul.bf16.gmra.mxu0 %v540
      %v685 = vpop.f32.mrf.mxu0
      %v686 = vadd.f32 %v597, %v685
      %v687 = vpop.f32.mrf.mxu0
      %v688 = vadd.f32 %v599, %v687
      %689 = vmatmul.bf16.gmra.mxu0 %v543
      %v690 = vpop.f32.mrf.mxu0
      %v691 = vadd.f32 %v602, %v690
      %v692 = vpop.f32.mrf.mxu0
      %v693 = vadd.f32 %v604, %v692
      %694 = vmatmul.bf16.gmra.mxu0 %v546
      %v695 = vpop.f32.mrf.mxu0
      %v696 = vadd.f32 %v607, %v695
      %v697 = vpop.f32.mrf.mxu0
      %v698 = vadd.f32 %v609, %v697
      %699 = vmatmul.bf16.gmra.mxu0 %v549
      %v700 = vpop.f32.mrf.mxu0
      %v701 = vadd.f32 %v612, %v700
      %v702 = vpop.f32.mrf.mxu0
      %v703 = vadd.f32 %v614, %v702
      %704 = vmatmul.bf16.gmra.mxu0 %v552
      %v705 = vpop.f32.mrf.mxu0
      %v706 = vadd.f32 %v617, %v705
      %v707 = vpop.f32.mrf.mxu0
      %v708 = vadd.f32 %v619, %v707
      %709 = vmatmul.bf16.gmra.mxu0 %v555
      %v710 = vpop.f32.mrf.mxu0
      %v711 = vadd.f32 %v622, %v710
      %v712 = vpop.f32.mrf.mxu0
      %v713 = vadd.f32 %v624, %v712
      %714 = vmatmul.bf16.gmra.mxu0 %v558
      %v715 = vpop.f32.mrf.mxu0
      %v716 = vadd.f32 %v627, %v715
      %v717 = vpop.f32.mrf.mxu0
      %v718 = vadd.f32 %v629, %v717
      %719 = vmatmul.bf16.gmra.mxu0 %v561
      %v720 = vpop.f32.mrf.mxu0
      %v721 = vadd.f32 %v632, %v720
      %v722 = vpop.f32.mrf.mxu0
      %v723 = vadd.f32 %v634, %v722
      %724 = vmatmul.bf16.gmra.mxu0 %v564
      %v725 = vpop.f32.mrf.mxu0
      %v726 = vadd.f32 %v637, %v725
      %v727 = vpop.f32.mrf.mxu0
      %v728 = vadd.f32 %v639, %v727
      %729 = vmatmul.bf16.gmra.mxu0 %v567
      %v730 = vpop.f32.mrf.mxu0
      %v731 = vadd.f32 %v642, %v730
      %v732 = vpop.f32.mrf.mxu0
      %v733 = vadd.f32 %v644, %v732
      %734 = vmatmul.bf16.gmra.mxu0 %v570
      %v735 = vpop.f32.mrf.mxu0
      %v736 = vadd.f32 %v647, %v735
      %v737 = vpop.f32.mrf.mxu0
      %v738 = vadd.f32 %v649, %v737
      %739 = vmatmul.bf16.gmra.mxu0 %v573
      %v740 = vpop.f32.mrf.mxu0
      %v741 = vadd.f32 %v652, %v740
      %v742 = vpop.f32.mrf.mxu0
      %v743 = vadd.f32 %v654, %v742
      %744 = vmatmul.bf16.gmra.mxu0 %v576
      %v745 = vpop.f32.mrf.mxu0
      %v746 = vadd.f32 %v657, %v745
      %v747 = vpop.f32.mrf.mxu0
      %v748 = vadd.f32 %v659, %v747
      %749 = vmatmul.bf16.gmra.mxu0 %v579
      %v750 = vpop.f32.mrf.mxu0
      %v751 = vadd.f32 %v662, %v750
      %v752 = vpop.f32.mrf.mxu0
      %v753 = vadd.f32 %v664, %v752
      %754 = vmatmul.bf16.gmra.mxu0 %v582
      %v755 = vpop.f32.mrf.mxu0
      %v756 = vadd.f32 %v667, %v755
      %v757 = vpop.f32.mrf.mxu0
      %v758 = vadd.f32 %v669, %v757
      %759 = vmatmul.bf16.gmra.mxu0 %v585
      %v760 = vpop.f32.mrf.mxu0
      %v761 = vadd.f32 %v672, %v760
      %v762 = vpop.f32.mrf.mxu0
      %v763 = vadd.f32 %v674, %v762
      %764 = vdwg.mxu0
      %v765 = vmax.f32 %v686, 0.0
      %v766 = vmax.f32 %v688, 0.0
      %v767 = vmax.f32 %v691, 0.0
      %v768 = vmax.f32 %v693, 0.0
      %v769 = vmax.f32 %v696, 0.0
      %v770 = vmax.f32 %v698, 0.0
      %v771 = vmax.f32 %v701, 0.0
      %v772 = vmax.f32 %v703, 0.0
      %v773 = vmax.f32 %v706, 0.0
      %v774 = vmax.f32 %v708, 0.0
      %v775 = vmax.f32 %v711, 0.0
      %v776 = vmax.f32 %v713, 0.0
      %v777 = vmax.f32 %v716, 0.0
      %v778 = vmax.f32 %v718, 0.0
      %v779 = vmax.f32 %v721, 0.0
      %v780 = vmax.f32 %v723, 0.0
      %v781 = vmax.f32 %v726, 0.0
      %v782 = vmax.f32 %v728, 0.0
      %v783 = vmax.f32 %v731, 0.0
      %v784 = vmax.f32 %v733, 0.0
      %v785 = vmax.f32 %v736, 0.0
      %v786 = vmax.f32 %v738, 0.0
      %v787 = vmax.f32 %v741, 0.0
      %v788 = vmax.f32 %v743, 0.0
      %v789 = vmax.f32 %v746, 0.0
      %v790 = vmax.f32 %v748, 0.0
      %v791 = vmax.f32 %v751, 0.0
      %v792 = vmax.f32 %v753, 0.0
      %v793 = vmax.f32 %v756, 0.0
      %v794 = vmax.f32 %v758, 0.0
      %v795 = vmax.f32 %v761, 0.0
      %v796 = vmax.f32 %v763, 0.0
      %v797 = vpack.c.bf16 %v765, %v765
      %v798 = vpack.c.bf16 %v766, %v766
      %v799 = vpack.c.bf16 %v767, %v767
      %v800 = vpack.c.bf16 %v768, %v768
      %v801 = vpack.c.bf16 %v769, %v769
      %v802 = vpack.c.bf16 %v770, %v770
      %v803 = vpack.c.bf16 %v771, %v771
      %v804 = vpack.c.bf16 %v772, %v772
      %v805 = vpack.c.bf16 %v773, %v773
      %v806 = vpack.c.bf16 %v774, %v774
      %v807 = vpack.c.bf16 %v775, %v775
      %v808 = vpack.c.bf16 %v776, %v776
      %v809 = vpack.c.bf16 %v777, %v777
      %v810 = vpack.c.bf16 %v778, %v778
      %v811 = vpack.c.bf16 %v779, %v779
      %v812 = vpack.c.bf16 %v780, %v780
      %v813 = vpack.c.bf16 %v781, %v781
      %v814 = vpack.c.bf16 %v782, %v782
      %v815 = vpack.c.bf16 %v783, %v783
      %v816 = vpack.c.bf16 %v784, %v784
      %v817 = vpack.c.bf16 %v785, %v785
      %v818 = vpack.c.bf16 %v786, %v786
      %v819 = vpack.c.bf16 %v787, %v787
      %v820 = vpack.c.bf16 %v788, %v788
      %v821 = vpack.c.bf16 %v789, %v789
      %v822 = vpack.c.bf16 %v790, %v790
      %v823 = vpack.c.bf16 %v791, %v791
      %v824 = vpack.c.bf16 %v792, %v792
      %v825 = vpack.c.bf16 %v793, %v793
      %v826 = vpack.c.bf16 %v794, %v794
      %v827 = vpack.c.bf16 %v795, %v795
      %v828 = vpack.c.bf16 %v796, %v796
      %829 = vst [vmem:[#allocation2] sm:$0xf] 0
      %830 = vst [vmem:[#allocation2 + $0x4] sm:$0x1] 0
      %s831 = scalar_lea.vmem [#allocation2], 72
      %832 = vst [vmem:[%s831] sm:$0xf] 0
      %833 = vst [vmem:[%s831 + $0x4] sm:$0x1] 0
      %s834 = scalar_lea.vmem [#allocation2], 8
      %vm835 = vcmask 1040384
      %vm836 = vsmask.f32 256
      %vm837 = vmand %vm835, %vm836
      %v838 = vld [vmem:[%s834] sm:$0x1]
      %v839 = vsel %vm837, 0, %v838
      %840 = vst [vmem:[%s834] sm:$0x1] %v839
      %v841 = vld [vmem:[%s834 + $0x8] sm:$0x1]
      %v842 = vsel %vm837, 0, %v841
      %843 = vst [vmem:[%s834 + $0x8] sm:$0x1] %v842
      %v844 = vld [vmem:[%s834 + $0x10] sm:$0x1]
      %v845 = vsel %vm837, 0, %v844
      %846 = vst [vmem:[%s834 + $0x10] sm:$0x1] %v845
      %v847 = vld [vmem:[%s834 + $0x18] sm:$0x1]
      %v848 = vsel %vm837, 0, %v847
      %849 = vst [vmem:[%s834 + $0x18] sm:$0x1] %v848
      %v850 = vld [vmem:[%s834 + $0x20] sm:$0x1]
      %v851 = vsel %vm837, 0, %v850
      %852 = vst [vmem:[%s834 + $0x20] sm:$0x1] %v851
      %v853 = vld [vmem:[%s834 + $0x28] sm:$0x1]
      %v854 = vsel %vm837, 0, %v853
      %855 = vst [vmem:[%s834 + $0x28] sm:$0x1] %v854
      %v856 = vld [vmem:[%s834 + $0x30] sm:$0x1]
      %v857 = vsel %vm837, 0, %v856
      %858 = vst [vmem:[%s834 + $0x30] sm:$0x1] %v857
      %v859 = vld [vmem:[%s834 + $0x38] sm:$0x1]
      %v860 = vsel %vm837, 0, %v859
      %861 = vst [vmem:[%s834 + $0x38] sm:$0x1] %v860
      %vm862 = vsmask.f32 7938
      %vm863 = vmand %vm835, %vm862
      %v864 = vld [vmem:[%s834 + $0x4] sm:$0x1]
      %v865 = vsel %vm863, 0, %v864
      %866 = vst [vmem:[%s834 + $0x4] sm:$0x1] %v865
      %v867 = vld [vmem:[%s834 + $0xc] sm:$0x1]
      %v868 = vsel %vm863, 0, %v867
      %869 = vst [vmem:[%s834 + $0xc] sm:$0x1] %v868
      %v870 = vld [vmem:[%s834 + $0x14] sm:$0x1]
      %v871 = vsel %vm863, 0, %v870
      %872 = vst [vmem:[%s834 + $0x14] sm:$0x1] %v871
      %v873 = vld [vmem:[%s834 + $0x1c] sm:$0x1]
      %v874 = vsel %vm863, 0, %v873
      %875 = vst [vmem:[%s834 + $0x1c] sm:$0x1] %v874
      %v876 = vld [vmem:[%s834 + $0x24] sm:$0x1]
      %v877 = vsel %vm863, 0, %v876
      %878 = vst [vmem:[%s834 + $0x24] sm:$0x1] %v877
      %v879 = vld [vmem:[%s834 + $0x2c] sm:$0x1]
      %v880 = vsel %vm863, 0, %v879
      %881 = vst [vmem:[%s834 + $0x2c] sm:$0x1] %v880
      %v882 = vld [vmem:[%s834 + $0x34] sm:$0x1]
      %v883 = vsel %vm863, 0, %v882
      %884 = vst [vmem:[%s834 + $0x34] sm:$0x1] %v883
      %v885 = vld [vmem:[%s834 + $0x3c] sm:$0x1]
      %v886 = vsel %vm863, 0, %v885
      %887 = vst [vmem:[%s834 + $0x3c] sm:$0x1] %v886
      %v889 = vshrl.u32 %v797, 16
      %v891 = vrot.slane %v889, 7
      %v892 = vshll.u32 %v797, 16
      %v894 = vor.u32 %v891, %v892
      %v895 = vrot.slane %v891, 4
      %v897 = vshrl.u32 %v798, 16
      %v899 = vrot.slane %v897, 7
      %v900 = vshll.u32 %v798, 16
      %v902 = vor.u32 %v899, %v900
      %v903 = vrot.slane %v899, 4
      %v905 = vshrl.u32 %v799, 16
      %v907 = vrot.slane %v905, 7
      %v908 = vshll.u32 %v799, 16
      %v910 = vor.u32 %v907, %v908
      %v911 = vrot.slane %v907, 4
      %v913 = vshrl.u32 %v800, 16
      %v915 = vrot.slane %v913, 7
      %v916 = vshll.u32 %v800, 16
      %v918 = vor.u32 %v915, %v916
      %v919 = vrot.slane %v915, 4
      %v921 = vshrl.u32 %v801, 16
      %v923 = vrot.slane %v921, 7
      %v924 = vshll.u32 %v801, 16
      %v926 = vor.u32 %v923, %v924
      %v927 = vrot.slane %v923, 4
      %v929 = vshrl.u32 %v802, 16
      %v931 = vrot.slane %v929, 7
      %v932 = vshll.u32 %v802, 16
      %v934 = vor.u32 %v931, %v932
      %v935 = vrot.slane %v931, 4
      %v937 = vshrl.u32 %v803, 16
      %v939 = vrot.slane %v937, 7
      %v940 = vshll.u32 %v803, 16
      %v942 = vor.u32 %v939, %v940
      %v943 = vrot.slane %v939, 4
      %v945 = vshrl.u32 %v804, 16
      %v947 = vrot.slane %v945, 7
      %v948 = vshll.u32 %v804, 16
      %v950 = vor.u32 %v947, %v948
      %v951 = vrot.slane %v947, 4
      %vm968 = vcmask 1043456
      %vm969 = vmand %vm968, %vm862
      %v970 = vld [vmem:[%s834] sm:$0xf]
      %v971 = vsel %vm969, %v894, %v970
      %972 = vst [vmem:[%s834] sm:$0xf] %v971
      %v973 = vld [vmem:[%s834 + $0x4] sm:$0x1]
      %v974 = vsel %vm837, %v895, %v973
      %975 = vst [vmem:[%s834 + $0x4] sm:$0x1] %v974
      %v976 = vld [vmem:[%s834 + $0x8] sm:$0xf]
      %v977 = vsel %vm969, %v902, %v976
      %978 = vst [vmem:[%s834 + $0x8] sm:$0xf] %v977
      %v979 = vld [vmem:[%s834 + $0xc] sm:$0x1]
      %v980 = vsel %vm837, %v903, %v979
      %981 = vst [vmem:[%s834 + $0xc] sm:$0x1] %v980
      %v982 = vld [vmem:[%s834 + $0x10] sm:$0xf]
      %v983 = vsel %vm969, %v910, %v982
      %984 = vst [vmem:[%s834 + $0x10] sm:$0xf] %v983
      %v985 = vld [vmem:[%s834 + $0x14] sm:$0x1]
      %v986 = vsel %vm837, %v911, %v985
      %987 = vst [vmem:[%s834 + $0x14] sm:$0x1] %v986
      %v988 = vld [vmem:[%s834 + $0x18] sm:$0xf]
      %v989 = vsel %vm969, %v918, %v988
      %990 = vst [vmem:[%s834 + $0x18] sm:$0xf] %v989
      %v991 = vld [vmem:[%s834 + $0x1c] sm:$0x1]
      %v992 = vsel %vm837, %v919, %v991
      %993 = vst [vmem:[%s834 + $0x1c] sm:$0x1] %v992
      %v994 = vld [vmem:[%s834 + $0x20] sm:$0xf]
      %v995 = vsel %vm969, %v926, %v994
      %996 = vst [vmem:[%s834 + $0x20] sm:$0xf] %v995
      %v997 = vld [vmem:[%s834 + $0x24] sm:$0x1]
      %v998 = vsel %vm837, %v927, %v997
      %999 = vst [vmem:[%s834 + $0x24] sm:$0x1] %v998
      %v1000 = vld [vmem:[%s834 + $0x28] sm:$0xf]
      %v1001 = vsel %vm969, %v934, %v1000
      %1002 = vst [vmem:[%s834 + $0x28] sm:$0xf] %v1001
      %v1003 = vld [vmem:[%s834 + $0x2c] sm:$0x1]
      %v1004 = vsel %vm837, %v935, %v1003
      %1005 = vst [vmem:[%s834 + $0x2c] sm:$0x1] %v1004
      %v1006 = vld [vmem:[%s834 + $0x30] sm:$0xf]
      %v1007 = vsel %vm969, %v942, %v1006
      %1008 = vst [vmem:[%s834 + $0x30] sm:$0xf] %v1007
      %v1009 = vld [vmem:[%s834 + $0x34] sm:$0x1]
      %v1010 = vsel %vm837, %v943, %v1009
      %1011 = vst [vmem:[%s834 + $0x34] sm:$0x1] %v1010
      %v1012 = vld [vmem:[%s834 + $0x38] sm:$0xf]
      %v1013 = vsel %vm969, %v950, %v1012
      %1014 = vst [vmem:[%s834 + $0x38] sm:$0xf] %v1013
      %v1015 = vld [vmem:[%s834 + $0x3c] sm:$0x1]
      %v1016 = vsel %vm837, %v951, %v1015
      %1017 = vst [vmem:[%s834 + $0x3c] sm:$0x1] %v1016
      %s1018 = scalar_lea.vmem [#allocation2], 80
      %1019 = vst [vmem:[%s1018] sm:$0xf] 0
      %1020 = vst [vmem:[%s1018 + $0x4] sm:$0x1] 0
      %s1021 = scalar_lea.vmem [#allocation2], 152
      %1022 = vst [vmem:[%s1021] sm:$0xf] 0
      %1023 = vst [vmem:[%s1021 + $0x4] sm:$0x1] 0
      %s1024 = scalar_lea.vmem [#allocation2], 88
      %v1025 = vld [vmem:[%s1024] sm:$0x1]
      %v1026 = vsel %vm837, 0, %v1025
      %1027 = vst [vmem:[%s1024] sm:$0x1] %v1026
      %v1028 = vld [vmem:[%s1024 + $0x8] sm:$0x1]
      %v1029 = vsel %vm837, 0, %v1028
      %1030 = vst [vmem:[%s1024 + $0x8] sm:$0x1] %v1029
      %v1031 = vld [vmem:[%s1024 + $0x10] sm:$0x1]
      %v1032 = vsel %vm837, 0, %v1031
      %1033 = vst [vmem:[%s1024 + $0x10] sm:$0x1] %v1032
      %v1034 = vld [vmem:[%s1024 + $0x18] sm:$0x1]
      %v1035 = vsel %vm837, 0, %v1034
      %1036 = vst [vmem:[%s1024 + $0x18] sm:$0x1] %v1035
      %v1037 = vld [vmem:[%s1024 + $0x20] sm:$0x1]
      %v1038 = vsel %vm837, 0, %v1037
      %1039 = vst [vmem:[%s1024 + $0x20] sm:$0x1] %v1038
      %v1040 = vld [vmem:[%s1024 + $0x28] sm:$0x1]
      %v1041 = vsel %vm837, 0, %v1040
      %1042 = vst [vmem:[%s1024 + $0x28] sm:$0x1] %v1041
      %v1043 = vld [vmem:[%s1024 + $0x30] sm:$0x1]
      %v1044 = vsel %vm837, 0, %v1043
      %1045 = vst [vmem:[%s1024 + $0x30] sm:$0x1] %v1044
      %v1046 = vld [vmem:[%s1024 + $0x38] sm:$0x1]
      %v1047 = vsel %vm837, 0, %v1046
      %1048 = vst [vmem:[%s1024 + $0x38] sm:$0x1] %v1047
      %v1049 = vld [vmem:[%s1024 + $0x4] sm:$0x1]
      %v1050 = vsel %vm863, 0, %v1049
      %1051 = vst [vmem:[%s1024 + $0x4] sm:$0x1] %v1050
      %v1052 = vld [vmem:[%s1024 + $0xc] sm:$0x1]
      %v1053 = vsel %vm863, 0, %v1052
      %1054 = vst [vmem:[%s1024 + $0xc] sm:$0x1] %v1053
      %v1055 = vld [vmem:[%s1024 + $0x14] sm:$0x1]
      %v1056 = vsel %vm863, 0, %v1055
      %1057 = vst [vmem:[%s1024 + $0x14] sm:$0x1] %v1056
      %v1058 = vld [vmem:[%s1024 + $0x1c] sm:$0x1]
      %v1059 = vsel %vm863, 0, %v1058
      %1060 = vst [vmem:[%s1024 + $0x1c] sm:$0x1] %v1059
      %v1061 = vld [vmem:[%s1024 + $0x24] sm:$0x1]
      %v1062 = vsel %vm863, 0, %v1061
      %1063 = vst [vmem:[%s1024 + $0x24] sm:$0x1] %v1062
      %v1064 = vld [vmem:[%s1024 + $0x2c] sm:$0x1]
      %v1065 = vsel %vm863, 0, %v1064
      %1066 = vst [vmem:[%s1024 + $0x2c] sm:$0x1] %v1065
      %v1067 = vld [vmem:[%s1024 + $0x34] sm:$0x1]
      %v1068 = vsel %vm863, 0, %v1067
      %1069 = vst [vmem:[%s1024 + $0x34] sm:$0x1] %v1068
      %v1070 = vld [vmem:[%s1024 + $0x3c] sm:$0x1]
      %v1071 = vsel %vm863, 0, %v1070
      %1072 = vst [vmem:[%s1024 + $0x3c] sm:$0x1] %v1071
      %v1074 = vshrl.u32 %v805, 16
      %v1076 = vrot.slane %v1074, 7
      %v1077 = vshll.u32 %v805, 16
      %v1079 = vor.u32 %v1076, %v1077
      %v1080 = vrot.slane %v1076, 4
      %v1082 = vshrl.u32 %v806, 16
      %v1084 = vrot.slane %v1082, 7
      %v1085 = vshll.u32 %v806, 16
      %v1087 = vor.u32 %v1084, %v1085
      %v1088 = vrot.slane %v1084, 4
      %v1090 = vshrl.u32 %v807, 16
      %v1092 = vrot.slane %v1090, 7
      %v1093 = vshll.u32 %v807, 16
      %v1095 = vor.u32 %v1092, %v1093
      %v1096 = vrot.slane %v1092, 4
      %v1098 = vshrl.u32 %v808, 16
      %v1100 = vrot.slane %v1098, 7
      %v1101 = vshll.u32 %v808, 16
      %v1103 = vor.u32 %v1100, %v1101
      %v1104 = vrot.slane %v1100, 4
      %v1106 = vshrl.u32 %v809, 16
      %v1108 = vrot.slane %v1106, 7
      %v1109 = vshll.u32 %v809, 16
      %v1111 = vor.u32 %v1108, %v1109
      %v1112 = vrot.slane %v1108, 4
      %v1114 = vshrl.u32 %v810, 16
      %v1116 = vrot.slane %v1114, 7
      %v1117 = vshll.u32 %v810, 16
      %v1119 = vor.u32 %v1116, %v1117
      %v1120 = vrot.slane %v1116, 4
      %v1122 = vshrl.u32 %v811, 16
      %v1124 = vrot.slane %v1122, 7
      %v1125 = vshll.u32 %v811, 16
      %v1127 = vor.u32 %v1124, %v1125
      %v1128 = vrot.slane %v1124, 4
      %v1130 = vshrl.u32 %v812, 16
      %v1132 = vrot.slane %v1130, 7
      %v1133 = vshll.u32 %v812, 16
      %v1135 = vor.u32 %v1132, %v1133
      %v1136 = vrot.slane %v1132, 4
      %v1153 = vld [vmem:[%s1024] sm:$0xf]
      %v1154 = vsel %vm969, %v1079, %v1153
      %1155 = vst [vmem:[%s1024] sm:$0xf] %v1154
      %v1156 = vld [vmem:[%s1024 + $0x4] sm:$0x1]
      %v1157 = vsel %vm837, %v1080, %v1156
      %1158 = vst [vmem:[%s1024 + $0x4] sm:$0x1] %v1157
      %v1159 = vld [vmem:[%s1024 + $0x8] sm:$0xf]
      %v1160 = vsel %vm969, %v1087, %v1159
      %1161 = vst [vmem:[%s1024 + $0x8] sm:$0xf] %v1160
      %v1162 = vld [vmem:[%s1024 + $0xc] sm:$0x1]
      %v1163 = vsel %vm837, %v1088, %v1162
      %1164 = vst [vmem:[%s1024 + $0xc] sm:$0x1] %v1163
      %v1165 = vld [vmem:[%s1024 + $0x10] sm:$0xf]
      %v1166 = vsel %vm969, %v1095, %v1165
      %1167 = vst [vmem:[%s1024 + $0x10] sm:$0xf] %v1166
      %v1168 = vld [vmem:[%s1024 + $0x14] sm:$0x1]
      %v1169 = vsel %vm837, %v1096, %v1168
      %1170 = vst [vmem:[%s1024 + $0x14] sm:$0x1] %v1169
      %v1171 = vld [vmem:[%s1024 + $0x18] sm:$0xf]
      %v1172 = vsel %vm969, %v1103, %v1171
      %1173 = vst [vmem:[%s1024 + $0x18] sm:$0xf] %v1172
      %v1174 = vld [vmem:[%s1024 + $0x1c] sm:$0x1]
      %v1175 = vsel %vm837, %v1104, %v1174
      %1176 = vst [vmem:[%s1024 + $0x1c] sm:$0x1] %v1175
      %v1177 = vld [vmem:[%s1024 + $0x20] sm:$0xf]
      %v1178 = vsel %vm969, %v1111, %v1177
      %1179 = vst [vmem:[%s1024 + $0x20] sm:$0xf] %v1178
      %v1180 = vld [vmem:[%s1024 + $0x24] sm:$0x1]
      %v1181 = vsel %vm837, %v1112, %v1180
      %1182 = vst [vmem:[%s1024 + $0x24] sm:$0x1] %v1181
      %v1183 = vld [vmem:[%s1024 + $0x28] sm:$0xf]
      %v1184 = vsel %vm969, %v1119, %v1183
      %1185 = vst [vmem:[%s1024 + $0x28] sm:$0xf] %v1184
      %v1186 = vld [vmem:[%s1024 + $0x2c] sm:$0x1]
      %v1187 = vsel %vm837, %v1120, %v1186
      %1188 = vst [vmem:[%s1024 + $0x2c] sm:$0x1] %v1187
      %v1189 = vld [vmem:[%s1024 + $0x30] sm:$0xf]
      %v1190 = vsel %vm969, %v1127, %v1189
      %1191 = vst [vmem:[%s1024 + $0x30] sm:$0xf] %v1190
      %v1192 = vld [vmem:[%s1024 + $0x34] sm:$0x1]
      %v1193 = vsel %vm837, %v1128, %v1192
      %1194 = vst [vmem:[%s1024 + $0x34] sm:$0x1] %v1193
      %v1195 = vld [vmem:[%s1024 + $0x38] sm:$0xf]
      %v1196 = vsel %vm969, %v1135, %v1195
      %1197 = vst [vmem:[%s1024 + $0x38] sm:$0xf] %v1196
      %v1198 = vld [vmem:[%s1024 + $0x3c] sm:$0x1]
      %v1199 = vsel %vm837, %v1136, %v1198
      %1200 = vst [vmem:[%s1024 + $0x3c] sm:$0x1] %v1199
      %s1201 = scalar_lea.vmem [#allocation2], 160
      %1202 = vst [vmem:[%s1201] sm:$0xf] 0
      %1203 = vst [vmem:[%s1201 + $0x4] sm:$0x1] 0
      %s1204 = scalar_lea.vmem [#allocation2], 232
      %1205 = vst [vmem:[%s1204] sm:$0xf] 0
      %1206 = vst [vmem:[%s1204 + $0x4] sm:$0x1] 0
      %s1207 = scalar_lea.vmem [#allocation2], 168
      %v1208 = vld [vmem:[%s1207] sm:$0x1]
      %v1209 = vsel %vm837, 0, %v1208
      %1210 = vst [vmem:[%s1207] sm:$0x1] %v1209
      %v1211 = vld [vmem:[%s1207 + $0x8] sm:$0x1]
      %v1212 = vsel %vm837, 0, %v1211
      %1213 = vst [vmem:[%s1207 + $0x8] sm:$0x1] %v1212
      %v1214 = vld [vmem:[%s1207 + $0x10] sm:$0x1]
      %v1215 = vsel %vm837, 0, %v1214
      %1216 = vst [vmem:[%s1207 + $0x10] sm:$0x1] %v1215
      %v1217 = vld [vmem:[%s1207 + $0x18] sm:$0x1]
      %v1218 = vsel %vm837, 0, %v1217
      %1219 = vst [vmem:[%s1207 + $0x18] sm:$0x1] %v1218
      %v1220 = vld [vmem:[%s1207 + $0x20] sm:$0x1]
      %v1221 = vsel %vm837, 0, %v1220
      %1222 = vst [vmem:[%s1207 + $0x20] sm:$0x1] %v1221
      %v1223 = vld [vmem:[%s1207 + $0x28] sm:$0x1]
      %v1224 = vsel %vm837, 0, %v1223
      %1225 = vst [vmem:[%s1207 + $0x28] sm:$0x1] %v1224
      %v1226 = vld [vmem:[%s1207 + $0x30] sm:$0x1]
      %v1227 = vsel %vm837, 0, %v1226
      %1228 = vst [vmem:[%s1207 + $0x30] sm:$0x1] %v1227
      %v1229 = vld [vmem:[%s1207 + $0x38] sm:$0x1]
      %v1230 = vsel %vm837, 0, %v1229
      %1231 = vst [vmem:[%s1207 + $0x38] sm:$0x1] %v1230
      %v1232 = vld [vmem:[%s1207 + $0x4] sm:$0x1]
      %v1233 = vsel %vm863, 0, %v1232
      %1234 = vst [vmem:[%s1207 + $0x4] sm:$0x1] %v1233
      %v1235 = vld [vmem:[%s1207 + $0xc] sm:$0x1]
      %v1236 = vsel %vm863, 0, %v1235
      %1237 = vst [vmem:[%s1207 + $0xc] sm:$0x1] %v1236
      %v1238 = vld [vmem:[%s1207 + $0x14] sm:$0x1]
      %v1239 = vsel %vm863, 0, %v1238
      %1240 = vst [vmem:[%s1207 + $0x14] sm:$0x1] %v1239
      %v1241 = vld [vmem:[%s1207 + $0x1c] sm:$0x1]
      %v1242 = vsel %vm863, 0, %v1241
      %1243 = vst [vmem:[%s1207 + $0x1c] sm:$0x1] %v1242
      %v1244 = vld [vmem:[%s1207 + $0x24] sm:$0x1]
      %v1245 = vsel %vm863, 0, %v1244
      %1246 = vst [vmem:[%s1207 + $0x24] sm:$0x1] %v1245
      %v1247 = vld [vmem:[%s1207 + $0x2c] sm:$0x1]
      %v1248 = vsel %vm863, 0, %v1247
      %1249 = vst [vmem:[%s1207 + $0x2c] sm:$0x1] %v1248
      %v1250 = vld [vmem:[%s1207 + $0x34] sm:$0x1]
      %v1251 = vsel %vm863, 0, %v1250
      %1252 = vst [vmem:[%s1207 + $0x34] sm:$0x1] %v1251
      %v1253 = vld [vmem:[%s1207 + $0x3c] sm:$0x1]
      %v1254 = vsel %vm863, 0, %v1253
      %1255 = vst [vmem:[%s1207 + $0x3c] sm:$0x1] %v1254
      %v1257 = vshrl.u32 %v813, 16
      %v1259 = vrot.slane %v1257, 7
      %v1260 = vshll.u32 %v813, 16
      %v1262 = vor.u32 %v1259, %v1260
      %v1263 = vrot.slane %v1259, 4
      %v1265 = vshrl.u32 %v814, 16
      %v1267 = vrot.slane %v1265, 7
      %v1268 = vshll.u32 %v814, 16
      %v1270 = vor.u32 %v1267, %v1268
      %v1271 = vrot.slane %v1267, 4
      %v1273 = vshrl.u32 %v815, 16
      %v1275 = vrot.slane %v1273, 7
      %v1276 = vshll.u32 %v815, 16
      %v1278 = vor.u32 %v1275, %v1276
      %v1279 = vrot.slane %v1275, 4
      %v1281 = vshrl.u32 %v816, 16
      %v1283 = vrot.slane %v1281, 7
      %v1284 = vshll.u32 %v816, 16
      %v1286 = vor.u32 %v1283, %v1284
      %v1287 = vrot.slane %v1283, 4
      %v1289 = vshrl.u32 %v817, 16
      %v1291 = vrot.slane %v1289, 7
      %v1292 = vshll.u32 %v817, 16
      %v1294 = vor.u32 %v1291, %v1292
      %v1295 = vrot.slane %v1291, 4
      %v1297 = vshrl.u32 %v818, 16
      %v1299 = vrot.slane %v1297, 7
      %v1300 = vshll.u32 %v818, 16
      %v1302 = vor.u32 %v1299, %v1300
      %v1303 = vrot.slane %v1299, 4
      %v1305 = vshrl.u32 %v819, 16
      %v1307 = vrot.slane %v1305, 7
      %v1308 = vshll.u32 %v819, 16
      %v1310 = vor.u32 %v1307, %v1308
      %v1311 = vrot.slane %v1307, 4
      %v1313 = vshrl.u32 %v820, 16
      %v1315 = vrot.slane %v1313, 7
      %v1316 = vshll.u32 %v820, 16
      %v1318 = vor.u32 %v1315, %v1316
      %v1319 = vrot.slane %v1315, 4
      %v1336 = vld [vmem:[%s1207] sm:$0xf]
      %v1337 = vsel %vm969, %v1262, %v1336
      %1338 = vst [vmem:[%s1207] sm:$0xf] %v1337
      %v1339 = vld [vmem:[%s1207 + $0x4] sm:$0x1]
      %v1340 = vsel %vm837, %v1263, %v1339
      %1341 = vst [vmem:[%s1207 + $0x4] sm:$0x1] %v1340
      %v1342 = vld [vmem:[%s1207 + $0x8] sm:$0xf]
      %v1343 = vsel %vm969, %v1270, %v1342
      %1344 = vst [vmem:[%s1207 + $0x8] sm:$0xf] %v1343
      %v1345 = vld [vmem:[%s1207 + $0xc] sm:$0x1]
      %v1346 = vsel %vm837, %v1271, %v1345
      %1347 = vst [vmem:[%s1207 + $0xc] sm:$0x1] %v1346
      %v1348 = vld [vmem:[%s1207 + $0x10] sm:$0xf]
      %v1349 = vsel %vm969, %v1278, %v1348
      %1350 = vst [vmem:[%s1207 + $0x10] sm:$0xf] %v1349
      %v1351 = vld [vmem:[%s1207 + $0x14] sm:$0x1]
      %v1352 = vsel %vm837, %v1279, %v1351
      %1353 = vst [vmem:[%s1207 + $0x14] sm:$0x1] %v1352
      %v1354 = vld [vmem:[%s1207 + $0x18] sm:$0xf]
      %v1355 = vsel %vm969, %v1286, %v1354
      %1356 = vst [vmem:[%s1207 + $0x18] sm:$0xf] %v1355
      %v1357 = vld [vmem:[%s1207 + $0x1c] sm:$0x1]
      %v1358 = vsel %vm837, %v1287, %v1357
      %1359 = vst [vmem:[%s1207 + $0x1c] sm:$0x1] %v1358
      %v1360 = vld [vmem:[%s1207 + $0x20] sm:$0xf]
      %v1361 = vsel %vm969, %v1294, %v1360
      %1362 = vst [vmem:[%s1207 + $0x20] sm:$0xf] %v1361
      %v1363 = vld [vmem:[%s1207 + $0x24] sm:$0x1]
      %v1364 = vsel %vm837, %v1295, %v1363
      %1365 = vst [vmem:[%s1207 + $0x24] sm:$0x1] %v1364
      %v1366 = vld [vmem:[%s1207 + $0x28] sm:$0xf]
      %v1367 = vsel %vm969, %v1302, %v1366
      %1368 = vst [vmem:[%s1207 + $0x28] sm:$0xf] %v1367
      %v1369 = vld [vmem:[%s1207 + $0x2c] sm:$0x1]
      %v1370 = vsel %vm837, %v1303, %v1369
      %1371 = vst [vmem:[%s1207 + $0x2c] sm:$0x1] %v1370
      %v1372 = vld [vmem:[%s1207 + $0x30] sm:$0xf]
      %v1373 = vsel %vm969, %v1310, %v1372
      %1374 = vst [vmem:[%s1207 + $0x30] sm:$0xf] %v1373
      %v1375 = vld [vmem:[%s1207 + $0x34] sm:$0x1]
      %v1376 = vsel %vm837, %v1311, %v1375
      %1377 = vst [vmem:[%s1207 + $0x34] sm:$0x1] %v1376
      %v1378 = vld [vmem:[%s1207 + $0x38] sm:$0xf]
      %v1379 = vsel %vm969, %v1318, %v1378
      %1380 = vst [vmem:[%s1207 + $0x38] sm:$0xf] %v1379
      %v1381 = vld [vmem:[%s1207 + $0x3c] sm:$0x1]
      %v1382 = vsel %vm837, %v1319, %v1381
      %1383 = vst [vmem:[%s1207 + $0x3c] sm:$0x1] %v1382
      %s1384 = scalar_lea.vmem [#allocation2], 240
      %1385 = vst [vmem:[%s1384] sm:$0xf] 0
      %1386 = vst [vmem:[%s1384 + $0x4] sm:$0x1] 0
      %s1387 = scalar_lea.vmem [#allocation2], 312
      %1388 = vst [vmem:[%s1387] sm:$0xf] 0
      %1389 = vst [vmem:[%s1387 + $0x4] sm:$0x1] 0
      %s1390 = scalar_lea.vmem [#allocation2], 248
      %v1391 = vld [vmem:[%s1390] sm:$0x1]
      %v1392 = vsel %vm837, 0, %v1391
      %1393 = vst [vmem:[%s1390] sm:$0x1] %v1392
      %v1394 = vld [vmem:[%s1390 + $0x8] sm:$0x1]
      %v1395 = vsel %vm837, 0, %v1394
      %1396 = vst [vmem:[%s1390 + $0x8] sm:$0x1] %v1395
      %v1397 = vld [vmem:[%s1390 + $0x10] sm:$0x1]
      %v1398 = vsel %vm837, 0, %v1397
      %1399 = vst [vmem:[%s1390 + $0x10] sm:$0x1] %v1398
      %v1400 = vld [vmem:[%s1390 + $0x18] sm:$0x1]
      %v1401 = vsel %vm837, 0, %v1400
      %1402 = vst [vmem:[%s1390 + $0x18] sm:$0x1] %v1401
      %v1403 = vld [vmem:[%s1390 + $0x20] sm:$0x1]
      %v1404 = vsel %vm837, 0, %v1403
      %1405 = vst [vmem:[%s1390 + $0x20] sm:$0x1] %v1404
      %v1406 = vld [vmem:[%s1390 + $0x28] sm:$0x1]
      %v1407 = vsel %vm837, 0, %v1406
      %1408 = vst [vmem:[%s1390 + $0x28] sm:$0x1] %v1407
      %v1409 = vld [vmem:[%s1390 + $0x30] sm:$0x1]
      %v1410 = vsel %vm837, 0, %v1409
      %1411 = vst [vmem:[%s1390 + $0x30] sm:$0x1] %v1410
      %v1412 = vld [vmem:[%s1390 + $0x38] sm:$0x1]
      %v1413 = vsel %vm837, 0, %v1412
      %1414 = vst [vmem:[%s1390 + $0x38] sm:$0x1] %v1413
      %v1415 = vld [vmem:[%s1390 + $0x4] sm:$0x1]
      %v1416 = vsel %vm863, 0, %v1415
      %1417 = vst [vmem:[%s1390 + $0x4] sm:$0x1] %v1416
      %v1418 = vld [vmem:[%s1390 + $0xc] sm:$0x1]
      %v1419 = vsel %vm863, 0, %v1418
      %1420 = vst [vmem:[%s1390 + $0xc] sm:$0x1] %v1419
      %v1421 = vld [vmem:[%s1390 + $0x14] sm:$0x1]
      %v1422 = vsel %vm863, 0, %v1421
      %1423 = vst [vmem:[%s1390 + $0x14] sm:$0x1] %v1422
      %v1424 = vld [vmem:[%s1390 + $0x1c] sm:$0x1]
      %v1425 = vsel %vm863, 0, %v1424
      %1426 = vst [vmem:[%s1390 + $0x1c] sm:$0x1] %v1425
      %v1427 = vld [vmem:[%s1390 + $0x24] sm:$0x1]
      %v1428 = vsel %vm863, 0, %v1427
      %1429 = vst [vmem:[%s1390 + $0x24] sm:$0x1] %v1428
      %v1430 = vld [vmem:[%s1390 + $0x2c] sm:$0x1]
      %v1431 = vsel %vm863, 0, %v1430
      %1432 = vst [vmem:[%s1390 + $0x2c] sm:$0x1] %v1431
      %v1433 = vld [vmem:[%s1390 + $0x34] sm:$0x1]
      %v1434 = vsel %vm863, 0, %v1433
      %1435 = vst [vmem:[%s1390 + $0x34] sm:$0x1] %v1434
      %v1436 = vld [vmem:[%s1390 + $0x3c] sm:$0x1]
      %v1437 = vsel %vm863, 0, %v1436
      %1438 = vst [vmem:[%s1390 + $0x3c] sm:$0x1] %v1437
      %v1440 = vshrl.u32 %v821, 16
      %v1442 = vrot.slane %v1440, 7
      %v1443 = vshll.u32 %v821, 16
      %v1445 = vor.u32 %v1442, %v1443
      %v1446 = vrot.slane %v1442, 4
      %v1448 = vshrl.u32 %v822, 16
      %v1450 = vrot.slane %v1448, 7
      %v1451 = vshll.u32 %v822, 16
      %v1453 = vor.u32 %v1450, %v1451
      %v1454 = vrot.slane %v1450, 4
      %v1456 = vshrl.u32 %v823, 16
      %v1458 = vrot.slane %v1456, 7
      %v1459 = vshll.u32 %v823, 16
      %v1461 = vor.u32 %v1458, %v1459
      %v1462 = vrot.slane %v1458, 4
      %v1464 = vshrl.u32 %v824, 16
      %v1466 = vrot.slane %v1464, 7
      %v1467 = vshll.u32 %v824, 16
      %v1469 = vor.u32 %v1466, %v1467
      %v1470 = vrot.slane %v1466, 4
      %v1472 = vshrl.u32 %v825, 16
      %v1474 = vrot.slane %v1472, 7
      %v1475 = vshll.u32 %v825, 16
      %v1477 = vor.u32 %v1474, %v1475
      %v1478 = vrot.slane %v1474, 4
      %v1480 = vshrl.u32 %v826, 16
      %v1482 = vrot.slane %v1480, 7
      %v1483 = vshll.u32 %v826, 16
      %v1485 = vor.u32 %v1482, %v1483
      %v1486 = vrot.slane %v1482, 4
      %v1488 = vshrl.u32 %v827, 16
      %v1490 = vrot.slane %v1488, 7
      %v1491 = vshll.u32 %v827, 16
      %v1493 = vor.u32 %v1490, %v1491
      %v1494 = vrot.slane %v1490, 4
      %v1496 = vshrl.u32 %v828, 16
      %v1498 = vrot.slane %v1496, 7
      %v1499 = vshll.u32 %v828, 16
      %v1501 = vor.u32 %v1498, %v1499
      %v1502 = vrot.slane %v1498, 4
      %v1519 = vld [vmem:[%s1390] sm:$0xf]
      %v1520 = vsel %vm969, %v1445, %v1519
      %1521 = vst [vmem:[%s1390] sm:$0xf] %v1520
      %v1522 = vld [vmem:[%s1390 + $0x4] sm:$0x1]
      %v1523 = vsel %vm837, %v1446, %v1522
      %1524 = vst [vmem:[%s1390 + $0x4] sm:$0x1] %v1523
      %v1525 = vld [vmem:[%s1390 + $0x8] sm:$0xf]
      %v1526 = vsel %vm969, %v1453, %v1525
      %1527 = vst [vmem:[%s1390 + $0x8] sm:$0xf] %v1526
      %v1528 = vld [vmem:[%s1390 + $0xc] sm:$0x1]
      %v1529 = vsel %vm837, %v1454, %v1528
      %1530 = vst [vmem:[%s1390 + $0xc] sm:$0x1] %v1529
      %v1531 = vld [vmem:[%s1390 + $0x10] sm:$0xf]
      %v1532 = vsel %vm969, %v1461, %v1531
      %1533 = vst [vmem:[%s1390 + $0x10] sm:$0xf] %v1532
      %v1534 = vld [vmem:[%s1390 + $0x14] sm:$0x1]
      %v1535 = vsel %vm837, %v1462, %v1534
      %1536 = vst [vmem:[%s1390 + $0x14] sm:$0x1] %v1535
      %v1537 = vld [vmem:[%s1390 + $0x18] sm:$0xf]
      %v1538 = vsel %vm969, %v1469, %v1537
      %1539 = vst [vmem:[%s1390 + $0x18] sm:$0xf] %v1538
      %v1540 = vld [vmem:[%s1390 + $0x1c] sm:$0x1]
      %v1541 = vsel %vm837, %v1470, %v1540
      %1542 = vst [vmem:[%s1390 + $0x1c] sm:$0x1] %v1541
      %v1543 = vld [vmem:[%s1390 + $0x20] sm:$0xf]
      %v1544 = vsel %vm969, %v1477, %v1543
      %1545 = vst [vmem:[%s1390 + $0x20] sm:$0xf] %v1544
      %v1546 = vld [vmem:[%s1390 + $0x24] sm:$0x1]
      %v1547 = vsel %vm837, %v1478, %v1546
      %1548 = vst [vmem:[%s1390 + $0x24] sm:$0x1] %v1547
      %v1549 = vld [vmem:[%s1390 + $0x28] sm:$0xf]
      %v1550 = vsel %vm969, %v1485, %v1549
      %1551 = vst [vmem:[%s1390 + $0x28] sm:$0xf] %v1550
      %v1552 = vld [vmem:[%s1390 + $0x2c] sm:$0x1]
      %v1553 = vsel %vm837, %v1486, %v1552
      %1554 = vst [vmem:[%s1390 + $0x2c] sm:$0x1] %v1553
      %v1555 = vld [vmem:[%s1390 + $0x30] sm:$0xf]
      %v1556 = vsel %vm969, %v1493, %v1555
      %1557 = vst [vmem:[%s1390 + $0x30] sm:$0xf] %v1556
      %v1558 = vld [vmem:[%s1390 + $0x34] sm:$0x1]
      %v1559 = vsel %vm837, %v1494, %v1558
      %1560 = vst [vmem:[%s1390 + $0x34] sm:$0x1] %v1559
      %v1561 = vld [vmem:[%s1390 + $0x38] sm:$0xf]
      %v1562 = vsel %vm969, %v1501, %v1561
      %1563 = vst [vmem:[%s1390 + $0x38] sm:$0xf] %v1562
      %v1564 = vld [vmem:[%s1390 + $0x3c] sm:$0x1]
      %v1565 = vsel %vm837, %v1502, %v1564
      %1566 = vst [vmem:[%s1390 + $0x3c] sm:$0x1] %v1565
      %v1567 = vld [vmem:[#allocation2] sm:$0xf]
      %v1568 = vld [vmem:[#allocation2 + $0x8] sm:$0xf]
      %v1569 = vld [vmem:[#allocation2 + $0x10] sm:$0xf]
      %v1570 = vld [vmem:[#allocation2 + $0x18] sm:$0xf]
      %v1571 = vld [vmem:[#allocation2 + $0x20] sm:$0xf]
      %v1572 = vld [vmem:[#allocation2 + $0x28] sm:$0xf]
      %v1573 = vld [vmem:[#allocation2 + $0x30] sm:$0xf]
      %v1574 = vld [vmem:[#allocation2 + $0x38] sm:$0xf]
      %1575 = vst [vmem:[#allocation3] sm:$0xf] %v1567
      %1576 = vst [vmem:[#allocation3 + $0x24] sm:$0xf] %v1568
      %1577 = vst [vmem:[#allocation3 + $0x48] sm:$0xf] %v1569
      %1578 = vst [vmem:[#allocation3 + $0x6c] sm:$0xf] %v1570
      %1579 = vst [vmem:[#allocation3 + $0x90] sm:$0xf] %v1571
      %1580 = vst [vmem:[#allocation3 + $0xb4] sm:$0xf] %v1572
      %1581 = vst [vmem:[#allocation3 + $0xd8] sm:$0xf] %v1573
      %1582 = vst [vmem:[#allocation3 + $0xfc] sm:$0xf] %v1574
      %v1583 = vld [vmem:[#allocation2] sm:$0xf]
      %v1584 = vld [vmem:[#allocation2 + $0x4] sm:$0x1]
      %v1585 = vld [vmem:[#allocation2 + $0x8] sm:$0xf]
      %v1586 = vld [vmem:[#allocation2 + $0xc] sm:$0x1]
      %v1587 = vld [vmem:[#allocation2 + $0x10] sm:$0xf]
      %v1588 = vld [vmem:[#allocation2 + $0x14] sm:$0x1]
      %v1589 = vld [vmem:[#allocation2 + $0x18] sm:$0xf]
      %v1590 = vld [vmem:[#allocation2 + $0x1c] sm:$0x1]
      %v1591 = vld [vmem:[#allocation2 + $0x20] sm:$0xf]
      %v1592 = vld [vmem:[#allocation2 + $0x24] sm:$0x1]
      %v1593 = vld [vmem:[#allocation2 + $0x28] sm:$0xf]
      %v1594 = vld [vmem:[#allocation2 + $0x2c] sm:$0x1]
      %v1595 = vld [vmem:[#allocation2 + $0x30] sm:$0xf]
      %v1596 = vld [vmem:[#allocation2 + $0x34] sm:$0x1]
      %v1597 = vld [vmem:[#allocation2 + $0x38] sm:$0xf]
      %v1598 = vld [vmem:[#allocation2 + $0x3c] sm:$0x1]
      %vm1599 = vsmask.f32 3328
      %vm1600 = vsmask.f32 7440
      %vm1601 = vmor %vm1599, %vm1600
      %v1603 = vshrl.u32 %v1583, 16
      %v1605 = vrot.slane %v1603, 4
      %v1606 = vshll.u32 %v1583, 16
      %v1608 = vrot.slane %v1606, 5
      %v1609 = vor.u32 %v1605, %v1608
      %v1610 = vrot.slane %v1609, 4
      %v1612 = vshll.u32 %v1584, 16
      %v1614 = vrot.slane %v1612, 5
      %v1615 = vsel %vm1601, %v1610, %v1614
      %v1617 = vshrl.u32 %v1585, 16
      %v1619 = vrot.slane %v1617, 4
      %v1620 = vshll.u32 %v1585, 16
      %v1622 = vrot.slane %v1620, 5
      %v1623 = vor.u32 %v1619, %v1622
      %v1624 = vrot.slane %v1623, 4
      %v1626 = vshll.u32 %v1586, 16
      %v1628 = vrot.slane %v1626, 5
      %v1629 = vsel %vm1601, %v1624, %v1628
      %v1631 = vshrl.u32 %v1587, 16
      %v1633 = vrot.slane %v1631, 4
      %v1634 = vshll.u32 %v1587, 16
      %v1636 = vrot.slane %v1634, 5
      %v1637 = vor.u32 %v1633, %v1636
      %v1638 = vrot.slane %v1637, 4
      %v1640 = vshll.u32 %v1588, 16
      %v1642 = vrot.slane %v1640, 5
      %v1643 = vsel %vm1601, %v1638, %v1642
      %v1645 = vshrl.u32 %v1589, 16
      %v1647 = vrot.slane %v1645, 4
      %v1648 = vshll.u32 %v1589, 16
      %v1650 = vrot.slane %v1648, 5
      %v1651 = vor.u32 %v1647, %v1650
      %v1652 = vrot.slane %v1651, 4
      %v1654 = vshll.u32 %v1590, 16
      %v1656 = vrot.slane %v1654, 5
      %v1657 = vsel %vm1601, %v1652, %v1656
      %v1659 = vshrl.u32 %v1591, 16
      %v1661 = vrot.slane %v1659, 4
      %v1662 = vshll.u32 %v1591, 16
      %v1664 = vrot.slane %v1662, 5
      %v1665 = vor.u32 %v1661, %v1664
      %v1666 = vrot.slane %v1665, 4
      %v1668 = vshll.u32 %v1592, 16
      %v1670 = vrot.slane %v1668, 5
      %v1671 = vsel %vm1601, %v1666, %v1670
      %v1673 = vshrl.u32 %v1593, 16
      %v1675 = vrot.slane %v1673, 4
      %v1676 = vshll.u32 %v1593, 16
      %v1678 = vrot.slane %v1676, 5
      %v1679 = vor.u32 %v1675, %v1678
      %v1680 = vrot.slane %v1679, 4
      %v1682 = vshll.u32 %v1594, 16
      %v1684 = vrot.slane %v1682, 5
      %v1685 = vsel %vm1601, %v1680, %v1684
      %v1687 = vshrl.u32 %v1595, 16
      %v1689 = vrot.slane %v1687, 4
      %v1690 = vshll.u32 %v1595, 16
      %v1692 = vrot.slane %v1690, 5
      %v1693 = vor.u32 %v1689, %v1692
      %v1694 = vrot.slane %v1693, 4
      %v1696 = vshll.u32 %v1596, 16
      %v1698 = vrot.slane %v1696, 5
      %v1699 = vsel %vm1601, %v1694, %v1698
      %v1701 = vshrl.u32 %v1597, 16
      %v1703 = vrot.slane %v1701, 4
      %v1704 = vshll.u32 %v1597, 16
      %v1706 = vrot.slane %v1704, 5
      %v1707 = vor.u32 %v1703, %v1706
      %v1708 = vrot.slane %v1707, 4
      %v1710 = vshll.u32 %v1598, 16
      %v1712 = vrot.slane %v1710, 5
      %v1713 = vsel %vm1601, %v1708, %v1712
      %1722 = vst [vmem:[#allocation3 + $0x4] sm:$0xf] %v1615
      %1723 = vst [vmem:[#allocation3 + $0x28] sm:$0xf] %v1629
      %1724 = vst [vmem:[#allocation3 + $0x4c] sm:$0xf] %v1643
      %1725 = vst [vmem:[#allocation3 + $0x70] sm:$0xf] %v1657
      %1726 = vst [vmem:[#allocation3 + $0x94] sm:$0xf] %v1671
      %1727 = vst [vmem:[#allocation3 + $0xb8] sm:$0xf] %v1685
      %1728 = vst [vmem:[#allocation3 + $0xdc] sm:$0xf] %v1699
      %1729 = vst [vmem:[#allocation3 + $0x100] sm:$0xf] %v1713
      %v1730 = vld [vmem:[#allocation2] sm:$0xe]
      %v1731 = vld [vmem:[#allocation2 + $0x4] sm:$0x1]
      %v1732 = vld [vmem:[#allocation2 + $0x8] sm:$0xe]
      %v1733 = vld [vmem:[#allocation2 + $0xc] sm:$0x1]
      %v1734 = vld [vmem:[#allocation2 + $0x10] sm:$0xe]
      %v1735 = vld [vmem:[#allocation2 + $0x14] sm:$0x1]
      %v1736 = vld [vmem:[#allocation2 + $0x18] sm:$0xe]
      %v1737 = vld [vmem:[#allocation2 + $0x1c] sm:$0x1]
      %v1738 = vld [vmem:[#allocation2 + $0x20] sm:$0xe]
      %v1739 = vld [vmem:[#allocation2 + $0x24] sm:$0x1]
      %v1740 = vld [vmem:[#allocation2 + $0x28] sm:$0xe]
      %v1741 = vld [vmem:[#allocation2 + $0x2c] sm:$0x1]
      %v1742 = vld [vmem:[#allocation2 + $0x30] sm:$0xe]
      %v1743 = vld [vmem:[#allocation2 + $0x34] sm:$0x1]
      %v1744 = vld [vmem:[#allocation2 + $0x38] sm:$0xe]
      %v1745 = vld [vmem:[#allocation2 + $0x3c] sm:$0x1]
      %vm1762 = vcmask 1042432
      %vm1763 = vcmask 1046532
      %vm1764 = vmor %vm1762, %vm1763
      %v1765 = vrot.slane %v1730, 5
      %v1766 = vrot.slane %v1765, 4
      %v1767 = vrot.slane %v1731, 5
      %v1768 = vsel %vm1764, %v1766, %v1767
      %v1769 = vrot.slane %v1732, 5
      %v1770 = vrot.slane %v1769, 4
      %v1771 = vrot.slane %v1733, 5
      %v1772 = vsel %vm1764, %v1770, %v1771
      %v1773 = vrot.slane %v1734, 5
      %v1774 = vrot.slane %v1773, 4
      %v1775 = vrot.slane %v1735, 5
      %v1776 = vsel %vm1764, %v1774, %v1775
      %v1777 = vrot.slane %v1736, 5
      %v1778 = vrot.slane %v1777, 4
      %v1779 = vrot.slane %v1737, 5
      %v1780 = vsel %vm1764, %v1778, %v1779
      %v1781 = vrot.slane %v1738, 5
      %v1782 = vrot.slane %v1781, 4
      %v1783 = vrot.slane %v1739, 5
      %v1784 = vsel %vm1764, %v1782, %v1783
      %v1785 = vrot.slane %v1740, 5
      %v1786 = vrot.slane %v1785, 4
      %v1787 = vrot.slane %v1741, 5
      %v1788 = vsel %vm1764, %v1786, %v1787
      %v1789 = vrot.slane %v1742, 5
      %v1790 = vrot.slane %v1789, 4
      %v1791 = vrot.slane %v1743, 5
      %v1792 = vsel %vm1764, %v1790, %v1791
      %v1793 = vrot.slane %v1744, 5
      %v1794 = vrot.slane %v1793, 4
      %v1795 = vrot.slane %v1745, 5
      %v1796 = vsel %vm1764, %v1794, %v1795
      %1805 = vst [vmem:[#allocation3 + $0x8] sm:$0xf] %v1768
      %1806 = vst [vmem:[#allocation3 + $0x2c] sm:$0xf] %v1772
      %1807 = vst [vmem:[#allocation3 + $0x50] sm:$0xf] %v1776
      %1808 = vst [vmem:[#allocation3 + $0x74] sm:$0xf] %v1780
      %1809 = vst [vmem:[#allocation3 + $0x98] sm:$0xf] %v1784
      %1810 = vst [vmem:[#allocation3 + $0xbc] sm:$0xf] %v1788
      %1811 = vst [vmem:[#allocation3 + $0xe0] sm:$0xf] %v1792
      %1812 = vst [vmem:[#allocation3 + $0x104] sm:$0xf] %v1796
      %v1813 = vld [vmem:[%s834] sm:$0xf]
      %v1814 = vld [vmem:[%s834 + $0x8] sm:$0xf]
      %v1815 = vld [vmem:[%s834 + $0x10] sm:$0xf]
      %v1816 = vld [vmem:[%s834 + $0x18] sm:$0xf]
      %v1817 = vld [vmem:[%s834 + $0x20] sm:$0xf]
      %v1818 = vld [vmem:[%s834 + $0x28] sm:$0xf]
      %v1819 = vld [vmem:[%s834 + $0x30] sm:$0xf]
      %v1820 = vld [vmem:[%s834 + $0x38] sm:$0xf]
      %1821 = vst [vmem:[#allocation3 + $0xc] sm:$0xf] %v1813
      %1822 = vst [vmem:[#allocation3 + $0x30] sm:$0xf] %v1814
      %1823 = vst [vmem:[#allocation3 + $0x54] sm:$0xf] %v1815
      %1824 = vst [vmem:[#allocation3 + $0x78] sm:$0xf] %v1816
      %1825 = vst [vmem:[#allocation3 + $0x9c] sm:$0xf] %v1817
      %1826 = vst [vmem:[#allocation3 + $0xc0] sm:$0xf] %v1818
      %1827 = vst [vmem:[#allocation3 + $0xe4] sm:$0xf] %v1819
      %1828 = vst [vmem:[#allocation3 + $0x108] sm:$0xf] %v1820
      %v1829 = vld [vmem:[%s834] sm:$0xf]
      %v1830 = vld [vmem:[%s834 + $0x4] sm:$0x1]
      %v1831 = vld [vmem:[%s834 + $0x8] sm:$0xf]
      %v1832 = vld [vmem:[%s834 + $0xc] sm:$0x1]
      %v1833 = vld [vmem:[%s834 + $0x10] sm:$0xf]
      %v1834 = vld [vmem:[%s834 + $0x14] sm:$0x1]
      %v1835 = vld [vmem:[%s834 + $0x18] sm:$0xf]
      %v1836 = vld [vmem:[%s834 + $0x1c] sm:$0x1]
      %v1837 = vld [vmem:[%s834 + $0x20] sm:$0xf]
      %v1838 = vld [vmem:[%s834 + $0x24] sm:$0x1]
      %v1839 = vld [vmem:[%s834 + $0x28] sm:$0xf]
      %v1840 = vld [vmem:[%s834 + $0x2c] sm:$0x1]
      %v1841 = vld [vmem:[%s834 + $0x30] sm:$0xf]
      %v1842 = vld [vmem:[%s834 + $0x34] sm:$0x1]
      %v1843 = vld [vmem:[%s834 + $0x38] sm:$0xf]
      %v1844 = vld [vmem:[%s834 + $0x3c] sm:$0x1]
      %v1846 = vshrl.u32 %v1829, 16
      %v1848 = vrot.slane %v1846, 4
      %v1849 = vshll.u32 %v1829, 16
      %v1851 = vrot.slane %v1849, 5
      %v1852 = vor.u32 %v1848, %v1851
      %v1853 = vrot.slane %v1852, 4
      %v1855 = vshll.u32 %v1830, 16
      %v1857 = vrot.slane %v1855, 5
      %v1858 = vsel %vm1601, %v1853, %v1857
      %v1860 = vshrl.u32 %v1831, 16
      %v1862 = vrot.slane %v1860, 4
      %v1863 = vshll.u32 %v1831, 16
      %v1865 = vrot.slane %v1863, 5
      %v1866 = vor.u32 %v1862, %v1865
      %v1867 = vrot.slane %v1866, 4
      %v1869 = vshll.u32 %v1832, 16
      %v1871 = vrot.slane %v1869, 5
      %v1872 = vsel %vm1601, %v1867, %v1871
      %v1874 = vshrl.u32 %v1833, 16
      %v1876 = vrot.slane %v1874, 4
      %v1877 = vshll.u32 %v1833, 16
      %v1879 = vrot.slane %v1877, 5
      %v1880 = vor.u32 %v1876, %v1879
      %v1881 = vrot.slane %v1880, 4
      %v1883 = vshll.u32 %v1834, 16
      %v1885 = vrot.slane %v1883, 5
      %v1886 = vsel %vm1601, %v1881, %v1885
      %v1888 = vshrl.u32 %v1835, 16
      %v1890 = vrot.slane %v1888, 4
      %v1891 = vshll.u32 %v1835, 16
      %v1893 = vrot.slane %v1891, 5
      %v1894 = vor.u32 %v1890, %v1893
      %v1895 = vrot.slane %v1894, 4
      %v1897 = vshll.u32 %v1836, 16
      %v1899 = vrot.slane %v1897, 5
      %v1900 = vsel %vm1601, %v1895, %v1899
      %v1902 = vshrl.u32 %v1837, 16
      %v1904 = vrot.slane %v1902, 4
      %v1905 = vshll.u32 %v1837, 16
      %v1907 = vrot.slane %v1905, 5
      %v1908 = vor.u32 %v1904, %v1907
      %v1909 = vrot.slane %v1908, 4
      %v1911 = vshll.u32 %v1838, 16
      %v1913 = vrot.slane %v1911, 5
      %v1914 = vsel %vm1601, %v1909, %v1913
      %v1916 = vshrl.u32 %v1839, 16
      %v1918 = vrot.slane %v1916, 4
      %v1919 = vshll.u32 %v1839, 16
      %v1921 = vrot.slane %v1919, 5
      %v1922 = vor.u32 %v1918, %v1921
      %v1923 = vrot.slane %v1922, 4
      %v1925 = vshll.u32 %v1840, 16
      %v1927 = vrot.slane %v1925, 5
      %v1928 = vsel %vm1601, %v1923, %v1927
      %v1930 = vshrl.u32 %v1841, 16
      %v1932 = vrot.slane %v1930, 4
      %v1933 = vshll.u32 %v1841, 16
      %v1935 = vrot.slane %v1933, 5
      %v1936 = vor.u32 %v1932, %v1935
      %v1937 = vrot.slane %v1936, 4
      %v1939 = vshll.u32 %v1842, 16
      %v1941 = vrot.slane %v1939, 5
      %v1942 = vsel %vm1601, %v1937, %v1941
      %v1944 = vshrl.u32 %v1843, 16
      %v1946 = vrot.slane %v1944, 4
      %v1947 = vshll.u32 %v1843, 16
      %v1949 = vrot.slane %v1947, 5
      %v1950 = vor.u32 %v1946, %v1949
      %v1951 = vrot.slane %v1950, 4
      %v1953 = vshll.u32 %v1844, 16
      %v1955 = vrot.slane %v1953, 5
      %v1956 = vsel %vm1601, %v1951, %v1955
      %1965 = vst [vmem:[#allocation3 + $0x10] sm:$0xf] %v1858
      %1966 = vst [vmem:[#allocation3 + $0x34] sm:$0xf] %v1872
      %1967 = vst [vmem:[#allocation3 + $0x58] sm:$0xf] %v1886
      %1968 = vst [vmem:[#allocation3 + $0x7c] sm:$0xf] %v1900
      %1969 = vst [vmem:[#allocation3 + $0xa0] sm:$0xf] %v1914
      %1970 = vst [vmem:[#allocation3 + $0xc4] sm:$0xf] %v1928
      %1971 = vst [vmem:[#allocation3 + $0xe8] sm:$0xf] %v1942
      %1972 = vst [vmem:[#allocation3 + $0x10c] sm:$0xf] %v1956
      %v1973 = vld [vmem:[%s834] sm:$0xe]
      %v1974 = vld [vmem:[%s834 + $0x4] sm:$0x1]
      %v1975 = vld [vmem:[%s834 + $0x8] sm:$0xe]
      %v1976 = vld [vmem:[%s834 + $0xc] sm:$0x1]
      %v1977 = vld [vmem:[%s834 + $0x10] sm:$0xe]
      %v1978 = vld [vmem:[%s834 + $0x14] sm:$0x1]
      %v1979 = vld [vmem:[%s834 + $0x18] sm:$0xe]
      %v1980 = vld [vmem:[%s834 + $0x1c] sm:$0x1]
      %v1981 = vld [vmem:[%s834 + $0x20] sm:$0xe]
      %v1982 = vld [vmem:[%s834 + $0x24] sm:$0x1]
      %v1983 = vld [vmem:[%s834 + $0x28] sm:$0xe]
      %v1984 = vld [vmem:[%s834 + $0x2c] sm:$0x1]
      %v1985 = vld [vmem:[%s834 + $0x30] sm:$0xe]
      %v1986 = vld [vmem:[%s834 + $0x34] sm:$0x1]
      %v1987 = vld [vmem:[%s834 + $0x38] sm:$0xe]
      %v1988 = vld [vmem:[%s834 + $0x3c] sm:$0x1]
      %v2005 = vrot.slane %v1973, 5
      %v2006 = vrot.slane %v2005, 4
      %v2007 = vrot.slane %v1974, 5
      %v2008 = vsel %vm1764, %v2006, %v2007
      %v2009 = vrot.slane %v1975, 5
      %v2010 = vrot.slane %v2009, 4
      %v2011 = vrot.slane %v1976, 5
      %v2012 = vsel %vm1764, %v2010, %v2011
      %v2013 = vrot.slane %v1977, 5
      %v2014 = vrot.slane %v2013, 4
      %v2015 = vrot.slane %v1978, 5
      %v2016 = vsel %vm1764, %v2014, %v2015
      %v2017 = vrot.slane %v1979, 5
      %v2018 = vrot.slane %v2017, 4
      %v2019 = vrot.slane %v1980, 5
      %v2020 = vsel %vm1764, %v2018, %v2019
      %v2021 = vrot.slane %v1981, 5
      %v2022 = vrot.slane %v2021, 4
      %v2023 = vrot.slane %v1982, 5
      %v2024 = vsel %vm1764, %v2022, %v2023
      %v2025 = vrot.slane %v1983, 5
      %v2026 = vrot.slane %v2025, 4
      %v2027 = vrot.slane %v1984, 5
      %v2028 = vsel %vm1764, %v2026, %v2027
      %v2029 = vrot.slane %v1985, 5
      %v2030 = vrot.slane %v2029, 4
      %v2031 = vrot.slane %v1986, 5
      %v2032 = vsel %vm1764, %v2030, %v2031
      %v2033 = vrot.slane %v1987, 5
      %v2034 = vrot.slane %v2033, 4
      %v2035 = vrot.slane %v1988, 5
      %v2036 = vsel %vm1764, %v2034, %v2035
      %2045 = vst [vmem:[#allocation3 + $0x14] sm:$0xf] %v2008
      %2046 = vst [vmem:[#allocation3 + $0x38] sm:$0xf] %v2012
      %2047 = vst [vmem:[#allocation3 + $0x5c] sm:$0xf] %v2016
      %2048 = vst [vmem:[#allocation3 + $0x80] sm:$0xf] %v2020
      %2049 = vst [vmem:[#allocation3 + $0xa4] sm:$0xf] %v2024
      %2050 = vst [vmem:[#allocation3 + $0xc8] sm:$0xf] %v2028
      %2051 = vst [vmem:[#allocation3 + $0xec] sm:$0xf] %v2032
      %2052 = vst [vmem:[#allocation3 + $0x110] sm:$0xf] %v2036
      %s2053 = scalar_lea.vmem [#allocation2], 16
      %v2054 = vld [vmem:[%s2053] sm:$0xf]
      %v2055 = vld [vmem:[%s2053 + $0x8] sm:$0xf]
      %v2056 = vld [vmem:[%s2053 + $0x10] sm:$0xf]
      %v2057 = vld [vmem:[%s2053 + $0x18] sm:$0xf]
      %v2058 = vld [vmem:[%s2053 + $0x20] sm:$0xf]
      %v2059 = vld [vmem:[%s2053 + $0x28] sm:$0xf]
      %v2060 = vld [vmem:[%s2053 + $0x30] sm:$0xf]
      %v2061 = vld [vmem:[%s2053 + $0x38] sm:$0xf]
      %2062 = vst [vmem:[#allocation3 + $0x18] sm:$0xf] %v2054
      %2063 = vst [vmem:[#allocation3 + $0x3c] sm:$0xf] %v2055
      %2064 = vst [vmem:[#allocation3 + $0x60] sm:$0xf] %v2056
      %2065 = vst [vmem:[#allocation3 + $0x84] sm:$0xf] %v2057
      %2066 = vst [vmem:[#allocation3 + $0xa8] sm:$0xf] %v2058
      %2067 = vst [vmem:[#allocation3 + $0xcc] sm:$0xf] %v2059
      %2068 = vst [vmem:[#allocation3 + $0xf0] sm:$0xf] %v2060
      %2069 = vst [vmem:[#allocation3 + $0x114] sm:$0xf] %v2061
      %v2070 = vld [vmem:[%s2053] sm:$0xf]
      %v2071 = vld [vmem:[%s2053 + $0x4] sm:$0x1]
      %v2072 = vld [vmem:[%s2053 + $0x8] sm:$0xf]
      %v2073 = vld [vmem:[%s2053 + $0xc] sm:$0x1]
      %v2074 = vld [vmem:[%s2053 + $0x10] sm:$0xf]
      %v2075 = vld [vmem:[%s2053 + $0x14] sm:$0x1]
      %v2076 = vld [vmem:[%s2053 + $0x18] sm:$0xf]
      %v2077 = vld [vmem:[%s2053 + $0x1c] sm:$0x1]
      %v2078 = vld [vmem:[%s2053 + $0x20] sm:$0xf]
      %v2079 = vld [vmem:[%s2053 + $0x24] sm:$0x1]
      %v2080 = vld [vmem:[%s2053 + $0x28] sm:$0xf]
      %v2081 = vld [vmem:[%s2053 + $0x2c] sm:$0x1]
      %v2082 = vld [vmem:[%s2053 + $0x30] sm:$0xf]
      %v2083 = vld [vmem:[%s2053 + $0x34] sm:$0x1]
      %v2084 = vld [vmem:[%s2053 + $0x38] sm:$0xf]
      %v2085 = vld [vmem:[%s2053 + $0x3c] sm:$0x1]
      %v2087 = vshrl.u32 %v2070, 16
      %v2089 = vrot.slane %v2087, 4
      %v2090 = vshll.u32 %v2070, 16
      %v2092 = vrot.slane %v2090, 5
      %v2093 = vor.u32 %v2089, %v2092
      %v2094 = vrot.slane %v2093, 4
      %v2096 = vshll.u32 %v2071, 16
      %v2098 = vrot.slane %v2096, 5
      %v2099 = vsel %vm1601, %v2094, %v2098
      %v2101 = vshrl.u32 %v2072, 16
      %v2103 = vrot.slane %v2101, 4
      %v2104 = vshll.u32 %v2072, 16
      %v2106 = vrot.slane %v2104, 5
      %v2107 = vor.u32 %v2103, %v2106
      %v2108 = vrot.slane %v2107, 4
      %v2110 = vshll.u32 %v2073, 16
      %v2112 = vrot.slane %v2110, 5
      %v2113 = vsel %vm1601, %v2108, %v2112
      %v2115 = vshrl.u32 %v2074, 16
      %v2117 = vrot.slane %v2115, 4
      %v2118 = vshll.u32 %v2074, 16
      %v2120 = vrot.slane %v2118, 5
      %v2121 = vor.u32 %v2117, %v2120
      %v2122 = vrot.slane %v2121, 4
      %v2124 = vshll.u32 %v2075, 16
      %v2126 = vrot.slane %v2124, 5
      %v2127 = vsel %vm1601, %v2122, %v2126
      %v2129 = vshrl.u32 %v2076, 16
      %v2131 = vrot.slane %v2129, 4
      %v2132 = vshll.u32 %v2076, 16
      %v2134 = vrot.slane %v2132, 5
      %v2135 = vor.u32 %v2131, %v2134
      %v2136 = vrot.slane %v2135, 4
      %v2138 = vshll.u32 %v2077, 16
      %v2140 = vrot.slane %v2138, 5
      %v2141 = vsel %vm1601, %v2136, %v2140
      %v2143 = vshrl.u32 %v2078, 16
      %v2145 = vrot.slane %v2143, 4
      %v2146 = vshll.u32 %v2078, 16
      %v2148 = vrot.slane %v2146, 5
      %v2149 = vor.u32 %v2145, %v2148
      %v2150 = vrot.slane %v2149, 4
      %v2152 = vshll.u32 %v2079, 16
      %v2154 = vrot.slane %v2152, 5
      %v2155 = vsel %vm1601, %v2150, %v2154
      %v2157 = vshrl.u32 %v2080, 16
      %v2159 = vrot.slane %v2157, 4
      %v2160 = vshll.u32 %v2080, 16
      %v2162 = vrot.slane %v2160, 5
      %v2163 = vor.u32 %v2159, %v2162
      %v2164 = vrot.slane %v2163, 4
      %v2166 = vshll.u32 %v2081, 16
      %v2168 = vrot.slane %v2166, 5
      %v2169 = vsel %vm1601, %v2164, %v2168
      %v2171 = vshrl.u32 %v2082, 16
      %v2173 = vrot.slane %v2171, 4
      %v2174 = vshll.u32 %v2082, 16
      %v2176 = vrot.slane %v2174, 5
      %v2177 = vor.u32 %v2173, %v2176
      %v2178 = vrot.slane %v2177, 4
      %v2180 = vshll.u32 %v2083, 16
      %v2182 = vrot.slane %v2180, 5
      %v2183 = vsel %vm1601, %v2178, %v2182
      %v2185 = vshrl.u32 %v2084, 16
      %v2187 = vrot.slane %v2185, 4
      %v2188 = vshll.u32 %v2084, 16
      %v2190 = vrot.slane %v2188, 5
      %v2191 = vor.u32 %v2187, %v2190
      %v2192 = vrot.slane %v2191, 4
      %v2194 = vshll.u32 %v2085, 16
      %v2196 = vrot.slane %v2194, 5
      %v2197 = vsel %vm1601, %v2192, %v2196
      %2206 = vst [vmem:[#allocation3 + $0x1c] sm:$0xf] %v2099
      %2207 = vst [vmem:[#allocation3 + $0x40] sm:$0xf] %v2113
      %2208 = vst [vmem:[#allocation3 + $0x64] sm:$0xf] %v2127
      %2209 = vst [vmem:[#allocation3 + $0x88] sm:$0xf] %v2141
      %2210 = vst [vmem:[#allocation3 + $0xac] sm:$0xf] %v2155
      %2211 = vst [vmem:[#allocation3 + $0xd0] sm:$0xf] %v2169
      %2212 = vst [vmem:[#allocation3 + $0xf4] sm:$0xf] %v2183
      %2213 = vst [vmem:[#allocation3 + $0x118] sm:$0xf] %v2197
      %v2214 = vld [vmem:[%s2053] sm:$0xe]
      %v2215 = vld [vmem:[%s2053 + $0x4] sm:$0x1]
      %v2216 = vld [vmem:[%s2053 + $0x8] sm:$0xe]
      %v2217 = vld [vmem:[%s2053 + $0xc] sm:$0x1]
      %v2218 = vld [vmem:[%s2053 + $0x10] sm:$0xe]
      %v2219 = vld [vmem:[%s2053 + $0x14] sm:$0x1]
      %v2220 = vld [vmem:[%s2053 + $0x18] sm:$0xe]
      %v2221 = vld [vmem:[%s2053 + $0x1c] sm:$0x1]
      %v2222 = vld [vmem:[%s2053 + $0x20] sm:$0xe]
      %v2223 = vld [vmem:[%s2053 + $0x24] sm:$0x1]
      %v2224 = vld [vmem:[%s2053 + $0x28] sm:$0xe]
      %v2225 = vld [vmem:[%s2053 + $0x2c] sm:$0x1]
      %v2226 = vld [vmem:[%s2053 + $0x30] sm:$0xe]
      %v2227 = vld [vmem:[%s2053 + $0x34] sm:$0x1]
      %v2228 = vld [vmem:[%s2053 + $0x38] sm:$0xe]
      %v2229 = vld [vmem:[%s2053 + $0x3c] sm:$0x1]
      %v2246 = vrot.slane %v2214, 5
      %v2247 = vrot.slane %v2246, 4
      %v2248 = vrot.slane %v2215, 5
      %v2249 = vsel %vm1764, %v2247, %v2248
      %v2250 = vrot.slane %v2216, 5
      %v2251 = vrot.slane %v2250, 4
      %v2252 = vrot.slane %v2217, 5
      %v2253 = vsel %vm1764, %v2251, %v2252
      %v2254 = vrot.slane %v2218, 5
      %v2255 = vrot.slane %v2254, 4
      %v2256 = vrot.slane %v2219, 5
      %v2257 = vsel %vm1764, %v2255, %v2256
      %v2258 = vrot.slane %v2220, 5
      %v2259 = vrot.slane %v2258, 4
      %v2260 = vrot.slane %v2221, 5
      %v2261 = vsel %vm1764, %v2259, %v2260
      %v2262 = vrot.slane %v2222, 5
      %v2263 = vrot.slane %v2262, 4
      %v2264 = vrot.slane %v2223, 5
      %v2265 = vsel %vm1764, %v2263, %v2264
      %v2266 = vrot.slane %v2224, 5
      %v2267 = vrot.slane %v2266, 4
      %v2268 = vrot.slane %v2225, 5
      %v2269 = vsel %vm1764, %v2267, %v2268
      %v2270 = vrot.slane %v2226, 5
      %v2271 = vrot.slane %v2270, 4
      %v2272 = vrot.slane %v2227, 5
      %v2273 = vsel %vm1764, %v2271, %v2272
      %v2274 = vrot.slane %v2228, 5
      %v2275 = vrot.slane %v2274, 4
      %v2276 = vrot.slane %v2229, 5
      %v2277 = vsel %vm1764, %v2275, %v2276
      %2286 = vst [vmem:[#allocation3 + $0x20] sm:$0xf] %v2249
      %2287 = vst [vmem:[#allocation3 + $0x44] sm:$0xf] %v2253
      %2288 = vst [vmem:[#allocation3 + $0x68] sm:$0xf] %v2257
      %2289 = vst [vmem:[#allocation3 + $0x8c] sm:$0xf] %v2261
      %2290 = vst [vmem:[#allocation3 + $0xb0] sm:$0xf] %v2265
      %2291 = vst [vmem:[#allocation3 + $0xd4] sm:$0xf] %v2269
      %2292 = vst [vmem:[#allocation3 + $0xf8] sm:$0xf] %v2273
      %2293 = vst [vmem:[#allocation3 + $0x11c] sm:$0xf] %v2277
      %v2294 = vld [vmem:[%s1018] sm:$0xf]
      %v2295 = vld [vmem:[%s1018 + $0x8] sm:$0xf]
      %v2296 = vld [vmem:[%s1018 + $0x10] sm:$0xf]
      %v2297 = vld [vmem:[%s1018 + $0x18] sm:$0xf]
      %v2298 = vld [vmem:[%s1018 + $0x20] sm:$0xf]
      %v2299 = vld [vmem:[%s1018 + $0x28] sm:$0xf]
      %v2300 = vld [vmem:[%s1018 + $0x30] sm:$0xf]
      %v2301 = vld [vmem:[%s1018 + $0x38] sm:$0xf]
      %s2302 = scalar_lea.vmem [#allocation3], 288
      %2303 = vst [vmem:[%s2302] sm:$0xf] %v2294
      %2304 = vst [vmem:[%s2302 + $0x24] sm:$0xf] %v2295
      %2305 = vst [vmem:[%s2302 + $0x48] sm:$0xf] %v2296
      %2306 = vst [vmem:[%s2302 + $0x6c] sm:$0xf] %v2297
      %2307 = vst [vmem:[%s2302 + $0x90] sm:$0xf] %v2298
      %2308 = vst [vmem:[%s2302 + $0xb4] sm:$0xf] %v2299
      %2309 = vst [vmem:[%s2302 + $0xd8] sm:$0xf] %v2300
      %2310 = vst [vmem:[%s2302 + $0xfc] sm:$0xf] %v2301
      %v2311 = vld [vmem:[%s1018] sm:$0xf]
      %v2312 = vld [vmem:[%s1018 + $0x4] sm:$0x1]
      %v2313 = vld [vmem:[%s1018 + $0x8] sm:$0xf]
      %v2314 = vld [vmem:[%s1018 + $0xc] sm:$0x1]
      %v2315 = vld [vmem:[%s1018 + $0x10] sm:$0xf]
      %v2316 = vld [vmem:[%s1018 + $0x14] sm:$0x1]
      %v2317 = vld [vmem:[%s1018 + $0x18] sm:$0xf]
      %v2318 = vld [vmem:[%s1018 + $0x1c] sm:$0x1]
      %v2319 = vld [vmem:[%s1018 + $0x20] sm:$0xf]
      %v2320 = vld [vmem:[%s1018 + $0x24] sm:$0x1]
      %v2321 = vld [vmem:[%s1018 + $0x28] sm:$0xf]
      %v2322 = vld [vmem:[%s1018 + $0x2c] sm:$0x1]
      %v2323 = vld [vmem:[%s1018 + $0x30] sm:$0xf]
      %v2324 = vld [vmem:[%s1018 + $0x34] sm:$0x1]
      %v2325 = vld [vmem:[%s1018 + $0x38] sm:$0xf]
      %v2326 = vld [vmem:[%s1018 + $0x3c] sm:$0x1]
      %v2328 = vshrl.u32 %v2311, 16
      %v2330 = vrot.slane %v2328, 4
      %v2331 = vshll.u32 %v2311, 16
      %v2333 = vrot.slane %v2331, 5
      %v2334 = vor.u32 %v2330, %v2333
      %v2335 = vrot.slane %v2334, 4
      %v2337 = vshll.u32 %v2312, 16
      %v2339 = vrot.slane %v2337, 5
      %v2340 = vsel %vm1601, %v2335, %v2339
      %v2342 = vshrl.u32 %v2313, 16
      %v2344 = vrot.slane %v2342, 4
      %v2345 = vshll.u32 %v2313, 16
      %v2347 = vrot.slane %v2345, 5
      %v2348 = vor.u32 %v2344, %v2347
      %v2349 = vrot.slane %v2348, 4
      %v2351 = vshll.u32 %v2314, 16
      %v2353 = vrot.slane %v2351, 5
      %v2354 = vsel %vm1601, %v2349, %v2353
      %v2356 = vshrl.u32 %v2315, 16
      %v2358 = vrot.slane %v2356, 4
      %v2359 = vshll.u32 %v2315, 16
      %v2361 = vrot.slane %v2359, 5
      %v2362 = vor.u32 %v2358, %v2361
      %v2363 = vrot.slane %v2362, 4
      %v2365 = vshll.u32 %v2316, 16
      %v2367 = vrot.slane %v2365, 5
      %v2368 = vsel %vm1601, %v2363, %v2367
      %v2370 = vshrl.u32 %v2317, 16
      %v2372 = vrot.slane %v2370, 4
      %v2373 = vshll.u32 %v2317, 16
      %v2375 = vrot.slane %v2373, 5
      %v2376 = vor.u32 %v2372, %v2375
      %v2377 = vrot.slane %v2376, 4
      %v2379 = vshll.u32 %v2318, 16
      %v2381 = vrot.slane %v2379, 5
      %v2382 = vsel %vm1601, %v2377, %v2381
      %v2384 = vshrl.u32 %v2319, 16
      %v2386 = vrot.slane %v2384, 4
      %v2387 = vshll.u32 %v2319, 16
      %v2389 = vrot.slane %v2387, 5
      %v2390 = vor.u32 %v2386, %v2389
      %v2391 = vrot.slane %v2390, 4
      %v2393 = vshll.u32 %v2320, 16
      %v2395 = vrot.slane %v2393, 5
      %v2396 = vsel %vm1601, %v2391, %v2395
      %v2398 = vshrl.u32 %v2321, 16
      %v2400 = vrot.slane %v2398, 4
      %v2401 = vshll.u32 %v2321, 16
      %v2403 = vrot.slane %v2401, 5
      %v2404 = vor.u32 %v2400, %v2403
      %v2405 = vrot.slane %v2404, 4
      %v2407 = vshll.u32 %v2322, 16
      %v2409 = vrot.slane %v2407, 5
      %v2410 = vsel %vm1601, %v2405, %v2409
      %v2412 = vshrl.u32 %v2323, 16
      %v2414 = vrot.slane %v2412, 4
      %v2415 = vshll.u32 %v2323, 16
      %v2417 = vrot.slane %v2415, 5
      %v2418 = vor.u32 %v2414, %v2417
      %v2419 = vrot.slane %v2418, 4
      %v2421 = vshll.u32 %v2324, 16
      %v2423 = vrot.slane %v2421, 5
      %v2424 = vsel %vm1601, %v2419, %v2423
      %v2426 = vshrl.u32 %v2325, 16
      %v2428 = vrot.slane %v2426, 4
      %v2429 = vshll.u32 %v2325, 16
      %v2431 = vrot.slane %v2429, 5
      %v2432 = vor.u32 %v2428, %v2431
      %v2433 = vrot.slane %v2432, 4
      %v2435 = vshll.u32 %v2326, 16
      %v2437 = vrot.slane %v2435, 5
      %v2438 = vsel %vm1601, %v2433, %v2437
      %2447 = vst [vmem:[%s2302 + $0x4] sm:$0xf] %v2340
      %2448 = vst [vmem:[%s2302 + $0x28] sm:$0xf] %v2354
      %2449 = vst [vmem:[%s2302 + $0x4c] sm:$0xf] %v2368
      %2450 = vst [vmem:[%s2302 + $0x70] sm:$0xf] %v2382
      %2451 = vst [vmem:[%s2302 + $0x94] sm:$0xf] %v2396
      %2452 = vst [vmem:[%s2302 + $0xb8] sm:$0xf] %v2410
      %2453 = vst [vmem:[%s2302 + $0xdc] sm:$0xf] %v2424
      %2454 = vst [vmem:[%s2302 + $0x100] sm:$0xf] %v2438
      %v2455 = vld [vmem:[%s1018] sm:$0xe]
      %v2456 = vld [vmem:[%s1018 + $0x4] sm:$0x1]
      %v2457 = vld [vmem:[%s1018 + $0x8] sm:$0xe]
      %v2458 = vld [vmem:[%s1018 + $0xc] sm:$0x1]
      %v2459 = vld [vmem:[%s1018 + $0x10] sm:$0xe]
      %v2460 = vld [vmem:[%s1018 + $0x14] sm:$0x1]
      %v2461 = vld [vmem:[%s1018 + $0x18] sm:$0xe]
      %v2462 = vld [vmem:[%s1018 + $0x1c] sm:$0x1]
      %v2463 = vld [vmem:[%s1018 + $0x20] sm:$0xe]
      %v2464 = vld [vmem:[%s1018 + $0x24] sm:$0x1]
      %v2465 = vld [vmem:[%s1018 + $0x28] sm:$0xe]
      %v2466 = vld [vmem:[%s1018 + $0x2c] sm:$0x1]
      %v2467 = vld [vmem:[%s1018 + $0x30] sm:$0xe]
      %v2468 = vld [vmem:[%s1018 + $0x34] sm:$0x1]
      %v2469 = vld [vmem:[%s1018 + $0x38] sm:$0xe]
      %v2470 = vld [vmem:[%s1018 + $0x3c] sm:$0x1]
      %v2487 = vrot.slane %v2455, 5
      %v2488 = vrot.slane %v2487, 4
      %v2489 = vrot.slane %v2456, 5
      %v2490 = vsel %vm1764, %v2488, %v2489
      %v2491 = vrot.slane %v2457, 5
      %v2492 = vrot.slane %v2491, 4
      %v2493 = vrot.slane %v2458, 5
      %v2494 = vsel %vm1764, %v2492, %v2493
      %v2495 = vrot.slane %v2459, 5
      %v2496 = vrot.slane %v2495, 4
      %v2497 = vrot.slane %v2460, 5
      %v2498 = vsel %vm1764, %v2496, %v2497
      %v2499 = vrot.slane %v2461, 5
      %v2500 = vrot.slane %v2499, 4
      %v2501 = vrot.slane %v2462, 5
      %v2502 = vsel %vm1764, %v2500, %v2501
      %v2503 = vrot.slane %v2463, 5
      %v2504 = vrot.slane %v2503, 4
      %v2505 = vrot.slane %v2464, 5
      %v2506 = vsel %vm1764, %v2504, %v2505
      %v2507 = vrot.slane %v2465, 5
      %v2508 = vrot.slane %v2507, 4
      %v2509 = vrot.slane %v2466, 5
      %v2510 = vsel %vm1764, %v2508, %v2509
      %v2511 = vrot.slane %v2467, 5
      %v2512 = vrot.slane %v2511, 4
      %v2513 = vrot.slane %v2468, 5
      %v2514 = vsel %vm1764, %v2512, %v2513
      %v2515 = vrot.slane %v2469, 5
      %v2516 = vrot.slane %v2515, 4
      %v2517 = vrot.slane %v2470, 5
      %v2518 = vsel %vm1764, %v2516, %v2517
      %2527 = vst [vmem:[%s2302 + $0x8] sm:$0xf] %v2490
      %2528 = vst [vmem:[%s2302 + $0x2c] sm:$0xf] %v2494
      %2529 = vst [vmem:[%s2302 + $0x50] sm:$0xf] %v2498
      %2530 = vst [vmem:[%s2302 + $0x74] sm:$0xf] %v2502
      %2531 = vst [vmem:[%s2302 + $0x98] sm:$0xf] %v2506
      %2532 = vst [vmem:[%s2302 + $0xbc] sm:$0xf] %v2510
      %2533 = vst [vmem:[%s2302 + $0xe0] sm:$0xf] %v2514
      %2534 = vst [vmem:[%s2302 + $0x104] sm:$0xf] %v2518
      %v2535 = vld [vmem:[%s1024] sm:$0xf]
      %v2536 = vld [vmem:[%s1024 + $0x8] sm:$0xf]
      %v2537 = vld [vmem:[%s1024 + $0x10] sm:$0xf]
      %v2538 = vld [vmem:[%s1024 + $0x18] sm:$0xf]
      %v2539 = vld [vmem:[%s1024 + $0x20] sm:$0xf]
      %v2540 = vld [vmem:[%s1024 + $0x28] sm:$0xf]
      %v2541 = vld [vmem:[%s1024 + $0x30] sm:$0xf]
      %v2542 = vld [vmem:[%s1024 + $0x38] sm:$0xf]
      %2543 = vst [vmem:[%s2302 + $0xc] sm:$0xf] %v2535
      %2544 = vst [vmem:[%s2302 + $0x30] sm:$0xf] %v2536
      %2545 = vst [vmem:[%s2302 + $0x54] sm:$0xf] %v2537
      %2546 = vst [vmem:[%s2302 + $0x78] sm:$0xf] %v2538
      %2547 = vst [vmem:[%s2302 + $0x9c] sm:$0xf] %v2539
      %2548 = vst [vmem:[%s2302 + $0xc0] sm:$0xf] %v2540
      %2549 = vst [vmem:[%s2302 + $0xe4] sm:$0xf] %v2541
      %2550 = vst [vmem:[%s2302 + $0x108] sm:$0xf] %v2542
      %v2551 = vld [vmem:[%s1024] sm:$0xf]
      %v2552 = vld [vmem:[%s1024 + $0x4] sm:$0x1]
      %v2553 = vld [vmem:[%s1024 + $0x8] sm:$0xf]
      %v2554 = vld [vmem:[%s1024 + $0xc] sm:$0x1]
      %v2555 = vld [vmem:[%s1024 + $0x10] sm:$0xf]
      %v2556 = vld [vmem:[%s1024 + $0x14] sm:$0x1]
      %v2557 = vld [vmem:[%s1024 + $0x18] sm:$0xf]
      %v2558 = vld [vmem:[%s1024 + $0x1c] sm:$0x1]
      %v2559 = vld [vmem:[%s1024 + $0x20] sm:$0xf]
      %v2560 = vld [vmem:[%s1024 + $0x24] sm:$0x1]
      %v2561 = vld [vmem:[%s1024 + $0x28] sm:$0xf]
      %v2562 = vld [vmem:[%s1024 + $0x2c] sm:$0x1]
      %v2563 = vld [vmem:[%s1024 + $0x30] sm:$0xf]
      %v2564 = vld [vmem:[%s1024 + $0x34] sm:$0x1]
      %v2565 = vld [vmem:[%s1024 + $0x38] sm:$0xf]
      %v2566 = vld [vmem:[%s1024 + $0x3c] sm:$0x1]
      %v2568 = vshrl.u32 %v2551, 16
      %v2570 = vrot.slane %v2568, 4
      %v2571 = vshll.u32 %v2551, 16
      %v2573 = vrot.slane %v2571, 5
      %v2574 = vor.u32 %v2570, %v2573
      %v2575 = vrot.slane %v2574, 4
      %v2577 = vshll.u32 %v2552, 16
      %v2579 = vrot.slane %v2577, 5
      %v2580 = vsel %vm1601, %v2575, %v2579
      %v2582 = vshrl.u32 %v2553, 16
      %v2584 = vrot.slane %v2582, 4
      %v2585 = vshll.u32 %v2553, 16
      %v2587 = vrot.slane %v2585, 5
      %v2588 = vor.u32 %v2584, %v2587
      %v2589 = vrot.slane %v2588, 4
      %v2591 = vshll.u32 %v2554, 16
      %v2593 = vrot.slane %v2591, 5
      %v2594 = vsel %vm1601, %v2589, %v2593
      %v2596 = vshrl.u32 %v2555, 16
      %v2598 = vrot.slane %v2596, 4
      %v2599 = vshll.u32 %v2555, 16
      %v2601 = vrot.slane %v2599, 5
      %v2602 = vor.u32 %v2598, %v2601
      %v2603 = vrot.slane %v2602, 4
      %v2605 = vshll.u32 %v2556, 16
      %v2607 = vrot.slane %v2605, 5
      %v2608 = vsel %vm1601, %v2603, %v2607
      %v2610 = vshrl.u32 %v2557, 16
      %v2612 = vrot.slane %v2610, 4
      %v2613 = vshll.u32 %v2557, 16
      %v2615 = vrot.slane %v2613, 5
      %v2616 = vor.u32 %v2612, %v2615
      %v2617 = vrot.slane %v2616, 4
      %v2619 = vshll.u32 %v2558, 16
      %v2621 = vrot.slane %v2619, 5
      %v2622 = vsel %vm1601, %v2617, %v2621
      %v2624 = vshrl.u32 %v2559, 16
      %v2626 = vrot.slane %v2624, 4
      %v2627 = vshll.u32 %v2559, 16
      %v2629 = vrot.slane %v2627, 5
      %v2630 = vor.u32 %v2626, %v2629
      %v2631 = vrot.slane %v2630, 4
      %v2633 = vshll.u32 %v2560, 16
      %v2635 = vrot.slane %v2633, 5
      %v2636 = vsel %vm1601, %v2631, %v2635
      %v2638 = vshrl.u32 %v2561, 16
      %v2640 = vrot.slane %v2638, 4
      %v2641 = vshll.u32 %v2561, 16
      %v2643 = vrot.slane %v2641, 5
      %v2644 = vor.u32 %v2640, %v2643
      %v2645 = vrot.slane %v2644, 4
      %v2647 = vshll.u32 %v2562, 16
      %v2649 = vrot.slane %v2647, 5
      %v2650 = vsel %vm1601, %v2645, %v2649
      %v2652 = vshrl.u32 %v2563, 16
      %v2654 = vrot.slane %v2652, 4
      %v2655 = vshll.u32 %v2563, 16
      %v2657 = vrot.slane %v2655, 5
      %v2658 = vor.u32 %v2654, %v2657
      %v2659 = vrot.slane %v2658, 4
      %v2661 = vshll.u32 %v2564, 16
      %v2663 = vrot.slane %v2661, 5
      %v2664 = vsel %vm1601, %v2659, %v2663
      %v2666 = vshrl.u32 %v2565, 16
      %v2668 = vrot.slane %v2666, 4
      %v2669 = vshll.u32 %v2565, 16
      %v2671 = vrot.slane %v2669, 5
      %v2672 = vor.u32 %v2668, %v2671
      %v2673 = vrot.slane %v2672, 4
      %v2675 = vshll.u32 %v2566, 16
      %v2677 = vrot.slane %v2675, 5
      %v2678 = vsel %vm1601, %v2673, %v2677
      %2687 = vst [vmem:[%s2302 + $0x10] sm:$0xf] %v2580
      %2688 = vst [vmem:[%s2302 + $0x34] sm:$0xf] %v2594
      %2689 = vst [vmem:[%s2302 + $0x58] sm:$0xf] %v2608
      %2690 = vst [vmem:[%s2302 + $0x7c] sm:$0xf] %v2622
      %2691 = vst [vmem:[%s2302 + $0xa0] sm:$0xf] %v2636
      %2692 = vst [vmem:[%s2302 + $0xc4] sm:$0xf] %v2650
      %2693 = vst [vmem:[%s2302 + $0xe8] sm:$0xf] %v2664
      %2694 = vst [vmem:[%s2302 + $0x10c] sm:$0xf] %v2678
      %v2695 = vld [vmem:[%s1024] sm:$0xe]
      %v2696 = vld [vmem:[%s1024 + $0x4] sm:$0x1]
      %v2697 = vld [vmem:[%s1024 + $0x8] sm:$0xe]
      %v2698 = vld [vmem:[%s1024 + $0xc] sm:$0x1]
      %v2699 = vld [vmem:[%s1024 + $0x10] sm:$0xe]
      %v2700 = vld [vmem:[%s1024 + $0x14] sm:$0x1]
      %v2701 = vld [vmem:[%s1024 + $0x18] sm:$0xe]
      %v2702 = vld [vmem:[%s1024 + $0x1c] sm:$0x1]
      %v2703 = vld [vmem:[%s1024 + $0x20] sm:$0xe]
      %v2704 = vld [vmem:[%s1024 + $0x24] sm:$0x1]
      %v2705 = vld [vmem:[%s1024 + $0x28] sm:$0xe]
      %v2706 = vld [vmem:[%s1024 + $0x2c] sm:$0x1]
      %v2707 = vld [vmem:[%s1024 + $0x30] sm:$0xe]
      %v2708 = vld [vmem:[%s1024 + $0x34] sm:$0x1]
      %v2709 = vld [vmem:[%s1024 + $0x38] sm:$0xe]
      %v2710 = vld [vmem:[%s1024 + $0x3c] sm:$0x1]
      %v2727 = vrot.slane %v2695, 5
      %v2728 = vrot.slane %v2727, 4
      %v2729 = vrot.slane %v2696, 5
      %v2730 = vsel %vm1764, %v2728, %v2729
      %v2731 = vrot.slane %v2697, 5
      %v2732 = vrot.slane %v2731, 4
      %v2733 = vrot.slane %v2698, 5
      %v2734 = vsel %vm1764, %v2732, %v2733
      %v2735 = vrot.slane %v2699, 5
      %v2736 = vrot.slane %v2735, 4
      %v2737 = vrot.slane %v2700, 5
      %v2738 = vsel %vm1764, %v2736, %v2737
      %v2739 = vrot.slane %v2701, 5
      %v2740 = vrot.slane %v2739, 4
      %v2741 = vrot.slane %v2702, 5
      %v2742 = vsel %vm1764, %v2740, %v2741
      %v2743 = vrot.slane %v2703, 5
      %v2744 = vrot.slane %v2743, 4
      %v2745 = vrot.slane %v2704, 5
      %v2746 = vsel %vm1764, %v2744, %v2745
      %v2747 = vrot.slane %v2705, 5
      %v2748 = vrot.slane %v2747, 4
      %v2749 = vrot.slane %v2706, 5
      %v2750 = vsel %vm1764, %v2748, %v2749
      %v2751 = vrot.slane %v2707, 5
      %v2752 = vrot.slane %v2751, 4
      %v2753 = vrot.slane %v2708, 5
      %v2754 = vsel %vm1764, %v2752, %v2753
      %v2755 = vrot.slane %v2709, 5
      %v2756 = vrot.slane %v2755, 4
      %v2757 = vrot.slane %v2710, 5
      %v2758 = vsel %vm1764, %v2756, %v2757
      %2767 = vst [vmem:[%s2302 + $0x14] sm:$0xf] %v2730
      %2768 = vst [vmem:[%s2302 + $0x38] sm:$0xf] %v2734
      %2769 = vst [vmem:[%s2302 + $0x5c] sm:$0xf] %v2738
      %2770 = vst [vmem:[%s2302 + $0x80] sm:$0xf] %v2742
      %2771 = vst [vmem:[%s2302 + $0xa4] sm:$0xf] %v2746
      %2772 = vst [vmem:[%s2302 + $0xc8] sm:$0xf] %v2750
      %2773 = vst [vmem:[%s2302 + $0xec] sm:$0xf] %v2754
      %2774 = vst [vmem:[%s2302 + $0x110] sm:$0xf] %v2758
      %s2775 = scalar_lea.vmem [#allocation2], 96
      %v2776 = vld [vmem:[%s2775] sm:$0xf]
      %v2777 = vld [vmem:[%s2775 + $0x8] sm:$0xf]
      %v2778 = vld [vmem:[%s2775 + $0x10] sm:$0xf]
      %v2779 = vld [vmem:[%s2775 + $0x18] sm:$0xf]
      %v2780 = vld [vmem:[%s2775 + $0x20] sm:$0xf]
      %v2781 = vld [vmem:[%s2775 + $0x28] sm:$0xf]
      %v2782 = vld [vmem:[%s2775 + $0x30] sm:$0xf]
      %v2783 = vld [vmem:[%s2775 + $0x38] sm:$0xf]
      %2784 = vst [vmem:[%s2302 + $0x18] sm:$0xf] %v2776
      %2785 = vst [vmem:[%s2302 + $0x3c] sm:$0xf] %v2777
      %2786 = vst [vmem:[%s2302 + $0x60] sm:$0xf] %v2778
      %2787 = vst [vmem:[%s2302 + $0x84] sm:$0xf] %v2779
      %2788 = vst [vmem:[%s2302 + $0xa8] sm:$0xf] %v2780
      %2789 = vst [vmem:[%s2302 + $0xcc] sm:$0xf] %v2781
      %2790 = vst [vmem:[%s2302 + $0xf0] sm:$0xf] %v2782
      %2791 = vst [vmem:[%s2302 + $0x114] sm:$0xf] %v2783
      %v2792 = vld [vmem:[%s2775] sm:$0xf]
      %v2793 = vld [vmem:[%s2775 + $0x4] sm:$0x1]
      %v2794 = vld [vmem:[%s2775 + $0x8] sm:$0xf]
      %v2795 = vld [vmem:[%s2775 + $0xc] sm:$0x1]
      %v2796 = vld [vmem:[%s2775 + $0x10] sm:$0xf]
      %v2797 = vld [vmem:[%s2775 + $0x14] sm:$0x1]
      %v2798 = vld [vmem:[%s2775 + $0x18] sm:$0xf]
      %v2799 = vld [vmem:[%s2775 + $0x1c] sm:$0x1]
      %v2800 = vld [vmem:[%s2775 + $0x20] sm:$0xf]
      %v2801 = vld [vmem:[%s2775 + $0x24] sm:$0x1]
      %v2802 = vld [vmem:[%s2775 + $0x28] sm:$0xf]
      %v2803 = vld [vmem:[%s2775 + $0x2c] sm:$0x1]
      %v2804 = vld [vmem:[%s2775 + $0x30] sm:$0xf]
      %v2805 = vld [vmem:[%s2775 + $0x34] sm:$0x1]
      %v2806 = vld [vmem:[%s2775 + $0x38] sm:$0xf]
      %v2807 = vld [vmem:[%s2775 + $0x3c] sm:$0x1]
      %v2809 = vshrl.u32 %v2792, 16
      %v2811 = vrot.slane %v2809, 4
      %v2812 = vshll.u32 %v2792, 16
      %v2814 = vrot.slane %v2812, 5
      %v2815 = vor.u32 %v2811, %v2814
      %v2816 = vrot.slane %v2815, 4
      %v2818 = vshll.u32 %v2793, 16
      %v2820 = vrot.slane %v2818, 5
      %v2821 = vsel %vm1601, %v2816, %v2820
      %v2823 = vshrl.u32 %v2794, 16
      %v2825 = vrot.slane %v2823, 4
      %v2826 = vshll.u32 %v2794, 16
      %v2828 = vrot.slane %v2826, 5
      %v2829 = vor.u32 %v2825, %v2828
      %v2830 = vrot.slane %v2829, 4
      %v2832 = vshll.u32 %v2795, 16
      %v2834 = vrot.slane %v2832, 5
      %v2835 = vsel %vm1601, %v2830, %v2834
      %v2837 = vshrl.u32 %v2796, 16
      %v2839 = vrot.slane %v2837, 4
      %v2840 = vshll.u32 %v2796, 16
      %v2842 = vrot.slane %v2840, 5
      %v2843 = vor.u32 %v2839, %v2842
      %v2844 = vrot.slane %v2843, 4
      %v2846 = vshll.u32 %v2797, 16
      %v2848 = vrot.slane %v2846, 5
      %v2849 = vsel %vm1601, %v2844, %v2848
      %v2851 = vshrl.u32 %v2798, 16
      %v2853 = vrot.slane %v2851, 4
      %v2854 = vshll.u32 %v2798, 16
      %v2856 = vrot.slane %v2854, 5
      %v2857 = vor.u32 %v2853, %v2856
      %v2858 = vrot.slane %v2857, 4
      %v2860 = vshll.u32 %v2799, 16
      %v2862 = vrot.slane %v2860, 5
      %v2863 = vsel %vm1601, %v2858, %v2862
      %v2865 = vshrl.u32 %v2800, 16
      %v2867 = vrot.slane %v2865, 4
      %v2868 = vshll.u32 %v2800, 16
      %v2870 = vrot.slane %v2868, 5
      %v2871 = vor.u32 %v2867, %v2870
      %v2872 = vrot.slane %v2871, 4
      %v2874 = vshll.u32 %v2801, 16
      %v2876 = vrot.slane %v2874, 5
      %v2877 = vsel %vm1601, %v2872, %v2876
      %v2879 = vshrl.u32 %v2802, 16
      %v2881 = vrot.slane %v2879, 4
      %v2882 = vshll.u32 %v2802, 16
      %v2884 = vrot.slane %v2882, 5
      %v2885 = vor.u32 %v2881, %v2884
      %v2886 = vrot.slane %v2885, 4
      %v2888 = vshll.u32 %v2803, 16
      %v2890 = vrot.slane %v2888, 5
      %v2891 = vsel %vm1601, %v2886, %v2890
      %v2893 = vshrl.u32 %v2804, 16
      %v2895 = vrot.slane %v2893, 4
      %v2896 = vshll.u32 %v2804, 16
      %v2898 = vrot.slane %v2896, 5
      %v2899 = vor.u32 %v2895, %v2898
      %v2900 = vrot.slane %v2899, 4
      %v2902 = vshll.u32 %v2805, 16
      %v2904 = vrot.slane %v2902, 5
      %v2905 = vsel %vm1601, %v2900, %v2904
      %v2907 = vshrl.u32 %v2806, 16
      %v2909 = vrot.slane %v2907, 4
      %v2910 = vshll.u32 %v2806, 16
      %v2912 = vrot.slane %v2910, 5
      %v2913 = vor.u32 %v2909, %v2912
      %v2914 = vrot.slane %v2913, 4
      %v2916 = vshll.u32 %v2807, 16
      %v2918 = vrot.slane %v2916, 5
      %v2919 = vsel %vm1601, %v2914, %v2918
      %2928 = vst [vmem:[%s2302 + $0x1c] sm:$0xf] %v2821
      %2929 = vst [vmem:[%s2302 + $0x40] sm:$0xf] %v2835
      %2930 = vst [vmem:[%s2302 + $0x64] sm:$0xf] %v2849
      %2931 = vst [vmem:[%s2302 + $0x88] sm:$0xf] %v2863
      %2932 = vst [vmem:[%s2302 + $0xac] sm:$0xf] %v2877
      %2933 = vst [vmem:[%s2302 + $0xd0] sm:$0xf] %v2891
      %2934 = vst [vmem:[%s2302 + $0xf4] sm:$0xf] %v2905
      %2935 = vst [vmem:[%s2302 + $0x118] sm:$0xf] %v2919
      %v2936 = vld [vmem:[%s2775] sm:$0xe]
      %v2937 = vld [vmem:[%s2775 + $0x4] sm:$0x1]
      %v2938 = vld [vmem:[%s2775 + $0x8] sm:$0xe]
      %v2939 = vld [vmem:[%s2775 + $0xc] sm:$0x1]
      %v2940 = vld [vmem:[%s2775 + $0x10] sm:$0xe]
      %v2941 = vld [vmem:[%s2775 + $0x14] sm:$0x1]
      %v2942 = vld [vmem:[%s2775 + $0x18] sm:$0xe]
      %v2943 = vld [vmem:[%s2775 + $0x1c] sm:$0x1]
      %v2944 = vld [vmem:[%s2775 + $0x20] sm:$0xe]
      %v2945 = vld [vmem:[%s2775 + $0x24] sm:$0x1]
      %v2946 = vld [vmem:[%s2775 + $0x28] sm:$0xe]
      %v2947 = vld [vmem:[%s2775 + $0x2c] sm:$0x1]
      %v2948 = vld [vmem:[%s2775 + $0x30] sm:$0xe]
      %v2949 = vld [vmem:[%s2775 + $0x34] sm:$0x1]
      %v2950 = vld [vmem:[%s2775 + $0x38] sm:$0xe]
      %v2951 = vld [vmem:[%s2775 + $0x3c] sm:$0x1]
      %v2968 = vrot.slane %v2936, 5
      %v2969 = vrot.slane %v2968, 4
      %v2970 = vrot.slane %v2937, 5
      %v2971 = vsel %vm1764, %v2969, %v2970
      %v2972 = vrot.slane %v2938, 5
      %v2973 = vrot.slane %v2972, 4
      %v2974 = vrot.slane %v2939, 5
      %v2975 = vsel %vm1764, %v2973, %v2974
      %v2976 = vrot.slane %v2940, 5
      %v2977 = vrot.slane %v2976, 4
      %v2978 = vrot.slane %v2941, 5
      %v2979 = vsel %vm1764, %v2977, %v2978
      %v2980 = vrot.slane %v2942, 5
      %v2981 = vrot.slane %v2980, 4
      %v2982 = vrot.slane %v2943, 5
      %v2983 = vsel %vm1764, %v2981, %v2982
      %v2984 = vrot.slane %v2944, 5
      %v2985 = vrot.slane %v2984, 4
      %v2986 = vrot.slane %v2945, 5
      %v2987 = vsel %vm1764, %v2985, %v2986
      %v2988 = vrot.slane %v2946, 5
      %v2989 = vrot.slane %v2988, 4
      %v2990 = vrot.slane %v2947, 5
      %v2991 = vsel %vm1764, %v2989, %v2990
      %v2992 = vrot.slane %v2948, 5
      %v2993 = vrot.slane %v2992, 4
      %v2994 = vrot.slane %v2949, 5
      %v2995 = vsel %vm1764, %v2993, %v2994
      %v2996 = vrot.slane %v2950, 5
      %v2997 = vrot.slane %v2996, 4
      %v2998 = vrot.slane %v2951, 5
      %v2999 = vsel %vm1764, %v2997, %v2998
      %3008 = vst [vmem:[%s2302 + $0x20] sm:$0xf] %v2971
      %3009 = vst [vmem:[%s2302 + $0x44] sm:$0xf] %v2975
      %3010 = vst [vmem:[%s2302 + $0x68] sm:$0xf] %v2979
      %3011 = vst [vmem:[%s2302 + $0x8c] sm:$0xf] %v2983
      %3012 = vst [vmem:[%s2302 + $0xb0] sm:$0xf] %v2987
      %3013 = vst [vmem:[%s2302 + $0xd4] sm:$0xf] %v2991
      %3014 = vst [vmem:[%s2302 + $0xf8] sm:$0xf] %v2995
      %3015 = vst [vmem:[%s2302 + $0x11c] sm:$0xf] %v2999
      %v3016 = vld [vmem:[%s1201] sm:$0xf]
      %v3017 = vld [vmem:[%s1201 + $0x8] sm:$0xf]
      %v3018 = vld [vmem:[%s1201 + $0x10] sm:$0xf]
      %v3019 = vld [vmem:[%s1201 + $0x18] sm:$0xf]
      %v3020 = vld [vmem:[%s1201 + $0x20] sm:$0xf]
      %v3021 = vld [vmem:[%s1201 + $0x28] sm:$0xf]
      %v3022 = vld [vmem:[%s1201 + $0x30] sm:$0xf]
      %v3023 = vld [vmem:[%s1201 + $0x38] sm:$0xf]
      %s3024 = scalar_lea.vmem [#allocation3], 576
      %3025 = vst [vmem:[%s3024] sm:$0xf] %v3016
      %3026 = vst [vmem:[%s3024 + $0x24] sm:$0xf] %v3017
      %3027 = vst [vmem:[%s3024 + $0x48] sm:$0xf] %v3018
      %3028 = vst [vmem:[%s3024 + $0x6c] sm:$0xf] %v3019
      %3029 = vst [vmem:[%s3024 + $0x90] sm:$0xf] %v3020
      %3030 = vst [vmem:[%s3024 + $0xb4] sm:$0xf] %v3021
      %3031 = vst [vmem:[%s3024 + $0xd8] sm:$0xf] %v3022
      %3032 = vst [vmem:[%s3024 + $0xfc] sm:$0xf] %v3023
      %v3033 = vld [vmem:[%s1201] sm:$0xf]
      %v3034 = vld [vmem:[%s1201 + $0x4] sm:$0x1]
      %v3035 = vld [vmem:[%s1201 + $0x8] sm:$0xf]
      %v3036 = vld [vmem:[%s1201 + $0xc] sm:$0x1]
      %v3037 = vld [vmem:[%s1201 + $0x10] sm:$0xf]
      %v3038 = vld [vmem:[%s1201 + $0x14] sm:$0x1]
      %v3039 = vld [vmem:[%s1201 + $0x18] sm:$0xf]
      %v3040 = vld [vmem:[%s1201 + $0x1c] sm:$0x1]
      %v3041 = vld [vmem:[%s1201 + $0x20] sm:$0xf]
      %v3042 = vld [vmem:[%s1201 + $0x24] sm:$0x1]
      %v3043 = vld [vmem:[%s1201 + $0x28] sm:$0xf]
      %v3044 = vld [vmem:[%s1201 + $0x2c] sm:$0x1]
      %v3045 = vld [vmem:[%s1201 + $0x30] sm:$0xf]
      %v3046 = vld [vmem:[%s1201 + $0x34] sm:$0x1]
      %v3047 = vld [vmem:[%s1201 + $0x38] sm:$0xf]
      %v3048 = vld [vmem:[%s1201 + $0x3c] sm:$0x1]
      %v3050 = vshrl.u32 %v3033, 16
      %v3052 = vrot.slane %v3050, 4
      %v3053 = vshll.u32 %v3033, 16
      %v3055 = vrot.slane %v3053, 5
      %v3056 = vor.u32 %v3052, %v3055
      %v3057 = vrot.slane %v3056, 4
      %v3059 = vshll.u32 %v3034, 16
      %v3061 = vrot.slane %v3059, 5
      %v3062 = vsel %vm1601, %v3057, %v3061
      %v3064 = vshrl.u32 %v3035, 16
      %v3066 = vrot.slane %v3064, 4
      %v3067 = vshll.u32 %v3035, 16
      %v3069 = vrot.slane %v3067, 5
      %v3070 = vor.u32 %v3066, %v3069
      %v3071 = vrot.slane %v3070, 4
      %v3073 = vshll.u32 %v3036, 16
      %v3075 = vrot.slane %v3073, 5
      %v3076 = vsel %vm1601, %v3071, %v3075
      %v3078 = vshrl.u32 %v3037, 16
      %v3080 = vrot.slane %v3078, 4
      %v3081 = vshll.u32 %v3037, 16
      %v3083 = vrot.slane %v3081, 5
      %v3084 = vor.u32 %v3080, %v3083
      %v3085 = vrot.slane %v3084, 4
      %v3087 = vshll.u32 %v3038, 16
      %v3089 = vrot.slane %v3087, 5
      %v3090 = vsel %vm1601, %v3085, %v3089
      %v3092 = vshrl.u32 %v3039, 16
      %v3094 = vrot.slane %v3092, 4
      %v3095 = vshll.u32 %v3039, 16
      %v3097 = vrot.slane %v3095, 5
      %v3098 = vor.u32 %v3094, %v3097
      %v3099 = vrot.slane %v3098, 4
      %v3101 = vshll.u32 %v3040, 16
      %v3103 = vrot.slane %v3101, 5
      %v3104 = vsel %vm1601, %v3099, %v3103
      %v3106 = vshrl.u32 %v3041, 16
      %v3108 = vrot.slane %v3106, 4
      %v3109 = vshll.u32 %v3041, 16
      %v3111 = vrot.slane %v3109, 5
      %v3112 = vor.u32 %v3108, %v3111
      %v3113 = vrot.slane %v3112, 4
      %v3115 = vshll.u32 %v3042, 16
      %v3117 = vrot.slane %v3115, 5
      %v3118 = vsel %vm1601, %v3113, %v3117
      %v3120 = vshrl.u32 %v3043, 16
      %v3122 = vrot.slane %v3120, 4
      %v3123 = vshll.u32 %v3043, 16
      %v3125 = vrot.slane %v3123, 5
      %v3126 = vor.u32 %v3122, %v3125
      %v3127 = vrot.slane %v3126, 4
      %v3129 = vshll.u32 %v3044, 16
      %v3131 = vrot.slane %v3129, 5
      %v3132 = vsel %vm1601, %v3127, %v3131
      %v3134 = vshrl.u32 %v3045, 16
      %v3136 = vrot.slane %v3134, 4
      %v3137 = vshll.u32 %v3045, 16
      %v3139 = vrot.slane %v3137, 5
      %v3140 = vor.u32 %v3136, %v3139
      %v3141 = vrot.slane %v3140, 4
      %v3143 = vshll.u32 %v3046, 16
      %v3145 = vrot.slane %v3143, 5
      %v3146 = vsel %vm1601, %v3141, %v3145
      %v3148 = vshrl.u32 %v3047, 16
      %v3150 = vrot.slane %v3148, 4
      %v3151 = vshll.u32 %v3047, 16
      %v3153 = vrot.slane %v3151, 5
      %v3154 = vor.u32 %v3150, %v3153
      %v3155 = vrot.slane %v3154, 4
      %v3157 = vshll.u32 %v3048, 16
      %v3159 = vrot.slane %v3157, 5
      %v3160 = vsel %vm1601, %v3155, %v3159
      %3169 = vst [vmem:[%s3024 + $0x4] sm:$0xf] %v3062
      %3170 = vst [vmem:[%s3024 + $0x28] sm:$0xf] %v3076
      %3171 = vst [vmem:[%s3024 + $0x4c] sm:$0xf] %v3090
      %3172 = vst [vmem:[%s3024 + $0x70] sm:$0xf] %v3104
      %3173 = vst [vmem:[%s3024 + $0x94] sm:$0xf] %v3118
      %3174 = vst [vmem:[%s3024 + $0xb8] sm:$0xf] %v3132
      %3175 = vst [vmem:[%s3024 + $0xdc] sm:$0xf] %v3146
      %3176 = vst [vmem:[%s3024 + $0x100] sm:$0xf] %v3160
      %v3177 = vld [vmem:[%s1201] sm:$0xe]
      %v3178 = vld [vmem:[%s1201 + $0x4] sm:$0x1]
      %v3179 = vld [vmem:[%s1201 + $0x8] sm:$0xe]
      %v3180 = vld [vmem:[%s1201 + $0xc] sm:$0x1]
      %v3181 = vld [vmem:[%s1201 + $0x10] sm:$0xe]
      %v3182 = vld [vmem:[%s1201 + $0x14] sm:$0x1]
      %v3183 = vld [vmem:[%s1201 + $0x18] sm:$0xe]
      %v3184 = vld [vmem:[%s1201 + $0x1c] sm:$0x1]
      %v3185 = vld [vmem:[%s1201 + $0x20] sm:$0xe]
      %v3186 = vld [vmem:[%s1201 + $0x24] sm:$0x1]
      %v3187 = vld [vmem:[%s1201 + $0x28] sm:$0xe]
      %v3188 = vld [vmem:[%s1201 + $0x2c] sm:$0x1]
      %v3189 = vld [vmem:[%s1201 + $0x30] sm:$0xe]
      %v3190 = vld [vmem:[%s1201 + $0x34] sm:$0x1]
      %v3191 = vld [vmem:[%s1201 + $0x38] sm:$0xe]
      %v3192 = vld [vmem:[%s1201 + $0x3c] sm:$0x1]
      %v3209 = vrot.slane %v3177, 5
      %v3210 = vrot.slane %v3209, 4
      %v3211 = vrot.slane %v3178, 5
      %v3212 = vsel %vm1764, %v3210, %v3211
      %v3213 = vrot.slane %v3179, 5
      %v3214 = vrot.slane %v3213, 4
      %v3215 = vrot.slane %v3180, 5
      %v3216 = vsel %vm1764, %v3214, %v3215
      %v3217 = vrot.slane %v3181, 5
      %v3218 = vrot.slane %v3217, 4
      %v3219 = vrot.slane %v3182, 5
      %v3220 = vsel %vm1764, %v3218, %v3219
      %v3221 = vrot.slane %v3183, 5
      %v3222 = vrot.slane %v3221, 4
      %v3223 = vrot.slane %v3184, 5
      %v3224 = vsel %vm1764, %v3222, %v3223
      %v3225 = vrot.slane %v3185, 5
      %v3226 = vrot.slane %v3225, 4
      %v3227 = vrot.slane %v3186, 5
      %v3228 = vsel %vm1764, %v3226, %v3227
      %v3229 = vrot.slane %v3187, 5
      %v3230 = vrot.slane %v3229, 4
      %v3231 = vrot.slane %v3188, 5
      %v3232 = vsel %vm1764, %v3230, %v3231
      %v3233 = vrot.slane %v3189, 5
      %v3234 = vrot.slane %v3233, 4
      %v3235 = vrot.slane %v3190, 5
      %v3236 = vsel %vm1764, %v3234, %v3235
      %v3237 = vrot.slane %v3191, 5
      %v3238 = vrot.slane %v3237, 4
      %v3239 = vrot.slane %v3192, 5
      %v3240 = vsel %vm1764, %v3238, %v3239
      %3249 = vst [vmem:[%s3024 + $0x8] sm:$0xf] %v3212
      %3250 = vst [vmem:[%s3024 + $0x2c] sm:$0xf] %v3216
      %3251 = vst [vmem:[%s3024 + $0x50] sm:$0xf] %v3220
      %3252 = vst [vmem:[%s3024 + $0x74] sm:$0xf] %v3224
      %3253 = vst [vmem:[%s3024 + $0x98] sm:$0xf] %v3228
      %3254 = vst [vmem:[%s3024 + $0xbc] sm:$0xf] %v3232
      %3255 = vst [vmem:[%s3024 + $0xe0] sm:$0xf] %v3236
      %3256 = vst [vmem:[%s3024 + $0x104] sm:$0xf] %v3240
      %v3257 = vld [vmem:[%s1207] sm:$0xf]
      %v3258 = vld [vmem:[%s1207 + $0x8] sm:$0xf]
      %v3259 = vld [vmem:[%s1207 + $0x10] sm:$0xf]
      %v3260 = vld [vmem:[%s1207 + $0x18] sm:$0xf]
      %v3261 = vld [vmem:[%s1207 + $0x20] sm:$0xf]
      %v3262 = vld [vmem:[%s1207 + $0x28] sm:$0xf]
      %v3263 = vld [vmem:[%s1207 + $0x30] sm:$0xf]
      %v3264 = vld [vmem:[%s1207 + $0x38] sm:$0xf]
      %3265 = vst [vmem:[%s3024 + $0xc] sm:$0xf] %v3257
      %3266 = vst [vmem:[%s3024 + $0x30] sm:$0xf] %v3258
      %3267 = vst [vmem:[%s3024 + $0x54] sm:$0xf] %v3259
      %3268 = vst [vmem:[%s3024 + $0x78] sm:$0xf] %v3260
      %3269 = vst [vmem:[%s3024 + $0x9c] sm:$0xf] %v3261
      %3270 = vst [vmem:[%s3024 + $0xc0] sm:$0xf] %v3262
      %3271 = vst [vmem:[%s3024 + $0xe4] sm:$0xf] %v3263
      %3272 = vst [vmem:[%s3024 + $0x108] sm:$0xf] %v3264
      %v3273 = vld [vmem:[%s1207] sm:$0xf]
      %v3274 = vld [vmem:[%s1207 + $0x4] sm:$0x1]
      %v3275 = vld [vmem:[%s1207 + $0x8] sm:$0xf]
      %v3276 = vld [vmem:[%s1207 + $0xc] sm:$0x1]
      %v3277 = vld [vmem:[%s1207 + $0x10] sm:$0xf]
      %v3278 = vld [vmem:[%s1207 + $0x14] sm:$0x1]
      %v3279 = vld [vmem:[%s1207 + $0x18] sm:$0xf]
      %v3280 = vld [vmem:[%s1207 + $0x1c] sm:$0x1]
      %v3281 = vld [vmem:[%s1207 + $0x20] sm:$0xf]
      %v3282 = vld [vmem:[%s1207 + $0x24] sm:$0x1]
      %v3283 = vld [vmem:[%s1207 + $0x28] sm:$0xf]
      %v3284 = vld [vmem:[%s1207 + $0x2c] sm:$0x1]
      %v3285 = vld [vmem:[%s1207 + $0x30] sm:$0xf]
      %v3286 = vld [vmem:[%s1207 + $0x34] sm:$0x1]
      %v3287 = vld [vmem:[%s1207 + $0x38] sm:$0xf]
      %v3288 = vld [vmem:[%s1207 + $0x3c] sm:$0x1]
      %v3290 = vshrl.u32 %v3273, 16
      %v3292 = vrot.slane %v3290, 4
      %v3293 = vshll.u32 %v3273, 16
      %v3295 = vrot.slane %v3293, 5
      %v3296 = vor.u32 %v3292, %v3295
      %v3297 = vrot.slane %v3296, 4
      %v3299 = vshll.u32 %v3274, 16
      %v3301 = vrot.slane %v3299, 5
      %v3302 = vsel %vm1601, %v3297, %v3301
      %v3304 = vshrl.u32 %v3275, 16
      %v3306 = vrot.slane %v3304, 4
      %v3307 = vshll.u32 %v3275, 16
      %v3309 = vrot.slane %v3307, 5
      %v3310 = vor.u32 %v3306, %v3309
      %v3311 = vrot.slane %v3310, 4
      %v3313 = vshll.u32 %v3276, 16
      %v3315 = vrot.slane %v3313, 5
      %v3316 = vsel %vm1601, %v3311, %v3315
      %v3318 = vshrl.u32 %v3277, 16
      %v3320 = vrot.slane %v3318, 4
      %v3321 = vshll.u32 %v3277, 16
      %v3323 = vrot.slane %v3321, 5
      %v3324 = vor.u32 %v3320, %v3323
      %v3325 = vrot.slane %v3324, 4
      %v3327 = vshll.u32 %v3278, 16
      %v3329 = vrot.slane %v3327, 5
      %v3330 = vsel %vm1601, %v3325, %v3329
      %v3332 = vshrl.u32 %v3279, 16
      %v3334 = vrot.slane %v3332, 4
      %v3335 = vshll.u32 %v3279, 16
      %v3337 = vrot.slane %v3335, 5
      %v3338 = vor.u32 %v3334, %v3337
      %v3339 = vrot.slane %v3338, 4
      %v3341 = vshll.u32 %v3280, 16
      %v3343 = vrot.slane %v3341, 5
      %v3344 = vsel %vm1601, %v3339, %v3343
      %v3346 = vshrl.u32 %v3281, 16
      %v3348 = vrot.slane %v3346, 4
      %v3349 = vshll.u32 %v3281, 16
      %v3351 = vrot.slane %v3349, 5
      %v3352 = vor.u32 %v3348, %v3351
      %v3353 = vrot.slane %v3352, 4
      %v3355 = vshll.u32 %v3282, 16
      %v3357 = vrot.slane %v3355, 5
      %v3358 = vsel %vm1601, %v3353, %v3357
      %v3360 = vshrl.u32 %v3283, 16
      %v3362 = vrot.slane %v3360, 4
      %v3363 = vshll.u32 %v3283, 16
      %v3365 = vrot.slane %v3363, 5
      %v3366 = vor.u32 %v3362, %v3365
      %v3367 = vrot.slane %v3366, 4
      %v3369 = vshll.u32 %v3284, 16
      %v3371 = vrot.slane %v3369, 5
      %v3372 = vsel %vm1601, %v3367, %v3371
      %v3374 = vshrl.u32 %v3285, 16
      %v3376 = vrot.slane %v3374, 4
      %v3377 = vshll.u32 %v3285, 16
      %v3379 = vrot.slane %v3377, 5
      %v3380 = vor.u32 %v3376, %v3379
      %v3381 = vrot.slane %v3380, 4
      %v3383 = vshll.u32 %v3286, 16
      %v3385 = vrot.slane %v3383, 5
      %v3386 = vsel %vm1601, %v3381, %v3385
      %v3388 = vshrl.u32 %v3287, 16
      %v3390 = vrot.slane %v3388, 4
      %v3391 = vshll.u32 %v3287, 16
      %v3393 = vrot.slane %v3391, 5
      %v3394 = vor.u32 %v3390, %v3393
      %v3395 = vrot.slane %v3394, 4
      %v3397 = vshll.u32 %v3288, 16
      %v3399 = vrot.slane %v3397, 5
      %v3400 = vsel %vm1601, %v3395, %v3399
      %3409 = vst [vmem:[%s3024 + $0x10] sm:$0xf] %v3302
      %3410 = vst [vmem:[%s3024 + $0x34] sm:$0xf] %v3316
      %3411 = vst [vmem:[%s3024 + $0x58] sm:$0xf] %v3330
      %3412 = vst [vmem:[%s3024 + $0x7c] sm:$0xf] %v3344
      %3413 = vst [vmem:[%s3024 + $0xa0] sm:$0xf] %v3358
      %3414 = vst [vmem:[%s3024 + $0xc4] sm:$0xf] %v3372
      %3415 = vst [vmem:[%s3024 + $0xe8] sm:$0xf] %v3386
      %3416 = vst [vmem:[%s3024 + $0x10c] sm:$0xf] %v3400
      %v3417 = vld [vmem:[%s1207] sm:$0xe]
      %v3418 = vld [vmem:[%s1207 + $0x4] sm:$0x1]
      %v3419 = vld [vmem:[%s1207 + $0x8] sm:$0xe]
      %v3420 = vld [vmem:[%s1207 + $0xc] sm:$0x1]
      %v3421 = vld [vmem:[%s1207 + $0x10] sm:$0xe]
      %v3422 = vld [vmem:[%s1207 + $0x14] sm:$0x1]
      %v3423 = vld [vmem:[%s1207 + $0x18] sm:$0xe]
      %v3424 = vld [vmem:[%s1207 + $0x1c] sm:$0x1]
      %v3425 = vld [vmem:[%s1207 + $0x20] sm:$0xe]
      %v3426 = vld [vmem:[%s1207 + $0x24] sm:$0x1]
      %v3427 = vld [vmem:[%s1207 + $0x28] sm:$0xe]
      %v3428 = vld [vmem:[%s1207 + $0x2c] sm:$0x1]
      %v3429 = vld [vmem:[%s1207 + $0x30] sm:$0xe]
      %v3430 = vld [vmem:[%s1207 + $0x34] sm:$0x1]
      %v3431 = vld [vmem:[%s1207 + $0x38] sm:$0xe]
      %v3432 = vld [vmem:[%s1207 + $0x3c] sm:$0x1]
      %v3449 = vrot.slane %v3417, 5
      %v3450 = vrot.slane %v3449, 4
      %v3451 = vrot.slane %v3418, 5
      %v3452 = vsel %vm1764, %v3450, %v3451
      %v3453 = vrot.slane %v3419, 5
      %v3454 = vrot.slane %v3453, 4
      %v3455 = vrot.slane %v3420, 5
      %v3456 = vsel %vm1764, %v3454, %v3455
      %v3457 = vrot.slane %v3421, 5
      %v3458 = vrot.slane %v3457, 4
      %v3459 = vrot.slane %v3422, 5
      %v3460 = vsel %vm1764, %v3458, %v3459
      %v3461 = vrot.slane %v3423, 5
      %v3462 = vrot.slane %v3461, 4
      %v3463 = vrot.slane %v3424, 5
      %v3464 = vsel %vm1764, %v3462, %v3463
      %v3465 = vrot.slane %v3425, 5
      %v3466 = vrot.slane %v3465, 4
      %v3467 = vrot.slane %v3426, 5
      %v3468 = vsel %vm1764, %v3466, %v3467
      %v3469 = vrot.slane %v3427, 5
      %v3470 = vrot.slane %v3469, 4
      %v3471 = vrot.slane %v3428, 5
      %v3472 = vsel %vm1764, %v3470, %v3471
      %v3473 = vrot.slane %v3429, 5
      %v3474 = vrot.slane %v3473, 4
      %v3475 = vrot.slane %v3430, 5
      %v3476 = vsel %vm1764, %v3474, %v3475
      %v3477 = vrot.slane %v3431, 5
      %v3478 = vrot.slane %v3477, 4
      %v3479 = vrot.slane %v3432, 5
      %v3480 = vsel %vm1764, %v3478, %v3479
      %3489 = vst [vmem:[%s3024 + $0x14] sm:$0xf] %v3452
      %3490 = vst [vmem:[%s3024 + $0x38] sm:$0xf] %v3456
      %3491 = vst [vmem:[%s3024 + $0x5c] sm:$0xf] %v3460
      %3492 = vst [vmem:[%s3024 + $0x80] sm:$0xf] %v3464
      %3493 = vst [vmem:[%s3024 + $0xa4] sm:$0xf] %v3468
      %3494 = vst [vmem:[%s3024 + $0xc8] sm:$0xf] %v3472
      %3495 = vst [vmem:[%s3024 + $0xec] sm:$0xf] %v3476
      %3496 = vst [vmem:[%s3024 + $0x110] sm:$0xf] %v3480
      %s3497 = scalar_lea.vmem [#allocation2], 176
      %v3498 = vld [vmem:[%s3497] sm:$0xf]
      %v3499 = vld [vmem:[%s3497 + $0x8] sm:$0xf]
      %v3500 = vld [vmem:[%s3497 + $0x10] sm:$0xf]
      %v3501 = vld [vmem:[%s3497 + $0x18] sm:$0xf]
      %v3502 = vld [vmem:[%s3497 + $0x20] sm:$0xf]
      %v3503 = vld [vmem:[%s3497 + $0x28] sm:$0xf]
      %v3504 = vld [vmem:[%s3497 + $0x30] sm:$0xf]
      %v3505 = vld [vmem:[%s3497 + $0x38] sm:$0xf]
      %3506 = vst [vmem:[%s3024 + $0x18] sm:$0xf] %v3498
      %3507 = vst [vmem:[%s3024 + $0x3c] sm:$0xf] %v3499
      %3508 = vst [vmem:[%s3024 + $0x60] sm:$0xf] %v3500
      %3509 = vst [vmem:[%s3024 + $0x84] sm:$0xf] %v3501
      %3510 = vst [vmem:[%s3024 + $0xa8] sm:$0xf] %v3502
      %3511 = vst [vmem:[%s3024 + $0xcc] sm:$0xf] %v3503
      %3512 = vst [vmem:[%s3024 + $0xf0] sm:$0xf] %v3504
      %3513 = vst [vmem:[%s3024 + $0x114] sm:$0xf] %v3505
      %v3514 = vld [vmem:[%s3497] sm:$0xf]
      %v3515 = vld [vmem:[%s3497 + $0x4] sm:$0x1]
      %v3516 = vld [vmem:[%s3497 + $0x8] sm:$0xf]
      %v3517 = vld [vmem:[%s3497 + $0xc] sm:$0x1]
      %v3518 = vld [vmem:[%s3497 + $0x10] sm:$0xf]
      %v3519 = vld [vmem:[%s3497 + $0x14] sm:$0x1]
      %v3520 = vld [vmem:[%s3497 + $0x18] sm:$0xf]
      %v3521 = vld [vmem:[%s3497 + $0x1c] sm:$0x1]
      %v3522 = vld [vmem:[%s3497 + $0x20] sm:$0xf]
      %v3523 = vld [vmem:[%s3497 + $0x24] sm:$0x1]
      %v3524 = vld [vmem:[%s3497 + $0x28] sm:$0xf]
      %v3525 = vld [vmem:[%s3497 + $0x2c] sm:$0x1]
      %v3526 = vld [vmem:[%s3497 + $0x30] sm:$0xf]
      %v3527 = vld [vmem:[%s3497 + $0x34] sm:$0x1]
      %v3528 = vld [vmem:[%s3497 + $0x38] sm:$0xf]
      %v3529 = vld [vmem:[%s3497 + $0x3c] sm:$0x1]
      %v3531 = vshrl.u32 %v3514, 16
      %v3533 = vrot.slane %v3531, 4
      %v3534 = vshll.u32 %v3514, 16
      %v3536 = vrot.slane %v3534, 5
      %v3537 = vor.u32 %v3533, %v3536
      %v3538 = vrot.slane %v3537, 4
      %v3540 = vshll.u32 %v3515, 16
      %v3542 = vrot.slane %v3540, 5
      %v3543 = vsel %vm1601, %v3538, %v3542
      %v3545 = vshrl.u32 %v3516, 16
      %v3547 = vrot.slane %v3545, 4
      %v3548 = vshll.u32 %v3516, 16
      %v3550 = vrot.slane %v3548, 5
      %v3551 = vor.u32 %v3547, %v3550
      %v3552 = vrot.slane %v3551, 4
      %v3554 = vshll.u32 %v3517, 16
      %v3556 = vrot.slane %v3554, 5
      %v3557 = vsel %vm1601, %v3552, %v3556
      %v3559 = vshrl.u32 %v3518, 16
      %v3561 = vrot.slane %v3559, 4
      %v3562 = vshll.u32 %v3518, 16
      %v3564 = vrot.slane %v3562, 5
      %v3565 = vor.u32 %v3561, %v3564
      %v3566 = vrot.slane %v3565, 4
      %v3568 = vshll.u32 %v3519, 16
      %v3570 = vrot.slane %v3568, 5
      %v3571 = vsel %vm1601, %v3566, %v3570
      %v3573 = vshrl.u32 %v3520, 16
      %v3575 = vrot.slane %v3573, 4
      %v3576 = vshll.u32 %v3520, 16
      %v3578 = vrot.slane %v3576, 5
      %v3579 = vor.u32 %v3575, %v3578
      %v3580 = vrot.slane %v3579, 4
      %v3582 = vshll.u32 %v3521, 16
      %v3584 = vrot.slane %v3582, 5
      %v3585 = vsel %vm1601, %v3580, %v3584
      %v3587 = vshrl.u32 %v3522, 16
      %v3589 = vrot.slane %v3587, 4
      %v3590 = vshll.u32 %v3522, 16
      %v3592 = vrot.slane %v3590, 5
      %v3593 = vor.u32 %v3589, %v3592
      %v3594 = vrot.slane %v3593, 4
      %v3596 = vshll.u32 %v3523, 16
      %v3598 = vrot.slane %v3596, 5
      %v3599 = vsel %vm1601, %v3594, %v3598
      %v3601 = vshrl.u32 %v3524, 16
      %v3603 = vrot.slane %v3601, 4
      %v3604 = vshll.u32 %v3524, 16
      %v3606 = vrot.slane %v3604, 5
      %v3607 = vor.u32 %v3603, %v3606
      %v3608 = vrot.slane %v3607, 4
      %v3610 = vshll.u32 %v3525, 16
      %v3612 = vrot.slane %v3610, 5
      %v3613 = vsel %vm1601, %v3608, %v3612
      %v3615 = vshrl.u32 %v3526, 16
      %v3617 = vrot.slane %v3615, 4
      %v3618 = vshll.u32 %v3526, 16
      %v3620 = vrot.slane %v3618, 5
      %v3621 = vor.u32 %v3617, %v3620
      %v3622 = vrot.slane %v3621, 4
      %v3624 = vshll.u32 %v3527, 16
      %v3626 = vrot.slane %v3624, 5
      %v3627 = vsel %vm1601, %v3622, %v3626
      %v3629 = vshrl.u32 %v3528, 16
      %v3631 = vrot.slane %v3629, 4
      %v3632 = vshll.u32 %v3528, 16
      %v3634 = vrot.slane %v3632, 5
      %v3635 = vor.u32 %v3631, %v3634
      %v3636 = vrot.slane %v3635, 4
      %v3638 = vshll.u32 %v3529, 16
      %v3640 = vrot.slane %v3638, 5
      %v3641 = vsel %vm1601, %v3636, %v3640
      %3650 = vst [vmem:[%s3024 + $0x1c] sm:$0xf] %v3543
      %3651 = vst [vmem:[%s3024 + $0x40] sm:$0xf] %v3557
      %3652 = vst [vmem:[%s3024 + $0x64] sm:$0xf] %v3571
      %3653 = vst [vmem:[%s3024 + $0x88] sm:$0xf] %v3585
      %3654 = vst [vmem:[%s3024 + $0xac] sm:$0xf] %v3599
      %3655 = vst [vmem:[%s3024 + $0xd0] sm:$0xf] %v3613
      %3656 = vst [vmem:[%s3024 + $0xf4] sm:$0xf] %v3627
      %3657 = vst [vmem:[%s3024 + $0x118] sm:$0xf] %v3641
      %v3658 = vld [vmem:[%s3497] sm:$0xe]
      %v3659 = vld [vmem:[%s3497 + $0x4] sm:$0x1]
      %v3660 = vld [vmem:[%s3497 + $0x8] sm:$0xe]
      %v3661 = vld [vmem:[%s3497 + $0xc] sm:$0x1]
      %v3662 = vld [vmem:[%s3497 + $0x10] sm:$0xe]
      %v3663 = vld [vmem:[%s3497 + $0x14] sm:$0x1]
      %v3664 = vld [vmem:[%s3497 + $0x18] sm:$0xe]
      %v3665 = vld [vmem:[%s3497 + $0x1c] sm:$0x1]
      %v3666 = vld [vmem:[%s3497 + $0x20] sm:$0xe]
      %v3667 = vld [vmem:[%s3497 + $0x24] sm:$0x1]
      %v3668 = vld [vmem:[%s3497 + $0x28] sm:$0xe]
      %v3669 = vld [vmem:[%s3497 + $0x2c] sm:$0x1]
      %v3670 = vld [vmem:[%s3497 + $0x30] sm:$0xe]
      %v3671 = vld [vmem:[%s3497 + $0x34] sm:$0x1]
      %v3672 = vld [vmem:[%s3497 + $0x38] sm:$0xe]
      %v3673 = vld [vmem:[%s3497 + $0x3c] sm:$0x1]
      %v3690 = vrot.slane %v3658, 5
      %v3691 = vrot.slane %v3690, 4
      %v3692 = vrot.slane %v3659, 5
      %v3693 = vsel %vm1764, %v3691, %v3692
      %v3694 = vrot.slane %v3660, 5
      %v3695 = vrot.slane %v3694, 4
      %v3696 = vrot.slane %v3661, 5
      %v3697 = vsel %vm1764, %v3695, %v3696
      %v3698 = vrot.slane %v3662, 5
      %v3699 = vrot.slane %v3698, 4
      %v3700 = vrot.slane %v3663, 5
      %v3701 = vsel %vm1764, %v3699, %v3700
      %v3702 = vrot.slane %v3664, 5
      %v3703 = vrot.slane %v3702, 4
      %v3704 = vrot.slane %v3665, 5
      %v3705 = vsel %vm1764, %v3703, %v3704
      %v3706 = vrot.slane %v3666, 5
      %v3707 = vrot.slane %v3706, 4
      %v3708 = vrot.slane %v3667, 5
      %v3709 = vsel %vm1764, %v3707, %v3708
      %v3710 = vrot.slane %v3668, 5
      %v3711 = vrot.slane %v3710, 4
      %v3712 = vrot.slane %v3669, 5
      %v3713 = vsel %vm1764, %v3711, %v3712
      %v3714 = vrot.slane %v3670, 5
      %v3715 = vrot.slane %v3714, 4
      %v3716 = vrot.slane %v3671, 5
      %v3717 = vsel %vm1764, %v3715, %v3716
      %v3718 = vrot.slane %v3672, 5
      %v3719 = vrot.slane %v3718, 4
      %v3720 = vrot.slane %v3673, 5
      %v3721 = vsel %vm1764, %v3719, %v3720
      %3730 = vst [vmem:[%s3024 + $0x20] sm:$0xf] %v3693
      %3731 = vst [vmem:[%s3024 + $0x44] sm:$0xf] %v3697
      %3732 = vst [vmem:[%s3024 + $0x68] sm:$0xf] %v3701
      %3733 = vst [vmem:[%s3024 + $0x8c] sm:$0xf] %v3705
      %3734 = vst [vmem:[%s3024 + $0xb0] sm:$0xf] %v3709
      %3735 = vst [vmem:[%s3024 + $0xd4] sm:$0xf] %v3713
      %3736 = vst [vmem:[%s3024 + $0xf8] sm:$0xf] %v3717
      %3737 = vst [vmem:[%s3024 + $0x11c] sm:$0xf] %v3721
      %v3738 = vld [vmem:[%s1384] sm:$0xf]
      %v3739 = vld [vmem:[%s1384 + $0x8] sm:$0xf]
      %v3740 = vld [vmem:[%s1384 + $0x10] sm:$0xf]
      %v3741 = vld [vmem:[%s1384 + $0x18] sm:$0xf]
      %v3742 = vld [vmem:[%s1384 + $0x20] sm:$0xf]
      %v3743 = vld [vmem:[%s1384 + $0x28] sm:$0xf]
      %v3744 = vld [vmem:[%s1384 + $0x30] sm:$0xf]
      %v3745 = vld [vmem:[%s1384 + $0x38] sm:$0xf]
      %s3746 = scalar_lea.vmem [#allocation3], 864
      %3747 = vst [vmem:[%s3746] sm:$0xf] %v3738
      %3748 = vst [vmem:[%s3746 + $0x24] sm:$0xf] %v3739
      %3749 = vst [vmem:[%s3746 + $0x48] sm:$0xf] %v3740
      %3750 = vst [vmem:[%s3746 + $0x6c] sm:$0xf] %v3741
      %3751 = vst [vmem:[%s3746 + $0x90] sm:$0xf] %v3742
      %3752 = vst [vmem:[%s3746 + $0xb4] sm:$0xf] %v3743
      %3753 = vst [vmem:[%s3746 + $0xd8] sm:$0xf] %v3744
      %3754 = vst [vmem:[%s3746 + $0xfc] sm:$0xf] %v3745
      %v3755 = vld [vmem:[%s1384] sm:$0xf]
      %v3756 = vld [vmem:[%s1384 + $0x4] sm:$0x1]
      %v3757 = vld [vmem:[%s1384 + $0x8] sm:$0xf]
      %v3758 = vld [vmem:[%s1384 + $0xc] sm:$0x1]
      %v3759 = vld [vmem:[%s1384 + $0x10] sm:$0xf]
      %v3760 = vld [vmem:[%s1384 + $0x14] sm:$0x1]
      %v3761 = vld [vmem:[%s1384 + $0x18] sm:$0xf]
      %v3762 = vld [vmem:[%s1384 + $0x1c] sm:$0x1]
      %v3763 = vld [vmem:[%s1384 + $0x20] sm:$0xf]
      %v3764 = vld [vmem:[%s1384 + $0x24] sm:$0x1]
      %v3765 = vld [vmem:[%s1384 + $0x28] sm:$0xf]
      %v3766 = vld [vmem:[%s1384 + $0x2c] sm:$0x1]
      %v3767 = vld [vmem:[%s1384 + $0x30] sm:$0xf]
      %v3768 = vld [vmem:[%s1384 + $0x34] sm:$0x1]
      %v3769 = vld [vmem:[%s1384 + $0x38] sm:$0xf]
      %v3770 = vld [vmem:[%s1384 + $0x3c] sm:$0x1]
      %v3772 = vshrl.u32 %v3755, 16
      %v3774 = vrot.slane %v3772, 4
      %v3775 = vshll.u32 %v3755, 16
      %v3777 = vrot.slane %v3775, 5
      %v3778 = vor.u32 %v3774, %v3777
      %v3779 = vrot.slane %v3778, 4
      %v3781 = vshll.u32 %v3756, 16
      %v3783 = vrot.slane %v3781, 5
      %v3784 = vsel %vm1601, %v3779, %v3783
      %v3786 = vshrl.u32 %v3757, 16
      %v3788 = vrot.slane %v3786, 4
      %v3789 = vshll.u32 %v3757, 16
      %v3791 = vrot.slane %v3789, 5
      %v3792 = vor.u32 %v3788, %v3791
      %v3793 = vrot.slane %v3792, 4
      %v3795 = vshll.u32 %v3758, 16
      %v3797 = vrot.slane %v3795, 5
      %v3798 = vsel %vm1601, %v3793, %v3797
      %v3800 = vshrl.u32 %v3759, 16
      %v3802 = vrot.slane %v3800, 4
      %v3803 = vshll.u32 %v3759, 16
      %v3805 = vrot.slane %v3803, 5
      %v3806 = vor.u32 %v3802, %v3805
      %v3807 = vrot.slane %v3806, 4
      %v3809 = vshll.u32 %v3760, 16
      %v3811 = vrot.slane %v3809, 5
      %v3812 = vsel %vm1601, %v3807, %v3811
      %v3814 = vshrl.u32 %v3761, 16
      %v3816 = vrot.slane %v3814, 4
      %v3817 = vshll.u32 %v3761, 16
      %v3819 = vrot.slane %v3817, 5
      %v3820 = vor.u32 %v3816, %v3819
      %v3821 = vrot.slane %v3820, 4
      %v3823 = vshll.u32 %v3762, 16
      %v3825 = vrot.slane %v3823, 5
      %v3826 = vsel %vm1601, %v3821, %v3825
      %v3828 = vshrl.u32 %v3763, 16
      %v3830 = vrot.slane %v3828, 4
      %v3831 = vshll.u32 %v3763, 16
      %v3833 = vrot.slane %v3831, 5
      %v3834 = vor.u32 %v3830, %v3833
      %v3835 = vrot.slane %v3834, 4
      %v3837 = vshll.u32 %v3764, 16
      %v3839 = vrot.slane %v3837, 5
      %v3840 = vsel %vm1601, %v3835, %v3839
      %v3842 = vshrl.u32 %v3765, 16
      %v3844 = vrot.slane %v3842, 4
      %v3845 = vshll.u32 %v3765, 16
      %v3847 = vrot.slane %v3845, 5
      %v3848 = vor.u32 %v3844, %v3847
      %v3849 = vrot.slane %v3848, 4
      %v3851 = vshll.u32 %v3766, 16
      %v3853 = vrot.slane %v3851, 5
      %v3854 = vsel %vm1601, %v3849, %v3853
      %v3856 = vshrl.u32 %v3767, 16
      %v3858 = vrot.slane %v3856, 4
      %v3859 = vshll.u32 %v3767, 16
      %v3861 = vrot.slane %v3859, 5
      %v3862 = vor.u32 %v3858, %v3861
      %v3863 = vrot.slane %v3862, 4
      %v3865 = vshll.u32 %v3768, 16
      %v3867 = vrot.slane %v3865, 5
      %v3868 = vsel %vm1601, %v3863, %v3867
      %v3870 = vshrl.u32 %v3769, 16
      %v3872 = vrot.slane %v3870, 4
      %v3873 = vshll.u32 %v3769, 16
      %v3875 = vrot.slane %v3873, 5
      %v3876 = vor.u32 %v3872, %v3875
      %v3877 = vrot.slane %v3876, 4
      %v3879 = vshll.u32 %v3770, 16
      %v3881 = vrot.slane %v3879, 5
      %v3882 = vsel %vm1601, %v3877, %v3881
      %3891 = vst [vmem:[%s3746 + $0x4] sm:$0xf] %v3784
      %3892 = vst [vmem:[%s3746 + $0x28] sm:$0xf] %v3798
      %3893 = vst [vmem:[%s3746 + $0x4c] sm:$0xf] %v3812
      %3894 = vst [vmem:[%s3746 + $0x70] sm:$0xf] %v3826
      %3895 = vst [vmem:[%s3746 + $0x94] sm:$0xf] %v3840
      %3896 = vst [vmem:[%s3746 + $0xb8] sm:$0xf] %v3854
      %3897 = vst [vmem:[%s3746 + $0xdc] sm:$0xf] %v3868
      %3898 = vst [vmem:[%s3746 + $0x100] sm:$0xf] %v3882
      %v3899 = vld [vmem:[%s1384] sm:$0xe]
      %v3900 = vld [vmem:[%s1384 + $0x4] sm:$0x1]
      %v3901 = vld [vmem:[%s1384 + $0x8] sm:$0xe]
      %v3902 = vld [vmem:[%s1384 + $0xc] sm:$0x1]
      %v3903 = vld [vmem:[%s1384 + $0x10] sm:$0xe]
      %v3904 = vld [vmem:[%s1384 + $0x14] sm:$0x1]
      %v3905 = vld [vmem:[%s1384 + $0x18] sm:$0xe]
      %v3906 = vld [vmem:[%s1384 + $0x1c] sm:$0x1]
      %v3907 = vld [vmem:[%s1384 + $0x20] sm:$0xe]
      %v3908 = vld [vmem:[%s1384 + $0x24] sm:$0x1]
      %v3909 = vld [vmem:[%s1384 + $0x28] sm:$0xe]
      %v3910 = vld [vmem:[%s1384 + $0x2c] sm:$0x1]
      %v3911 = vld [vmem:[%s1384 + $0x30] sm:$0xe]
      %v3912 = vld [vmem:[%s1384 + $0x34] sm:$0x1]
      %v3913 = vld [vmem:[%s1384 + $0x38] sm:$0xe]
      %v3914 = vld [vmem:[%s1384 + $0x3c] sm:$0x1]
      %v3931 = vrot.slane %v3899, 5
      %v3932 = vrot.slane %v3931, 4
      %v3933 = vrot.slane %v3900, 5
      %v3934 = vsel %vm1764, %v3932, %v3933
      %v3935 = vrot.slane %v3901, 5
      %v3936 = vrot.slane %v3935, 4
      %v3937 = vrot.slane %v3902, 5
      %v3938 = vsel %vm1764, %v3936, %v3937
      %v3939 = vrot.slane %v3903, 5
      %v3940 = vrot.slane %v3939, 4
      %v3941 = vrot.slane %v3904, 5
      %v3942 = vsel %vm1764, %v3940, %v3941
      %v3943 = vrot.slane %v3905, 5
      %v3944 = vrot.slane %v3943, 4
      %v3945 = vrot.slane %v3906, 5
      %v3946 = vsel %vm1764, %v3944, %v3945
      %v3947 = vrot.slane %v3907, 5
      %v3948 = vrot.slane %v3947, 4
      %v3949 = vrot.slane %v3908, 5
      %v3950 = vsel %vm1764, %v3948, %v3949
      %v3951 = vrot.slane %v3909, 5
      %v3952 = vrot.slane %v3951, 4
      %v3953 = vrot.slane %v3910, 5
      %v3954 = vsel %vm1764, %v3952, %v3953
      %v3955 = vrot.slane %v3911, 5
      %v3956 = vrot.slane %v3955, 4
      %v3957 = vrot.slane %v3912, 5
      %v3958 = vsel %vm1764, %v3956, %v3957
      %v3959 = vrot.slane %v3913, 5
      %v3960 = vrot.slane %v3959, 4
      %v3961 = vrot.slane %v3914, 5
      %v3962 = vsel %vm1764, %v3960, %v3961
      %3971 = vst [vmem:[%s3746 + $0x8] sm:$0xf] %v3934
      %3972 = vst [vmem:[%s3746 + $0x2c] sm:$0xf] %v3938
      %3973 = vst [vmem:[%s3746 + $0x50] sm:$0xf] %v3942
      %3974 = vst [vmem:[%s3746 + $0x74] sm:$0xf] %v3946
      %3975 = vst [vmem:[%s3746 + $0x98] sm:$0xf] %v3950
      %3976 = vst [vmem:[%s3746 + $0xbc] sm:$0xf] %v3954
      %3977 = vst [vmem:[%s3746 + $0xe0] sm:$0xf] %v3958
      %3978 = vst [vmem:[%s3746 + $0x104] sm:$0xf] %v3962
      %v3979 = vld [vmem:[%s1390] sm:$0xf]
      %v3980 = vld [vmem:[%s1390 + $0x8] sm:$0xf]
      %v3981 = vld [vmem:[%s1390 + $0x10] sm:$0xf]
      %v3982 = vld [vmem:[%s1390 + $0x18] sm:$0xf]
      %v3983 = vld [vmem:[%s1390 + $0x20] sm:$0xf]
      %v3984 = vld [vmem:[%s1390 + $0x28] sm:$0xf]
      %v3985 = vld [vmem:[%s1390 + $0x30] sm:$0xf]
      %v3986 = vld [vmem:[%s1390 + $0x38] sm:$0xf]
      %3987 = vst [vmem:[%s3746 + $0xc] sm:$0xf] %v3979
      %3988 = vst [vmem:[%s3746 + $0x30] sm:$0xf] %v3980
      %3989 = vst [vmem:[%s3746 + $0x54] sm:$0xf] %v3981
      %3990 = vst [vmem:[%s3746 + $0x78] sm:$0xf] %v3982
      %3991 = vst [vmem:[%s3746 + $0x9c] sm:$0xf] %v3983
      %3992 = vst [vmem:[%s3746 + $0xc0] sm:$0xf] %v3984
      %3993 = vst [vmem:[%s3746 + $0xe4] sm:$0xf] %v3985
      %3994 = vst [vmem:[%s3746 + $0x108] sm:$0xf] %v3986
      %v3995 = vld [vmem:[%s1390] sm:$0xf]
      %v3996 = vld [vmem:[%s1390 + $0x4] sm:$0x1]
      %v3997 = vld [vmem:[%s1390 + $0x8] sm:$0xf]
      %v3998 = vld [vmem:[%s1390 + $0xc] sm:$0x1]
      %v3999 = vld [vmem:[%s1390 + $0x10] sm:$0xf]
      %v4000 = vld [vmem:[%s1390 + $0x14] sm:$0x1]
      %v4001 = vld [vmem:[%s1390 + $0x18] sm:$0xf]
      %v4002 = vld [vmem:[%s1390 + $0x1c] sm:$0x1]
      %v4003 = vld [vmem:[%s1390 + $0x20] sm:$0xf]
      %v4004 = vld [vmem:[%s1390 + $0x24] sm:$0x1]
      %v4005 = vld [vmem:[%s1390 + $0x28] sm:$0xf]
      %v4006 = vld [vmem:[%s1390 + $0x2c] sm:$0x1]
      %v4007 = vld [vmem:[%s1390 + $0x30] sm:$0xf]
      %v4008 = vld [vmem:[%s1390 + $0x34] sm:$0x1]
      %v4009 = vld [vmem:[%s1390 + $0x38] sm:$0xf]
      %v4010 = vld [vmem:[%s1390 + $0x3c] sm:$0x1]
      %v4012 = vshrl.u32 %v3995, 16
      %v4014 = vrot.slane %v4012, 4
      %v4015 = vshll.u32 %v3995, 16
      %v4017 = vrot.slane %v4015, 5
      %v4018 = vor.u32 %v4014, %v4017
      %v4019 = vrot.slane %v4018, 4
      %v4021 = vshll.u32 %v3996, 16
      %v4023 = vrot.slane %v4021, 5
      %v4024 = vsel %vm1601, %v4019, %v4023
      %v4026 = vshrl.u32 %v3997, 16
      %v4028 = vrot.slane %v4026, 4
      %v4029 = vshll.u32 %v3997, 16
      %v4031 = vrot.slane %v4029, 5
      %v4032 = vor.u32 %v4028, %v4031
      %v4033 = vrot.slane %v4032, 4
      %v4035 = vshll.u32 %v3998, 16
      %v4037 = vrot.slane %v4035, 5
      %v4038 = vsel %vm1601, %v4033, %v4037
      %v4040 = vshrl.u32 %v3999, 16
      %v4042 = vrot.slane %v4040, 4
      %v4043 = vshll.u32 %v3999, 16
      %v4045 = vrot.slane %v4043, 5
      %v4046 = vor.u32 %v4042, %v4045
      %v4047 = vrot.slane %v4046, 4
      %v4049 = vshll.u32 %v4000, 16
      %v4051 = vrot.slane %v4049, 5
      %v4052 = vsel %vm1601, %v4047, %v4051
      %v4054 = vshrl.u32 %v4001, 16
      %v4056 = vrot.slane %v4054, 4
      %v4057 = vshll.u32 %v4001, 16
      %v4059 = vrot.slane %v4057, 5
      %v4060 = vor.u32 %v4056, %v4059
      %v4061 = vrot.slane %v4060, 4
      %v4063 = vshll.u32 %v4002, 16
      %v4065 = vrot.slane %v4063, 5
      %v4066 = vsel %vm1601, %v4061, %v4065
      %v4068 = vshrl.u32 %v4003, 16
      %v4070 = vrot.slane %v4068, 4
      %v4071 = vshll.u32 %v4003, 16
      %v4073 = vrot.slane %v4071, 5
      %v4074 = vor.u32 %v4070, %v4073
      %v4075 = vrot.slane %v4074, 4
      %v4077 = vshll.u32 %v4004, 16
      %v4079 = vrot.slane %v4077, 5
      %v4080 = vsel %vm1601, %v4075, %v4079
      %v4082 = vshrl.u32 %v4005, 16
      %v4084 = vrot.slane %v4082, 4
      %v4085 = vshll.u32 %v4005, 16
      %v4087 = vrot.slane %v4085, 5
      %v4088 = vor.u32 %v4084, %v4087
      %v4089 = vrot.slane %v4088, 4
      %v4091 = vshll.u32 %v4006, 16
      %v4093 = vrot.slane %v4091, 5
      %v4094 = vsel %vm1601, %v4089, %v4093
      %v4096 = vshrl.u32 %v4007, 16
      %v4098 = vrot.slane %v4096, 4
      %v4099 = vshll.u32 %v4007, 16
      %v4101 = vrot.slane %v4099, 5
      %v4102 = vor.u32 %v4098, %v4101
      %v4103 = vrot.slane %v4102, 4
      %v4105 = vshll.u32 %v4008, 16
      %v4107 = vrot.slane %v4105, 5
      %v4108 = vsel %vm1601, %v4103, %v4107
      %v4110 = vshrl.u32 %v4009, 16
      %v4112 = vrot.slane %v4110, 4
      %v4113 = vshll.u32 %v4009, 16
      %v4115 = vrot.slane %v4113, 5
      %v4116 = vor.u32 %v4112, %v4115
      %v4117 = vrot.slane %v4116, 4
      %v4119 = vshll.u32 %v4010, 16
      %v4121 = vrot.slane %v4119, 5
      %v4122 = vsel %vm1601, %v4117, %v4121
      %4131 = vst [vmem:[%s3746 + $0x10] sm:$0xf] %v4024
      %4132 = vst [vmem:[%s3746 + $0x34] sm:$0xf] %v4038
      %4133 = vst [vmem:[%s3746 + $0x58] sm:$0xf] %v4052
      %4134 = vst [vmem:[%s3746 + $0x7c] sm:$0xf] %v4066
      %4135 = vst [vmem:[%s3746 + $0xa0] sm:$0xf] %v4080
      %4136 = vst [vmem:[%s3746 + $0xc4] sm:$0xf] %v4094
      %4137 = vst [vmem:[%s3746 + $0xe8] sm:$0xf] %v4108
      %4138 = vst [vmem:[%s3746 + $0x10c] sm:$0xf] %v4122
      %v4139 = vld [vmem:[%s1390] sm:$0xe]
      %v4140 = vld [vmem:[%s1390 + $0x4] sm:$0x1]
      %v4141 = vld [vmem:[%s1390 + $0x8] sm:$0xe]
      %v4142 = vld [vmem:[%s1390 + $0xc] sm:$0x1]
      %v4143 = vld [vmem:[%s1390 + $0x10] sm:$0xe]
      %v4144 = vld [vmem:[%s1390 + $0x14] sm:$0x1]
      %v4145 = vld [vmem:[%s1390 + $0x18] sm:$0xe]
      %v4146 = vld [vmem:[%s1390 + $0x1c] sm:$0x1]
      %v4147 = vld [vmem:[%s1390 + $0x20] sm:$0xe]
      %v4148 = vld [vmem:[%s1390 + $0x24] sm:$0x1]
      %v4149 = vld [vmem:[%s1390 + $0x28] sm:$0xe]
      %v4150 = vld [vmem:[%s1390 + $0x2c] sm:$0x1]
      %v4151 = vld [vmem:[%s1390 + $0x30] sm:$0xe]
      %v4152 = vld [vmem:[%s1390 + $0x34] sm:$0x1]
      %v4153 = vld [vmem:[%s1390 + $0x38] sm:$0xe]
      %v4154 = vld [vmem:[%s1390 + $0x3c] sm:$0x1]
      %v4171 = vrot.slane %v4139, 5
      %v4172 = vrot.slane %v4171, 4
      %v4173 = vrot.slane %v4140, 5
      %v4174 = vsel %vm1764, %v4172, %v4173
      %v4175 = vrot.slane %v4141, 5
      %v4176 = vrot.slane %v4175, 4
      %v4177 = vrot.slane %v4142, 5
      %v4178 = vsel %vm1764, %v4176, %v4177
      %v4179 = vrot.slane %v4143, 5
      %v4180 = vrot.slane %v4179, 4
      %v4181 = vrot.slane %v4144, 5
      %v4182 = vsel %vm1764, %v4180, %v4181
      %v4183 = vrot.slane %v4145, 5
      %v4184 = vrot.slane %v4183, 4
      %v4185 = vrot.slane %v4146, 5
      %v4186 = vsel %vm1764, %v4184, %v4185
      %v4187 = vrot.slane %v4147, 5
      %v4188 = vrot.slane %v4187, 4
      %v4189 = vrot.slane %v4148, 5
      %v4190 = vsel %vm1764, %v4188, %v4189
      %v4191 = vrot.slane %v4149, 5
      %v4192 = vrot.slane %v4191, 4
      %v4193 = vrot.slane %v4150, 5
      %v4194 = vsel %vm1764, %v4192, %v4193
      %v4195 = vrot.slane %v4151, 5
      %v4196 = vrot.slane %v4195, 4
      %v4197 = vrot.slane %v4152, 5
      %v4198 = vsel %vm1764, %v4196, %v4197
      %v4199 = vrot.slane %v4153, 5
      %v4200 = vrot.slane %v4199, 4
      %v4201 = vrot.slane %v4154, 5
      %v4202 = vsel %vm1764, %v4200, %v4201
      %4211 = vst [vmem:[%s3746 + $0x14] sm:$0xf] %v4174
      %4212 = vst [vmem:[%s3746 + $0x38] sm:$0xf] %v4178
      %4213 = vst [vmem:[%s3746 + $0x5c] sm:$0xf] %v4182
      %4214 = vst [vmem:[%s3746 + $0x80] sm:$0xf] %v4186
      %4215 = vst [vmem:[%s3746 + $0xa4] sm:$0xf] %v4190
      %4216 = vst [vmem:[%s3746 + $0xc8] sm:$0xf] %v4194
      %4217 = vst [vmem:[%s3746 + $0xec] sm:$0xf] %v4198
      %4218 = vst [vmem:[%s3746 + $0x110] sm:$0xf] %v4202
      %s4219 = scalar_lea.vmem [#allocation2], 256
      %v4220 = vld [vmem:[%s4219] sm:$0xf]
      %v4221 = vld [vmem:[%s4219 + $0x8] sm:$0xf]
      %v4222 = vld [vmem:[%s4219 + $0x10] sm:$0xf]
      %v4223 = vld [vmem:[%s4219 + $0x18] sm:$0xf]
      %v4224 = vld [vmem:[%s4219 + $0x20] sm:$0xf]
      %v4225 = vld [vmem:[%s4219 + $0x28] sm:$0xf]
      %v4226 = vld [vmem:[%s4219 + $0x30] sm:$0xf]
      %v4227 = vld [vmem:[%s4219 + $0x38] sm:$0xf]
      %4228 = vst [vmem:[%s3746 + $0x18] sm:$0xf] %v4220
      %4229 = vst [vmem:[%s3746 + $0x3c] sm:$0xf] %v4221
      %4230 = vst [vmem:[%s3746 + $0x60] sm:$0xf] %v4222
      %4231 = vst [vmem:[%s3746 + $0x84] sm:$0xf] %v4223
      %4232 = vst [vmem:[%s3746 + $0xa8] sm:$0xf] %v4224
      %4233 = vst [vmem:[%s3746 + $0xcc] sm:$0xf] %v4225
      %4234 = vst [vmem:[%s3746 + $0xf0] sm:$0xf] %v4226
      %4235 = vst [vmem:[%s3746 + $0x114] sm:$0xf] %v4227
      %v4236 = vld [vmem:[%s4219] sm:$0xf]
      %v4237 = vld [vmem:[%s4219 + $0x4] sm:$0x1]
      %v4238 = vld [vmem:[%s4219 + $0x8] sm:$0xf]
      %v4239 = vld [vmem:[%s4219 + $0xc] sm:$0x1]
      %v4240 = vld [vmem:[%s4219 + $0x10] sm:$0xf]
      %v4241 = vld [vmem:[%s4219 + $0x14] sm:$0x1]
      %v4242 = vld [vmem:[%s4219 + $0x18] sm:$0xf]
      %v4243 = vld [vmem:[%s4219 + $0x1c] sm:$0x1]
      %v4244 = vld [vmem:[%s4219 + $0x20] sm:$0xf]
      %v4245 = vld [vmem:[%s4219 + $0x24] sm:$0x1]
      %v4246 = vld [vmem:[%s4219 + $0x28] sm:$0xf]
      %v4247 = vld [vmem:[%s4219 + $0x2c] sm:$0x1]
      %v4248 = vld [vmem:[%s4219 + $0x30] sm:$0xf]
      %v4249 = vld [vmem:[%s4219 + $0x34] sm:$0x1]
      %v4250 = vld [vmem:[%s4219 + $0x38] sm:$0xf]
      %v4251 = vld [vmem:[%s4219 + $0x3c] sm:$0x1]
      %v4253 = vshrl.u32 %v4236, 16
      %v4255 = vrot.slane %v4253, 4
      %v4256 = vshll.u32 %v4236, 16
      %v4258 = vrot.slane %v4256, 5
      %v4259 = vor.u32 %v4255, %v4258
      %v4260 = vrot.slane %v4259, 4
      %v4262 = vshll.u32 %v4237, 16
      %v4264 = vrot.slane %v4262, 5
      %v4265 = vsel %vm1601, %v4260, %v4264
      %v4267 = vshrl.u32 %v4238, 16
      %v4269 = vrot.slane %v4267, 4
      %v4270 = vshll.u32 %v4238, 16
      %v4272 = vrot.slane %v4270, 5
      %v4273 = vor.u32 %v4269, %v4272
      %v4274 = vrot.slane %v4273, 4
      %v4276 = vshll.u32 %v4239, 16
      %v4278 = vrot.slane %v4276, 5
      %v4279 = vsel %vm1601, %v4274, %v4278
      %v4281 = vshrl.u32 %v4240, 16
      %v4283 = vrot.slane %v4281, 4
      %v4284 = vshll.u32 %v4240, 16
      %v4286 = vrot.slane %v4284, 5
      %v4287 = vor.u32 %v4283, %v4286
      %v4288 = vrot.slane %v4287, 4
      %v4290 = vshll.u32 %v4241, 16
      %v4292 = vrot.slane %v4290, 5
      %v4293 = vsel %vm1601, %v4288, %v4292
      %v4295 = vshrl.u32 %v4242, 16
      %v4297 = vrot.slane %v4295, 4
      %v4298 = vshll.u32 %v4242, 16
      %v4300 = vrot.slane %v4298, 5
      %v4301 = vor.u32 %v4297, %v4300
      %v4302 = vrot.slane %v4301, 4
      %v4304 = vshll.u32 %v4243, 16
      %v4306 = vrot.slane %v4304, 5
      %v4307 = vsel %vm1601, %v4302, %v4306
      %v4309 = vshrl.u32 %v4244, 16
      %v4311 = vrot.slane %v4309, 4
      %v4312 = vshll.u32 %v4244, 16
      %v4314 = vrot.slane %v4312, 5
      %v4315 = vor.u32 %v4311, %v4314
      %v4316 = vrot.slane %v4315, 4
      %v4318 = vshll.u32 %v4245, 16
      %v4320 = vrot.slane %v4318, 5
      %v4321 = vsel %vm1601, %v4316, %v4320
      %v4323 = vshrl.u32 %v4246, 16
      %v4325 = vrot.slane %v4323, 4
      %v4326 = vshll.u32 %v4246, 16
      %v4328 = vrot.slane %v4326, 5
      %v4329 = vor.u32 %v4325, %v4328
      %v4330 = vrot.slane %v4329, 4
      %v4332 = vshll.u32 %v4247, 16
      %v4334 = vrot.slane %v4332, 5
      %v4335 = vsel %vm1601, %v4330, %v4334
      %v4337 = vshrl.u32 %v4248, 16
      %v4339 = vrot.slane %v4337, 4
      %v4340 = vshll.u32 %v4248, 16
      %v4342 = vrot.slane %v4340, 5
      %v4343 = vor.u32 %v4339, %v4342
      %v4344 = vrot.slane %v4343, 4
      %v4346 = vshll.u32 %v4249, 16
      %v4348 = vrot.slane %v4346, 5
      %v4349 = vsel %vm1601, %v4344, %v4348
      %v4351 = vshrl.u32 %v4250, 16
      %v4353 = vrot.slane %v4351, 4
      %v4354 = vshll.u32 %v4250, 16
      %v4356 = vrot.slane %v4354, 5
      %v4357 = vor.u32 %v4353, %v4356
      %v4358 = vrot.slane %v4357, 4
      %v4360 = vshll.u32 %v4251, 16
      %v4362 = vrot.slane %v4360, 5
      %v4363 = vsel %vm1601, %v4358, %v4362
      %4372 = vst [vmem:[%s3746 + $0x1c] sm:$0xf] %v4265
      %4373 = vst [vmem:[%s3746 + $0x40] sm:$0xf] %v4279
      %4374 = vst [vmem:[%s3746 + $0x64] sm:$0xf] %v4293
      %4375 = vst [vmem:[%s3746 + $0x88] sm:$0xf] %v4307
      %4376 = vst [vmem:[%s3746 + $0xac] sm:$0xf] %v4321
      %4377 = vst [vmem:[%s3746 + $0xd0] sm:$0xf] %v4335
      %4378 = vst [vmem:[%s3746 + $0xf4] sm:$0xf] %v4349
      %4379 = vst [vmem:[%s3746 + $0x118] sm:$0xf] %v4363
      %v4380 = vld [vmem:[%s4219] sm:$0xe]
      %v4381 = vld [vmem:[%s4219 + $0x4] sm:$0x1]
      %v4382 = vld [vmem:[%s4219 + $0x8] sm:$0xe]
      %v4383 = vld [vmem:[%s4219 + $0xc] sm:$0x1]
      %v4384 = vld [vmem:[%s4219 + $0x10] sm:$0xe]
      %v4385 = vld [vmem:[%s4219 + $0x14] sm:$0x1]
      %v4386 = vld [vmem:[%s4219 + $0x18] sm:$0xe]
      %v4387 = vld [vmem:[%s4219 + $0x1c] sm:$0x1]
      %v4388 = vld [vmem:[%s4219 + $0x20] sm:$0xe]
      %v4389 = vld [vmem:[%s4219 + $0x24] sm:$0x1]
      %v4390 = vld [vmem:[%s4219 + $0x28] sm:$0xe]
      %v4391 = vld [vmem:[%s4219 + $0x2c] sm:$0x1]
      %v4392 = vld [vmem:[%s4219 + $0x30] sm:$0xe]
      %v4393 = vld [vmem:[%s4219 + $0x34] sm:$0x1]
      %v4394 = vld [vmem:[%s4219 + $0x38] sm:$0xe]
      %v4395 = vld [vmem:[%s4219 + $0x3c] sm:$0x1]
      %v4412 = vrot.slane %v4380, 5
      %v4413 = vrot.slane %v4412, 4
      %v4414 = vrot.slane %v4381, 5
      %v4415 = vsel %vm1764, %v4413, %v4414
      %v4416 = vrot.slane %v4382, 5
      %v4417 = vrot.slane %v4416, 4
      %v4418 = vrot.slane %v4383, 5
      %v4419 = vsel %vm1764, %v4417, %v4418
      %v4420 = vrot.slane %v4384, 5
      %v4421 = vrot.slane %v4420, 4
      %v4422 = vrot.slane %v4385, 5
      %v4423 = vsel %vm1764, %v4421, %v4422
      %v4424 = vrot.slane %v4386, 5
      %v4425 = vrot.slane %v4424, 4
      %v4426 = vrot.slane %v4387, 5
      %v4427 = vsel %vm1764, %v4425, %v4426
      %v4428 = vrot.slane %v4388, 5
      %v4429 = vrot.slane %v4428, 4
      %v4430 = vrot.slane %v4389, 5
      %v4431 = vsel %vm1764, %v4429, %v4430
      %v4432 = vrot.slane %v4390, 5
      %v4433 = vrot.slane %v4432, 4
      %v4434 = vrot.slane %v4391, 5
      %v4435 = vsel %vm1764, %v4433, %v4434
      %v4436 = vrot.slane %v4392, 5
      %v4437 = vrot.slane %v4436, 4
      %v4438 = vrot.slane %v4393, 5
      %v4439 = vsel %vm1764, %v4437, %v4438
      %v4440 = vrot.slane %v4394, 5
      %v4441 = vrot.slane %v4440, 4
      %v4442 = vrot.slane %v4395, 5
      %v4443 = vsel %vm1764, %v4441, %v4442
      %4452 = vst [vmem:[%s3746 + $0x20] sm:$0xf] %v4415
      %4453 = vst [vmem:[%s3746 + $0x44] sm:$0xf] %v4419
      %4454 = vst [vmem:[%s3746 + $0x68] sm:$0xf] %v4423
      %4455 = vst [vmem:[%s3746 + $0x8c] sm:$0xf] %v4427
      %4456 = vst [vmem:[%s3746 + $0xb0] sm:$0xf] %v4431
      %4457 = vst [vmem:[%s3746 + $0xd4] sm:$0xf] %v4435
      %4458 = vst [vmem:[%s3746 + $0xf8] sm:$0xf] %v4439
      %4459 = vst [vmem:[%s3746 + $0x11c] sm:$0xf] %v4443
      %v4460 = vld [vmem:[#allocation3] sm:$0xff]
      %v4461 = vld [vmem:[#allocation3 + $0x8] sm:$0xff]
      %v4462 = vld [vmem:[#allocation3 + $0x10] sm:$0xff]
      %v4463 = vld [vmem:[#allocation3 + $0x18] sm:$0xff]
      %v4464 = vld [vmem:[#allocation3 + $0x20] sm:$0xf]
      %v4465 = vld [vmem:[#allocation3 + $0x24] sm:$0xff]
      %v4466 = vld [vmem:[#allocation3 + $0x2c] sm:$0xff]
      %v4467 = vld [vmem:[#allocation3 + $0x34] sm:$0xff]
      %v4468 = vld [vmem:[#allocation3 + $0x3c] sm:$0xff]
      %v4469 = vld [vmem:[#allocation3 + $0x44] sm:$0xf]
      %v4470 = vld [vmem:[#allocation3 + $0x48] sm:$0xff]
      %v4471 = vld [vmem:[#allocation3 + $0x50] sm:$0xff]
      %v4472 = vld [vmem:[#allocation3 + $0x58] sm:$0xff]
      %v4473 = vld [vmem:[#allocation3 + $0x60] sm:$0xff]
      %v4474 = vld [vmem:[#allocation3 + $0x68] sm:$0xf]
      %v4475 = vld [vmem:[#allocation3 + $0x6c] sm:$0xff]
      %v4476 = vld [vmem:[#allocation3 + $0x74] sm:$0xff]
      %v4477 = vld [vmem:[#allocation3 + $0x7c] sm:$0xff]
      %v4478 = vld [vmem:[#allocation3 + $0x84] sm:$0xff]
      %v4479 = vld [vmem:[#allocation3 + $0x8c] sm:$0xf]
      %v4480 = vld [vmem:[#allocation3 + $0x90] sm:$0xff]
      %v4481 = vld [vmem:[#allocation3 + $0x98] sm:$0xff]
      %v4482 = vld [vmem:[#allocation3 + $0xa0] sm:$0xff]
      %v4483 = vld [vmem:[#allocation3 + $0xa8] sm:$0xff]
      %v4484 = vld [vmem:[#allocation3 + $0xb0] sm:$0xf]
      %v4485 = vld [vmem:[#allocation3 + $0xb4] sm:$0xff]
      %v4486 = vld [vmem:[#allocation3 + $0xbc] sm:$0xff]
      %v4487 = vld [vmem:[#allocation3 + $0xc4] sm:$0xff]
      %v4488 = vld [vmem:[#allocation3 + $0xcc] sm:$0xff]
      %v4489 = vld [vmem:[#allocation3 + $0xd4] sm:$0xf]
      %v4490 = vld [vmem:[#allocation3 + $0xd8] sm:$0xff]
      %v4491 = vld [vmem:[#allocation3 + $0xe0] sm:$0xff]
      %v4492 = vld [vmem:[#allocation3 + $0xe8] sm:$0xff]
      %v4493 = vld [vmem:[#allocation3 + $0xf0] sm:$0xff]
      %v4494 = vld [vmem:[#allocation3 + $0xf8] sm:$0xf]
      %v4495 = vld [vmem:[#allocation3 + $0xfc] sm:$0xff]
      %v4496 = vld [vmem:[#allocation3 + $0x104] sm:$0xff]
      %v4497 = vld [vmem:[#allocation3 + $0x10c] sm:$0xff]
      %v4498 = vld [vmem:[#allocation3 + $0x114] sm:$0xff]
      %v4499 = vld [vmem:[#allocation3 + $0x11c] sm:$0xf]
      %v4500 = vld [vmem:[#allocation3 + $0x120] sm:$0xff]
      %v4501 = vld [vmem:[#allocation3 + $0x128] sm:$0xff]
      %v4502 = vld [vmem:[#allocation3 + $0x130] sm:$0xff]
      %v4503 = vld [vmem:[#allocation3 + $0x138] sm:$0xff]
      %v4504 = vld [vmem:[#allocation3 + $0x140] sm:$0xf]
      %v4505 = vld [vmem:[#allocation3 + $0x144] sm:$0xff]
      %v4506 = vld [vmem:[#allocation3 + $0x14c] sm:$0xff]
      %v4507 = vld [vmem:[#allocation3 + $0x154] sm:$0xff]
      %v4508 = vld [vmem:[#allocation3 + $0x15c] sm:$0xff]
      %v4509 = vld [vmem:[#allocation3 + $0x164] sm:$0xf]
      %v4510 = vld [vmem:[#allocation3 + $0x168] sm:$0xff]
      %v4511 = vld [vmem:[#allocation3 + $0x170] sm:$0xff]
      %v4512 = vld [vmem:[#allocation3 + $0x178] sm:$0xff]
      %v4513 = vld [vmem:[#allocation3 + $0x180] sm:$0xff]
      %v4514 = vld [vmem:[#allocation3 + $0x188] sm:$0xf]
      %v4515 = vld [vmem:[#allocation3 + $0x18c] sm:$0xff]
      %v4516 = vld [vmem:[#allocation3 + $0x194] sm:$0xff]
      %v4517 = vld [vmem:[#allocation3 + $0x19c] sm:$0xff]
      %v4518 = vld [vmem:[#allocation3 + $0x1a4] sm:$0xff]
      %v4519 = vld [vmem:[#allocation3 + $0x1ac] sm:$0xf]
      %v4520 = vld [vmem:[#allocation3 + $0x1b0] sm:$0xff]
      %v4521 = vld [vmem:[#allocation3 + $0x1b8] sm:$0xff]
      %v4522 = vld [vmem:[#allocation3 + $0x1c0] sm:$0xff]
      %v4523 = vld [vmem:[#allocation3 + $0x1c8] sm:$0xff]
      %v4524 = vld [vmem:[#allocation3 + $0x1d0] sm:$0xf]
      %v4525 = vld [vmem:[#allocation3 + $0x1d4] sm:$0xff]
      %v4526 = vld [vmem:[#allocation3 + $0x1dc] sm:$0xff]
      %v4527 = vld [vmem:[#allocation3 + $0x1e4] sm:$0xff]
      %v4528 = vld [vmem:[#allocation3 + $0x1ec] sm:$0xff]
      %v4529 = vld [vmem:[#allocation3 + $0x1f4] sm:$0xf]
      %v4530 = vld [vmem:[#allocation3 + $0x1f8] sm:$0xff]
      %v4531 = vld [vmem:[#allocation3 + $0x200] sm:$0xff]
      %v4532 = vld [vmem:[#allocation3 + $0x208] sm:$0xff]
      %v4533 = vld [vmem:[#allocation3 + $0x210] sm:$0xff]
      %v4534 = vld [vmem:[#allocation3 + $0x218] sm:$0xf]
      %v4535 = vld [vmem:[#allocation3 + $0x21c] sm:$0xff]
      %v4536 = vld [vmem:[#allocation3 + $0x224] sm:$0xff]
      %v4537 = vld [vmem:[#allocation3 + $0x22c] sm:$0xff]
      %v4538 = vld [vmem:[#allocation3 + $0x234] sm:$0xff]
      %v4539 = vld [vmem:[#allocation3 + $0x23c] sm:$0xf]
      %v4540 = vld [vmem:[#allocation3 + $0x240] sm:$0xff]
      %v4541 = vld [vmem:[#allocation3 + $0x248] sm:$0xff]
      %v4542 = vld [vmem:[#allocation3 + $0x250] sm:$0xff]
      %v4543 = vld [vmem:[#allocation3 + $0x258] sm:$0xff]
      %v4544 = vld [vmem:[#allocation3 + $0x260] sm:$0xf]
      %v4545 = vld [vmem:[#allocation3 + $0x264] sm:$0xff]
      %v4546 = vld [vmem:[#allocation3 + $0x26c] sm:$0xff]
      %v4547 = vld [vmem:[#allocation3 + $0x274] sm:$0xff]
      %v4548 = vld [vmem:[#allocation3 + $0x27c] sm:$0xff]
      %v4549 = vld [vmem:[#allocation3 + $0x284] sm:$0xf]
      %v4550 = vld [vmem:[#allocation3 + $0x288] sm:$0xff]
      %v4551 = vld [vmem:[#allocation3 + $0x290] sm:$0xff]
      %v4552 = vld [vmem:[#allocation3 + $0x298] sm:$0xff]
      %v4553 = vld [vmem:[#allocation3 + $0x2a0] sm:$0xff]
      %v4554 = vld [vmem:[#allocation3 + $0x2a8] sm:$0xf]
      %v4555 = vld [vmem:[#allocation3 + $0x2ac] sm:$0xff]
      %v4556 = vld [vmem:[#allocation3 + $0x2b4] sm:$0xff]
      %v4557 = vld [vmem:[#allocation3 + $0x2bc] sm:$0xff]
      %v4558 = vld [vmem:[#allocation3 + $0x2c4] sm:$0xff]
      %v4559 = vld [vmem:[#allocation3 + $0x2cc] sm:$0xf]
      %v4560 = vld [vmem:[#allocation3 + $0x2d0] sm:$0xff]
      %v4561 = vld [vmem:[#allocation3 + $0x2d8] sm:$0xff]
      %v4562 = vld [vmem:[#allocation3 + $0x2e0] sm:$0xff]
      %v4563 = vld [vmem:[#allocation3 + $0x2e8] sm:$0xff]
      %v4564 = vld [vmem:[#allocation3 + $0x2f0] sm:$0xf]
      %v4565 = vld [vmem:[#allocation3 + $0x2f4] sm:$0xff]
      %v4566 = vld [vmem:[#allocation3 + $0x2fc] sm:$0xff]
      %v4567 = vld [vmem:[#allocation3 + $0x304] sm:$0xff]
      %v4568 = vld [vmem:[#allocation3 + $0x30c] sm:$0xff]
      %v4569 = vld [vmem:[#allocation3 + $0x314] sm:$0xf]
      %v4570 = vld [vmem:[#allocation3 + $0x318] sm:$0xff]
      %v4571 = vld [vmem:[#allocation3 + $0x320] sm:$0xff]
      %v4572 = vld [vmem:[#allocation3 + $0x328] sm:$0xff]
      %v4573 = vld [vmem:[#allocation3 + $0x330] sm:$0xff]
      %v4574 = vld [vmem:[#allocation3 + $0x338] sm:$0xf]
      %v4575 = vld [vmem:[#allocation3 + $0x33c] sm:$0xff]
      %v4576 = vld [vmem:[#allocation3 + $0x344] sm:$0xff]
      %v4577 = vld [vmem:[#allocation3 + $0x34c] sm:$0xff]
      %v4578 = vld [vmem:[#allocation3 + $0x354] sm:$0xff]
      %v4579 = vld [vmem:[#allocation3 + $0x35c] sm:$0xf]
      %v4580 = vld [vmem:[#allocation3 + $0x360] sm:$0xff]
      %v4581 = vld [vmem:[#allocation3 + $0x368] sm:$0xff]
      %v4582 = vld [vmem:[#allocation3 + $0x370] sm:$0xff]
      %v4583 = vld [vmem:[#allocation3 + $0x378] sm:$0xff]
      %v4584 = vld [vmem:[#allocation3 + $0x380] sm:$0xf]
      %v4585 = vld [vmem:[#allocation3 + $0x384] sm:$0xff]
      %v4586 = vld [vmem:[#allocation3 + $0x38c] sm:$0xff]
      %v4587 = vld [vmem:[#allocation3 + $0x394] sm:$0xff]
      %v4588 = vld [vmem:[#allocation3 + $0x39c] sm:$0xff]
      %v4589 = vld [vmem:[#allocation3 + $0x3a4] sm:$0xf]
      %v4590 = vld [vmem:[#allocation3 + $0x3a8] sm:$0xff]
      %v4591 = vld [vmem:[#allocation3 + $0x3b0] sm:$0xff]
      %v4592 = vld [vmem:[#allocation3 + $0x3b8] sm:$0xff]
      %v4593 = vld [vmem:[#allocation3 + $0x3c0] sm:$0xff]
      %v4594 = vld [vmem:[#allocation3 + $0x3c8] sm:$0xf]
      %v4595 = vld [vmem:[#allocation3 + $0x3cc] sm:$0xff]
      %v4596 = vld [vmem:[#allocation3 + $0x3d4] sm:$0xff]
      %v4597 = vld [vmem:[#allocation3 + $0x3dc] sm:$0xff]
      %v4598 = vld [vmem:[#allocation3 + $0x3e4] sm:$0xff]
      %v4599 = vld [vmem:[#allocation3 + $0x3ec] sm:$0xf]
      %v4600 = vld [vmem:[#allocation3 + $0x3f0] sm:$0xff]
      %v4601 = vld [vmem:[#allocation3 + $0x3f8] sm:$0xff]
      %v4602 = vld [vmem:[#allocation3 + $0x400] sm:$0xff]
      %v4603 = vld [vmem:[#allocation3 + $0x408] sm:$0xff]
      %v4604 = vld [vmem:[#allocation3 + $0x410] sm:$0xf]
      %v4605 = vld [vmem:[#allocation3 + $0x414] sm:$0xff]
      %v4606 = vld [vmem:[#allocation3 + $0x41c] sm:$0xff]
      %v4607 = vld [vmem:[#allocation3 + $0x424] sm:$0xff]
      %v4608 = vld [vmem:[#allocation3 + $0x42c] sm:$0xff]
      %v4609 = vld [vmem:[#allocation3 + $0x434] sm:$0xf]
      %v4610 = vld [vmem:[#allocation3 + $0x438] sm:$0xff]
      %v4611 = vld [vmem:[#allocation3 + $0x440] sm:$0xff]
      %v4612 = vld [vmem:[#allocation3 + $0x448] sm:$0xff]
      %v4613 = vld [vmem:[#allocation3 + $0x450] sm:$0xff]
      %v4614 = vld [vmem:[#allocation3 + $0x458] sm:$0xf]
      %v4615 = vld [vmem:[#allocation3 + $0x45c] sm:$0xff]
      %v4616 = vld [vmem:[#allocation3 + $0x464] sm:$0xff]
      %v4617 = vld [vmem:[#allocation3 + $0x46c] sm:$0xff]
      %v4618 = vld [vmem:[#allocation3 + $0x474] sm:$0xff]
      %v4619 = vld [vmem:[#allocation3 + $0x47c] sm:$0xf]
      %v4620 = vld [vmem:[%s3] sm:$0xf]
      %v4621 = vld [vmem:[%s3 + $0x4] sm:$0xf]
      %v4622 = vld [vmem:[%s3 + $0x8] sm:$0xf]
      %v4623 = vld [vmem:[%s3 + $0xc] sm:$0xf]
      %v4624 = vld [vmem:[%s3 + $0x10] sm:$0xf]
      %v4625 = vld [vmem:[%s3 + $0x14] sm:$0xf]
      %v4626 = vld [vmem:[%s3 + $0x18] sm:$0xf]
      %v4627 = vld [vmem:[%s3 + $0x1c] sm:$0xf]
      %v4628 = vld [vmem:[%s3 + $0x20] sm:$0xf]
      %v4629 = vld [vmem:[%s3 + $0x24] sm:$0xf]
      %v4630 = vld [vmem:[%s3 + $0x28] sm:$0xf]
      %v4631 = vld [vmem:[%s3 + $0x2c] sm:$0xf]
      %v4632 = vld [vmem:[%s3 + $0x30] sm:$0xf]
      %v4633 = vld [vmem:[%s3 + $0x34] sm:$0xf]
      %v4634 = vld [vmem:[%s3 + $0x38] sm:$0xf]
      %v4635 = vld [vmem:[%s3 + $0x3c] sm:$0xf]
      %v4636 = vld [vmem:[%s3 + $0x40] sm:$0xf]
      %v4637 = vld [vmem:[%s3 + $0x44] sm:$0xf]
      %v4638 = vld [vmem:[%s3 + $0x48] sm:$0xf]
      %v4639 = vld [vmem:[%s3 + $0x4c] sm:$0xf]
      %v4640 = vld [vmem:[%s3 + $0x50] sm:$0xf]
      %v4641 = vld [vmem:[%s3 + $0x54] sm:$0xf]
      %v4642 = vld [vmem:[%s3 + $0x58] sm:$0xf]
      %v4643 = vld [vmem:[%s3 + $0x5c] sm:$0xf]
      %v4644 = vld [vmem:[%s3 + $0x60] sm:$0xf]
      %v4645 = vld [vmem:[%s3 + $0x64] sm:$0xf]
      %v4646 = vld [vmem:[%s3 + $0x68] sm:$0xf]
      %v4647 = vld [vmem:[%s3 + $0x6c] sm:$0xf]
      %v4648 = vld [vmem:[%s3 + $0x70] sm:$0xf]
      %v4649 = vld [vmem:[%s3 + $0x74] sm:$0xf]
      %v4650 = vld [vmem:[%s3 + $0x78] sm:$0xf]
      %v4651 = vld [vmem:[%s3 + $0x7c] sm:$0xf]
      %v4652 = vld [vmem:[%s3 + $0x80] sm:$0xf]
      %v4653 = vld [vmem:[%s3 + $0x84] sm:$0xf]
      %v4654 = vld [vmem:[%s3 + $0x88] sm:$0xf]
      %v4655 = vld [vmem:[%s3 + $0x8c] sm:$0xf]
      %v4656 = vld [vmem:[%s3 + $0x90] sm:$0xf]
      %v4657 = vld [vmem:[%s3 + $0x94] sm:$0xf]
      %v4658 = vld [vmem:[%s3 + $0x98] sm:$0xf]
      %v4659 = vld [vmem:[%s3 + $0x9c] sm:$0xf]
      %v4660 = vld [vmem:[%s3 + $0xa0] sm:$0xf]
      %v4661 = vld [vmem:[%s3 + $0xa4] sm:$0xf]
      %v4662 = vld [vmem:[%s3 + $0xa8] sm:$0xf]
      %v4663 = vld [vmem:[%s3 + $0xac] sm:$0xf]
      %v4664 = vld [vmem:[%s3 + $0xb0] sm:$0xf]
      %v4665 = vld [vmem:[%s3 + $0xb4] sm:$0xf]
      %v4666 = vld [vmem:[%s3 + $0xb8] sm:$0xf]
      %v4667 = vld [vmem:[%s3 + $0xbc] sm:$0xf]
      %v4668 = vld [vmem:[%s3 + $0xc0] sm:$0xf]
      %v4669 = vld [vmem:[%s3 + $0xc4] sm:$0xf]
      %v4670 = vld [vmem:[%s3 + $0xc8] sm:$0xf]
      %v4671 = vld [vmem:[%s3 + $0xcc] sm:$0xf]
      %v4672 = vld [vmem:[%s3 + $0xd0] sm:$0xf]
      %v4673 = vld [vmem:[%s3 + $0xd4] sm:$0xf]
      %v4674 = vld [vmem:[%s3 + $0xd8] sm:$0xf]
      %v4675 = vld [vmem:[%s3 + $0xdc] sm:$0xf]
      %v4676 = vld [vmem:[%s3 + $0xe0] sm:$0xf]
      %v4677 = vld [vmem:[%s3 + $0xe4] sm:$0xf]
      %v4678 = vld [vmem:[%s3 + $0xe8] sm:$0xf]
      %v4679 = vld [vmem:[%s3 + $0xec] sm:$0xf]
      %v4680 = vld [vmem:[%s3 + $0xf0] sm:$0xf]
      %v4681 = vld [vmem:[%s3 + $0xf4] sm:$0xf]
      %v4682 = vld [vmem:[%s3 + $0xf8] sm:$0xf]
      %v4683 = vld [vmem:[%s3 + $0xfc] sm:$0xf]
      %v4684 = vld [vmem:[%s3 + $0x100] sm:$0xf]
      %v4685 = vld [vmem:[%s3 + $0x104] sm:$0xf]
      %v4686 = vld [vmem:[%s3 + $0x108] sm:$0xf]
      %v4687 = vld [vmem:[%s3 + $0x10c] sm:$0xf]
      %v4688 = vld [vmem:[%s3 + $0x110] sm:$0xf]
      %v4689 = vld [vmem:[%s3 + $0x114] sm:$0xf]
      %v4690 = vld [vmem:[%s3 + $0x118] sm:$0xf]
      %v4691 = vld [vmem:[%s3 + $0x11c] sm:$0xf]
      %v4692 = vld [vmem:[%s3 + $0x120] sm:$0xf]
      %v4693 = vld [vmem:[%s3 + $0x124] sm:$0xf]
      %v4694 = vld [vmem:[%s3 + $0x128] sm:$0xf]
      %v4695 = vld [vmem:[%s3 + $0x12c] sm:$0xf]
      %v4696 = vld [vmem:[%s3 + $0x130] sm:$0xf]
      %v4697 = vld [vmem:[%s3 + $0x134] sm:$0xf]
      %v4698 = vld [vmem:[%s3 + $0x138] sm:$0xf]
      %v4699 = vld [vmem:[%s3 + $0x13c] sm:$0xf]
      %v4700 = vld [vmem:[%s3 + $0x140] sm:$0xf]
      %v4701 = vld [vmem:[%s3 + $0x144] sm:$0xf]
      %v4702 = vld [vmem:[%s3 + $0x148] sm:$0xf]
      %v4703 = vld [vmem:[%s3 + $0x14c] sm:$0xf]
      %v4704 = vld [vmem:[%s3 + $0x150] sm:$0xf]
      %v4705 = vld [vmem:[%s3 + $0x154] sm:$0xf]
      %v4706 = vld [vmem:[%s3 + $0x158] sm:$0xf]
      %v4707 = vld [vmem:[%s3 + $0x15c] sm:$0xf]
      %v4708 = vld [vmem:[%s3 + $0x160] sm:$0xf]
      %v4709 = vld [vmem:[%s3 + $0x164] sm:$0xf]
      %v4710 = vld [vmem:[%s3 + $0x168] sm:$0xf]
      %v4711 = vld [vmem:[%s3 + $0x16c] sm:$0xf]
      %v4712 = vld [vmem:[%s3 + $0x170] sm:$0xf]
      %v4713 = vld [vmem:[%s3 + $0x174] sm:$0xf]
      %v4714 = vld [vmem:[%s3 + $0x178] sm:$0xf]
      %v4715 = vld [vmem:[%s3 + $0x17c] sm:$0xf]
      %v4716 = vld [vmem:[%s3 + $0x180] sm:$0xf]
      %v4717 = vld [vmem:[%s3 + $0x184] sm:$0xf]
      %v4718 = vld [vmem:[%s3 + $0x188] sm:$0xf]
      %v4719 = vld [vmem:[%s3 + $0x18c] sm:$0xf]
      %v4720 = vld [vmem:[%s3 + $0x190] sm:$0xf]
      %v4721 = vld [vmem:[%s3 + $0x194] sm:$0xf]
      %v4722 = vld [vmem:[%s3 + $0x198] sm:$0xf]
      %v4723 = vld [vmem:[%s3 + $0x19c] sm:$0xf]
      %v4724 = vld [vmem:[%s3 + $0x1a0] sm:$0xf]
      %v4725 = vld [vmem:[%s3 + $0x1a4] sm:$0xf]
      %v4726 = vld [vmem:[%s3 + $0x1a8] sm:$0xf]
      %v4727 = vld [vmem:[%s3 + $0x1ac] sm:$0xf]
      %v4728 = vld [vmem:[%s3 + $0x1b0] sm:$0xf]
      %v4729 = vld [vmem:[%s3 + $0x1b4] sm:$0xf]
      %v4730 = vld [vmem:[%s3 + $0x1b8] sm:$0xf]
      %v4731 = vld [vmem:[%s3 + $0x1bc] sm:$0xf]
      %v4732 = vld [vmem:[%s3 + $0x1c0] sm:$0xf]
      %v4733 = vld [vmem:[%s3 + $0x1c4] sm:$0xf]
      %v4734 = vld [vmem:[%s3 + $0x1c8] sm:$0xf]
      %v4735 = vld [vmem:[%s3 + $0x1cc] sm:$0xf]
      %v4736 = vld [vmem:[%s3 + $0x1d0] sm:$0xf]
      %v4737 = vld [vmem:[%s3 + $0x1d4] sm:$0xf]
      %v4738 = vld [vmem:[%s3 + $0x1d8] sm:$0xf]
      %v4739 = vld [vmem:[%s3 + $0x1dc] sm:$0xf]
      %v4740 = vld [vmem:[%s3 + $0x1e0] sm:$0xf]
      %v4741 = vld [vmem:[%s3 + $0x1e4] sm:$0xf]
      %v4742 = vld [vmem:[%s3 + $0x1e8] sm:$0xf]
      %v4743 = vld [vmem:[%s3 + $0x1ec] sm:$0xf]
      %v4744 = vld [vmem:[%s3 + $0x1f0] sm:$0xf]
      %v4745 = vld [vmem:[%s3 + $0x1f4] sm:$0xf]
      %v4746 = vld [vmem:[%s3 + $0x1f8] sm:$0xf]
      %v4747 = vld [vmem:[%s3 + $0x1fc] sm:$0xf]
      %v4748 = vld [vmem:[%s3 + $0x200] sm:$0xf]
      %v4749 = vld [vmem:[%s3 + $0x204] sm:$0xf]
      %v4750 = vld [vmem:[%s3 + $0x208] sm:$0xf]
      %v4751 = vld [vmem:[%s3 + $0x20c] sm:$0xf]
      %v4752 = vld [vmem:[%s3 + $0x210] sm:$0xf]
      %v4753 = vld [vmem:[%s3 + $0x214] sm:$0xf]
      %v4754 = vld [vmem:[%s3 + $0x218] sm:$0xf]
      %v4755 = vld [vmem:[%s3 + $0x21c] sm:$0xf]
      %v4756 = vld [vmem:[%s3 + $0x220] sm:$0xf]
      %v4757 = vld [vmem:[%s3 + $0x224] sm:$0xf]
      %v4758 = vld [vmem:[%s3 + $0x228] sm:$0xf]
      %v4759 = vld [vmem:[%s3 + $0x22c] sm:$0xf]
      %v4760 = vld [vmem:[%s3 + $0x230] sm:$0xf]
      %v4761 = vld [vmem:[%s3 + $0x234] sm:$0xf]
      %v4762 = vld [vmem:[%s3 + $0x238] sm:$0xf]
      %v4763 = vld [vmem:[%s3 + $0x23c] sm:$0xf]
      %v4764 = vld [vmem:[%s276] sm:$0xf]
      %v4765 = vld [vmem:[%s276 + $0x4] sm:$0xf]
      %v4766 = vld [vmem:[%s276 + $0x8] sm:$0xf]
      %v4767 = vld [vmem:[%s276 + $0xc] sm:$0xf]
      %v4768 = vld [vmem:[%s276 + $0x10] sm:$0xf]
      %v4769 = vld [vmem:[%s276 + $0x14] sm:$0xf]
      %v4770 = vld [vmem:[%s276 + $0x18] sm:$0xf]
      %v4771 = vld [vmem:[%s276 + $0x1c] sm:$0xf]
      %v4772 = vld [vmem:[%s276 + $0x20] sm:$0xf]
      %v4773 = vld [vmem:[%s276 + $0x24] sm:$0xf]
      %v4774 = vld [vmem:[%s276 + $0x28] sm:$0xf]
      %v4775 = vld [vmem:[%s276 + $0x2c] sm:$0xf]
      %v4776 = vld [vmem:[%s276 + $0x30] sm:$0xf]
      %v4777 = vld [vmem:[%s276 + $0x34] sm:$0xf]
      %v4778 = vld [vmem:[%s276 + $0x38] sm:$0xf]
      %v4779 = vld [vmem:[%s276 + $0x3c] sm:$0xf]
      %v4780 = vld [vmem:[%s276 + $0x40] sm:$0xf]
      %v4781 = vld [vmem:[%s276 + $0x44] sm:$0xf]
      %v4782 = vld [vmem:[%s276 + $0x48] sm:$0xf]
      %v4783 = vld [vmem:[%s276 + $0x4c] sm:$0xf]
      %v4784 = vld [vmem:[%s276 + $0x50] sm:$0xf]
      %v4785 = vld [vmem:[%s276 + $0x54] sm:$0xf]
      %v4786 = vld [vmem:[%s276 + $0x58] sm:$0xf]
      %v4787 = vld [vmem:[%s276 + $0x5c] sm:$0xf]
      %v4788 = vld [vmem:[%s276 + $0x60] sm:$0xf]
      %v4789 = vld [vmem:[%s276 + $0x64] sm:$0xf]
      %v4790 = vld [vmem:[%s276 + $0x68] sm:$0xf]
      %v4791 = vld [vmem:[%s276 + $0x6c] sm:$0xf]
      %v4792 = vld [vmem:[%s276 + $0x70] sm:$0xf]
      %v4793 = vld [vmem:[%s276 + $0x74] sm:$0xf]
      %v4794 = vld [vmem:[%s276 + $0x78] sm:$0xf]
      %v4795 = vld [vmem:[%s276 + $0x7c] sm:$0xf]
      %v4796 = vunpack.c.l.bf16 %v4764
      %v4797 = vunpack.c.l.bf16 %v4765
      %v4798 = vunpack.c.l.bf16 %v4766
      %v4799 = vunpack.c.l.bf16 %v4767
      %v4800 = vunpack.c.l.bf16 %v4768
      %v4801 = vunpack.c.l.bf16 %v4769
      %v4802 = vunpack.c.l.bf16 %v4770
      %v4803 = vunpack.c.l.bf16 %v4771
      %v4804 = vunpack.c.l.bf16 %v4772
      %v4805 = vunpack.c.l.bf16 %v4773
      %v4806 = vunpack.c.l.bf16 %v4774
      %v4807 = vunpack.c.l.bf16 %v4775
      %v4808 = vunpack.c.l.bf16 %v4776
      %v4809 = vunpack.c.l.bf16 %v4777
      %v4810 = vunpack.c.l.bf16 %v4778
      %v4811 = vunpack.c.l.bf16 %v4779
      %v4812 = vunpack.c.l.bf16 %v4780
      %v4813 = vunpack.c.l.bf16 %v4781
      %v4814 = vunpack.c.l.bf16 %v4782
      %v4815 = vunpack.c.l.bf16 %v4783
      %v4816 = vunpack.c.l.bf16 %v4784
      %v4817 = vunpack.c.l.bf16 %v4785
      %v4818 = vunpack.c.l.bf16 %v4786
      %v4819 = vunpack.c.l.bf16 %v4787
      %v4820 = vunpack.c.l.bf16 %v4788
      %v4821 = vunpack.c.l.bf16 %v4789
      %v4822 = vunpack.c.l.bf16 %v4790
      %v4823 = vunpack.c.l.bf16 %v4791
      %v4824 = vunpack.c.l.bf16 %v4792
      %v4825 = vunpack.c.l.bf16 %v4793
      %v4826 = vunpack.c.l.bf16 %v4794
      %v4827 = vunpack.c.l.bf16 %v4795
      %v4828 = vld [vmem:[%s4] sm:$0x1]
      %v4830 = vperm.slane %v4828, 0
      %v4992 = vunpack.c.l.b16 %v4460
      %v4993 = vunpack.c.h.b16 %v4460
      %v4994 = vunpack.c.l.b16 %v4461
      %v4995 = vunpack.c.h.b16 %v4461
      %v4996 = vunpack.c.l.b16 %v4462
      %v4997 = vunpack.c.h.b16 %v4462
      %v4998 = vunpack.c.l.b16 %v4463
      %v4999 = vunpack.c.h.b16 %v4463
      %v5000 = vunpack.c.l.b16 %v4464
      %v5001 = vunpack.c.l.b16 %v4465
      %v5002 = vunpack.c.h.b16 %v4465
      %v5003 = vunpack.c.l.b16 %v4466
      %v5004 = vunpack.c.h.b16 %v4466
      %v5005 = vunpack.c.l.b16 %v4467
      %v5006 = vunpack.c.h.b16 %v4467
      %v5007 = vunpack.c.l.b16 %v4468
      %v5008 = vunpack.c.h.b16 %v4468
      %v5009 = vunpack.c.l.b16 %v4469
      %v5010 = vunpack.c.l.b16 %v4470
      %v5011 = vunpack.c.h.b16 %v4470
      %v5012 = vunpack.c.l.b16 %v4471
      %v5013 = vunpack.c.h.b16 %v4471
      %v5014 = vunpack.c.l.b16 %v4472
      %v5015 = vunpack.c.h.b16 %v4472
      %v5016 = vunpack.c.l.b16 %v4473
      %v5017 = vunpack.c.h.b16 %v4473
      %v5018 = vunpack.c.l.b16 %v4474
      %v5019 = vunpack.c.l.b16 %v4475
      %v5020 = vunpack.c.h.b16 %v4475
      %v5021 = vunpack.c.l.b16 %v4476
      %v5022 = vunpack.c.h.b16 %v4476
      %v5023 = vunpack.c.l.b16 %v4477
      %v5024 = vunpack.c.h.b16 %v4477
      %v5025 = vunpack.c.l.b16 %v4478
      %v5026 = vunpack.c.h.b16 %v4478
      %v5027 = vunpack.c.l.b16 %v4479
      %v5028 = vunpack.c.l.b16 %v4480
      %v5029 = vunpack.c.h.b16 %v4480
      %v5030 = vunpack.c.l.b16 %v4481
      %v5031 = vunpack.c.h.b16 %v4481
      %v5032 = vunpack.c.l.b16 %v4482
      %v5033 = vunpack.c.h.b16 %v4482
      %v5034 = vunpack.c.l.b16 %v4483
      %v5035 = vunpack.c.h.b16 %v4483
      %v5036 = vunpack.c.l.b16 %v4484
      %v5037 = vunpack.c.l.b16 %v4485
      %v5038 = vunpack.c.h.b16 %v4485
      %v5039 = vunpack.c.l.b16 %v4486
      %v5040 = vunpack.c.h.b16 %v4486
      %v5041 = vunpack.c.l.b16 %v4487
      %v5042 = vunpack.c.h.b16 %v4487
      %v5043 = vunpack.c.l.b16 %v4488
      %v5044 = vunpack.c.h.b16 %v4488
      %v5045 = vunpack.c.l.b16 %v4489
      %v5046 = vunpack.c.l.b16 %v4490
      %v5047 = vunpack.c.h.b16 %v4490
      %v5048 = vunpack.c.l.b16 %v4491
      %v5049 = vunpack.c.h.b16 %v4491
      %v5050 = vunpack.c.l.b16 %v4492
      %v5051 = vunpack.c.h.b16 %v4492
      %v5052 = vunpack.c.l.b16 %v4493
      %v5053 = vunpack.c.h.b16 %v4493
      %v5054 = vunpack.c.l.b16 %v4494
      %v5055 = vunpack.c.l.b16 %v4495
      %v5056 = vunpack.c.h.b16 %v4495
      %v5057 = vunpack.c.l.b16 %v4496
      %v5058 = vunpack.c.h.b16 %v4496
      %v5059 = vunpack.c.l.b16 %v4497
      %v5060 = vunpack.c.h.b16 %v4497
      %v5061 = vunpack.c.l.b16 %v4498
      %v5062 = vunpack.c.h.b16 %v4498
      %v5063 = vunpack.c.l.b16 %v4499
      %v5064 = vunpack.c.l.b16 %v4500
      %v5065 = vunpack.c.h.b16 %v4500
      %v5066 = vunpack.c.l.b16 %v4501
      %v5067 = vunpack.c.h.b16 %v4501
      %v5068 = vunpack.c.l.b16 %v4502
      %v5069 = vunpack.c.h.b16 %v4502
      %v5070 = vunpack.c.l.b16 %v4503
      %v5071 = vunpack.c.h.b16 %v4503
      %v5072 = vunpack.c.l.b16 %v4504
      %v5073 = vunpack.c.l.b16 %v4505
      %v5074 = vunpack.c.h.b16 %v4505
      %v5075 = vunpack.c.l.b16 %v4506
      %v5076 = vunpack.c.h.b16 %v4506
      %v5077 = vunpack.c.l.b16 %v4507
      %v5078 = vunpack.c.h.b16 %v4507
      %v5079 = vunpack.c.l.b16 %v4508
      %v5080 = vunpack.c.h.b16 %v4508
      %v5081 = vunpack.c.l.b16 %v4509
      %v5082 = vunpack.c.l.b16 %v4510
      %v5083 = vunpack.c.h.b16 %v4510
      %v5084 = vunpack.c.l.b16 %v4511
      %v5085 = vunpack.c.h.b16 %v4511
      %v5086 = vunpack.c.l.b16 %v4512
      %v5087 = vunpack.c.h.b16 %v4512
      %v5088 = vunpack.c.l.b16 %v4513
      %v5089 = vunpack.c.h.b16 %v4513
      %v5090 = vunpack.c.l.b16 %v4514
      %v5091 = vunpack.c.l.b16 %v4515
      %v5092 = vunpack.c.h.b16 %v4515
      %v5093 = vunpack.c.l.b16 %v4516
      %v5094 = vunpack.c.h.b16 %v4516
      %v5095 = vunpack.c.l.b16 %v4517
      %v5096 = vunpack.c.h.b16 %v4517
      %v5097 = vunpack.c.l.b16 %v4518
      %v5098 = vunpack.c.h.b16 %v4518
      %v5099 = vunpack.c.l.b16 %v4519
      %v5100 = vunpack.c.l.b16 %v4520
      %v5101 = vunpack.c.h.b16 %v4520
      %v5102 = vunpack.c.l.b16 %v4521
      %v5103 = vunpack.c.h.b16 %v4521
      %v5104 = vunpack.c.l.b16 %v4522
      %v5105 = vunpack.c.h.b16 %v4522
      %v5106 = vunpack.c.l.b16 %v4523
      %v5107 = vunpack.c.h.b16 %v4523
      %v5108 = vunpack.c.l.b16 %v4524
      %v5109 = vunpack.c.l.b16 %v4525
      %v5110 = vunpack.c.h.b16 %v4525
      %v5111 = vunpack.c.l.b16 %v4526
      %v5112 = vunpack.c.h.b16 %v4526
      %v5113 = vunpack.c.l.b16 %v4527
      %v5114 = vunpack.c.h.b16 %v4527
      %v5115 = vunpack.c.l.b16 %v4528
      %v5116 = vunpack.c.h.b16 %v4528
      %v5117 = vunpack.c.l.b16 %v4529
      %v5118 = vunpack.c.l.b16 %v4530
      %v5119 = vunpack.c.h.b16 %v4530
      %v5120 = vunpack.c.l.b16 %v4531
      %v5121 = vunpack.c.h.b16 %v4531
      %v5122 = vunpack.c.l.b16 %v4532
      %v5123 = vunpack.c.h.b16 %v4532
      %v5124 = vunpack.c.l.b16 %v4533
      %v5125 = vunpack.c.h.b16 %v4533
      %v5126 = vunpack.c.l.b16 %v4534
      %v5127 = vunpack.c.l.b16 %v4535
      %v5128 = vunpack.c.h.b16 %v4535
      %v5129 = vunpack.c.l.b16 %v4536
      %v5130 = vunpack.c.h.b16 %v4536
      %v5131 = vunpack.c.l.b16 %v4537
      %v5132 = vunpack.c.h.b16 %v4537
      %v5133 = vunpack.c.l.b16 %v4538
      %v5134 = vunpack.c.h.b16 %v4538
      %v5135 = vunpack.c.l.b16 %v4539
      %v5136 = vunpack.c.l.b16 %v4540
      %v5137 = vunpack.c.h.b16 %v4540
      %v5138 = vunpack.c.l.b16 %v4541
      %v5139 = vunpack.c.h.b16 %v4541
      %v5140 = vunpack.c.l.b16 %v4542
      %v5141 = vunpack.c.h.b16 %v4542
      %v5142 = vunpack.c.l.b16 %v4543
      %v5143 = vunpack.c.h.b16 %v4543
      %v5144 = vunpack.c.l.b16 %v4544
      %v5145 = vunpack.c.l.b16 %v4545
      %v5146 = vunpack.c.h.b16 %v4545
      %v5147 = vunpack.c.l.b16 %v4546
      %v5148 = vunpack.c.h.b16 %v4546
      %v5149 = vunpack.c.l.b16 %v4547
      %v5150 = vunpack.c.h.b16 %v4547
      %v5151 = vunpack.c.l.b16 %v4548
      %v5152 = vunpack.c.h.b16 %v4548
      %v5153 = vunpack.c.l.b16 %v4549
      %v5154 = vunpack.c.l.b16 %v4550
      %v5155 = vunpack.c.h.b16 %v4550
      %v5156 = vunpack.c.l.b16 %v4551
      %v5157 = vunpack.c.h.b16 %v4551
      %v5158 = vunpack.c.l.b16 %v4552
      %v5159 = vunpack.c.h.b16 %v4552
      %v5160 = vunpack.c.l.b16 %v4553
      %v5161 = vunpack.c.h.b16 %v4553
      %v5162 = vunpack.c.l.b16 %v4554
      %v5163 = vunpack.c.l.b16 %v4555
      %v5164 = vunpack.c.h.b16 %v4555
      %v5165 = vunpack.c.l.b16 %v4556
      %v5166 = vunpack.c.h.b16 %v4556
      %v5167 = vunpack.c.l.b16 %v4557
      %v5168 = vunpack.c.h.b16 %v4557
      %v5169 = vunpack.c.l.b16 %v4558
      %v5170 = vunpack.c.h.b16 %v4558
      %v5171 = vunpack.c.l.b16 %v4559
      %v5172 = vunpack.c.l.b16 %v4560
      %v5173 = vunpack.c.h.b16 %v4560
      %v5174 = vunpack.c.l.b16 %v4561
      %v5175 = vunpack.c.h.b16 %v4561
      %v5176 = vunpack.c.l.b16 %v4562
      %v5177 = vunpack.c.h.b16 %v4562
      %v5178 = vunpack.c.l.b16 %v4563
      %v5179 = vunpack.c.h.b16 %v4563
      %v5180 = vunpack.c.l.b16 %v4564
      %v5181 = vunpack.c.l.b16 %v4565
      %v5182 = vunpack.c.h.b16 %v4565
      %v5183 = vunpack.c.l.b16 %v4566
      %v5184 = vunpack.c.h.b16 %v4566
      %v5185 = vunpack.c.l.b16 %v4567
      %v5186 = vunpack.c.h.b16 %v4567
      %v5187 = vunpack.c.l.b16 %v4568
      %v5188 = vunpack.c.h.b16 %v4568
      %v5189 = vunpack.c.l.b16 %v4569
      %v5190 = vunpack.c.l.b16 %v4570
      %v5191 = vunpack.c.h.b16 %v4570
      %v5192 = vunpack.c.l.b16 %v4571
      %v5193 = vunpack.c.h.b16 %v4571
      %v5194 = vunpack.c.l.b16 %v4572
      %v5195 = vunpack.c.h.b16 %v4572
      %v5196 = vunpack.c.l.b16 %v4573
      %v5197 = vunpack.c.h.b16 %v4573
      %v5198 = vunpack.c.l.b16 %v4574
      %v5199 = vunpack.c.l.b16 %v4575
      %v5200 = vunpack.c.h.b16 %v4575
      %v5201 = vunpack.c.l.b16 %v4576
      %v5202 = vunpack.c.h.b16 %v4576
      %v5203 = vunpack.c.l.b16 %v4577
      %v5204 = vunpack.c.h.b16 %v4577
      %v5205 = vunpack.c.l.b16 %v4578
      %v5206 = vunpack.c.h.b16 %v4578
      %v5207 = vunpack.c.l.b16 %v4579
      %v5208 = vunpack.c.l.b16 %v4580
      %v5209 = vunpack.c.h.b16 %v4580
      %v5210 = vunpack.c.l.b16 %v4581
      %v5211 = vunpack.c.h.b16 %v4581
      %v5212 = vunpack.c.l.b16 %v4582
      %v5213 = vunpack.c.h.b16 %v4582
      %v5214 = vunpack.c.l.b16 %v4583
      %v5215 = vunpack.c.h.b16 %v4583
      %v5216 = vunpack.c.l.b16 %v4584
      %v5217 = vunpack.c.l.b16 %v4585
      %v5218 = vunpack.c.h.b16 %v4585
      %v5219 = vunpack.c.l.b16 %v4586
      %v5220 = vunpack.c.h.b16 %v4586
      %v5221 = vunpack.c.l.b16 %v4587
      %v5222 = vunpack.c.h.b16 %v4587
      %v5223 = vunpack.c.l.b16 %v4588
      %v5224 = vunpack.c.h.b16 %v4588
      %v5225 = vunpack.c.l.b16 %v4589
      %v5226 = vunpack.c.l.b16 %v4590
      %v5227 = vunpack.c.h.b16 %v4590
      %v5228 = vunpack.c.l.b16 %v4591
      %v5229 = vunpack.c.h.b16 %v4591
      %v5230 = vunpack.c.l.b16 %v4592
      %v5231 = vunpack.c.h.b16 %v4592
      %v5232 = vunpack.c.l.b16 %v4593
      %v5233 = vunpack.c.h.b16 %v4593
      %v5234 = vunpack.c.l.b16 %v4594
      %v5235 = vunpack.c.l.b16 %v4595
      %v5236 = vunpack.c.h.b16 %v4595
      %v5237 = vunpack.c.l.b16 %v4596
      %v5238 = vunpack.c.h.b16 %v4596
      %v5239 = vunpack.c.l.b16 %v4597
      %v5240 = vunpack.c.h.b16 %v4597
      %v5241 = vunpack.c.l.b16 %v4598
      %v5242 = vunpack.c.h.b16 %v4598
      %v5243 = vunpack.c.l.b16 %v4599
      %v5244 = vunpack.c.l.b16 %v4600
      %v5245 = vunpack.c.h.b16 %v4600
      %v5246 = vunpack.c.l.b16 %v4601
      %v5247 = vunpack.c.h.b16 %v4601
      %v5248 = vunpack.c.l.b16 %v4602
      %v5249 = vunpack.c.h.b16 %v4602
      %v5250 = vunpack.c.l.b16 %v4603
      %v5251 = vunpack.c.h.b16 %v4603
      %v5252 = vunpack.c.l.b16 %v4604
      %v5253 = vunpack.c.l.b16 %v4605
      %v5254 = vunpack.c.h.b16 %v4605
      %v5255 = vunpack.c.l.b16 %v4606
      %v5256 = vunpack.c.h.b16 %v4606
      %v5257 = vunpack.c.l.b16 %v4607
      %v5258 = vunpack.c.h.b16 %v4607
      %v5259 = vunpack.c.l.b16 %v4608
      %v5260 = vunpack.c.h.b16 %v4608
      %v5261 = vunpack.c.l.b16 %v4609
      %v5262 = vunpack.c.l.b16 %v4610
      %v5263 = vunpack.c.h.b16 %v4610
      %v5264 = vunpack.c.l.b16 %v4611
      %v5265 = vunpack.c.h.b16 %v4611
      %v5266 = vunpack.c.l.b16 %v4612
      %v5267 = vunpack.c.h.b16 %v4612
      %v5268 = vunpack.c.l.b16 %v4613
      %v5269 = vunpack.c.h.b16 %v4613
      %v5270 = vunpack.c.l.b16 %v4614
      %v5271 = vunpack.c.l.b16 %v4615
      %v5272 = vunpack.c.h.b16 %v4615
      %v5273 = vunpack.c.l.b16 %v4616
      %v5274 = vunpack.c.h.b16 %v4616
      %v5275 = vunpack.c.l.b16 %v4617
      %v5276 = vunpack.c.h.b16 %v4617
      %v5277 = vunpack.c.l.b16 %v4618
      %v5278 = vunpack.c.h.b16 %v4618
      %v5279 = vunpack.c.l.b16 %v4619
      %v5280 = vpack.c.b16 %v5001, %v4992
      %v5281 = vpack.c.b16 %v5002, %v4993
      %v5282 = vpack.c.b16 %v5003, %v4994
      %v5283 = vpack.c.b16 %v5004, %v4995
      %v5284 = vpack.c.b16 %v5005, %v4996
      %v5285 = vpack.c.b16 %v5006, %v4997
      %v5286 = vpack.c.b16 %v5007, %v4998
      %v5287 = vpack.c.b16 %v5008, %v4999
      %v5288 = vpack.c.b16 %v5009, %v5000
      %v5289 = vpack.c.b16 %v5019, %v5010
      %v5290 = vpack.c.b16 %v5020, %v5011
      %v5291 = vpack.c.b16 %v5021, %v5012
      %v5292 = vpack.c.b16 %v5022, %v5013
      %v5293 = vpack.c.b16 %v5023, %v5014
      %v5294 = vpack.c.b16 %v5024, %v5015
      %v5295 = vpack.c.b16 %v5025, %v5016
      %v5296 = vpack.c.b16 %v5026, %v5017
      %v5297 = vpack.c.b16 %v5027, %v5018
      %v5298 = vpack.c.b16 %v5037, %v5028
      %v5299 = vpack.c.b16 %v5038, %v5029
      %v5300 = vpack.c.b16 %v5039, %v5030
      %v5301 = vpack.c.b16 %v5040, %v5031
      %v5302 = vpack.c.b16 %v5041, %v5032
      %v5303 = vpack.c.b16 %v5042, %v5033
      %v5304 = vpack.c.b16 %v5043, %v5034
      %v5305 = vpack.c.b16 %v5044, %v5035
      %v5306 = vpack.c.b16 %v5045, %v5036
      %v5307 = vpack.c.b16 %v5055, %v5046
      %v5308 = vpack.c.b16 %v5056, %v5047
      %v5309 = vpack.c.b16 %v5057, %v5048
      %v5310 = vpack.c.b16 %v5058, %v5049
      %v5311 = vpack.c.b16 %v5059, %v5050
      %v5312 = vpack.c.b16 %v5060, %v5051
      %v5313 = vpack.c.b16 %v5061, %v5052
      %v5314 = vpack.c.b16 %v5062, %v5053
      %v5315 = vpack.c.b16 %v5063, %v5054
      %v5316 = vpack.c.b16 %v5073, %v5064
      %v5317 = vpack.c.b16 %v5074, %v5065
      %v5318 = vpack.c.b16 %v5075, %v5066
      %v5319 = vpack.c.b16 %v5076, %v5067
      %v5320 = vpack.c.b16 %v5077, %v5068
      %v5321 = vpack.c.b16 %v5078, %v5069
      %v5322 = vpack.c.b16 %v5079, %v5070
      %v5323 = vpack.c.b16 %v5080, %v5071
      %v5324 = vpack.c.b16 %v5081, %v5072
      %v5325 = vpack.c.b16 %v5091, %v5082
      %v5326 = vpack.c.b16 %v5092, %v5083
      %v5327 = vpack.c.b16 %v5093, %v5084
      %v5328 = vpack.c.b16 %v5094, %v5085
      %v5329 = vpack.c.b16 %v5095, %v5086
      %v5330 = vpack.c.b16 %v5096, %v5087
      %v5331 = vpack.c.b16 %v5097, %v5088
      %v5332 = vpack.c.b16 %v5098, %v5089
      %v5333 = vpack.c.b16 %v5099, %v5090
      %v5334 = vpack.c.b16 %v5109, %v5100
      %v5335 = vpack.c.b16 %v5110, %v5101
      %v5336 = vpack.c.b16 %v5111, %v5102
      %v5337 = vpack.c.b16 %v5112, %v5103
      %v5338 = vpack.c.b16 %v5113, %v5104
      %v5339 = vpack.c.b16 %v5114, %v5105
      %v5340 = vpack.c.b16 %v5115, %v5106
      %v5341 = vpack.c.b16 %v5116, %v5107
      %v5342 = vpack.c.b16 %v5117, %v5108
      %v5343 = vpack.c.b16 %v5127, %v5118
      %v5344 = vpack.c.b16 %v5128, %v5119
      %v5345 = vpack.c.b16 %v5129, %v5120
      %v5346 = vpack.c.b16 %v5130, %v5121
      %v5347 = vpack.c.b16 %v5131, %v5122
      %v5348 = vpack.c.b16 %v5132, %v5123
      %v5349 = vpack.c.b16 %v5133, %v5124
      %v5350 = vpack.c.b16 %v5134, %v5125
      %v5351 = vpack.c.b16 %v5135, %v5126
      %v5352 = vpack.c.b16 %v5145, %v5136
      %v5353 = vpack.c.b16 %v5146, %v5137
      %v5354 = vpack.c.b16 %v5147, %v5138
      %v5355 = vpack.c.b16 %v5148, %v5139
      %v5356 = vpack.c.b16 %v5149, %v5140
      %v5357 = vpack.c.b16 %v5150, %v5141
      %v5358 = vpack.c.b16 %v5151, %v5142
      %v5359 = vpack.c.b16 %v5152, %v5143
      %v5360 = vpack.c.b16 %v5153, %v5144
      %v5361 = vpack.c.b16 %v5163, %v5154
      %v5362 = vpack.c.b16 %v5164, %v5155
      %v5363 = vpack.c.b16 %v5165, %v5156
      %v5364 = vpack.c.b16 %v5166, %v5157
      %v5365 = vpack.c.b16 %v5167, %v5158
      %v5366 = vpack.c.b16 %v5168, %v5159
      %v5367 = vpack.c.b16 %v5169, %v5160
      %v5368 = vpack.c.b16 %v5170, %v5161
      %v5369 = vpack.c.b16 %v5171, %v5162
      %v5370 = vpack.c.b16 %v5181, %v5172
      %v5371 = vpack.c.b16 %v5182, %v5173
      %v5372 = vpack.c.b16 %v5183, %v5174
      %v5373 = vpack.c.b16 %v5184, %v5175
      %v5374 = vpack.c.b16 %v5185, %v5176
      %v5375 = vpack.c.b16 %v5186, %v5177
      %v5376 = vpack.c.b16 %v5187, %v5178
      %v5377 = vpack.c.b16 %v5188, %v5179
      %v5378 = vpack.c.b16 %v5189, %v5180
      %v5379 = vpack.c.b16 %v5199, %v5190
      %v5380 = vpack.c.b16 %v5200, %v5191
      %v5381 = vpack.c.b16 %v5201, %v5192
      %v5382 = vpack.c.b16 %v5202, %v5193
      %v5383 = vpack.c.b16 %v5203, %v5194
      %v5384 = vpack.c.b16 %v5204, %v5195
      %v5385 = vpack.c.b16 %v5205, %v5196
      %v5386 = vpack.c.b16 %v5206, %v5197
      %v5387 = vpack.c.b16 %v5207, %v5198
      %v5388 = vpack.c.b16 %v5217, %v5208
      %v5389 = vpack.c.b16 %v5218, %v5209
      %v5390 = vpack.c.b16 %v5219, %v5210
      %v5391 = vpack.c.b16 %v5220, %v5211
      %v5392 = vpack.c.b16 %v5221, %v5212
      %v5393 = vpack.c.b16 %v5222, %v5213
      %v5394 = vpack.c.b16 %v5223, %v5214
      %v5395 = vpack.c.b16 %v5224, %v5215
      %v5396 = vpack.c.b16 %v5225, %v5216
      %v5397 = vpack.c.b16 %v5235, %v5226
      %v5398 = vpack.c.b16 %v5236, %v5227
      %v5399 = vpack.c.b16 %v5237, %v5228
      %v5400 = vpack.c.b16 %v5238, %v5229
      %v5401 = vpack.c.b16 %v5239, %v5230
      %v5402 = vpack.c.b16 %v5240, %v5231
      %v5403 = vpack.c.b16 %v5241, %v5232
      %v5404 = vpack.c.b16 %v5242, %v5233
      %v5405 = vpack.c.b16 %v5243, %v5234
      %v5406 = vpack.c.b16 %v5253, %v5244
      %v5407 = vpack.c.b16 %v5254, %v5245
      %v5408 = vpack.c.b16 %v5255, %v5246
      %v5409 = vpack.c.b16 %v5256, %v5247
      %v5410 = vpack.c.b16 %v5257, %v5248
      %v5411 = vpack.c.b16 %v5258, %v5249
      %v5412 = vpack.c.b16 %v5259, %v5250
      %v5413 = vpack.c.b16 %v5260, %v5251
      %v5414 = vpack.c.b16 %v5261, %v5252
      %v5415 = vpack.c.b16 %v5271, %v5262
      %v5416 = vpack.c.b16 %v5272, %v5263
      %v5417 = vpack.c.b16 %v5273, %v5264
      %v5418 = vpack.c.b16 %v5274, %v5265
      %v5419 = vpack.c.b16 %v5275, %v5266
      %v5420 = vpack.c.b16 %v5276, %v5267
      %v5421 = vpack.c.b16 %v5277, %v5268
      %v5422 = vpack.c.b16 %v5278, %v5269
      %v5423 = vpack.c.b16 %v5279, %v5270
      %v5712 = vunpack.c.l.b16 %v4620
      %v5713 = vunpack.c.l.b16 %v4621
      %v5714 = vunpack.c.l.b16 %v4622
      %v5715 = vunpack.c.l.b16 %v4623
      %v5716 = vunpack.c.l.b16 %v4624
      %v5717 = vunpack.c.l.b16 %v4625
      %v5718 = vunpack.c.l.b16 %v4626
      %v5719 = vunpack.c.l.b16 %v4627
      %v5720 = vunpack.c.l.b16 %v4628
      %v5721 = vunpack.c.l.b16 %v4629
      %v5722 = vunpack.c.l.b16 %v4630
      %v5723 = vunpack.c.l.b16 %v4631
      %v5724 = vunpack.c.l.b16 %v4632
      %v5725 = vunpack.c.l.b16 %v4633
      %v5726 = vunpack.c.l.b16 %v4634
      %v5727 = vunpack.c.l.b16 %v4635
      %v5728 = vunpack.c.l.b16 %v4636
      %v5729 = vunpack.c.l.b16 %v4637
      %v5730 = vunpack.c.l.b16 %v4638
      %v5731 = vunpack.c.l.b16 %v4639
      %v5732 = vunpack.c.l.b16 %v4640
      %v5733 = vunpack.c.l.b16 %v4641
      %v5734 = vunpack.c.l.b16 %v4642
      %v5735 = vunpack.c.l.b16 %v4643
      %v5736 = vunpack.c.l.b16 %v4644
      %v5737 = vunpack.c.l.b16 %v4645
      %v5738 = vunpack.c.l.b16 %v4646
      %v5739 = vunpack.c.l.b16 %v4647
      %v5740 = vunpack.c.l.b16 %v4648
      %v5741 = vunpack.c.l.b16 %v4649
      %v5742 = vunpack.c.l.b16 %v4650
      %v5743 = vunpack.c.l.b16 %v4651
      %v5744 = vunpack.c.l.b16 %v4652
      %v5745 = vunpack.c.l.b16 %v4653
      %v5746 = vunpack.c.l.b16 %v4654
      %v5747 = vunpack.c.l.b16 %v4655
      %v5748 = vunpack.c.l.b16 %v4656
      %v5749 = vunpack.c.l.b16 %v4657
      %v5750 = vunpack.c.l.b16 %v4658
      %v5751 = vunpack.c.l.b16 %v4659
      %v5752 = vunpack.c.l.b16 %v4660
      %v5753 = vunpack.c.l.b16 %v4661
      %v5754 = vunpack.c.l.b16 %v4662
      %v5755 = vunpack.c.l.b16 %v4663
      %v5756 = vunpack.c.l.b16 %v4664
      %v5757 = vunpack.c.l.b16 %v4665
      %v5758 = vunpack.c.l.b16 %v4666
      %v5759 = vunpack.c.l.b16 %v4667
      %v5760 = vunpack.c.l.b16 %v4668
      %v5761 = vunpack.c.l.b16 %v4669
      %v5762 = vunpack.c.l.b16 %v4670
      %v5763 = vunpack.c.l.b16 %v4671
      %v5764 = vunpack.c.l.b16 %v4672
      %v5765 = vunpack.c.l.b16 %v4673
      %v5766 = vunpack.c.l.b16 %v4674
      %v5767 = vunpack.c.l.b16 %v4675
      %v5768 = vunpack.c.l.b16 %v4676
      %v5769 = vunpack.c.l.b16 %v4677
      %v5770 = vunpack.c.l.b16 %v4678
      %v5771 = vunpack.c.l.b16 %v4679
      %v5772 = vunpack.c.l.b16 %v4680
      %v5773 = vunpack.c.l.b16 %v4681
      %v5774 = vunpack.c.l.b16 %v4682
      %v5775 = vunpack.c.l.b16 %v4683
      %v5776 = vunpack.c.l.b16 %v4684
      %v5777 = vunpack.c.l.b16 %v4685
      %v5778 = vunpack.c.l.b16 %v4686
      %v5779 = vunpack.c.l.b16 %v4687
      %v5780 = vunpack.c.l.b16 %v4688
      %v5781 = vunpack.c.l.b16 %v4689
      %v5782 = vunpack.c.l.b16 %v4690
      %v5783 = vunpack.c.l.b16 %v4691
      %v5784 = vunpack.c.l.b16 %v4692
      %v5785 = vunpack.c.l.b16 %v4693
      %v5786 = vunpack.c.l.b16 %v4694
      %v5787 = vunpack.c.l.b16 %v4695
      %v5788 = vunpack.c.l.b16 %v4696
      %v5789 = vunpack.c.l.b16 %v4697
      %v5790 = vunpack.c.l.b16 %v4698
      %v5791 = vunpack.c.l.b16 %v4699
      %v5792 = vunpack.c.l.b16 %v4700
      %v5793 = vunpack.c.l.b16 %v4701
      %v5794 = vunpack.c.l.b16 %v4702
      %v5795 = vunpack.c.l.b16 %v4703
      %v5796 = vunpack.c.l.b16 %v4704
      %v5797 = vunpack.c.l.b16 %v4705
      %v5798 = vunpack.c.l.b16 %v4706
      %v5799 = vunpack.c.l.b16 %v4707
      %v5800 = vunpack.c.l.b16 %v4708
      %v5801 = vunpack.c.l.b16 %v4709
      %v5802 = vunpack.c.l.b16 %v4710
      %v5803 = vunpack.c.l.b16 %v4711
      %v5804 = vunpack.c.l.b16 %v4712
      %v5805 = vunpack.c.l.b16 %v4713
      %v5806 = vunpack.c.l.b16 %v4714
      %v5807 = vunpack.c.l.b16 %v4715
      %v5808 = vunpack.c.l.b16 %v4716
      %v5809 = vunpack.c.l.b16 %v4717
      %v5810 = vunpack.c.l.b16 %v4718
      %v5811 = vunpack.c.l.b16 %v4719
      %v5812 = vunpack.c.l.b16 %v4720
      %v5813 = vunpack.c.l.b16 %v4721
      %v5814 = vunpack.c.l.b16 %v4722
      %v5815 = vunpack.c.l.b16 %v4723
      %v5816 = vunpack.c.l.b16 %v4724
      %v5817 = vunpack.c.l.b16 %v4725
      %v5818 = vunpack.c.l.b16 %v4726
      %v5819 = vunpack.c.l.b16 %v4727
      %v5820 = vunpack.c.l.b16 %v4728
      %v5821 = vunpack.c.l.b16 %v4729
      %v5822 = vunpack.c.l.b16 %v4730
      %v5823 = vunpack.c.l.b16 %v4731
      %v5824 = vunpack.c.l.b16 %v4732
      %v5825 = vunpack.c.l.b16 %v4733
      %v5826 = vunpack.c.l.b16 %v4734
      %v5827 = vunpack.c.l.b16 %v4735
      %v5828 = vunpack.c.l.b16 %v4736
      %v5829 = vunpack.c.l.b16 %v4737
      %v5830 = vunpack.c.l.b16 %v4738
      %v5831 = vunpack.c.l.b16 %v4739
      %v5832 = vunpack.c.l.b16 %v4740
      %v5833 = vunpack.c.l.b16 %v4741
      %v5834 = vunpack.c.l.b16 %v4742
      %v5835 = vunpack.c.l.b16 %v4743
      %v5836 = vunpack.c.l.b16 %v4744
      %v5837 = vunpack.c.l.b16 %v4745
      %v5838 = vunpack.c.l.b16 %v4746
      %v5839 = vunpack.c.l.b16 %v4747
      %v5840 = vunpack.c.l.b16 %v4748
      %v5841 = vunpack.c.l.b16 %v4749
      %v5842 = vunpack.c.l.b16 %v4750
      %v5843 = vunpack.c.l.b16 %v4751
      %v5844 = vunpack.c.l.b16 %v4752
      %v5845 = vunpack.c.l.b16 %v4753
      %v5846 = vunpack.c.l.b16 %v4754
      %v5847 = vunpack.c.l.b16 %v4755
      %v5848 = vunpack.c.l.b16 %v4756
      %v5849 = vunpack.c.l.b16 %v4757
      %v5850 = vunpack.c.l.b16 %v4758
      %v5851 = vunpack.c.l.b16 %v4759
      %v5852 = vunpack.c.l.b16 %v4760
      %v5853 = vunpack.c.l.b16 %v4761
      %v5854 = vunpack.c.l.b16 %v4762
      %v5855 = vunpack.c.l.b16 %v4763
      %v5856 = vpack.c.b16 %v5713, %v5712
      %v5857 = vpack.c.b16 %v5715, %v5714
      %v5858 = vpack.c.b16 %v5717, %v5716
      %v5859 = vpack.c.b16 %v5719, %v5718
      %v5860 = vpack.c.b16 %v5721, %v5720
      %v5861 = vpack.c.b16 %v5723, %v5722
      %v5862 = vpack.c.b16 %v5725, %v5724
      %v5863 = vpack.c.b16 %v5727, %v5726
      %v5864 = vpack.c.b16 %v5729, %v5728
      %v5865 = vpack.c.b16 %v5731, %v5730
      %v5866 = vpack.c.b16 %v5733, %v5732
      %v5867 = vpack.c.b16 %v5735, %v5734
      %v5868 = vpack.c.b16 %v5737, %v5736
      %v5869 = vpack.c.b16 %v5739, %v5738
      %v5870 = vpack.c.b16 %v5741, %v5740
      %v5871 = vpack.c.b16 %v5743, %v5742
      %v5872 = vpack.c.b16 %v5745, %v5744
      %v5873 = vpack.c.b16 %v5747, %v5746
      %v5874 = vpack.c.b16 %v5749, %v5748
      %v5875 = vpack.c.b16 %v5751, %v5750
      %v5876 = vpack.c.b16 %v5753, %v5752
      %v5877 = vpack.c.b16 %v5755, %v5754
      %v5878 = vpack.c.b16 %v5757, %v5756
      %v5879 = vpack.c.b16 %v5759, %v5758
      %v5880 = vpack.c.b16 %v5761, %v5760
      %v5881 = vpack.c.b16 %v5763, %v5762
      %v5882 = vpack.c.b16 %v5765, %v5764
      %v5883 = vpack.c.b16 %v5767, %v5766
      %v5884 = vpack.c.b16 %v5769, %v5768
      %v5885 = vpack.c.b16 %v5771, %v5770
      %v5886 = vpack.c.b16 %v5773, %v5772
      %v5887 = vpack.c.b16 %v5775, %v5774
      %v5888 = vpack.c.b16 %v5777, %v5776
      %v5889 = vpack.c.b16 %v5779, %v5778
      %v5890 = vpack.c.b16 %v5781, %v5780
      %v5891 = vpack.c.b16 %v5783, %v5782
      %v5892 = vpack.c.b16 %v5785, %v5784
      %v5893 = vpack.c.b16 %v5787, %v5786
      %v5894 = vpack.c.b16 %v5789, %v5788
      %v5895 = vpack.c.b16 %v5791, %v5790
      %v5896 = vpack.c.b16 %v5793, %v5792
      %v5897 = vpack.c.b16 %v5795, %v5794
      %v5898 = vpack.c.b16 %v5797, %v5796
      %v5899 = vpack.c.b16 %v5799, %v5798
      %v5900 = vpack.c.b16 %v5801, %v5800
      %v5901 = vpack.c.b16 %v5803, %v5802
      %v5902 = vpack.c.b16 %v5805, %v5804
      %v5903 = vpack.c.b16 %v5807, %v5806
      %v5904 = vpack.c.b16 %v5809, %v5808
      %v5905 = vpack.c.b16 %v5811, %v5810
      %v5906 = vpack.c.b16 %v5813, %v5812
      %v5907 = vpack.c.b16 %v5815, %v5814
      %v5908 = vpack.c.b16 %v5817, %v5816
      %v5909 = vpack.c.b16 %v5819, %v5818
      %v5910 = vpack.c.b16 %v5821, %v5820
      %v5911 = vpack.c.b16 %v5823, %v5822
      %v5912 = vpack.c.b16 %v5825, %v5824
      %v5913 = vpack.c.b16 %v5827, %v5826
      %v5914 = vpack.c.b16 %v5829, %v5828
      %v5915 = vpack.c.b16 %v5831, %v5830
      %v5916 = vpack.c.b16 %v5833, %v5832
      %v5917 = vpack.c.b16 %v5835, %v5834
      %v5918 = vpack.c.b16 %v5837, %v5836
      %v5919 = vpack.c.b16 %v5839, %v5838
      %v5920 = vpack.c.b16 %v5841, %v5840
      %v5921 = vpack.c.b16 %v5843, %v5842
      %v5922 = vpack.c.b16 %v5845, %v5844
      %v5923 = vpack.c.b16 %v5847, %v5846
      %v5924 = vpack.c.b16 %v5849, %v5848
      %v5925 = vpack.c.b16 %v5851, %v5850
      %v5926 = vpack.c.b16 %v5853, %v5852
      %v5927 = vpack.c.b16 %v5855, %v5854
      %6000 = vmatpush.bf16.msra.mxu0 %v5863
      %6001 = vmatpush.bf16.msra.mxu0 %v5862
      %6002 = vmatpush.bf16.msra.mxu0 %v5861
      %6003 = vmatpush.bf16.msra.mxu0 %v5860
      %6004 = vmatpush.bf16.msra.mxu0 %v5859
      %6005 = vmatpush.bf16.msra.mxu0 %v5858
      %6006 = vmatpush.bf16.msra.mxu0 %v5857
      %6007 = vmatpush.bf16.msra.mxu0 %v5856
      %6008 = vmatmul.bf16.gmra.mxu0 %v5280
      %v6009 = vpop.f32.mrf.mxu0
      %v6010 = vadd.f32 %v4830, %v6009
      %v6011 = vpop.f32.mrf.mxu0
      %v6012 = vadd.f32 %v4830, %v6011
      %6013 = vmatmul.bf16.gmra.mxu0 %v5289
      %v6014 = vpop.f32.mrf.mxu0
      %v6015 = vadd.f32 %v4830, %v6014
      %v6016 = vpop.f32.mrf.mxu0
      %v6017 = vadd.f32 %v4830, %v6016
      %6018 = vmatmul.bf16.gmra.mxu0 %v5298
      %v6019 = vpop.f32.mrf.mxu0
      %v6020 = vadd.f32 %v4830, %v6019
      %v6021 = vpop.f32.mrf.mxu0
      %v6022 = vadd.f32 %v4830, %v6021
      %6023 = vmatmul.bf16.gmra.mxu0 %v5307
      %v6024 = vpop.f32.mrf.mxu0
      %v6025 = vadd.f32 %v4830, %v6024
      %v6026 = vpop.f32.mrf.mxu0
      %v6027 = vadd.f32 %v4830, %v6026
      %6028 = vmatmul.bf16.gmra.mxu0 %v5316
      %v6029 = vpop.f32.mrf.mxu0
      %v6030 = vadd.f32 %v4830, %v6029
      %v6031 = vpop.f32.mrf.mxu0
      %v6032 = vadd.f32 %v4830, %v6031
      %6033 = vmatmul.bf16.gmra.mxu0 %v5325
      %v6034 = vpop.f32.mrf.mxu0
      %v6035 = vadd.f32 %v4830, %v6034
      %v6036 = vpop.f32.mrf.mxu0
      %v6037 = vadd.f32 %v4830, %v6036
      %6038 = vmatmul.bf16.gmra.mxu0 %v5334
      %v6039 = vpop.f32.mrf.mxu0
      %v6040 = vadd.f32 %v4830, %v6039
      %v6041 = vpop.f32.mrf.mxu0
      %v6042 = vadd.f32 %v4830, %v6041
      %6043 = vmatmul.bf16.gmra.mxu0 %v5343
      %v6044 = vpop.f32.mrf.mxu0
      %v6045 = vadd.f32 %v4830, %v6044
      %v6046 = vpop.f32.mrf.mxu0
      %v6047 = vadd.f32 %v4830, %v6046
      %6048 = vmatmul.bf16.gmra.mxu0 %v5352
      %v6049 = vpop.f32.mrf.mxu0
      %v6050 = vadd.f32 %v4830, %v6049
      %v6051 = vpop.f32.mrf.mxu0
      %v6052 = vadd.f32 %v4830, %v6051
      %6053 = vmatmul.bf16.gmra.mxu0 %v5361
      %v6054 = vpop.f32.mrf.mxu0
      %v6055 = vadd.f32 %v4830, %v6054
      %v6056 = vpop.f32.mrf.mxu0
      %v6057 = vadd.f32 %v4830, %v6056
      %6058 = vmatmul.bf16.gmra.mxu0 %v5370
      %v6059 = vpop.f32.mrf.mxu0
      %v6060 = vadd.f32 %v4830, %v6059
      %v6061 = vpop.f32.mrf.mxu0
      %v6062 = vadd.f32 %v4830, %v6061
      %6063 = vmatmul.bf16.gmra.mxu0 %v5379
      %v6064 = vpop.f32.mrf.mxu0
      %v6065 = vadd.f32 %v4830, %v6064
      %v6066 = vpop.f32.mrf.mxu0
      %v6067 = vadd.f32 %v4830, %v6066
      %6068 = vmatmul.bf16.gmra.mxu0 %v5388
      %v6069 = vpop.f32.mrf.mxu0
      %v6070 = vadd.f32 %v4830, %v6069
      %v6071 = vpop.f32.mrf.mxu0
      %v6072 = vadd.f32 %v4830, %v6071
      %6073 = vmatmul.bf16.gmra.mxu0 %v5397
      %v6074 = vpop.f32.mrf.mxu0
      %v6075 = vadd.f32 %v4830, %v6074
      %v6076 = vpop.f32.mrf.mxu0
      %v6077 = vadd.f32 %v4830, %v6076
      %6078 = vmatmul.bf16.gmra.mxu0 %v5406
      %v6079 = vpop.f32.mrf.mxu0
      %v6080 = vadd.f32 %v4830, %v6079
      %v6081 = vpop.f32.mrf.mxu0
      %v6082 = vadd.f32 %v4830, %v6081
      %6083 = vmatmul.bf16.gmra.mxu0 %v5415
      %v6084 = vpop.f32.mrf.mxu0
      %v6085 = vadd.f32 %v4830, %v6084
      %v6086 = vpop.f32.mrf.mxu0
      %v6087 = vadd.f32 %v4830, %v6086
      %6088 = vdwg.mxu0
      %6089 = vmatpush.bf16.msra.mxu0 %v5871
      %6090 = vmatpush.bf16.msra.mxu0 %v5870
      %6091 = vmatpush.bf16.msra.mxu0 %v5869
      %6092 = vmatpush.bf16.msra.mxu0 %v5868
      %6093 = vmatpush.bf16.msra.mxu0 %v5867
      %6094 = vmatpush.bf16.msra.mxu0 %v5866
      %6095 = vmatpush.bf16.msra.mxu0 %v5865
      %6096 = vmatpush.bf16.msra.mxu0 %v5864
      %6097 = vmatmul.bf16.gmra.mxu0 %v5281
      %v6098 = vpop.f32.mrf.mxu0
      %v6099 = vadd.f32 %v6010, %v6098
      %v6100 = vpop.f32.mrf.mxu0
      %v6101 = vadd.f32 %v6012, %v6100
      %6102 = vmatmul.bf16.gmra.mxu0 %v5290
      %v6103 = vpop.f32.mrf.mxu0
      %v6104 = vadd.f32 %v6015, %v6103
      %v6105 = vpop.f32.mrf.mxu0
      %v6106 = vadd.f32 %v6017, %v6105
      %6107 = vmatmul.bf16.gmra.mxu0 %v5299
      %v6108 = vpop.f32.mrf.mxu0
      %v6109 = vadd.f32 %v6020, %v6108
      %v6110 = vpop.f32.mrf.mxu0
      %v6111 = vadd.f32 %v6022, %v6110
      %6112 = vmatmul.bf16.gmra.mxu0 %v5308
      %v6113 = vpop.f32.mrf.mxu0
      %v6114 = vadd.f32 %v6025, %v6113
      %v6115 = vpop.f32.mrf.mxu0
      %v6116 = vadd.f32 %v6027, %v6115
      %6117 = vmatmul.bf16.gmra.mxu0 %v5317
      %v6118 = vpop.f32.mrf.mxu0
      %v6119 = vadd.f32 %v6030, %v6118
      %v6120 = vpop.f32.mrf.mxu0
      %v6121 = vadd.f32 %v6032, %v6120
      %6122 = vmatmul.bf16.gmra.mxu0 %v5326
      %v6123 = vpop.f32.mrf.mxu0
      %v6124 = vadd.f32 %v6035, %v6123
      %v6125 = vpop.f32.mrf.mxu0
      %v6126 = vadd.f32 %v6037, %v6125
      %6127 = vmatmul.bf16.gmra.mxu0 %v5335
      %v6128 = vpop.f32.mrf.mxu0
      %v6129 = vadd.f32 %v6040, %v6128
      %v6130 = vpop.f32.mrf.mxu0
      %v6131 = vadd.f32 %v6042, %v6130
      %6132 = vmatmul.bf16.gmra.mxu0 %v5344
      %v6133 = vpop.f32.mrf.mxu0
      %v6134 = vadd.f32 %v6045, %v6133
      %v6135 = vpop.f32.mrf.mxu0
      %v6136 = vadd.f32 %v6047, %v6135
      %6137 = vmatmul.bf16.gmra.mxu0 %v5353
      %v6138 = vpop.f32.mrf.mxu0
      %v6139 = vadd.f32 %v6050, %v6138
      %v6140 = vpop.f32.mrf.mxu0
      %v6141 = vadd.f32 %v6052, %v6140
      %6142 = vmatmul.bf16.gmra.mxu0 %v5362
      %v6143 = vpop.f32.mrf.mxu0
      %v6144 = vadd.f32 %v6055, %v6143
      %v6145 = vpop.f32.mrf.mxu0
      %v6146 = vadd.f32 %v6057, %v6145
      %6147 = vmatmul.bf16.gmra.mxu0 %v5371
      %v6148 = vpop.f32.mrf.mxu0
      %v6149 = vadd.f32 %v6060, %v6148
      %v6150 = vpop.f32.mrf.mxu0
      %v6151 = vadd.f32 %v6062, %v6150
      %6152 = vmatmul.bf16.gmra.mxu0 %v5380
      %v6153 = vpop.f32.mrf.mxu0
      %v6154 = vadd.f32 %v6065, %v6153
      %v6155 = vpop.f32.mrf.mxu0
      %v6156 = vadd.f32 %v6067, %v6155
      %6157 = vmatmul.bf16.gmra.mxu0 %v5389
      %v6158 = vpop.f32.mrf.mxu0
      %v6159 = vadd.f32 %v6070, %v6158
      %v6160 = vpop.f32.mrf.mxu0
      %v6161 = vadd.f32 %v6072, %v6160
      %6162 = vmatmul.bf16.gmra.mxu0 %v5398
      %v6163 = vpop.f32.mrf.mxu0
      %v6164 = vadd.f32 %v6075, %v6163
      %v6165 = vpop.f32.mrf.mxu0
      %v6166 = vadd.f32 %v6077, %v6165
      %6167 = vmatmul.bf16.gmra.mxu0 %v5407
      %v6168 = vpop.f32.mrf.mxu0
      %v6169 = vadd.f32 %v6080, %v6168
      %v6170 = vpop.f32.mrf.mxu0
      %v6171 = vadd.f32 %v6082, %v6170
      %6172 = vmatmul.bf16.gmra.mxu0 %v5416
      %v6173 = vpop.f32.mrf.mxu0
      %v6174 = vadd.f32 %v6085, %v6173
      %v6175 = vpop.f32.mrf.mxu0
      %v6176 = vadd.f32 %v6087, %v6175
      %6177 = vdwg.mxu0
      %6178 = vmatpush.bf16.msra.mxu0 %v5879
      %6179 = vmatpush.bf16.msra.mxu0 %v5878
      %6180 = vmatpush.bf16.msra.mxu0 %v5877
      %6181 = vmatpush.bf16.msra.mxu0 %v5876
      %6182 = vmatpush.bf16.msra.mxu0 %v5875
      %6183 = vmatpush.bf16.msra.mxu0 %v5874
      %6184 = vmatpush.bf16.msra.mxu0 %v5873
      %6185 = vmatpush.bf16.msra.mxu0 %v5872
      %6186 = vmatmul.bf16.gmra.mxu0 %v5282
      %v6187 = vpop.f32.mrf.mxu0
      %v6188 = vadd.f32 %v6099, %v6187
      %v6189 = vpop.f32.mrf.mxu0
      %v6190 = vadd.f32 %v6101, %v6189
      %6191 = vmatmul.bf16.gmra.mxu0 %v5291
      %v6192 = vpop.f32.mrf.mxu0
      %v6193 = vadd.f32 %v6104, %v6192
      %v6194 = vpop.f32.mrf.mxu0
      %v6195 = vadd.f32 %v6106, %v6194
      %6196 = vmatmul.bf16.gmra.mxu0 %v5300
      %v6197 = vpop.f32.mrf.mxu0
      %v6198 = vadd.f32 %v6109, %v6197
      %v6199 = vpop.f32.mrf.mxu0
      %v6200 = vadd.f32 %v6111, %v6199
      %6201 = vmatmul.bf16.gmra.mxu0 %v5309
      %v6202 = vpop.f32.mrf.mxu0
      %v6203 = vadd.f32 %v6114, %v6202
      %v6204 = vpop.f32.mrf.mxu0
      %v6205 = vadd.f32 %v6116, %v6204
      %6206 = vmatmul.bf16.gmra.mxu0 %v5318
      %v6207 = vpop.f32.mrf.mxu0
      %v6208 = vadd.f32 %v6119, %v6207
      %v6209 = vpop.f32.mrf.mxu0
      %v6210 = vadd.f32 %v6121, %v6209
      %6211 = vmatmul.bf16.gmra.mxu0 %v5327
      %v6212 = vpop.f32.mrf.mxu0
      %v6213 = vadd.f32 %v6124, %v6212
      %v6214 = vpop.f32.mrf.mxu0
      %v6215 = vadd.f32 %v6126, %v6214
      %6216 = vmatmul.bf16.gmra.mxu0 %v5336
      %v6217 = vpop.f32.mrf.mxu0
      %v6218 = vadd.f32 %v6129, %v6217
      %v6219 = vpop.f32.mrf.mxu0
      %v6220 = vadd.f32 %v6131, %v6219
      %6221 = vmatmul.bf16.gmra.mxu0 %v5345
      %v6222 = vpop.f32.mrf.mxu0
      %v6223 = vadd.f32 %v6134, %v6222
      %v6224 = vpop.f32.mrf.mxu0
      %v6225 = vadd.f32 %v6136, %v6224
      %6226 = vmatmul.bf16.gmra.mxu0 %v5354
      %v6227 = vpop.f32.mrf.mxu0
      %v6228 = vadd.f32 %v6139, %v6227
      %v6229 = vpop.f32.mrf.mxu0
      %v6230 = vadd.f32 %v6141, %v6229
      %6231 = vmatmul.bf16.gmra.mxu0 %v5363
      %v6232 = vpop.f32.mrf.mxu0
      %v6233 = vadd.f32 %v6144, %v6232
      %v6234 = vpop.f32.mrf.mxu0
      %v6235 = vadd.f32 %v6146, %v6234
      %6236 = vmatmul.bf16.gmra.mxu0 %v5372
      %v6237 = vpop.f32.mrf.mxu0
      %v6238 = vadd.f32 %v6149, %v6237
      %v6239 = vpop.f32.mrf.mxu0
      %v6240 = vadd.f32 %v6151, %v6239
      %6241 = vmatmul.bf16.gmra.mxu0 %v5381
      %v6242 = vpop.f32.mrf.mxu0
      %v6243 = vadd.f32 %v6154, %v6242
      %v6244 = vpop.f32.mrf.mxu0
      %v6245 = vadd.f32 %v6156, %v6244
      %6246 = vmatmul.bf16.gmra.mxu0 %v5390
      %v6247 = vpop.f32.mrf.mxu0
      %v6248 = vadd.f32 %v6159, %v6247
      %v6249 = vpop.f32.mrf.mxu0
      %v6250 = vadd.f32 %v6161, %v6249
      %6251 = vmatmul.bf16.gmra.mxu0 %v5399
      %v6252 = vpop.f32.mrf.mxu0
      %v6253 = vadd.f32 %v6164, %v6252
      %v6254 = vpop.f32.mrf.mxu0
      %v6255 = vadd.f32 %v6166, %v6254
      %6256 = vmatmul.bf16.gmra.mxu0 %v5408
      %v6257 = vpop.f32.mrf.mxu0
      %v6258 = vadd.f32 %v6169, %v6257
      %v6259 = vpop.f32.mrf.mxu0
      %v6260 = vadd.f32 %v6171, %v6259
      %6261 = vmatmul.bf16.gmra.mxu0 %v5417
      %v6262 = vpop.f32.mrf.mxu0
      %v6263 = vadd.f32 %v6174, %v6262
      %v6264 = vpop.f32.mrf.mxu0
      %v6265 = vadd.f32 %v6176, %v6264
      %6266 = vdwg.mxu0
      %6267 = vmatpush.bf16.msra.mxu0 %v5887
      %6268 = vmatpush.bf16.msra.mxu0 %v5886
      %6269 = vmatpush.bf16.msra.mxu0 %v5885
      %6270 = vmatpush.bf16.msra.mxu0 %v5884
      %6271 = vmatpush.bf16.msra.mxu0 %v5883
      %6272 = vmatpush.bf16.msra.mxu0 %v5882
      %6273 = vmatpush.bf16.msra.mxu0 %v5881
      %6274 = vmatpush.bf16.msra.mxu0 %v5880
      %6275 = vmatmul.bf16.gmra.mxu0 %v5283
      %v6276 = vpop.f32.mrf.mxu0
      %v6277 = vadd.f32 %v6188, %v6276
      %v6278 = vpop.f32.mrf.mxu0
      %v6279 = vadd.f32 %v6190, %v6278
      %6280 = vmatmul.bf16.gmra.mxu0 %v5292
      %v6281 = vpop.f32.mrf.mxu0
      %v6282 = vadd.f32 %v6193, %v6281
      %v6283 = vpop.f32.mrf.mxu0
      %v6284 = vadd.f32 %v6195, %v6283
      %6285 = vmatmul.bf16.gmra.mxu0 %v5301
      %v6286 = vpop.f32.mrf.mxu0
      %v6287 = vadd.f32 %v6198, %v6286
      %v6288 = vpop.f32.mrf.mxu0
      %v6289 = vadd.f32 %v6200, %v6288
      %6290 = vmatmul.bf16.gmra.mxu0 %v5310
      %v6291 = vpop.f32.mrf.mxu0
      %v6292 = vadd.f32 %v6203, %v6291
      %v6293 = vpop.f32.mrf.mxu0
      %v6294 = vadd.f32 %v6205, %v6293
      %6295 = vmatmul.bf16.gmra.mxu0 %v5319
      %v6296 = vpop.f32.mrf.mxu0
      %v6297 = vadd.f32 %v6208, %v6296
      %v6298 = vpop.f32.mrf.mxu0
      %v6299 = vadd.f32 %v6210, %v6298
      %6300 = vmatmul.bf16.gmra.mxu0 %v5328
      %v6301 = vpop.f32.mrf.mxu0
      %v6302 = vadd.f32 %v6213, %v6301
      %v6303 = vpop.f32.mrf.mxu0
      %v6304 = vadd.f32 %v6215, %v6303
      %6305 = vmatmul.bf16.gmra.mxu0 %v5337
      %v6306 = vpop.f32.mrf.mxu0
      %v6307 = vadd.f32 %v6218, %v6306
      %v6308 = vpop.f32.mrf.mxu0
      %v6309 = vadd.f32 %v6220, %v6308
      %6310 = vmatmul.bf16.gmra.mxu0 %v5346
      %v6311 = vpop.f32.mrf.mxu0
      %v6312 = vadd.f32 %v6223, %v6311
      %v6313 = vpop.f32.mrf.mxu0
      %v6314 = vadd.f32 %v6225, %v6313
      %6315 = vmatmul.bf16.gmra.mxu0 %v5355
      %v6316 = vpop.f32.mrf.mxu0
      %v6317 = vadd.f32 %v6228, %v6316
      %v6318 = vpop.f32.mrf.mxu0
      %v6319 = vadd.f32 %v6230, %v6318
      %6320 = vmatmul.bf16.gmra.mxu0 %v5364
      %v6321 = vpop.f32.mrf.mxu0
      %v6322 = vadd.f32 %v6233, %v6321
      %v6323 = vpop.f32.mrf.mxu0
      %v6324 = vadd.f32 %v6235, %v6323
      %6325 = vmatmul.bf16.gmra.mxu0 %v5373
      %v6326 = vpop.f32.mrf.mxu0
      %v6327 = vadd.f32 %v6238, %v6326
      %v6328 = vpop.f32.mrf.mxu0
      %v6329 = vadd.f32 %v6240, %v6328
      %6330 = vmatmul.bf16.gmra.mxu0 %v5382
      %v6331 = vpop.f32.mrf.mxu0
      %v6332 = vadd.f32 %v6243, %v6331
      %v6333 = vpop.f32.mrf.mxu0
      %v6334 = vadd.f32 %v6245, %v6333
      %6335 = vmatmul.bf16.gmra.mxu0 %v5391
      %v6336 = vpop.f32.mrf.mxu0
      %v6337 = vadd.f32 %v6248, %v6336
      %v6338 = vpop.f32.mrf.mxu0
      %v6339 = vadd.f32 %v6250, %v6338
      %6340 = vmatmul.bf16.gmra.mxu0 %v5400
      %v6341 = vpop.f32.mrf.mxu0
      %v6342 = vadd.f32 %v6253, %v6341
      %v6343 = vpop.f32.mrf.mxu0
      %v6344 = vadd.f32 %v6255, %v6343
      %6345 = vmatmul.bf16.gmra.mxu0 %v5409
      %v6346 = vpop.f32.mrf.mxu0
      %v6347 = vadd.f32 %v6258, %v6346
      %v6348 = vpop.f32.mrf.mxu0
      %v6349 = vadd.f32 %v6260, %v6348
      %6350 = vmatmul.bf16.gmra.mxu0 %v5418
      %v6351 = vpop.f32.mrf.mxu0
      %v6352 = vadd.f32 %v6263, %v6351
      %v6353 = vpop.f32.mrf.mxu0
      %v6354 = vadd.f32 %v6265, %v6353
      %6355 = vdwg.mxu0
      %6356 = vmatpush.bf16.msra.mxu0 %v5895
      %6357 = vmatpush.bf16.msra.mxu0 %v5894
      %6358 = vmatpush.bf16.msra.mxu0 %v5893
      %6359 = vmatpush.bf16.msra.mxu0 %v5892
      %6360 = vmatpush.bf16.msra.mxu0 %v5891
      %6361 = vmatpush.bf16.msra.mxu0 %v5890
      %6362 = vmatpush.bf16.msra.mxu0 %v5889
      %6363 = vmatpush.bf16.msra.mxu0 %v5888
      %6364 = vmatmul.bf16.gmra.mxu0 %v5284
      %v6365 = vpop.f32.mrf.mxu0
      %v6366 = vadd.f32 %v6277, %v6365
      %v6367 = vpop.f32.mrf.mxu0
      %v6368 = vadd.f32 %v6279, %v6367
      %6369 = vmatmul.bf16.gmra.mxu0 %v5293
      %v6370 = vpop.f32.mrf.mxu0
      %v6371 = vadd.f32 %v6282, %v6370
      %v6372 = vpop.f32.mrf.mxu0
      %v6373 = vadd.f32 %v6284, %v6372
      %6374 = vmatmul.bf16.gmra.mxu0 %v5302
      %v6375 = vpop.f32.mrf.mxu0
      %v6376 = vadd.f32 %v6287, %v6375
      %v6377 = vpop.f32.mrf.mxu0
      %v6378 = vadd.f32 %v6289, %v6377
      %6379 = vmatmul.bf16.gmra.mxu0 %v5311
      %v6380 = vpop.f32.mrf.mxu0
      %v6381 = vadd.f32 %v6292, %v6380
      %v6382 = vpop.f32.mrf.mxu0
      %v6383 = vadd.f32 %v6294, %v6382
      %6384 = vmatmul.bf16.gmra.mxu0 %v5320
      %v6385 = vpop.f32.mrf.mxu0
      %v6386 = vadd.f32 %v6297, %v6385
      %v6387 = vpop.f32.mrf.mxu0
      %v6388 = vadd.f32 %v6299, %v6387
      %6389 = vmatmul.bf16.gmra.mxu0 %v5329
      %v6390 = vpop.f32.mrf.mxu0
      %v6391 = vadd.f32 %v6302, %v6390
      %v6392 = vpop.f32.mrf.mxu0
      %v6393 = vadd.f32 %v6304, %v6392
      %6394 = vmatmul.bf16.gmra.mxu0 %v5338
      %v6395 = vpop.f32.mrf.mxu0
      %v6396 = vadd.f32 %v6307, %v6395
      %v6397 = vpop.f32.mrf.mxu0
      %v6398 = vadd.f32 %v6309, %v6397
      %6399 = vmatmul.bf16.gmra.mxu0 %v5347
      %v6400 = vpop.f32.mrf.mxu0
      %v6401 = vadd.f32 %v6312, %v6400
      %v6402 = vpop.f32.mrf.mxu0
      %v6403 = vadd.f32 %v6314, %v6402
      %6404 = vmatmul.bf16.gmra.mxu0 %v5356
      %v6405 = vpop.f32.mrf.mxu0
      %v6406 = vadd.f32 %v6317, %v6405
      %v6407 = vpop.f32.mrf.mxu0
      %v6408 = vadd.f32 %v6319, %v6407
      %6409 = vmatmul.bf16.gmra.mxu0 %v5365
      %v6410 = vpop.f32.mrf.mxu0
      %v6411 = vadd.f32 %v6322, %v6410
      %v6412 = vpop.f32.mrf.mxu0
      %v6413 = vadd.f32 %v6324, %v6412
      %6414 = vmatmul.bf16.gmra.mxu0 %v5374
      %v6415 = vpop.f32.mrf.mxu0
      %v6416 = vadd.f32 %v6327, %v6415
      %v6417 = vpop.f32.mrf.mxu0
      %v6418 = vadd.f32 %v6329, %v6417
      %6419 = vmatmul.bf16.gmra.mxu0 %v5383
      %v6420 = vpop.f32.mrf.mxu0
      %v6421 = vadd.f32 %v6332, %v6420
      %v6422 = vpop.f32.mrf.mxu0
      %v6423 = vadd.f32 %v6334, %v6422
      %6424 = vmatmul.bf16.gmra.mxu0 %v5392
      %v6425 = vpop.f32.mrf.mxu0
      %v6426 = vadd.f32 %v6337, %v6425
      %v6427 = vpop.f32.mrf.mxu0
      %v6428 = vadd.f32 %v6339, %v6427
      %6429 = vmatmul.bf16.gmra.mxu0 %v5401
      %v6430 = vpop.f32.mrf.mxu0
      %v6431 = vadd.f32 %v6342, %v6430
      %v6432 = vpop.f32.mrf.mxu0
      %v6433 = vadd.f32 %v6344, %v6432
      %6434 = vmatmul.bf16.gmra.mxu0 %v5410
      %v6435 = vpop.f32.mrf.mxu0
      %v6436 = vadd.f32 %v6347, %v6435
      %v6437 = vpop.f32.mrf.mxu0
      %v6438 = vadd.f32 %v6349, %v6437
      %6439 = vmatmul.bf16.gmra.mxu0 %v5419
      %v6440 = vpop.f32.mrf.mxu0
      %v6441 = vadd.f32 %v6352, %v6440
      %v6442 = vpop.f32.mrf.mxu0
      %v6443 = vadd.f32 %v6354, %v6442
      %6444 = vdwg.mxu0
      %6445 = vmatpush.bf16.msra.mxu0 %v5903
      %6446 = vmatpush.bf16.msra.mxu0 %v5902
      %6447 = vmatpush.bf16.msra.mxu0 %v5901
      %6448 = vmatpush.bf16.msra.mxu0 %v5900
      %6449 = vmatpush.bf16.msra.mxu0 %v5899
      %6450 = vmatpush.bf16.msra.mxu0 %v5898
      %6451 = vmatpush.bf16.msra.mxu0 %v5897
      %6452 = vmatpush.bf16.msra.mxu0 %v5896
      %6453 = vmatmul.bf16.gmra.mxu0 %v5285
      %v6454 = vpop.f32.mrf.mxu0
      %v6455 = vadd.f32 %v6366, %v6454
      %v6456 = vpop.f32.mrf.mxu0
      %v6457 = vadd.f32 %v6368, %v6456
      %6458 = vmatmul.bf16.gmra.mxu0 %v5294
      %v6459 = vpop.f32.mrf.mxu0
      %v6460 = vadd.f32 %v6371, %v6459
      %v6461 = vpop.f32.mrf.mxu0
      %v6462 = vadd.f32 %v6373, %v6461
      %6463 = vmatmul.bf16.gmra.mxu0 %v5303
      %v6464 = vpop.f32.mrf.mxu0
      %v6465 = vadd.f32 %v6376, %v6464
      %v6466 = vpop.f32.mrf.mxu0
      %v6467 = vadd.f32 %v6378, %v6466
      %6468 = vmatmul.bf16.gmra.mxu0 %v5312
      %v6469 = vpop.f32.mrf.mxu0
      %v6470 = vadd.f32 %v6381, %v6469
      %v6471 = vpop.f32.mrf.mxu0
      %v6472 = vadd.f32 %v6383, %v6471
      %6473 = vmatmul.bf16.gmra.mxu0 %v5321
      %v6474 = vpop.f32.mrf.mxu0
      %v6475 = vadd.f32 %v6386, %v6474
      %v6476 = vpop.f32.mrf.mxu0
      %v6477 = vadd.f32 %v6388, %v6476
      %6478 = vmatmul.bf16.gmra.mxu0 %v5330
      %v6479 = vpop.f32.mrf.mxu0
      %v6480 = vadd.f32 %v6391, %v6479
      %v6481 = vpop.f32.mrf.mxu0
      %v6482 = vadd.f32 %v6393, %v6481
      %6483 = vmatmul.bf16.gmra.mxu0 %v5339
      %v6484 = vpop.f32.mrf.mxu0
      %v6485 = vadd.f32 %v6396, %v6484
      %v6486 = vpop.f32.mrf.mxu0
      %v6487 = vadd.f32 %v6398, %v6486
      %6488 = vmatmul.bf16.gmra.mxu0 %v5348
      %v6489 = vpop.f32.mrf.mxu0
      %v6490 = vadd.f32 %v6401, %v6489
      %v6491 = vpop.f32.mrf.mxu0
      %v6492 = vadd.f32 %v6403, %v6491
      %6493 = vmatmul.bf16.gmra.mxu0 %v5357
      %v6494 = vpop.f32.mrf.mxu0
      %v6495 = vadd.f32 %v6406, %v6494
      %v6496 = vpop.f32.mrf.mxu0
      %v6497 = vadd.f32 %v6408, %v6496
      %6498 = vmatmul.bf16.gmra.mxu0 %v5366
      %v6499 = vpop.f32.mrf.mxu0
      %v6500 = vadd.f32 %v6411, %v6499
      %v6501 = vpop.f32.mrf.mxu0
      %v6502 = vadd.f32 %v6413, %v6501
      %6503 = vmatmul.bf16.gmra.mxu0 %v5375
      %v6504 = vpop.f32.mrf.mxu0
      %v6505 = vadd.f32 %v6416, %v6504
      %v6506 = vpop.f32.mrf.mxu0
      %v6507 = vadd.f32 %v6418, %v6506
      %6508 = vmatmul.bf16.gmra.mxu0 %v5384
      %v6509 = vpop.f32.mrf.mxu0
      %v6510 = vadd.f32 %v6421, %v6509
      %v6511 = vpop.f32.mrf.mxu0
      %v6512 = vadd.f32 %v6423, %v6511
      %6513 = vmatmul.bf16.gmra.mxu0 %v5393
      %v6514 = vpop.f32.mrf.mxu0
      %v6515 = vadd.f32 %v6426, %v6514
      %v6516 = vpop.f32.mrf.mxu0
      %v6517 = vadd.f32 %v6428, %v6516
      %6518 = vmatmul.bf16.gmra.mxu0 %v5402
      %v6519 = vpop.f32.mrf.mxu0
      %v6520 = vadd.f32 %v6431, %v6519
      %v6521 = vpop.f32.mrf.mxu0
      %v6522 = vadd.f32 %v6433, %v6521
      %6523 = vmatmul.bf16.gmra.mxu0 %v5411
      %v6524 = vpop.f32.mrf.mxu0
      %v6525 = vadd.f32 %v6436, %v6524
      %v6526 = vpop.f32.mrf.mxu0
      %v6527 = vadd.f32 %v6438, %v6526
      %6528 = vmatmul.bf16.gmra.mxu0 %v5420
      %v6529 = vpop.f32.mrf.mxu0
      %v6530 = vadd.f32 %v6441, %v6529
      %v6531 = vpop.f32.mrf.mxu0
      %v6532 = vadd.f32 %v6443, %v6531
      %6533 = vdwg.mxu0
      %6534 = vmatpush.bf16.msra.mxu0 %v5911
      %6535 = vmatpush.bf16.msra.mxu0 %v5910
      %6536 = vmatpush.bf16.msra.mxu0 %v5909
      %6537 = vmatpush.bf16.msra.mxu0 %v5908
      %6538 = vmatpush.bf16.msra.mxu0 %v5907
      %6539 = vmatpush.bf16.msra.mxu0 %v5906
      %6540 = vmatpush.bf16.msra.mxu0 %v5905
      %6541 = vmatpush.bf16.msra.mxu0 %v5904
      %6542 = vmatmul.bf16.gmra.mxu0 %v5286
      %v6543 = vpop.f32.mrf.mxu0
      %v6544 = vadd.f32 %v6455, %v6543
      %v6545 = vpop.f32.mrf.mxu0
      %v6546 = vadd.f32 %v6457, %v6545
      %6547 = vmatmul.bf16.gmra.mxu0 %v5295
      %v6548 = vpop.f32.mrf.mxu0
      %v6549 = vadd.f32 %v6460, %v6548
      %v6550 = vpop.f32.mrf.mxu0
      %v6551 = vadd.f32 %v6462, %v6550
      %6552 = vmatmul.bf16.gmra.mxu0 %v5304
      %v6553 = vpop.f32.mrf.mxu0
      %v6554 = vadd.f32 %v6465, %v6553
      %v6555 = vpop.f32.mrf.mxu0
      %v6556 = vadd.f32 %v6467, %v6555
      %6557 = vmatmul.bf16.gmra.mxu0 %v5313
      %v6558 = vpop.f32.mrf.mxu0
      %v6559 = vadd.f32 %v6470, %v6558
      %v6560 = vpop.f32.mrf.mxu0
      %v6561 = vadd.f32 %v6472, %v6560
      %6562 = vmatmul.bf16.gmra.mxu0 %v5322
      %v6563 = vpop.f32.mrf.mxu0
      %v6564 = vadd.f32 %v6475, %v6563
      %v6565 = vpop.f32.mrf.mxu0
      %v6566 = vadd.f32 %v6477, %v6565
      %6567 = vmatmul.bf16.gmra.mxu0 %v5331
      %v6568 = vpop.f32.mrf.mxu0
      %v6569 = vadd.f32 %v6480, %v6568
      %v6570 = vpop.f32.mrf.mxu0
      %v6571 = vadd.f32 %v6482, %v6570
      %6572 = vmatmul.bf16.gmra.mxu0 %v5340
      %v6573 = vpop.f32.mrf.mxu0
      %v6574 = vadd.f32 %v6485, %v6573
      %v6575 = vpop.f32.mrf.mxu0
      %v6576 = vadd.f32 %v6487, %v6575
      %6577 = vmatmul.bf16.gmra.mxu0 %v5349
      %v6578 = vpop.f32.mrf.mxu0
      %v6579 = vadd.f32 %v6490, %v6578
      %v6580 = vpop.f32.mrf.mxu0
      %v6581 = vadd.f32 %v6492, %v6580
      %6582 = vmatmul.bf16.gmra.mxu0 %v5358
      %v6583 = vpop.f32.mrf.mxu0
      %v6584 = vadd.f32 %v6495, %v6583
      %v6585 = vpop.f32.mrf.mxu0
      %v6586 = vadd.f32 %v6497, %v6585
      %6587 = vmatmul.bf16.gmra.mxu0 %v5367
      %v6588 = vpop.f32.mrf.mxu0
      %v6589 = vadd.f32 %v6500, %v6588
      %v6590 = vpop.f32.mrf.mxu0
      %v6591 = vadd.f32 %v6502, %v6590
      %6592 = vmatmul.bf16.gmra.mxu0 %v5376
      %v6593 = vpop.f32.mrf.mxu0
      %v6594 = vadd.f32 %v6505, %v6593
      %v6595 = vpop.f32.mrf.mxu0
      %v6596 = vadd.f32 %v6507, %v6595
      %6597 = vmatmul.bf16.gmra.mxu0 %v5385
      %v6598 = vpop.f32.mrf.mxu0
      %v6599 = vadd.f32 %v6510, %v6598
      %v6600 = vpop.f32.mrf.mxu0
      %v6601 = vadd.f32 %v6512, %v6600
      %6602 = vmatmul.bf16.gmra.mxu0 %v5394
      %v6603 = vpop.f32.mrf.mxu0
      %v6604 = vadd.f32 %v6515, %v6603
      %v6605 = vpop.f32.mrf.mxu0
      %v6606 = vadd.f32 %v6517, %v6605
      %6607 = vmatmul.bf16.gmra.mxu0 %v5403
      %v6608 = vpop.f32.mrf.mxu0
      %v6609 = vadd.f32 %v6520, %v6608
      %v6610 = vpop.f32.mrf.mxu0
      %v6611 = vadd.f32 %v6522, %v6610
      %6612 = vmatmul.bf16.gmra.mxu0 %v5412
      %v6613 = vpop.f32.mrf.mxu0
      %v6614 = vadd.f32 %v6525, %v6613
      %v6615 = vpop.f32.mrf.mxu0
      %v6616 = vadd.f32 %v6527, %v6615
      %6617 = vmatmul.bf16.gmra.mxu0 %v5421
      %v6618 = vpop.f32.mrf.mxu0
      %v6619 = vadd.f32 %v6530, %v6618
      %v6620 = vpop.f32.mrf.mxu0
      %v6621 = vadd.f32 %v6532, %v6620
      %6622 = vdwg.mxu0
      %6623 = vmatpush.bf16.msra.mxu0 %v5919
      %6624 = vmatpush.bf16.msra.mxu0 %v5918
      %6625 = vmatpush.bf16.msra.mxu0 %v5917
      %6626 = vmatpush.bf16.msra.mxu0 %v5916
      %6627 = vmatpush.bf16.msra.mxu0 %v5915
      %6628 = vmatpush.bf16.msra.mxu0 %v5914
      %6629 = vmatpush.bf16.msra.mxu0 %v5913
      %6630 = vmatpush.bf16.msra.mxu0 %v5912
      %6631 = vmatmul.bf16.gmra.mxu0 %v5287
      %v6632 = vpop.f32.mrf.mxu0
      %v6633 = vadd.f32 %v6544, %v6632
      %v6634 = vpop.f32.mrf.mxu0
      %v6635 = vadd.f32 %v6546, %v6634
      %6636 = vmatmul.bf16.gmra.mxu0 %v5296
      %v6637 = vpop.f32.mrf.mxu0
      %v6638 = vadd.f32 %v6549, %v6637
      %v6639 = vpop.f32.mrf.mxu0
      %v6640 = vadd.f32 %v6551, %v6639
      %6641 = vmatmul.bf16.gmra.mxu0 %v5305
      %v6642 = vpop.f32.mrf.mxu0
      %v6643 = vadd.f32 %v6554, %v6642
      %v6644 = vpop.f32.mrf.mxu0
      %v6645 = vadd.f32 %v6556, %v6644
      %6646 = vmatmul.bf16.gmra.mxu0 %v5314
      %v6647 = vpop.f32.mrf.mxu0
      %v6648 = vadd.f32 %v6559, %v6647
      %v6649 = vpop.f32.mrf.mxu0
      %v6650 = vadd.f32 %v6561, %v6649
      %6651 = vmatmul.bf16.gmra.mxu0 %v5323
      %v6652 = vpop.f32.mrf.mxu0
      %v6653 = vadd.f32 %v6564, %v6652
      %v6654 = vpop.f32.mrf.mxu0
      %v6655 = vadd.f32 %v6566, %v6654
      %6656 = vmatmul.bf16.gmra.mxu0 %v5332
      %v6657 = vpop.f32.mrf.mxu0
      %v6658 = vadd.f32 %v6569, %v6657
      %v6659 = vpop.f32.mrf.mxu0
      %v6660 = vadd.f32 %v6571, %v6659
      %6661 = vmatmul.bf16.gmra.mxu0 %v5341
      %v6662 = vpop.f32.mrf.mxu0
      %v6663 = vadd.f32 %v6574, %v6662
      %v6664 = vpop.f32.mrf.mxu0
      %v6665 = vadd.f32 %v6576, %v6664
      %6666 = vmatmul.bf16.gmra.mxu0 %v5350
      %v6667 = vpop.f32.mrf.mxu0
      %v6668 = vadd.f32 %v6579, %v6667
      %v6669 = vpop.f32.mrf.mxu0
      %v6670 = vadd.f32 %v6581, %v6669
      %6671 = vmatmul.bf16.gmra.mxu0 %v5359
      %v6672 = vpop.f32.mrf.mxu0
      %v6673 = vadd.f32 %v6584, %v6672
      %v6674 = vpop.f32.mrf.mxu0
      %v6675 = vadd.f32 %v6586, %v6674
      %6676 = vmatmul.bf16.gmra.mxu0 %v5368
      %v6677 = vpop.f32.mrf.mxu0
      %v6678 = vadd.f32 %v6589, %v6677
      %v6679 = vpop.f32.mrf.mxu0
      %v6680 = vadd.f32 %v6591, %v6679
      %6681 = vmatmul.bf16.gmra.mxu0 %v5377
      %v6682 = vpop.f32.mrf.mxu0
      %v6683 = vadd.f32 %v6594, %v6682
      %v6684 = vpop.f32.mrf.mxu0
      %v6685 = vadd.f32 %v6596, %v6684
      %6686 = vmatmul.bf16.gmra.mxu0 %v5386
      %v6687 = vpop.f32.mrf.mxu0
      %v6688 = vadd.f32 %v6599, %v6687
      %v6689 = vpop.f32.mrf.mxu0
      %v6690 = vadd.f32 %v6601, %v6689
      %6691 = vmatmul.bf16.gmra.mxu0 %v5395
      %v6692 = vpop.f32.mrf.mxu0
      %v6693 = vadd.f32 %v6604, %v6692
      %v6694 = vpop.f32.mrf.mxu0
      %v6695 = vadd.f32 %v6606, %v6694
      %6696 = vmatmul.bf16.gmra.mxu0 %v5404
      %v6697 = vpop.f32.mrf.mxu0
      %v6698 = vadd.f32 %v6609, %v6697
      %v6699 = vpop.f32.mrf.mxu0
      %v6700 = vadd.f32 %v6611, %v6699
      %6701 = vmatmul.bf16.gmra.mxu0 %v5413
      %v6702 = vpop.f32.mrf.mxu0
      %v6703 = vadd.f32 %v6614, %v6702
      %v6704 = vpop.f32.mrf.mxu0
      %v6705 = vadd.f32 %v6616, %v6704
      %6706 = vmatmul.bf16.gmra.mxu0 %v5422
      %v6707 = vpop.f32.mrf.mxu0
      %v6708 = vadd.f32 %v6619, %v6707
      %v6709 = vpop.f32.mrf.mxu0
      %v6710 = vadd.f32 %v6621, %v6709
      %6711 = vdwg.mxu0
      %6712 = vmatpush.bf16.msra.mxu0 %v5927
      %6713 = vmatpush.bf16.msra.mxu0 %v5926
      %6714 = vmatpush.bf16.msra.mxu0 %v5925
      %6715 = vmatpush.bf16.msra.mxu0 %v5924
      %6716 = vmatpush.bf16.msra.mxu0 %v5923
      %6717 = vmatpush.bf16.msra.mxu0 %v5922
      %6718 = vmatpush.bf16.msra.mxu0 %v5921
      %6719 = vmatpush.bf16.msra.mxu0 %v5920
      %6720 = vmatmul.bf16.gmra.mxu0 %v5288
      %v6721 = vpop.f32.mrf.mxu0
      %v6722 = vadd.f32 %v6633, %v6721
      %v6723 = vpop.f32.mrf.mxu0
      %v6724 = vadd.f32 %v6635, %v6723
      %6725 = vmatmul.bf16.gmra.mxu0 %v5297
      %v6726 = vpop.f32.mrf.mxu0
      %v6727 = vadd.f32 %v6638, %v6726
      %v6728 = vpop.f32.mrf.mxu0
      %v6729 = vadd.f32 %v6640, %v6728
      %6730 = vmatmul.bf16.gmra.mxu0 %v5306
      %v6731 = vpop.f32.mrf.mxu0
      %v6732 = vadd.f32 %v6643, %v6731
      %v6733 = vpop.f32.mrf.mxu0
      %v6734 = vadd.f32 %v6645, %v6733
      %6735 = vmatmul.bf16.gmra.mxu0 %v5315
      %v6736 = vpop.f32.mrf.mxu0
      %v6737 = vadd.f32 %v6648, %v6736
      %v6738 = vpop.f32.mrf.mxu0
      %v6739 = vadd.f32 %v6650, %v6738
      %6740 = vmatmul.bf16.gmra.mxu0 %v5324
      %v6741 = vpop.f32.mrf.mxu0
      %v6742 = vadd.f32 %v6653, %v6741
      %v6743 = vpop.f32.mrf.mxu0
      %v6744 = vadd.f32 %v6655, %v6743
      %6745 = vmatmul.bf16.gmra.mxu0 %v5333
      %v6746 = vpop.f32.mrf.mxu0
      %v6747 = vadd.f32 %v6658, %v6746
      %v6748 = vpop.f32.mrf.mxu0
      %v6749 = vadd.f32 %v6660, %v6748
      %6750 = vmatmul.bf16.gmra.mxu0 %v5342
      %v6751 = vpop.f32.mrf.mxu0
      %v6752 = vadd.f32 %v6663, %v6751
      %v6753 = vpop.f32.mrf.mxu0
      %v6754 = vadd.f32 %v6665, %v6753
      %6755 = vmatmul.bf16.gmra.mxu0 %v5351
      %v6756 = vpop.f32.mrf.mxu0
      %v6757 = vadd.f32 %v6668, %v6756
      %v6758 = vpop.f32.mrf.mxu0
      %v6759 = vadd.f32 %v6670, %v6758
      %6760 = vmatmul.bf16.gmra.mxu0 %v5360
      %v6761 = vpop.f32.mrf.mxu0
      %v6762 = vadd.f32 %v6673, %v6761
      %v6763 = vpop.f32.mrf.mxu0
      %v6764 = vadd.f32 %v6675, %v6763
      %6765 = vmatmul.bf16.gmra.mxu0 %v5369
      %v6766 = vpop.f32.mrf.mxu0
      %v6767 = vadd.f32 %v6678, %v6766
      %v6768 = vpop.f32.mrf.mxu0
      %v6769 = vadd.f32 %v6680, %v6768
      %6770 = vmatmul.bf16.gmra.mxu0 %v5378
      %v6771 = vpop.f32.mrf.mxu0
      %v6772 = vadd.f32 %v6683, %v6771
      %v6773 = vpop.f32.mrf.mxu0
      %v6774 = vadd.f32 %v6685, %v6773
      %6775 = vmatmul.bf16.gmra.mxu0 %v5387
      %v6776 = vpop.f32.mrf.mxu0
      %v6777 = vadd.f32 %v6688, %v6776
      %v6778 = vpop.f32.mrf.mxu0
      %v6779 = vadd.f32 %v6690, %v6778
      %6780 = vmatmul.bf16.gmra.mxu0 %v5396
      %v6781 = vpop.f32.mrf.mxu0
      %v6782 = vadd.f32 %v6693, %v6781
      %v6783 = vpop.f32.mrf.mxu0
      %v6784 = vadd.f32 %v6695, %v6783
      %6785 = vmatmul.bf16.gmra.mxu0 %v5405
      %v6786 = vpop.f32.mrf.mxu0
      %v6787 = vadd.f32 %v6698, %v6786
      %v6788 = vpop.f32.mrf.mxu0
      %v6789 = vadd.f32 %v6700, %v6788
      %6790 = vmatmul.bf16.gmra.mxu0 %v5414
      %v6791 = vpop.f32.mrf.mxu0
      %v6792 = vadd.f32 %v6703, %v6791
      %v6793 = vpop.f32.mrf.mxu0
      %v6794 = vadd.f32 %v6705, %v6793
      %6795 = vmatmul.bf16.gmra.mxu0 %v5423
      %v6796 = vpop.f32.mrf.mxu0
      %v6797 = vadd.f32 %v6708, %v6796
      %v6798 = vpop.f32.mrf.mxu0
      %v6799 = vadd.f32 %v6710, %v6798
      %6800 = vdwg.mxu0
      %v6801 = vadd.f32 %v6722, %v4796
      %v6802 = vadd.f32 %v6724, %v4797
      %v6803 = vadd.f32 %v6727, %v4798
      %v6804 = vadd.f32 %v6729, %v4799
      %v6805 = vadd.f32 %v6732, %v4800
      %v6806 = vadd.f32 %v6734, %v4801
      %v6807 = vadd.f32 %v6737, %v4802
      %v6808 = vadd.f32 %v6739, %v4803
      %v6809 = vadd.f32 %v6742, %v4804
      %v6810 = vadd.f32 %v6744, %v4805
      %v6811 = vadd.f32 %v6747, %v4806
      %v6812 = vadd.f32 %v6749, %v4807
      %v6813 = vadd.f32 %v6752, %v4808
      %v6814 = vadd.f32 %v6754, %v4809
      %v6815 = vadd.f32 %v6757, %v4810
      %v6816 = vadd.f32 %v6759, %v4811
      %v6817 = vadd.f32 %v6762, %v4812
      %v6818 = vadd.f32 %v6764, %v4813
      %v6819 = vadd.f32 %v6767, %v4814
      %v6820 = vadd.f32 %v6769, %v4815
      %v6821 = vadd.f32 %v6772, %v4816
      %v6822 = vadd.f32 %v6774, %v4817
      %v6823 = vadd.f32 %v6777, %v4818
      %v6824 = vadd.f32 %v6779, %v4819
      %v6825 = vadd.f32 %v6782, %v4820
      %v6826 = vadd.f32 %v6784, %v4821
      %v6827 = vadd.f32 %v6787, %v4822
      %v6828 = vadd.f32 %v6789, %v4823
      %v6829 = vadd.f32 %v6792, %v4824
      %v6830 = vadd.f32 %v6794, %v4825
      %v6831 = vadd.f32 %v6797, %v4826
      %v6832 = vadd.f32 %v6799, %v4827
      %v6833 = vmax.f32 %v6801, 0.0
      %v6834 = vmax.f32 %v6802, 0.0
      %v6835 = vmax.f32 %v6803, 0.0
      %v6836 = vmax.f32 %v6804, 0.0
      %v6837 = vmax.f32 %v6805, 0.0
      %v6838 = vmax.f32 %v6806, 0.0
      %v6839 = vmax.f32 %v6807, 0.0
      %v6840 = vmax.f32 %v6808, 0.0
      %v6841 = vmax.f32 %v6809, 0.0
      %v6842 = vmax.f32 %v6810, 0.0
      %v6843 = vmax.f32 %v6811, 0.0
      %v6844 = vmax.f32 %v6812, 0.0
      %v6845 = vmax.f32 %v6813, 0.0
      %v6846 = vmax.f32 %v6814, 0.0
      %v6847 = vmax.f32 %v6815, 0.0
      %v6848 = vmax.f32 %v6816, 0.0
      %v6849 = vmax.f32 %v6817, 0.0
      %v6850 = vmax.f32 %v6818, 0.0
      %v6851 = vmax.f32 %v6819, 0.0
      %v6852 = vmax.f32 %v6820, 0.0
      %v6853 = vmax.f32 %v6821, 0.0
      %v6854 = vmax.f32 %v6822, 0.0
      %v6855 = vmax.f32 %v6823, 0.0
      %v6856 = vmax.f32 %v6824, 0.0
      %v6857 = vmax.f32 %v6825, 0.0
      %v6858 = vmax.f32 %v6826, 0.0
      %v6859 = vmax.f32 %v6827, 0.0
      %v6860 = vmax.f32 %v6828, 0.0
      %v6861 = vmax.f32 %v6829, 0.0
      %v6862 = vmax.f32 %v6830, 0.0
      %v6863 = vmax.f32 %v6831, 0.0
      %v6864 = vmax.f32 %v6832, 0.0
      %v6865 = vpack.c.bf16 %v6833, %v6833
      %v6866 = vpack.c.bf16 %v6834, %v6834
      %v6867 = vpack.c.bf16 %v6835, %v6835
      %v6868 = vpack.c.bf16 %v6836, %v6836
      %v6869 = vpack.c.bf16 %v6837, %v6837
      %v6870 = vpack.c.bf16 %v6838, %v6838
      %v6871 = vpack.c.bf16 %v6839, %v6839
      %v6872 = vpack.c.bf16 %v6840, %v6840
      %v6873 = vpack.c.bf16 %v6841, %v6841
      %v6874 = vpack.c.bf16 %v6842, %v6842
      %v6875 = vpack.c.bf16 %v6843, %v6843
      %v6876 = vpack.c.bf16 %v6844, %v6844
      %v6877 = vpack.c.bf16 %v6845, %v6845
      %v6878 = vpack.c.bf16 %v6846, %v6846
      %v6879 = vpack.c.bf16 %v6847, %v6847
      %v6880 = vpack.c.bf16 %v6848, %v6848
      %v6881 = vpack.c.bf16 %v6849, %v6849
      %v6882 = vpack.c.bf16 %v6850, %v6850
      %v6883 = vpack.c.bf16 %v6851, %v6851
      %v6884 = vpack.c.bf16 %v6852, %v6852
      %v6885 = vpack.c.bf16 %v6853, %v6853
      %v6886 = vpack.c.bf16 %v6854, %v6854
      %v6887 = vpack.c.bf16 %v6855, %v6855
      %v6888 = vpack.c.bf16 %v6856, %v6856
      %v6889 = vpack.c.bf16 %v6857, %v6857
      %v6890 = vpack.c.bf16 %v6858, %v6858
      %v6891 = vpack.c.bf16 %v6859, %v6859
      %v6892 = vpack.c.bf16 %v6860, %v6860
      %v6893 = vpack.c.bf16 %v6861, %v6861
      %v6894 = vpack.c.bf16 %v6862, %v6862
      %v6895 = vpack.c.bf16 %v6863, %v6863
      %v6896 = vpack.c.bf16 %v6864, %v6864
      %6897 = vst [vmem:[%s283] sm:$0xf] %v6865
      %6898 = vst [vmem:[%s283 + $0x4] sm:$0xf] %v6866
      %6899 = vst [vmem:[%s283 + $0x8] sm:$0xf] %v6867
      %6900 = vst [vmem:[%s283 + $0xc] sm:$0xf] %v6868
      %6901 = vst [vmem:[%s283 + $0x10] sm:$0xf] %v6869
      %6902 = vst [vmem:[%s283 + $0x14] sm:$0xf] %v6870
      %6903 = vst [vmem:[%s283 + $0x18] sm:$0xf] %v6871
      %6904 = vst [vmem:[%s283 + $0x1c] sm:$0xf] %v6872
      %6905 = vst [vmem:[%s283 + $0x20] sm:$0xf] %v6873
      %6906 = vst [vmem:[%s283 + $0x24] sm:$0xf] %v6874
      %6907 = vst [vmem:[%s283 + $0x28] sm:$0xf] %v6875
      %6908 = vst [vmem:[%s283 + $0x2c] sm:$0xf] %v6876
      %6909 = vst [vmem:[%s283 + $0x30] sm:$0xf] %v6877
      %6910 = vst [vmem:[%s283 + $0x34] sm:$0xf] %v6878
      %6911 = vst [vmem:[%s283 + $0x38] sm:$0xf] %v6879
      %6912 = vst [vmem:[%s283 + $0x3c] sm:$0xf] %v6880
      %6913 = vst [vmem:[%s283 + $0x40] sm:$0xf] %v6881
      %6914 = vst [vmem:[%s283 + $0x44] sm:$0xf] %v6882
      %6915 = vst [vmem:[%s283 + $0x48] sm:$0xf] %v6883
      %6916 = vst [vmem:[%s283 + $0x4c] sm:$0xf] %v6884
      %6917 = vst [vmem:[%s283 + $0x50] sm:$0xf] %v6885
      %6918 = vst [vmem:[%s283 + $0x54] sm:$0xf] %v6886
      %6919 = vst [vmem:[%s283 + $0x58] sm:$0xf] %v6887
      %6920 = vst [vmem:[%s283 + $0x5c] sm:$0xf] %v6888
      %6921 = vst [vmem:[%s283 + $0x60] sm:$0xf] %v6889
      %6922 = vst [vmem:[%s283 + $0x64] sm:$0xf] %v6890
      %6923 = vst [vmem:[%s283 + $0x68] sm:$0xf] %v6891
      %6924 = vst [vmem:[%s283 + $0x6c] sm:$0xf] %v6892
      %6925 = vst [vmem:[%s283 + $0x70] sm:$0xf] %v6893
      %6926 = vst [vmem:[%s283 + $0x74] sm:$0xf] %v6894
      %6927 = vst [vmem:[%s283 + $0x78] sm:$0xf] %v6895
      %6928 = vst [vmem:[%s283 + $0x7c] sm:$0xf] %v6896
      %s6929 = smul.u32 4, %s17
      %p6930 = scmp.lt.s32.totalorder %s6929, 7
      %s6931 = scalar_select %p6930, %s6929, 7
      %s6932 = smul.addr %s6931, 8
      %s6933 = smul.addr %s6932, 4
      %s6934 = scalar_lea.vmem %s6, %s6933
      // Predicated region
      $region45: #{maddness_basic_block.1} parent=43 // pred_check
        %p6935 = pneg %p171
      $region46: #{maddness_basic_block.1} parent=43 // pred_check_branch
        %6937 = sbr.rel (%p6935) target = $region48
      $region47: #{maddness_basic_block.1} parent=43 // pred_region
        %s6938 = smul.u32 4, %s17
      $region48: #{maddness_basic_block.1} parent=43 // pred_fallthru
        _
    $region44: #{maddness_basic_block.1} parent=5 // pred_fallthru
      _
    %p6939 = scmp.le.s32.totalorder 2, %s12
    // Predicated region
    $region49: #{maddness_basic_block.1} parent=5 // pred_check
      %p6940 = pneg %p6939
    $region50: #{maddness_basic_block.1} parent=5 // pred_check_branch
      %6942 = sbr.rel (%p6940) target = $region52
    $region51: #{maddness_basic_block.1} parent=5 // pred_region
      %s6943 = ssub.s32 %s12, 2
      // Predicated region
      $region53: #{maddness_basic_block.1} parent=51 // pred_check
        %p6944 = pneg %p177
      $region54: #{maddness_basic_block.1} parent=51 // pred_check_branch
        %6946 = sbr.rel (%p6944) target = $region56
      $region55: #{maddness_basic_block.1} parent=51 // pred_region
        %s6947 = smul.u32 4, %s18
        %p6948 = scmp.lt.s32.totalorder %s6947, 7
        %s6949 = scalar_select %p6948, %s6947, 7
        %s6950 = smul.addr %s6949, 8
        %s6951 = smul.addr %s6950, 4
        %s6952 = scalar_lea.vmem %s6, %s6951
      $region56: #{maddness_basic_block.1} parent=51 // pred_fallthru
        _
    $region52: #{maddness_basic_block.1} parent=5 // pred_fallthru
      _
  $region6: #{maddness_basic_block.1} parent=0 // loop_footer
    %s16 = sadd.s32 1, %s12
  $region7: #{maddness_basic_block.1} parent=0 // loop_footer_branch
    %11 = sbr.rel target = $region3
  $region8: #{maddness_basic_block.1} parent=0 // loop_exit
    _

</llo_original>
